<compile_context>
chip_gen: v5e
topology: v5e:2x2
jax: 0.10.0
libtpu: 0.0.40
codegen_flags: <defaults>
</compile_context>

<pallas_src>
import jax
import jax.numpy as jnp
from jax import lax
from jax.experimental import pallas as pl
from jax.experimental.pallas import tpu as pltpu

NEG_SLOPE = 0.2  # LeakyReLU(0.2)


def _leaky(v):
    return jnp.maximum(v, NEG_SLOPE * v)


# ----------------------------------------------------------------------------
# Static stage plan
# ----------------------------------------------------------------------------
def _build_stages(H0, W0, C0, n_res, n_up, out_dim):
    stages = []
    H, W, C = H0, W0, C0
    for _ in range(n_res):
        stages.append(dict(kind="res", K=3, pad=1, H=H, W=W, Cin=C, Cout=C))
    for _ in range(n_up):
        H, W = 2 * H, 2 * W                      # conv runs on the upsampled grid
        stages.append(dict(kind="up", K=5, pad=2, H=H, W=W, Cin=C, Cout=C // 2))
        C //= 2
    stages.append(dict(kind="final", K=7, pad=3, H=H, W=W, Cin=C, Cout=out_dim))
    return stages


# ----------------------------------------------------------------------------
# Host-side constant builders (masks / upsample matrix / weight layout)
# ----------------------------------------------------------------------------
def _conv_mask(H, W, K, p, dtype=jnp.bfloat16):
    """(K*K, H*W) 0/1 mask: is tap (kh,kw) inside the image at output (h,w)?"""
    c = jnp.arange(H * W)
    h, w = c // W, c % W
    rows = []
    for t in range(K * K):
        kh, kw = divmod(t, K)
        valid = ((h + kh - p >= 0) & (h + kh - p < H) &
                 (w + kw - p >= 0) & (w + kw - p < W))
        rows.append(valid)
    return jnp.stack(rows).astype(dtype)


def _upsample_matrix(Hs, Ws, dtype=jnp.bfloat16):
    """(Hs*Ws, 4*Hs*Ws) 0/1 matrix: x_up = x @ U is nearest 2x upsampling."""
    H, W = 2 * Hs, 2 * Ws
    c = jnp.arange(H * W)
    src = (c // W // 2) * Ws + (c % W) // 2
    return (jnp.arange(Hs * Ws)[:, None] == src[None, :]).astype(dtype)


def _to_tap_layout(w_oihw, dtype=jnp.bfloat16):
    """PyTorch (Cout,Cin,KH,KW) -> tap-major (KH*KW, Cout, Cin) bf16."""
    Cout, Cin, KH, KW = w_oihw.shape
    return (jnp.transpose(w_oihw, (2, 3, 0, 1))
            .reshape(KH * KW, Cout, Cin).astype(dtype))


# ----------------------------------------------------------------------------
# Fused decoder kernel (one grid point per batch element)
# ----------------------------------------------------------------------------
def _make_decoder_kernel(stages, out_dtype):

    def stage_arity(st):
        if st["kind"] == "res":
            return 5                       # w1, b1, w2, b2, mask
        if st["kind"] == "up":
            return 4                       # w, b, mask, U
        return 3                           # w, b, mask

    def conv(x, w_ref, b_ref, m_ref, H, W, K, p, Cin, Cout):
        """Zero-padded KxK conv + bias + LeakyReLU on a (Cin, H*W) activation."""
        HW = H * W
        ext = p * W + p                                    # max |tap shift|
        xb = x.astype(jnp.bfloat16)
        zpad = jnp.zeros((Cin, ext), jnp.bfloat16)
        xe = jnp.concatenate([zpad, xb, zpad], axis=1)     # (Cin, HW + 2*ext)
        acc = jnp.zeros((Cout, HW), jnp.float32)
        for t in range(K * K):
            kh, kw = divmod(t, K)
            off = (kh - p) * W + (kw - p) + ext            # static, in [0, 2*ext]
            xs = xe[:, off:off + HW]                       # shifted window (lane slice)
            xs = xs * m_ref[t:t + 1, :]                    # zero the padding taps
            acc = acc + jnp.dot(w_ref[t], xs,
                                preferred_element_type=jnp.float32)
        return _leaky(acc + b_ref[...])                    # (Cout, HW) f32

    def kernel(*refs):
        idx = 0
        x_ref = refs[idx]; idx += 1
        stage_refs = []
        for st in stages:
            n = stage_arity(st)
            stage_refs.append(refs[idx:idx + n]); idx += n
        o_ref = refs[idx]

        cur = x_ref[0].astype(jnp.float32)                 # (C0, H0*W0)

        for st, sr in zip(stages, stage_refs):
            H, W, K, p = st["H"], st["W"], st["K"], st["pad"]
            Cin, Cout = st["Cin"], st["Cout"]
            if st["kind"] == "res":
                w1, b1, w2, b2, m = sr
                h1 = conv(cur, w1, b1, m, H, W, K, p, Cin, Cout)
                h2 = conv(h1, w2, b2, m, H, W, K, p, Cin, Cout)
                cur = cur + h2                             # residual add (f32)
            elif st["kind"] == "up":
                w, b, m, u = sr
                # nearest 2x upsample as one lane-dense MXU matmul
                x_up = jnp.dot(cur.astype(jnp.bfloat16), u[...],
                               preferred_element_type=jnp.float32)
                cur = conv(x_up, w, b, m, H, W, K, p, Cin, Cout)
            else:                                          # final 7x7 conv
                w, b, m = sr
                y = conv(cur, w, b, m, H, W, K, p, Cin, Cout)   # (Cout, HW)
                o_ref[0] = y.astype(out_dtype)             # lane-dense store

    return kernel


# ----------------------------------------------------------------------------
# Wrapper: one pallas_call for the whole SubDecoder, grid parallel over batch
# ----------------------------------------------------------------------------
def decoder_apply(params, content_nchw):
    B, C0, H0, W0 = content_nchw.shape
    n_res = len(params["res"])
    n_up = len(params["up"])
    out_dim = params["final"][0].shape[1]                  # (K*K, Cout, Cin)
    stages = _build_stages(H0, W0, C0, n_res, n_up, out_dim)

    # flatten per-stage constants in the exact order the kernel unpacks them
    flat = []
    ri = ui = 0
    for st in stages:
        H, W, K, p = st["H"], st["W"], st["K"], st["pad"]
        mask = _conv_mask(H, W, K, p)
        if st["kind"] == "res":
            (w1, b1), (w2, b2) = params["res"][ri]; ri += 1
            flat += [w1, b1, w2, b2, mask]
        elif st["kind"] == "up":
            w, b = params["up"][ui]; ui += 1
            flat += [w, b, mask, _upsample_matrix(H // 2, W // 2)]
        else:
            w, b = params["final"]
            flat += [w, b, mask]

    Hf, Wf = stages[-1]["H"], stages[-1]["W"]
    x = content_nchw.reshape(B, C0, H0 * W0)               # free reshape (NCHW)
    out_shape = jax.ShapeDtypeStruct((B, out_dim, Hf * Wf), content_nchw.dtype)

    def const_spec(a):
        nd = a.ndim
        return pl.BlockSpec(a.shape, lambda b, nd=nd: (0,) * nd)

    in_specs = ([pl.BlockSpec((1, C0, H0 * W0), lambda b: (b, 0, 0))]
                + [const_spec(a) for a in flat])
    out_specs = pl.BlockSpec((1, out_dim, Hf * Wf), lambda b: (b, 0, 0))

    kernel = _make_decoder_kernel(stages, out_shape.dtype)
    out = pl.pallas_call(
        kernel,
        out_shape=out_shape,
        grid=(B,),                                          # parallel over batch
        in_specs=in_specs,
        out_specs=out_specs,
        compiler_params=pltpu.CompilerParams(
            dimension_semantics=("parallel",),              # v7x: 2 TCs used
            vmem_limit_bytes=32 * 1024 * 1024),
    )(x, *flat)
    return out.reshape(B, out_dim, Hf, Wf)                  # free reshape -> NCHW


# ----------------------------------------------------------------------------
# Parameters (synthetic). Raw weights are PyTorch OIHW (for the reference);
# packed weights are tap-major bf16 for the kernel.
# ----------------------------------------------------------------------------
def init_decoder_params(key, input_dim, hp):
    mlp_dim, style_dim = hp["mlp_dim"], hp["style_dim"]
    n_up, n_res = hp["n_downsample"], hp["n_res"]

    def conv_init(k, cin, cout, ks):
        k1, k2 = jax.random.split(k)
        w = jax.random.normal(k1, (cout, cin, ks, ks), jnp.float32) * 0.1
        b = jax.random.normal(k2, (cout,), jnp.float32) * 0.1
        return w, b

    def lin_init(k, din, dout):
        k1, k2 = jax.random.split(k)
        return (jax.random.normal(k1, (din, dout), jnp.float32) * 0.1,
                jax.random.normal(k2, (dout,), jnp.float32) * 0.1)

    keys = iter(jax.random.split(key, 64))
    raw = {"res": [], "up": []}
    d = mlp_dim
    for _ in range(n_res):
        raw["res"].append((conv_init(next(keys), d, d, 3),
                           conv_init(next(keys), d, d, 3)))
    for _ in range(n_up):
        raw["up"].append(conv_init(next(keys), d, d // 2, 5))
        d //= 2
    raw["final"] = conv_init(next(keys), d, input_dim, 7)

    def pack(wb):
        w, b = wb
        return _to_tap_layout(w), b.reshape(-1, 1).astype(jnp.float32)

    packed = {
        "res": [(pack(c1), pack(c2)) for c1, c2 in raw["res"]],
        "up": [pack(c) for c in raw["up"]],
        "final": pack(raw["final"]),
        # Style-MLP weights kept only for structural fidelity: SubDecoder has no
        # AdaptiveInstanceNorm2d (norm hardcoded to None) -> num_adain == 0 and
        # the MLP output is never consumed.
        "mlp": [lin_init(next(keys), style_dim, mlp_dim),
                lin_init(next(keys), mlp_dim, mlp_dim)],
    }
    return raw, packed


@jax.jit
def decoder_forward(params, content_nchw, style):
    # TODO(synk): the style MLP feeds assign_adain_params, but there are zero
    # AdaIN modules (get_num_adain_params()==0), so its output is dead code and
    # is intentionally not computed -- the returned images are identical.
    del style
    return decoder_apply(params, content_nchw)


# ----------------------------------------------------------------------------
# Pure-JAX reference (f32), used only for a numerical self-check.
# ----------------------------------------------------------------------------
def _reference_forward(raw, content):
    def conv(x, w, b, p):
        y = lax.conv_general_dilated(x, w, (1, 1), [(p, p), (p, p)],
                                     dimension_numbers=("NCHW", "OIHW", "NCHW"))
        return _leaky(y + b[None, :, None, None])
    x = content
    for (w1, b1), (w2, b2) in raw["res"]:
        x = x + conv(conv(x, w1, b1, 1), w2, b2, 1)
    for (w, b) in raw["up"]:
        x = jnp.repeat(jnp.repeat(x, 2, axis=2), 2, axis=3)   # nearest 2x
        x = conv(x, w, b, 2)
    wf, bf = raw["final"]
    return conv(x, wf, bf, 3)


# ----------------------------------------------------------------------------
if __name__ == "__main__":
    hp = dict(dim=16, style_dim=8, n_downsample=1, n_res=1,
              activ="relu", pad_type="zero", mlp_dim=16)
    input_dim = 3  # decoder output channels

    key = jax.random.PRNGKey(0)
    kp, kc, ks = jax.random.split(key, 3)
    raw_params, params = init_decoder_params(kp, input_dim, hp)

    # content has mlp_dim channels (the SubDecoder's starting width), NCHW
    content = jax.random.normal(kc, (2, hp["mlp_dim"], 8, 8), jnp.float32)
    style = jax.random.normal(ks, (2, hp["style_dim"]), jnp.float32)

    images = decoder_forward(params, content, style)
    jax.block_until_ready(images)
    assert images.shape == (2, input_dim, 16, 16), images.shape
    assert images.dtype == jnp.float32

    # numerical self-check vs pure-JAX f32 reference (bf16-matmul tolerance)
    ref = _reference_forward(raw_params, content)
    rel = jnp.linalg.norm(images - ref) / jnp.linalg.norm(ref)
    assert float(rel) < 0.05, f"relative error too large: {float(rel)}"

    print("KERNEL_OK")
</pallas_src>

<mosaic_0001>
module attributes {stable_mosaic.version = 11 : i64} {
  func.func @kernel(%arg0: i32, %arg1: memref<1x16x64xf32, #tpu.memory_space<vmem>>, %arg2: memref<9x16x16xbf16, #tpu.memory_space<vmem>>, %arg3: memref<16x1xf32, #tpu.memory_space<vmem>>, %arg4: memref<9x16x16xbf16, #tpu.memory_space<vmem>>, %arg5: memref<16x1xf32, #tpu.memory_space<vmem>>, %arg6: memref<9x64xbf16, #tpu.memory_space<vmem>>, %arg7: memref<25x8x16xbf16, #tpu.memory_space<vmem>>, %arg8: memref<8x1xf32, #tpu.memory_space<vmem>>, %arg9: memref<25x256xbf16, #tpu.memory_space<vmem>>, %arg10: memref<64x256xbf16, #tpu.memory_space<vmem>>, %arg11: memref<49x3x8xbf16, #tpu.memory_space<vmem>>, %arg12: memref<3x1xf32, #tpu.memory_space<vmem>>, %arg13: memref<49x256xbf16, #tpu.memory_space<vmem>>, %arg14: memref<1x3x256xf32, #tpu.memory_space<vmem>>) attributes {dimension_semantics = [#tpu.dimension_semantics<parallel>], iteration_bounds = array<i64: 2>, scalar_prefetch = 0 : i64, scratch_operands = 0 : i64, tpu.core_type = #tpu.core_type<tc>, window_params = [{transform_indices = @transform_0, window_bounds = array<i64: 1, 16, 64>}, {pipeline_mode = #tpu.pipeline_mode<synchronous>, transform_indices = @transform_1, window_bounds = array<i64: 9, 16, 16>}, {pipeline_mode = #tpu.pipeline_mode<synchronous>, transform_indices = @transform_2, window_bounds = array<i64: 16, 1>}, {pipeline_mode = #tpu.pipeline_mode<synchronous>, transform_indices = @transform_3, window_bounds = array<i64: 9, 16, 16>}, {pipeline_mode = #tpu.pipeline_mode<synchronous>, transform_indices = @transform_4, window_bounds = array<i64: 16, 1>}, {pipeline_mode = #tpu.pipeline_mode<synchronous>, transform_indices = @transform_5, window_bounds = array<i64: 9, 64>}, {pipeline_mode = #tpu.pipeline_mode<synchronous>, transform_indices = @transform_6, window_bounds = array<i64: 25, 8, 16>}, {pipeline_mode = #tpu.pipeline_mode<synchronous>, transform_indices = @transform_7, window_bounds = array<i64: 8, 1>}, {pipeline_mode = #tpu.pipeline_mode<synchronous>, transform_indices = @transform_8, window_bounds = array<i64: 25, 256>}, {pipeline_mode = #tpu.pipeline_mode<synchronous>, transform_indices = @transform_9, window_bounds = array<i64: 64, 256>}, {pipeline_mode = #tpu.pipeline_mode<synchronous>, transform_indices = @transform_10, window_bounds = array<i64: 49, 3, 8>}, {pipeline_mode = #tpu.pipeline_mode<synchronous>, transform_indices = @transform_11, window_bounds = array<i64: 3, 1>}, {pipeline_mode = #tpu.pipeline_mode<synchronous>, transform_indices = @transform_12, window_bounds = array<i64: 49, 256>}, {transform_indices = @transform_13, window_bounds = array<i64: 1, 3, 256>}]} {
    %c0 = arith.constant 0 : index
    %c0_0 = arith.constant 0 : index
    %c0_1 = arith.constant 0 : index
    %0 = vector.load %arg1[%c0, %c0_0, %c0_1] : memref<1x16x64xf32, #tpu.memory_space<vmem>>, vector<1x16x64xf32>
    %1 = vector.shape_cast %0 : vector<1x16x64xf32> to vector<16x64xf32>
    %2 = arith.truncf %1 : vector<16x64xf32> to vector<16x64xbf16>
    %cst = arith.constant 0.000000e+00 : bf16
    %3 = vector.broadcast %cst : bf16 to vector<16x9xbf16>
    %4 = tpu.concatenate %3, %2, %3 in 1 : vector<16x9xbf16>, vector<16x64xbf16>, vector<16x9xbf16> -> vector<16x82xbf16>
    %cst_2 = arith.constant 0.000000e+00 : f32
    %5 = vector.broadcast %cst_2 : f32 to vector<16x64xf32>
    %6 = vector.extract_strided_slice %4 {offsets = [0, 0], sizes = [16, 64], strides = [1, 1]} : vector<16x82xbf16> to vector<16x64xbf16>
    %c0_3 = arith.constant 0 : index
    %c0_4 = arith.constant 0 : index
    %7 = vector.load %arg6[%c0_3, %c0_4] : memref<9x64xbf16, #tpu.memory_space<vmem>>, vector<1x64xbf16>
    %8 = vector.broadcast %7 : vector<1x64xbf16> to vector<16x64xbf16>
    %9 = arith.mulf %6, %8 : vector<16x64xbf16>
    %c0_5 = arith.constant 0 : index
    %c0_6 = arith.constant 0 : index
    %c0_7 = arith.constant 0 : index
    %10 = vector.load %arg2[%c0_5, %c0_6, %c0_7] : memref<9x16x16xbf16, #tpu.memory_space<vmem>>, vector<1x16x16xbf16>
    %11 = vector.shape_cast %10 : vector<1x16x16xbf16> to vector<16x16xbf16>
    %cst_8 = arith.constant dense<0.000000e+00> : vector<16x64xf32>
    %12 = tpu.matmul %11, %9, %cst_8 {dimension_numbers = #tpu.dot_dimension_numbers<[1], [0], [0], [1], [0, 0, 1, 1], [], []>} : vector<16x16xbf16>, vector<16x64xbf16>, vector<16x64xf32> -> vector<16x64xf32>
    %13 = arith.addf %5, %12 : vector<16x64xf32>
    %14 = vector.extract_strided_slice %4 {offsets = [0, 1], sizes = [16, 64], strides = [1, 1]} : vector<16x82xbf16> to vector<16x64xbf16>
    %c1 = arith.constant 1 : index
    %c0_9 = arith.constant 0 : index
    %15 = vector.load %arg6[%c1, %c0_9] : memref<9x64xbf16, #tpu.memory_space<vmem>>, vector<1x64xbf16>
    %16 = vector.broadcast %15 : vector<1x64xbf16> to vector<16x64xbf16>
    %17 = arith.mulf %14, %16 : vector<16x64xbf16>
    %c1_10 = arith.constant 1 : index
    %c0_11 = arith.constant 0 : index
    %c0_12 = arith.constant 0 : index
    %18 = vector.load %arg2[%c1_10, %c0_11, %c0_12] : memref<9x16x16xbf16, #tpu.memory_space<vmem>>, vector<1x16x16xbf16>
    %19 = vector.shape_cast %18 : vector<1x16x16xbf16> to vector<16x16xbf16>
    %cst_13 = arith.constant dense<0.000000e+00> : vector<16x64xf32>
    %20 = tpu.matmul %19, %17, %cst_13 {dimension_numbers = #tpu.dot_dimension_numbers<[1], [0], [0], [1], [0, 0, 1, 1], [], []>} : vector<16x16xbf16>, vector<16x64xbf16>, vector<16x64xf32> -> vector<16x64xf32>
    %21 = arith.addf %13, %20 : vector<16x64xf32>
    %22 = vector.extract_strided_slice %4 {offsets = [0, 2], sizes = [16, 64], strides = [1, 1]} : vector<16x82xbf16> to vector<16x64xbf16>
    %c2 = arith.constant 2 : index
    %c0_14 = arith.constant 0 : index
    %23 = vector.load %arg6[%c2, %c0_14] : memref<9x64xbf16, #tpu.memory_space<vmem>>, vector<1x64xbf16>
    %24 = vector.broadcast %23 : vector<1x64xbf16> to vector<16x64xbf16>
    %25 = arith.mulf %22, %24 : vector<16x64xbf16>
    %c2_15 = arith.constant 2 : index
    %c0_16 = arith.constant 0 : index
    %c0_17 = arith.constant 0 : index
    %26 = vector.load %arg2[%c2_15, %c0_16, %c0_17] : memref<9x16x16xbf16, #tpu.memory_space<vmem>>, vector<1x16x16xbf16>
    %27 = vector.shape_cast %26 : vector<1x16x16xbf16> to vector<16x16xbf16>
    %cst_18 = arith.constant dense<0.000000e+00> : vector<16x64xf32>
    %28 = tpu.matmul %27, %25, %cst_18 {dimension_numbers = #tpu.dot_dimension_numbers<[1], [0], [0], [1], [0, 0, 1, 1], [], []>} : vector<16x16xbf16>, vector<16x64xbf16>, vector<16x64xf32> -> vector<16x64xf32>
    %29 = arith.addf %21, %28 : vector<16x64xf32>
    %30 = vector.extract_strided_slice %4 {offsets = [0, 8], sizes = [16, 64], strides = [1, 1]} : vector<16x82xbf16> to vector<16x64xbf16>
    %c3 = arith.constant 3 : index
    %c0_19 = arith.constant 0 : index
    %31 = vector.load %arg6[%c3, %c0_19] : memref<9x64xbf16, #tpu.memory_space<vmem>>, vector<1x64xbf16>
    %32 = vector.broadcast %31 : vector<1x64xbf16> to vector<16x64xbf16>
    %33 = arith.mulf %30, %32 : vector<16x64xbf16>
    %c3_20 = arith.constant 3 : index
    %c0_21 = arith.constant 0 : index
    %c0_22 = arith.constant 0 : index
    %34 = vector.load %arg2[%c3_20, %c0_21, %c0_22] : memref<9x16x16xbf16, #tpu.memory_space<vmem>>, vector<1x16x16xbf16>
    %35 = vector.shape_cast %34 : vector<1x16x16xbf16> to vector<16x16xbf16>
    %cst_23 = arith.constant dense<0.000000e+00> : vector<16x64xf32>
    %36 = tpu.matmul %35, %33, %cst_23 {dimension_numbers = #tpu.dot_dimension_numbers<[1], [0], [0], [1], [0, 0, 1, 1], [], []>} : vector<16x16xbf16>, vector<16x64xbf16>, vector<16x64xf32> -> vector<16x64xf32>
    %37 = arith.addf %29, %36 : vector<16x64xf32>
    %38 = vector.extract_strided_slice %4 {offsets = [0, 9], sizes = [16, 64], strides = [1, 1]} : vector<16x82xbf16> to vector<16x64xbf16>
    %c4 = arith.constant 4 : index
    %c0_24 = arith.constant 0 : index
    %39 = vector.load %arg6[%c4, %c0_24] : memref<9x64xbf16, #tpu.memory_space<vmem>>, vector<1x64xbf16>
    %40 = vector.broadcast %39 : vector<1x64xbf16> to vector<16x64xbf16>
    %41 = arith.mulf %38, %40 : vector<16x64xbf16>
    %c4_25 = arith.constant 4 : index
    %c0_26 = arith.constant 0 : index
    %c0_27 = arith.constant 0 : index
    %42 = vector.load %arg2[%c4_25, %c0_26, %c0_27] : memref<9x16x16xbf16, #tpu.memory_space<vmem>>, vector<1x16x16xbf16>
    %43 = vector.shape_cast %42 : vector<1x16x16xbf16> to vector<16x16xbf16>
    %cst_28 = arith.constant dense<0.000000e+00> : vector<16x64xf32>
    %44 = tpu.matmul %43, %41, %cst_28 {dimension_numbers = #tpu.dot_dimension_numbers<[1], [0], [0], [1], [0, 0, 1, 1], [], []>} : vector<16x16xbf16>, vector<16x64xbf16>, vector<16x64xf32> -> vector<16x64xf32>
    %45 = arith.addf %37, %44 : vector<16x64xf32>
    %46 = vector.extract_strided_slice %4 {offsets = [0, 10], sizes = [16, 64], strides = [1, 1]} : vector<16x82xbf16> to vector<16x64xbf16>
    %c5 = arith.constant 5 : index
    %c0_29 = arith.constant 0 : index
    %47 = vector.load %arg6[%c5, %c0_29] : memref<9x64xbf16, #tpu.memory_space<vmem>>, vector<1x64xbf16>
    %48 = vector.broadcast %47 : vector<1x64xbf16> to vector<16x64xbf16>
    %49 = arith.mulf %46, %48 : vector<16x64xbf16>
    %c5_30 = arith.constant 5 : index
    %c0_31 = arith.constant 0 : index
    %c0_32 = arith.constant 0 : index
    %50 = vector.load %arg2[%c5_30, %c0_31, %c0_32] : memref<9x16x16xbf16, #tpu.memory_space<vmem>>, vector<1x16x16xbf16>
    %51 = vector.shape_cast %50 : vector<1x16x16xbf16> to vector<16x16xbf16>
    %cst_33 = arith.constant dense<0.000000e+00> : vector<16x64xf32>
    %52 = tpu.matmul %51, %49, %cst_33 {dimension_numbers = #tpu.dot_dimension_numbers<[1], [0], [0], [1], [0, 0, 1, 1], [], []>} : vector<16x16xbf16>, vector<16x64xbf16>, vector<16x64xf32> -> vector<16x64xf32>
    %53 = arith.addf %45, %52 : vector<16x64xf32>
    %54 = vector.extract_strided_slice %4 {offsets = [0, 16], sizes = [16, 64], strides = [1, 1]} : vector<16x82xbf16> to vector<16x64xbf16>
    %c6 = arith.constant 6 : index
    %c0_34 = arith.constant 0 : index
    %55 = vector.load %arg6[%c6, %c0_34] : memref<9x64xbf16, #tpu.memory_space<vmem>>, vector<1x64xbf16>
    %56 = vector.broadcast %55 : vector<1x64xbf16> to vector<16x64xbf16>
    %57 = arith.mulf %54, %56 : vector<16x64xbf16>
    %c6_35 = arith.constant 6 : index
    %c0_36 = arith.constant 0 : index
    %c0_37 = arith.constant 0 : index
    %58 = vector.load %arg2[%c6_35, %c0_36, %c0_37] : memref<9x16x16xbf16, #tpu.memory_space<vmem>>, vector<1x16x16xbf16>
    %59 = vector.shape_cast %58 : vector<1x16x16xbf16> to vector<16x16xbf16>
    %cst_38 = arith.constant dense<0.000000e+00> : vector<16x64xf32>
    %60 = tpu.matmul %59, %57, %cst_38 {dimension_numbers = #tpu.dot_dimension_numbers<[1], [0], [0], [1], [0, 0, 1, 1], [], []>} : vector<16x16xbf16>, vector<16x64xbf16>, vector<16x64xf32> -> vector<16x64xf32>
    %61 = arith.addf %53, %60 : vector<16x64xf32>
    %62 = vector.extract_strided_slice %4 {offsets = [0, 17], sizes = [16, 64], strides = [1, 1]} : vector<16x82xbf16> to vector<16x64xbf16>
    %c7 = arith.constant 7 : index
    %c0_39 = arith.constant 0 : index
    %63 = vector.load %arg6[%c7, %c0_39] : memref<9x64xbf16, #tpu.memory_space<vmem>>, vector<1x64xbf16>
    %64 = vector.broadcast %63 : vector<1x64xbf16> to vector<16x64xbf16>
    %65 = arith.mulf %62, %64 : vector<16x64xbf16>
    %c7_40 = arith.constant 7 : index
    %c0_41 = arith.constant 0 : index
    %c0_42 = arith.constant 0 : index
    %66 = vector.load %arg2[%c7_40, %c0_41, %c0_42] : memref<9x16x16xbf16, #tpu.memory_space<vmem>>, vector<1x16x16xbf16>
    %67 = vector.shape_cast %66 : vector<1x16x16xbf16> to vector<16x16xbf16>
    %cst_43 = arith.constant dense<0.000000e+00> : vector<16x64xf32>
    %68 = tpu.matmul %67, %65, %cst_43 {dimension_numbers = #tpu.dot_dimension_numbers<[1], [0], [0], [1], [0, 0, 1, 1], [], []>} : vector<16x16xbf16>, vector<16x64xbf16>, vector<16x64xf32> -> vector<16x64xf32>
    %69 = arith.addf %61, %68 : vector<16x64xf32>
    %70 = vector.extract_strided_slice %4 {offsets = [0, 18], sizes = [16, 64], strides = [1, 1]} : vector<16x82xbf16> to vector<16x64xbf16>
    %c8 = arith.constant 8 : index
    %c0_44 = arith.constant 0 : index
    %71 = vector.load %arg6[%c8, %c0_44] : memref<9x64xbf16, #tpu.memory_space<vmem>>, vector<1x64xbf16>
    %72 = vector.broadcast %71 : vector<1x64xbf16> to vector<16x64xbf16>
    %73 = arith.mulf %70, %72 : vector<16x64xbf16>
    %c8_45 = arith.constant 8 : index
    %c0_46 = arith.constant 0 : index
    %c0_47 = arith.constant 0 : index
    %74 = vector.load %arg2[%c8_45, %c0_46, %c0_47] : memref<9x16x16xbf16, #tpu.memory_space<vmem>>, vector<1x16x16xbf16>
    %75 = vector.shape_cast %74 : vector<1x16x16xbf16> to vector<16x16xbf16>
    %cst_48 = arith.constant dense<0.000000e+00> : vector<16x64xf32>
    %76 = tpu.matmul %75, %73, %cst_48 {dimension_numbers = #tpu.dot_dimension_numbers<[1], [0], [0], [1], [0, 0, 1, 1], [], []>} : vector<16x16xbf16>, vector<16x64xbf16>, vector<16x64xf32> -> vector<16x64xf32>
    %77 = arith.addf %69, %76 : vector<16x64xf32>
    %c0_49 = arith.constant 0 : index
    %c0_50 = arith.constant 0 : index
    %78 = vector.load %arg3[%c0_49, %c0_50] : memref<16x1xf32, #tpu.memory_space<vmem>>, vector<16x1xf32>
    %79 = vector.broadcast %78 : vector<16x1xf32> to vector<16x64xf32>
    %80 = arith.addf %77, %79 : vector<16x64xf32>
    %cst_51 = arith.constant 2.000000e-01 : f32
    %81 = vector.broadcast %cst_51 : f32 to vector<16x64xf32>
    %82 = arith.mulf %81, %80 : vector<16x64xf32>
    %83 = arith.maximumf %80, %82 : vector<16x64xf32>
    %84 = arith.truncf %83 : vector<16x64xf32> to vector<16x64xbf16>
    %cst_52 = arith.constant 0.000000e+00 : bf16
    %85 = vector.broadcast %cst_52 : bf16 to vector<16x9xbf16>
    %86 = tpu.concatenate %85, %84, %85 in 1 : vector<16x9xbf16>, vector<16x64xbf16>, vector<16x9xbf16> -> vector<16x82xbf16>
    %cst_53 = arith.constant 0.000000e+00 : f32
    %87 = vector.broadcast %cst_53 : f32 to vector<16x64xf32>
    %88 = vector.extract_strided_slice %86 {offsets = [0, 0], sizes = [16, 64], strides = [1, 1]} : vector<16x82xbf16> to vector<16x64xbf16>
    %c0_54 = arith.constant 0 : index
    %c0_55 = arith.constant 0 : index
    %89 = vector.load %arg6[%c0_54, %c0_55] : memref<9x64xbf16, #tpu.memory_space<vmem>>, vector<1x64xbf16>
    %90 = vector.broadcast %89 : vector<1x64xbf16> to vector<16x64xbf16>
    %91 = arith.mulf %88, %90 : vector<16x64xbf16>
    %c0_56 = arith.constant 0 : index
    %c0_57 = arith.constant 0 : index
    %c0_58 = arith.constant 0 : index
    %92 = vector.load %arg4[%c0_56, %c0_57, %c0_58] : memref<9x16x16xbf16, #tpu.memory_space<vmem>>, vector<1x16x16xbf16>
    %93 = vector.shape_cast %92 : vector<1x16x16xbf16> to vector<16x16xbf16>
    %cst_59 = arith.constant dense<0.000000e+00> : vector<16x64xf32>
    %94 = tpu.matmul %93, %91, %cst_59 {dimension_numbers = #tpu.dot_dimension_numbers<[1], [0], [0], [1], [0, 0, 1, 1], [], []>} : vector<16x16xbf16>, vector<16x64xbf16>, vector<16x64xf32> -> vector<16x64xf32>
    %95 = arith.addf %87, %94 : vector<16x64xf32>
    %96 = vector.extract_strided_slice %86 {offsets = [0, 1], sizes = [16, 64], strides = [1, 1]} : vector<16x82xbf16> to vector<16x64xbf16>
    %c1_60 = arith.constant 1 : index
    %c0_61 = arith.constant 0 : index
    %97 = vector.load %arg6[%c1_60, %c0_61] : memref<9x64xbf16, #tpu.memory_space<vmem>>, vector<1x64xbf16>
    %98 = vector.broadcast %97 : vector<1x64xbf16> to vector<16x64xbf16>
    %99 = arith.mulf %96, %98 : vector<16x64xbf16>
    %c1_62 = arith.constant 1 : index
    %c0_63 = arith.constant 0 : index
    %c0_64 = arith.constant 0 : index
    %100 = vector.load %arg4[%c1_62, %c0_63, %c0_64] : memref<9x16x16xbf16, #tpu.memory_space<vmem>>, vector<1x16x16xbf16>
    %101 = vector.shape_cast %100 : vector<1x16x16xbf16> to vector<16x16xbf16>
    %cst_65 = arith.constant dense<0.000000e+00> : vector<16x64xf32>
    %102 = tpu.matmul %101, %99, %cst_65 {dimension_numbers = #tpu.dot_dimension_numbers<[1], [0], [0], [1], [0, 0, 1, 1], [], []>} : vector<16x16xbf16>, vector<16x64xbf16>, vector<16x64xf32> -> vector<16x64xf32>
    %103 = arith.addf %95, %102 : vector<16x64xf32>
    %104 = vector.extract_strided_slice %86 {offsets = [0, 2], sizes = [16, 64], strides = [1, 1]} : vector<16x82xbf16> to vector<16x64xbf16>
    %c2_66 = arith.constant 2 : index
    %c0_67 = arith.constant 0 : index
    %105 = vector.load %arg6[%c2_66, %c0_67] : memref<9x64xbf16, #tpu.memory_space<vmem>>, vector<1x64xbf16>
    %106 = vector.broadcast %105 : vector<1x64xbf16> to vector<16x64xbf16>
    %107 = arith.mulf %104, %106 : vector<16x64xbf16>
    %c2_68 = arith.constant 2 : index
    %c0_69 = arith.constant 0 : index
    %c0_70 = arith.constant 0 : index
    %108 = vector.load %arg4[%c2_68, %c0_69, %c0_70] : memref<9x16x16xbf16, #tpu.memory_space<vmem>>, vector<1x16x16xbf16>
    %109 = vector.shape_cast %108 : vector<1x16x16xbf16> to vector<16x16xbf16>
    %cst_71 = arith.constant dense<0.000000e+00> : vector<16x64xf32>
    %110 = tpu.matmul %109, %107, %cst_71 {dimension_numbers = #tpu.dot_dimension_numbers<[1], [0], [0], [1], [0, 0, 1, 1], [], []>} : vector<16x16xbf16>, vector<16x64xbf16>, vector<16x64xf32> -> vector<16x64xf32>
    %111 = arith.addf %103, %110 : vector<16x64xf32>
    %112 = vector.extract_strided_slice %86 {offsets = [0, 8], sizes = [16, 64], strides = [1, 1]} : vector<16x82xbf16> to vector<16x64xbf16>
    %c3_72 = arith.constant 3 : index
    %c0_73 = arith.constant 0 : index
    %113 = vector.load %arg6[%c3_72, %c0_73] : memref<9x64xbf16, #tpu.memory_space<vmem>>, vector<1x64xbf16>
    %114 = vector.broadcast %113 : vector<1x64xbf16> to vector<16x64xbf16>
    %115 = arith.mulf %112, %114 : vector<16x64xbf16>
    %c3_74 = arith.constant 3 : index
    %c0_75 = arith.constant 0 : index
    %c0_76 = arith.constant 0 : index
    %116 = vector.load %arg4[%c3_74, %c0_75, %c0_76] : memref<9x16x16xbf16, #tpu.memory_space<vmem>>, vector<1x16x16xbf16>
    %117 = vector.shape_cast %116 : vector<1x16x16xbf16> to vector<16x16xbf16>
    %cst_77 = arith.constant dense<0.000000e+00> : vector<16x64xf32>
    %118 = tpu.matmul %117, %115, %cst_77 {dimension_numbers = #tpu.dot_dimension_numbers<[1], [0], [0], [1], [0, 0, 1, 1], [], []>} : vector<16x16xbf16>, vector<16x64xbf16>, vector<16x64xf32> -> vector<16x64xf32>
    %119 = arith.addf %111, %118 : vector<16x64xf32>
    %120 = vector.extract_strided_slice %86 {offsets = [0, 9], sizes = [16, 64], strides = [1, 1]} : vector<16x82xbf16> to vector<16x64xbf16>
    %c4_78 = arith.constant 4 : index
    %c0_79 = arith.constant 0 : index
    %121 = vector.load %arg6[%c4_78, %c0_79] : memref<9x64xbf16, #tpu.memory_space<vmem>>, vector<1x64xbf16>
    %122 = vector.broadcast %121 : vector<1x64xbf16> to vector<16x64xbf16>
    %123 = arith.mulf %120, %122 : vector<16x64xbf16>
    %c4_80 = arith.constant 4 : index
    %c0_81 = arith.constant 0 : index
    %c0_82 = arith.constant 0 : index
    %124 = vector.load %arg4[%c4_80, %c0_81, %c0_82] : memref<9x16x16xbf16, #tpu.memory_space<vmem>>, vector<1x16x16xbf16>
    %125 = vector.shape_cast %124 : vector<1x16x16xbf16> to vector<16x16xbf16>
    %cst_83 = arith.constant dense<0.000000e+00> : vector<16x64xf32>
    %126 = tpu.matmul %125, %123, %cst_83 {dimension_numbers = #tpu.dot_dimension_numbers<[1], [0], [0], [1], [0, 0, 1, 1], [], []>} : vector<16x16xbf16>, vector<16x64xbf16>, vector<16x64xf32> -> vector<16x64xf32>
    %127 = arith.addf %119, %126 : vector<16x64xf32>
    %128 = vector.extract_strided_slice %86 {offsets = [0, 10], sizes = [16, 64], strides = [1, 1]} : vector<16x82xbf16> to vector<16x64xbf16>
    %c5_84 = arith.constant 5 : index
    %c0_85 = arith.constant 0 : index
    %129 = vector.load %arg6[%c5_84, %c0_85] : memref<9x64xbf16, #tpu.memory_space<vmem>>, vector<1x64xbf16>
    %130 = vector.broadcast %129 : vector<1x64xbf16> to vector<16x64xbf16>
    %131 = arith.mulf %128, %130 : vector<16x64xbf16>
    %c5_86 = arith.constant 5 : index
    %c0_87 = arith.constant 0 : index
    %c0_88 = arith.constant 0 : index
    %132 = vector.load %arg4[%c5_86, %c0_87, %c0_88] : memref<9x16x16xbf16, #tpu.memory_space<vmem>>, vector<1x16x16xbf16>
    %133 = vector.shape_cast %132 : vector<1x16x16xbf16> to vector<16x16xbf16>
    %cst_89 = arith.constant dense<0.000000e+00> : vector<16x64xf32>
    %134 = tpu.matmul %133, %131, %cst_89 {dimension_numbers = #tpu.dot_dimension_numbers<[1], [0], [0], [1], [0, 0, 1, 1], [], []>} : vector<16x16xbf16>, vector<16x64xbf16>, vector<16x64xf32> -> vector<16x64xf32>
    %135 = arith.addf %127, %134 : vector<16x64xf32>
    %136 = vector.extract_strided_slice %86 {offsets = [0, 16], sizes = [16, 64], strides = [1, 1]} : vector<16x82xbf16> to vector<16x64xbf16>
    %c6_90 = arith.constant 6 : index
    %c0_91 = arith.constant 0 : index
    %137 = vector.load %arg6[%c6_90, %c0_91] : memref<9x64xbf16, #tpu.memory_space<vmem>>, vector<1x64xbf16>
    %138 = vector.broadcast %137 : vector<1x64xbf16> to vector<16x64xbf16>
    %139 = arith.mulf %136, %138 : vector<16x64xbf16>
    %c6_92 = arith.constant 6 : index
    %c0_93 = arith.constant 0 : index
    %c0_94 = arith.constant 0 : index
    %140 = vector.load %arg4[%c6_92, %c0_93, %c0_94] : memref<9x16x16xbf16, #tpu.memory_space<vmem>>, vector<1x16x16xbf16>
    %141 = vector.shape_cast %140 : vector<1x16x16xbf16> to vector<16x16xbf16>
    %cst_95 = arith.constant dense<0.000000e+00> : vector<16x64xf32>
    %142 = tpu.matmul %141, %139, %cst_95 {dimension_numbers = #tpu.dot_dimension_numbers<[1], [0], [0], [1], [0, 0, 1, 1], [], []>} : vector<16x16xbf16>, vector<16x64xbf16>, vector<16x64xf32> -> vector<16x64xf32>
    %143 = arith.addf %135, %142 : vector<16x64xf32>
    %144 = vector.extract_strided_slice %86 {offsets = [0, 17], sizes = [16, 64], strides = [1, 1]} : vector<16x82xbf16> to vector<16x64xbf16>
    %c7_96 = arith.constant 7 : index
    %c0_97 = arith.constant 0 : index
    %145 = vector.load %arg6[%c7_96, %c0_97] : memref<9x64xbf16, #tpu.memory_space<vmem>>, vector<1x64xbf16>
    %146 = vector.broadcast %145 : vector<1x64xbf16> to vector<16x64xbf16>
    %147 = arith.mulf %144, %146 : vector<16x64xbf16>
    %c7_98 = arith.constant 7 : index
    %c0_99 = arith.constant 0 : index
    %c0_100 = arith.constant 0 : index
    %148 = vector.load %arg4[%c7_98, %c0_99, %c0_100] : memref<9x16x16xbf16, #tpu.memory_space<vmem>>, vector<1x16x16xbf16>
    %149 = vector.shape_cast %148 : vector<1x16x16xbf16> to vector<16x16xbf16>
    %cst_101 = arith.constant dense<0.000000e+00> : vector<16x64xf32>
    %150 = tpu.matmul %149, %147, %cst_101 {dimension_numbers = #tpu.dot_dimension_numbers<[1], [0], [0], [1], [0, 0, 1, 1], [], []>} : vector<16x16xbf16>, vector<16x64xbf16>, vector<16x64xf32> -> vector<16x64xf32>
    %151 = arith.addf %143, %150 : vector<16x64xf32>
    %152 = vector.extract_strided_slice %86 {offsets = [0, 18], sizes = [16, 64], strides = [1, 1]} : vector<16x82xbf16> to vector<16x64xbf16>
    %c8_102 = arith.constant 8 : index
    %c0_103 = arith.constant 0 : index
    %153 = vector.load %arg6[%c8_102, %c0_103] : memref<9x64xbf16, #tpu.memory_space<vmem>>, vector<1x64xbf16>
    %154 = vector.broadcast %153 : vector<1x64xbf16> to vector<16x64xbf16>
    %155 = arith.mulf %152, %154 : vector<16x64xbf16>
    %c8_104 = arith.constant 8 : index
    %c0_105 = arith.constant 0 : index
    %c0_106 = arith.constant 0 : index
    %156 = vector.load %arg4[%c8_104, %c0_105, %c0_106] : memref<9x16x16xbf16, #tpu.memory_space<vmem>>, vector<1x16x16xbf16>
    %157 = vector.shape_cast %156 : vector<1x16x16xbf16> to vector<16x16xbf16>
    %cst_107 = arith.constant dense<0.000000e+00> : vector<16x64xf32>
    %158 = tpu.matmul %157, %155, %cst_107 {dimension_numbers = #tpu.dot_dimension_numbers<[1], [0], [0], [1], [0, 0, 1, 1], [], []>} : vector<16x16xbf16>, vector<16x64xbf16>, vector<16x64xf32> -> vector<16x64xf32>
    %159 = arith.addf %151, %158 : vector<16x64xf32>
    %c0_108 = arith.constant 0 : index
    %c0_109 = arith.constant 0 : index
    %160 = vector.load %arg5[%c0_108, %c0_109] : memref<16x1xf32, #tpu.memory_space<vmem>>, vector<16x1xf32>
    %161 = vector.broadcast %160 : vector<16x1xf32> to vector<16x64xf32>
    %162 = arith.addf %159, %161 : vector<16x64xf32>
    %cst_110 = arith.constant 2.000000e-01 : f32
    %163 = vector.broadcast %cst_110 : f32 to vector<16x64xf32>
    %164 = arith.mulf %163, %162 : vector<16x64xf32>
    %165 = arith.maximumf %162, %164 : vector<16x64xf32>
    %166 = arith.addf %1, %165 : vector<16x64xf32>
    %167 = arith.truncf %166 : vector<16x64xf32> to vector<16x64xbf16>
    %c0_111 = arith.constant 0 : index
    %c0_112 = arith.constant 0 : index
    %168 = vector.load %arg10[%c0_111, %c0_112] : memref<64x256xbf16, #tpu.memory_space<vmem>>, vector<64x256xbf16>
    %cst_113 = arith.constant dense<0.000000e+00> : vector<16x256xf32>
    %169 = tpu.matmul %167, %168, %cst_113 {dimension_numbers = #tpu.dot_dimension_numbers<[1], [0], [0], [1], [0, 0, 1, 1], [], []>} : vector<16x64xbf16>, vector<64x256xbf16>, vector<16x256xf32> -> vector<16x256xf32>
    %170 = arith.truncf %169 : vector<16x256xf32> to vector<16x256xbf16>
    %cst_114 = arith.constant 0.000000e+00 : bf16
    %171 = vector.broadcast %cst_114 : bf16 to vector<16x34xbf16>
    %172 = tpu.concatenate %171, %170, %171 in 1 : vector<16x34xbf16>, vector<16x256xbf16>, vector<16x34xbf16> -> vector<16x324xbf16>
    %cst_115 = arith.constant 0.000000e+00 : f32
    %173 = vector.broadcast %cst_115 : f32 to vector<8x256xf32>
    %174 = vector.extract_strided_slice %172 {offsets = [0, 0], sizes = [16, 256], strides = [1, 1]} : vector<16x324xbf16> to vector<16x256xbf16>
    %c0_116 = arith.constant 0 : index
    %c0_117 = arith.constant 0 : index
    %175 = vector.load %arg9[%c0_116, %c0_117] : memref<25x256xbf16, #tpu.memory_space<vmem>>, vector<1x256xbf16>
    %176 = vector.broadcast %175 : vector<1x256xbf16> to vector<16x256xbf16>
    %177 = arith.mulf %174, %176 : vector<16x256xbf16>
    %c0_118 = arith.constant 0 : index
    %c0_119 = arith.constant 0 : index
    %c0_120 = arith.constant 0 : index
    %178 = vector.load %arg7[%c0_118, %c0_119, %c0_120] : memref<25x8x16xbf16, #tpu.memory_space<vmem>>, vector<1x8x16xbf16>
    %179 = vector.shape_cast %178 : vector<1x8x16xbf16> to vector<8x16xbf16>
    %cst_121 = arith.constant dense<0.000000e+00> : vector<8x256xf32>
    %180 = tpu.matmul %179, %177, %cst_121 {dimension_numbers = #tpu.dot_dimension_numbers<[1], [0], [0], [1], [0, 0, 1, 1], [], []>} : vector<8x16xbf16>, vector<16x256xbf16>, vector<8x256xf32> -> vector<8x256xf32>
    %181 = arith.addf %173, %180 : vector<8x256xf32>
    %182 = vector.extract_strided_slice %172 {offsets = [0, 1], sizes = [16, 256], strides = [1, 1]} : vector<16x324xbf16> to vector<16x256xbf16>
    %c1_122 = arith.constant 1 : index
    %c0_123 = arith.constant 0 : index
    %183 = vector.load %arg9[%c1_122, %c0_123] : memref<25x256xbf16, #tpu.memory_space<vmem>>, vector<1x256xbf16>
    %184 = vector.broadcast %183 : vector<1x256xbf16> to vector<16x256xbf16>
    %185 = arith.mulf %182, %184 : vector<16x256xbf16>
    %c1_124 = arith.constant 1 : index
    %c0_125 = arith.constant 0 : index
    %c0_126 = arith.constant 0 : index
    %186 = vector.load %arg7[%c1_124, %c0_125, %c0_126] : memref<25x8x16xbf16, #tpu.memory_space<vmem>>, vector<1x8x16xbf16>
    %187 = vector.shape_cast %186 : vector<1x8x16xbf16> to vector<8x16xbf16>
    %cst_127 = arith.constant dense<0.000000e+00> : vector<8x256xf32>
    %188 = tpu.matmul %187, %185, %cst_127 {dimension_numbers = #tpu.dot_dimension_numbers<[1], [0], [0], [1], [0, 0, 1, 1], [], []>} : vector<8x16xbf16>, vector<16x256xbf16>, vector<8x256xf32> -> vector<8x256xf32>
    %189 = arith.addf %181, %188 : vector<8x256xf32>
    %190 = vector.extract_strided_slice %172 {offsets = [0, 2], sizes = [16, 256], strides = [1, 1]} : vector<16x324xbf16> to vector<16x256xbf16>
    %c2_128 = arith.constant 2 : index
    %c0_129 = arith.constant 0 : index
    %191 = vector.load %arg9[%c2_128, %c0_129] : memref<25x256xbf16, #tpu.memory_space<vmem>>, vector<1x256xbf16>
    %192 = vector.broadcast %191 : vector<1x256xbf16> to vector<16x256xbf16>
    %193 = arith.mulf %190, %192 : vector<16x256xbf16>
    %c2_130 = arith.constant 2 : index
    %c0_131 = arith.constant 0 : index
    %c0_132 = arith.constant 0 : index
    %194 = vector.load %arg7[%c2_130, %c0_131, %c0_132] : memref<25x8x16xbf16, #tpu.memory_space<vmem>>, vector<1x8x16xbf16>
    %195 = vector.shape_cast %194 : vector<1x8x16xbf16> to vector<8x16xbf16>
    %cst_133 = arith.constant dense<0.000000e+00> : vector<8x256xf32>
    %196 = tpu.matmul %195, %193, %cst_133 {dimension_numbers = #tpu.dot_dimension_numbers<[1], [0], [0], [1], [0, 0, 1, 1], [], []>} : vector<8x16xbf16>, vector<16x256xbf16>, vector<8x256xf32> -> vector<8x256xf32>
    %197 = arith.addf %189, %196 : vector<8x256xf32>
    %198 = vector.extract_strided_slice %172 {offsets = [0, 3], sizes = [16, 256], strides = [1, 1]} : vector<16x324xbf16> to vector<16x256xbf16>
    %c3_134 = arith.constant 3 : index
    %c0_135 = arith.constant 0 : index
    %199 = vector.load %arg9[%c3_134, %c0_135] : memref<25x256xbf16, #tpu.memory_space<vmem>>, vector<1x256xbf16>
    %200 = vector.broadcast %199 : vector<1x256xbf16> to vector<16x256xbf16>
    %201 = arith.mulf %198, %200 : vector<16x256xbf16>
    %c3_136 = arith.constant 3 : index
    %c0_137 = arith.constant 0 : index
    %c0_138 = arith.constant 0 : index
    %202 = vector.load %arg7[%c3_136, %c0_137, %c0_138] : memref<25x8x16xbf16, #tpu.memory_space<vmem>>, vector<1x8x16xbf16>
    %203 = vector.shape_cast %202 : vector<1x8x16xbf16> to vector<8x16xbf16>
    %cst_139 = arith.constant dense<0.000000e+00> : vector<8x256xf32>
    %204 = tpu.matmul %203, %201, %cst_139 {dimension_numbers = #tpu.dot_dimension_numbers<[1], [0], [0], [1], [0, 0, 1, 1], [], []>} : vector<8x16xbf16>, vector<16x256xbf16>, vector<8x256xf32> -> vector<8x256xf32>
    %205 = arith.addf %197, %204 : vector<8x256xf32>
    %206 = vector.extract_strided_slice %172 {offsets = [0, 4], sizes = [16, 256], strides = [1, 1]} : vector<16x324xbf16> to vector<16x256xbf16>
    %c4_140 = arith.constant 4 : index
    %c0_141 = arith.constant 0 : index
    %207 = vector.load %arg9[%c4_140, %c0_141] : memref<25x256xbf16, #tpu.memory_space<vmem>>, vector<1x256xbf16>
    %208 = vector.broadcast %207 : vector<1x256xbf16> to vector<16x256xbf16>
    %209 = arith.mulf %206, %208 : vector<16x256xbf16>
    %c4_142 = arith.constant 4 : index
    %c0_143 = arith.constant 0 : index
    %c0_144 = arith.constant 0 : index
    %210 = vector.load %arg7[%c4_142, %c0_143, %c0_144] : memref<25x8x16xbf16, #tpu.memory_space<vmem>>, vector<1x8x16xbf16>
    %211 = vector.shape_cast %210 : vector<1x8x16xbf16> to vector<8x16xbf16>
    %cst_145 = arith.constant dense<0.000000e+00> : vector<8x256xf32>
    %212 = tpu.matmul %211, %209, %cst_145 {dimension_numbers = #tpu.dot_dimension_numbers<[1], [0], [0], [1], [0, 0, 1, 1], [], []>} : vector<8x16xbf16>, vector<16x256xbf16>, vector<8x256xf32> -> vector<8x256xf32>
    %213 = arith.addf %205, %212 : vector<8x256xf32>
    %214 = vector.extract_strided_slice %172 {offsets = [0, 16], sizes = [16, 256], strides = [1, 1]} : vector<16x324xbf16> to vector<16x256xbf16>
    %c5_146 = arith.constant 5 : index
    %c0_147 = arith.constant 0 : index
    %215 = vector.load %arg9[%c5_146, %c0_147] : memref<25x256xbf16, #tpu.memory_space<vmem>>, vector<1x256xbf16>
    %216 = vector.broadcast %215 : vector<1x256xbf16> to vector<16x256xbf16>
    %217 = arith.mulf %214, %216 : vector<16x256xbf16>
    %c5_148 = arith.constant 5 : index
    %c0_149 = arith.constant 0 : index
    %c0_150 = arith.constant 0 : index
    %218 = vector.load %arg7[%c5_148, %c0_149, %c0_150] : memref<25x8x16xbf16, #tpu.memory_space<vmem>>, vector<1x8x16xbf16>
    %219 = vector.shape_cast %218 : vector<1x8x16xbf16> to vector<8x16xbf16>
    %cst_151 = arith.constant dense<0.000000e+00> : vector<8x256xf32>
    %220 = tpu.matmul %219, %217, %cst_151 {dimension_numbers = #tpu.dot_dimension_numbers<[1], [0], [0], [1], [0, 0, 1, 1], [], []>} : vector<8x16xbf16>, vector<16x256xbf16>, vector<8x256xf32> -> vector<8x256xf32>
    %221 = arith.addf %213, %220 : vector<8x256xf32>
    %222 = vector.extract_strided_slice %172 {offsets = [0, 17], sizes = [16, 256], strides = [1, 1]} : vector<16x324xbf16> to vector<16x256xbf16>
    %c6_152 = arith.constant 6 : index
    %c0_153 = arith.constant 0 : index
    %223 = vector.load %arg9[%c6_152, %c0_153] : memref<25x256xbf16, #tpu.memory_space<vmem>>, vector<1x256xbf16>
    %224 = vector.broadcast %223 : vector<1x256xbf16> to vector<16x256xbf16>
    %225 = arith.mulf %222, %224 : vector<16x256xbf16>
    %c6_154 = arith.constant 6 : index
    %c0_155 = arith.constant 0 : index
    %c0_156 = arith.constant 0 : index
    %226 = vector.load %arg7[%c6_154, %c0_155, %c0_156] : memref<25x8x16xbf16, #tpu.memory_space<vmem>>, vector<1x8x16xbf16>
    %227 = vector.shape_cast %226 : vector<1x8x16xbf16> to vector<8x16xbf16>
    %cst_157 = arith.constant dense<0.000000e+00> : vector<8x256xf32>
    %228 = tpu.matmul %227, %225, %cst_157 {dimension_numbers = #tpu.dot_dimension_numbers<[1], [0], [0], [1], [0, 0, 1, 1], [], []>} : vector<8x16xbf16>, vector<16x256xbf16>, vector<8x256xf32> -> vector<8x256xf32>
    %229 = arith.addf %221, %228 : vector<8x256xf32>
    %230 = vector.extract_strided_slice %172 {offsets = [0, 18], sizes = [16, 256], strides = [1, 1]} : vector<16x324xbf16> to vector<16x256xbf16>
    %c7_158 = arith.constant 7 : index
    %c0_159 = arith.constant 0 : index
    %231 = vector.load %arg9[%c7_158, %c0_159] : memref<25x256xbf16, #tpu.memory_space<vmem>>, vector<1x256xbf16>
    %232 = vector.broadcast %231 : vector<1x256xbf16> to vector<16x256xbf16>
    %233 = arith.mulf %230, %232 : vector<16x256xbf16>
    %c7_160 = arith.constant 7 : index
    %c0_161 = arith.constant 0 : index
    %c0_162 = arith.constant 0 : index
    %234 = vector.load %arg7[%c7_160, %c0_161, %c0_162] : memref<25x8x16xbf16, #tpu.memory_space<vmem>>, vector<1x8x16xbf16>
    %235 = vector.shape_cast %234 : vector<1x8x16xbf16> to vector<8x16xbf16>
    %cst_163 = arith.constant dense<0.000000e+00> : vector<8x256xf32>
    %236 = tpu.matmul %235, %233, %cst_163 {dimension_numbers = #tpu.dot_dimension_numbers<[1], [0], [0], [1], [0, 0, 1, 1], [], []>} : vector<8x16xbf16>, vector<16x256xbf16>, vector<8x256xf32> -> vector<8x256xf32>
    %237 = arith.addf %229, %236 : vector<8x256xf32>
    %238 = vector.extract_strided_slice %172 {offsets = [0, 19], sizes = [16, 256], strides = [1, 1]} : vector<16x324xbf16> to vector<16x256xbf16>
    %c8_164 = arith.constant 8 : index
    %c0_165 = arith.constant 0 : index
    %239 = vector.load %arg9[%c8_164, %c0_165] : memref<25x256xbf16, #tpu.memory_space<vmem>>, vector<1x256xbf16>
    %240 = vector.broadcast %239 : vector<1x256xbf16> to vector<16x256xbf16>
    %241 = arith.mulf %238, %240 : vector<16x256xbf16>
    %c8_166 = arith.constant 8 : index
    %c0_167 = arith.constant 0 : index
    %c0_168 = arith.constant 0 : index
    %242 = vector.load %arg7[%c8_166, %c0_167, %c0_168] : memref<25x8x16xbf16, #tpu.memory_space<vmem>>, vector<1x8x16xbf16>
    %243 = vector.shape_cast %242 : vector<1x8x16xbf16> to vector<8x16xbf16>
    %cst_169 = arith.constant dense<0.000000e+00> : vector<8x256xf32>
    %244 = tpu.matmul %243, %241, %cst_169 {dimension_numbers = #tpu.dot_dimension_numbers<[1], [0], [0], [1], [0, 0, 1, 1], [], []>} : vector<8x16xbf16>, vector<16x256xbf16>, vector<8x256xf32> -> vector<8x256xf32>
    %245 = arith.addf %237, %244 : vector<8x256xf32>
    %246 = vector.extract_strided_slice %172 {offsets = [0, 20], sizes = [16, 256], strides = [1, 1]} : vector<16x324xbf16> to vector<16x256xbf16>
    %c9 = arith.constant 9 : index
    %c0_170 = arith.constant 0 : index
    %247 = vector.load %arg9[%c9, %c0_170] : memref<25x256xbf16, #tpu.memory_space<vmem>>, vector<1x256xbf16>
    %248 = vector.broadcast %247 : vector<1x256xbf16> to vector<16x256xbf16>
    %249 = arith.mulf %246, %248 : vector<16x256xbf16>
    %c9_171 = arith.constant 9 : index
    %c0_172 = arith.constant 0 : index
    %c0_173 = arith.constant 0 : index
    %250 = vector.load %arg7[%c9_171, %c0_172, %c0_173] : memref<25x8x16xbf16, #tpu.memory_space<vmem>>, vector<1x8x16xbf16>
    %251 = vector.shape_cast %250 : vector<1x8x16xbf16> to vector<8x16xbf16>
    %cst_174 = arith.constant dense<0.000000e+00> : vector<8x256xf32>
    %252 = tpu.matmul %251, %249, %cst_174 {dimension_numbers = #tpu.dot_dimension_numbers<[1], [0], [0], [1], [0, 0, 1, 1], [], []>} : vector<8x16xbf16>, vector<16x256xbf16>, vector<8x256xf32> -> vector<8x256xf32>
    %253 = arith.addf %245, %252 : vector<8x256xf32>
    %254 = vector.extract_strided_slice %172 {offsets = [0, 32], sizes = [16, 256], strides = [1, 1]} : vector<16x324xbf16> to vector<16x256xbf16>
    %c10 = arith.constant 10 : index
    %c0_175 = arith.constant 0 : index
    %255 = vector.load %arg9[%c10, %c0_175] : memref<25x256xbf16, #tpu.memory_space<vmem>>, vector<1x256xbf16>
    %256 = vector.broadcast %255 : vector<1x256xbf16> to vector<16x256xbf16>
    %257 = arith.mulf %254, %256 : vector<16x256xbf16>
    %c10_176 = arith.constant 10 : index
    %c0_177 = arith.constant 0 : index
    %c0_178 = arith.constant 0 : index
    %258 = vector.load %arg7[%c10_176, %c0_177, %c0_178] : memref<25x8x16xbf16, #tpu.memory_space<vmem>>, vector<1x8x16xbf16>
    %259 = vector.shape_cast %258 : vector<1x8x16xbf16> to vector<8x16xbf16>
    %cst_179 = arith.constant dense<0.000000e+00> : vector<8x256xf32>
    %260 = tpu.matmul %259, %257, %cst_179 {dimension_numbers = #tpu.dot_dimension_numbers<[1], [0], [0], [1], [0, 0, 1, 1], [], []>} : vector<8x16xbf16>, vector<16x256xbf16>, vector<8x256xf32> -> vector<8x256xf32>
    %261 = arith.addf %253, %260 : vector<8x256xf32>
    %262 = vector.extract_strided_slice %172 {offsets = [0, 33], sizes = [16, 256], strides = [1, 1]} : vector<16x324xbf16> to vector<16x256xbf16>
    %c11 = arith.constant 11 : index
    %c0_180 = arith.constant 0 : index
    %263 = vector.load %arg9[%c11, %c0_180] : memref<25x256xbf16, #tpu.memory_space<vmem>>, vector<1x256xbf16>
    %264 = vector.broadcast %263 : vector<1x256xbf16> to vector<16x256xbf16>
    %265 = arith.mulf %262, %264 : vector<16x256xbf16>
    %c11_181 = arith.constant 11 : index
    %c0_182 = arith.constant 0 : index
    %c0_183 = arith.constant 0 : index
    %266 = vector.load %arg7[%c11_181, %c0_182, %c0_183] : memref<25x8x16xbf16, #tpu.memory_space<vmem>>, vector<1x8x16xbf16>
    %267 = vector.shape_cast %266 : vector<1x8x16xbf16> to vector<8x16xbf16>
    %cst_184 = arith.constant dense<0.000000e+00> : vector<8x256xf32>
    %268 = tpu.matmul %267, %265, %cst_184 {dimension_numbers = #tpu.dot_dimension_numbers<[1], [0], [0], [1], [0, 0, 1, 1], [], []>} : vector<8x16xbf16>, vector<16x256xbf16>, vector<8x256xf32> -> vector<8x256xf32>
    %269 = arith.addf %261, %268 : vector<8x256xf32>
    %270 = vector.extract_strided_slice %172 {offsets = [0, 34], sizes = [16, 256], strides = [1, 1]} : vector<16x324xbf16> to vector<16x256xbf16>
    %c12 = arith.constant 12 : index
    %c0_185 = arith.constant 0 : index
    %271 = vector.load %arg9[%c12, %c0_185] : memref<25x256xbf16, #tpu.memory_space<vmem>>, vector<1x256xbf16>
    %272 = vector.broadcast %271 : vector<1x256xbf16> to vector<16x256xbf16>
    %273 = arith.mulf %270, %272 : vector<16x256xbf16>
    %c12_186 = arith.constant 12 : index
    %c0_187 = arith.constant 0 : index
    %c0_188 = arith.constant 0 : index
    %274 = vector.load %arg7[%c12_186, %c0_187, %c0_188] : memref<25x8x16xbf16, #tpu.memory_space<vmem>>, vector<1x8x16xbf16>
    %275 = vector.shape_cast %274 : vector<1x8x16xbf16> to vector<8x16xbf16>
    %cst_189 = arith.constant dense<0.000000e+00> : vector<8x256xf32>
    %276 = tpu.matmul %275, %273, %cst_189 {dimension_numbers = #tpu.dot_dimension_numbers<[1], [0], [0], [1], [0, 0, 1, 1], [], []>} : vector<8x16xbf16>, vector<16x256xbf16>, vector<8x256xf32> -> vector<8x256xf32>
    %277 = arith.addf %269, %276 : vector<8x256xf32>
    %278 = vector.extract_strided_slice %172 {offsets = [0, 35], sizes = [16, 256], strides = [1, 1]} : vector<16x324xbf16> to vector<16x256xbf16>
    %c13 = arith.constant 13 : index
    %c0_190 = arith.constant 0 : index
    %279 = vector.load %arg9[%c13, %c0_190] : memref<25x256xbf16, #tpu.memory_space<vmem>>, vector<1x256xbf16>
    %280 = vector.broadcast %279 : vector<1x256xbf16> to vector<16x256xbf16>
    %281 = arith.mulf %278, %280 : vector<16x256xbf16>
    %c13_191 = arith.constant 13 : index
    %c0_192 = arith.constant 0 : index
    %c0_193 = arith.constant 0 : index
    %282 = vector.load %arg7[%c13_191, %c0_192, %c0_193] : memref<25x8x16xbf16, #tpu.memory_space<vmem>>, vector<1x8x16xbf16>
    %283 = vector.shape_cast %282 : vector<1x8x16xbf16> to vector<8x16xbf16>
    %cst_194 = arith.constant dense<0.000000e+00> : vector<8x256xf32>
    %284 = tpu.matmul %283, %281, %cst_194 {dimension_numbers = #tpu.dot_dimension_numbers<[1], [0], [0], [1], [0, 0, 1, 1], [], []>} : vector<8x16xbf16>, vector<16x256xbf16>, vector<8x256xf32> -> vector<8x256xf32>
    %285 = arith.addf %277, %284 : vector<8x256xf32>
    %286 = vector.extract_strided_slice %172 {offsets = [0, 36], sizes = [16, 256], strides = [1, 1]} : vector<16x324xbf16> to vector<16x256xbf16>
    %c14 = arith.constant 14 : index
    %c0_195 = arith.constant 0 : index
    %287 = vector.load %arg9[%c14, %c0_195] : memref<25x256xbf16, #tpu.memory_space<vmem>>, vector<1x256xbf16>
    %288 = vector.broadcast %287 : vector<1x256xbf16> to vector<16x256xbf16>
    %289 = arith.mulf %286, %288 : vector<16x256xbf16>
    %c14_196 = arith.constant 14 : index
    %c0_197 = arith.constant 0 : index
    %c0_198 = arith.constant 0 : index
    %290 = vector.load %arg7[%c14_196, %c0_197, %c0_198] : memref<25x8x16xbf16, #tpu.memory_space<vmem>>, vector<1x8x16xbf16>
    %291 = vector.shape_cast %290 : vector<1x8x16xbf16> to vector<8x16xbf16>
    %cst_199 = arith.constant dense<0.000000e+00> : vector<8x256xf32>
    %292 = tpu.matmul %291, %289, %cst_199 {dimension_numbers = #tpu.dot_dimension_numbers<[1], [0], [0], [1], [0, 0, 1, 1], [], []>} : vector<8x16xbf16>, vector<16x256xbf16>, vector<8x256xf32> -> vector<8x256xf32>
    %293 = arith.addf %285, %292 : vector<8x256xf32>
    %294 = vector.extract_strided_slice %172 {offsets = [0, 48], sizes = [16, 256], strides = [1, 1]} : vector<16x324xbf16> to vector<16x256xbf16>
    %c15 = arith.constant 15 : index
    %c0_200 = arith.constant 0 : index
    %295 = vector.load %arg9[%c15, %c0_200] : memref<25x256xbf16, #tpu.memory_space<vmem>>, vector<1x256xbf16>
    %296 = vector.broadcast %295 : vector<1x256xbf16> to vector<16x256xbf16>
    %297 = arith.mulf %294, %296 : vector<16x256xbf16>
    %c15_201 = arith.constant 15 : index
    %c0_202 = arith.constant 0 : index
    %c0_203 = arith.constant 0 : index
    %298 = vector.load %arg7[%c15_201, %c0_202, %c0_203] : memref<25x8x16xbf16, #tpu.memory_space<vmem>>, vector<1x8x16xbf16>
    %299 = vector.shape_cast %298 : vector<1x8x16xbf16> to vector<8x16xbf16>
    %cst_204 = arith.constant dense<0.000000e+00> : vector<8x256xf32>
    %300 = tpu.matmul %299, %297, %cst_204 {dimension_numbers = #tpu.dot_dimension_numbers<[1], [0], [0], [1], [0, 0, 1, 1], [], []>} : vector<8x16xbf16>, vector<16x256xbf16>, vector<8x256xf32> -> vector<8x256xf32>
    %301 = arith.addf %293, %300 : vector<8x256xf32>
    %302 = vector.extract_strided_slice %172 {offsets = [0, 49], sizes = [16, 256], strides = [1, 1]} : vector<16x324xbf16> to vector<16x256xbf16>
    %c16 = arith.constant 16 : index
    %c0_205 = arith.constant 0 : index
    %303 = vector.load %arg9[%c16, %c0_205] : memref<25x256xbf16, #tpu.memory_space<vmem>>, vector<1x256xbf16>
    %304 = vector.broadcast %303 : vector<1x256xbf16> to vector<16x256xbf16>
    %305 = arith.mulf %302, %304 : vector<16x256xbf16>
    %c16_206 = arith.constant 16 : index
    %c0_207 = arith.constant 0 : index
    %c0_208 = arith.constant 0 : index
    %306 = vector.load %arg7[%c16_206, %c0_207, %c0_208] : memref<25x8x16xbf16, #tpu.memory_space<vmem>>, vector<1x8x16xbf16>
    %307 = vector.shape_cast %306 : vector<1x8x16xbf16> to vector<8x16xbf16>
    %cst_209 = arith.constant dense<0.000000e+00> : vector<8x256xf32>
    %308 = tpu.matmul %307, %305, %cst_209 {dimension_numbers = #tpu.dot_dimension_numbers<[1], [0], [0], [1], [0, 0, 1, 1], [], []>} : vector<8x16xbf16>, vector<16x256xbf16>, vector<8x256xf32> -> vector<8x256xf32>
    %309 = arith.addf %301, %308 : vector<8x256xf32>
    %310 = vector.extract_strided_slice %172 {offsets = [0, 50], sizes = [16, 256], strides = [1, 1]} : vector<16x324xbf16> to vector<16x256xbf16>
    %c17 = arith.constant 17 : index
    %c0_210 = arith.constant 0 : index
    %311 = vector.load %arg9[%c17, %c0_210] : memref<25x256xbf16, #tpu.memory_space<vmem>>, vector<1x256xbf16>
    %312 = vector.broadcast %311 : vector<1x256xbf16> to vector<16x256xbf16>
    %313 = arith.mulf %310, %312 : vector<16x256xbf16>
    %c17_211 = arith.constant 17 : index
    %c0_212 = arith.constant 0 : index
    %c0_213 = arith.constant 0 : index
    %314 = vector.load %arg7[%c17_211, %c0_212, %c0_213] : memref<25x8x16xbf16, #tpu.memory_space<vmem>>, vector<1x8x16xbf16>
    %315 = vector.shape_cast %314 : vector<1x8x16xbf16> to vector<8x16xbf16>
    %cst_214 = arith.constant dense<0.000000e+00> : vector<8x256xf32>
    %316 = tpu.matmul %315, %313, %cst_214 {dimension_numbers = #tpu.dot_dimension_numbers<[1], [0], [0], [1], [0, 0, 1, 1], [], []>} : vector<8x16xbf16>, vector<16x256xbf16>, vector<8x256xf32> -> vector<8x256xf32>
    %317 = arith.addf %309, %316 : vector<8x256xf32>
    %318 = vector.extract_strided_slice %172 {offsets = [0, 51], sizes = [16, 256], strides = [1, 1]} : vector<16x324xbf16> to vector<16x256xbf16>
    %c18 = arith.constant 18 : index
    %c0_215 = arith.constant 0 : index
    %319 = vector.load %arg9[%c18, %c0_215] : memref<25x256xbf16, #tpu.memory_space<vmem>>, vector<1x256xbf16>
    %320 = vector.broadcast %319 : vector<1x256xbf16> to vector<16x256xbf16>
    %321 = arith.mulf %318, %320 : vector<16x256xbf16>
    %c18_216 = arith.constant 18 : index
    %c0_217 = arith.constant 0 : index
    %c0_218 = arith.constant 0 : index
    %322 = vector.load %arg7[%c18_216, %c0_217, %c0_218] : memref<25x8x16xbf16, #tpu.memory_space<vmem>>, vector<1x8x16xbf16>
    %323 = vector.shape_cast %322 : vector<1x8x16xbf16> to vector<8x16xbf16>
    %cst_219 = arith.constant dense<0.000000e+00> : vector<8x256xf32>
    %324 = tpu.matmul %323, %321, %cst_219 {dimension_numbers = #tpu.dot_dimension_numbers<[1], [0], [0], [1], [0, 0, 1, 1], [], []>} : vector<8x16xbf16>, vector<16x256xbf16>, vector<8x256xf32> -> vector<8x256xf32>
    %325 = arith.addf %317, %324 : vector<8x256xf32>
    %326 = vector.extract_strided_slice %172 {offsets = [0, 52], sizes = [16, 256], strides = [1, 1]} : vector<16x324xbf16> to vector<16x256xbf16>
    %c19 = arith.constant 19 : index
    %c0_220 = arith.constant 0 : index
    %327 = vector.load %arg9[%c19, %c0_220] : memref<25x256xbf16, #tpu.memory_space<vmem>>, vector<1x256xbf16>
    %328 = vector.broadcast %327 : vector<1x256xbf16> to vector<16x256xbf16>
    %329 = arith.mulf %326, %328 : vector<16x256xbf16>
    %c19_221 = arith.constant 19 : index
    %c0_222 = arith.constant 0 : index
    %c0_223 = arith.constant 0 : index
    %330 = vector.load %arg7[%c19_221, %c0_222, %c0_223] : memref<25x8x16xbf16, #tpu.memory_space<vmem>>, vector<1x8x16xbf16>
    %331 = vector.shape_cast %330 : vector<1x8x16xbf16> to vector<8x16xbf16>
    %cst_224 = arith.constant dense<0.000000e+00> : vector<8x256xf32>
    %332 = tpu.matmul %331, %329, %cst_224 {dimension_numbers = #tpu.dot_dimension_numbers<[1], [0], [0], [1], [0, 0, 1, 1], [], []>} : vector<8x16xbf16>, vector<16x256xbf16>, vector<8x256xf32> -> vector<8x256xf32>
    %333 = arith.addf %325, %332 : vector<8x256xf32>
    %334 = vector.extract_strided_slice %172 {offsets = [0, 64], sizes = [16, 256], strides = [1, 1]} : vector<16x324xbf16> to vector<16x256xbf16>
    %c20 = arith.constant 20 : index
    %c0_225 = arith.constant 0 : index
    %335 = vector.load %arg9[%c20, %c0_225] : memref<25x256xbf16, #tpu.memory_space<vmem>>, vector<1x256xbf16>
    %336 = vector.broadcast %335 : vector<1x256xbf16> to vector<16x256xbf16>
    %337 = arith.mulf %334, %336 : vector<16x256xbf16>
    %c20_226 = arith.constant 20 : index
    %c0_227 = arith.constant 0 : index
    %c0_228 = arith.constant 0 : index
    %338 = vector.load %arg7[%c20_226, %c0_227, %c0_228] : memref<25x8x16xbf16, #tpu.memory_space<vmem>>, vector<1x8x16xbf16>
    %339 = vector.shape_cast %338 : vector<1x8x16xbf16> to vector<8x16xbf16>
    %cst_229 = arith.constant dense<0.000000e+00> : vector<8x256xf32>
    %340 = tpu.matmul %339, %337, %cst_229 {dimension_numbers = #tpu.dot_dimension_numbers<[1], [0], [0], [1], [0, 0, 1, 1], [], []>} : vector<8x16xbf16>, vector<16x256xbf16>, vector<8x256xf32> -> vector<8x256xf32>
    %341 = arith.addf %333, %340 : vector<8x256xf32>
    %342 = vector.extract_strided_slice %172 {offsets = [0, 65], sizes = [16, 256], strides = [1, 1]} : vector<16x324xbf16> to vector<16x256xbf16>
    %c21 = arith.constant 21 : index
    %c0_230 = arith.constant 0 : index
    %343 = vector.load %arg9[%c21, %c0_230] : memref<25x256xbf16, #tpu.memory_space<vmem>>, vector<1x256xbf16>
    %344 = vector.broadcast %343 : vector<1x256xbf16> to vector<16x256xbf16>
    %345 = arith.mulf %342, %344 : vector<16x256xbf16>
    %c21_231 = arith.constant 21 : index
    %c0_232 = arith.constant 0 : index
    %c0_233 = arith.constant 0 : index
    %346 = vector.load %arg7[%c21_231, %c0_232, %c0_233] : memref<25x8x16xbf16, #tpu.memory_space<vmem>>, vector<1x8x16xbf16>
    %347 = vector.shape_cast %346 : vector<1x8x16xbf16> to vector<8x16xbf16>
    %cst_234 = arith.constant dense<0.000000e+00> : vector<8x256xf32>
    %348 = tpu.matmul %347, %345, %cst_234 {dimension_numbers = #tpu.dot_dimension_numbers<[1], [0], [0], [1], [0, 0, 1, 1], [], []>} : vector<8x16xbf16>, vector<16x256xbf16>, vector<8x256xf32> -> vector<8x256xf32>
    %349 = arith.addf %341, %348 : vector<8x256xf32>
    %350 = vector.extract_strided_slice %172 {offsets = [0, 66], sizes = [16, 256], strides = [1, 1]} : vector<16x324xbf16> to vector<16x256xbf16>
    %c22 = arith.constant 22 : index
    %c0_235 = arith.constant 0 : index
    %351 = vector.load %arg9[%c22, %c0_235] : memref<25x256xbf16, #tpu.memory_space<vmem>>, vector<1x256xbf16>
    %352 = vector.broadcast %351 : vector<1x256xbf16> to vector<16x256xbf16>
    %353 = arith.mulf %350, %352 : vector<16x256xbf16>
    %c22_236 = arith.constant 22 : index
    %c0_237 = arith.constant 0 : index
    %c0_238 = arith.constant 0 : index
    %354 = vector.load %arg7[%c22_236, %c0_237, %c0_238] : memref<25x8x16xbf16, #tpu.memory_space<vmem>>, vector<1x8x16xbf16>
    %355 = vector.shape_cast %354 : vector<1x8x16xbf16> to vector<8x16xbf16>
    %cst_239 = arith.constant dense<0.000000e+00> : vector<8x256xf32>
    %356 = tpu.matmul %355, %353, %cst_239 {dimension_numbers = #tpu.dot_dimension_numbers<[1], [0], [0], [1], [0, 0, 1, 1], [], []>} : vector<8x16xbf16>, vector<16x256xbf16>, vector<8x256xf32> -> vector<8x256xf32>
    %357 = arith.addf %349, %356 : vector<8x256xf32>
    %358 = vector.extract_strided_slice %172 {offsets = [0, 67], sizes = [16, 256], strides = [1, 1]} : vector<16x324xbf16> to vector<16x256xbf16>
    %c23 = arith.constant 23 : index
    %c0_240 = arith.constant 0 : index
    %359 = vector.load %arg9[%c23, %c0_240] : memref<25x256xbf16, #tpu.memory_space<vmem>>, vector<1x256xbf16>
    %360 = vector.broadcast %359 : vector<1x256xbf16> to vector<16x256xbf16>
    %361 = arith.mulf %358, %360 : vector<16x256xbf16>
    %c23_241 = arith.constant 23 : index
    %c0_242 = arith.constant 0 : index
    %c0_243 = arith.constant 0 : index
    %362 = vector.load %arg7[%c23_241, %c0_242, %c0_243] : memref<25x8x16xbf16, #tpu.memory_space<vmem>>, vector<1x8x16xbf16>
    %363 = vector.shape_cast %362 : vector<1x8x16xbf16> to vector<8x16xbf16>
    %cst_244 = arith.constant dense<0.000000e+00> : vector<8x256xf32>
    %364 = tpu.matmul %363, %361, %cst_244 {dimension_numbers = #tpu.dot_dimension_numbers<[1], [0], [0], [1], [0, 0, 1, 1], [], []>} : vector<8x16xbf16>, vector<16x256xbf16>, vector<8x256xf32> -> vector<8x256xf32>
    %365 = arith.addf %357, %364 : vector<8x256xf32>
    %366 = vector.extract_strided_slice %172 {offsets = [0, 68], sizes = [16, 256], strides = [1, 1]} : vector<16x324xbf16> to vector<16x256xbf16>
    %c24 = arith.constant 24 : index
    %c0_245 = arith.constant 0 : index
    %367 = vector.load %arg9[%c24, %c0_245] : memref<25x256xbf16, #tpu.memory_space<vmem>>, vector<1x256xbf16>
    %368 = vector.broadcast %367 : vector<1x256xbf16> to vector<16x256xbf16>
    %369 = arith.mulf %366, %368 : vector<16x256xbf16>
    %c24_246 = arith.constant 24 : index
    %c0_247 = arith.constant 0 : index
    %c0_248 = arith.constant 0 : index
    %370 = vector.load %arg7[%c24_246, %c0_247, %c0_248] : memref<25x8x16xbf16, #tpu.memory_space<vmem>>, vector<1x8x16xbf16>
    %371 = vector.shape_cast %370 : vector<1x8x16xbf16> to vector<8x16xbf16>
    %cst_249 = arith.constant dense<0.000000e+00> : vector<8x256xf32>
    %372 = tpu.matmul %371, %369, %cst_249 {dimension_numbers = #tpu.dot_dimension_numbers<[1], [0], [0], [1], [0, 0, 1, 1], [], []>} : vector<8x16xbf16>, vector<16x256xbf16>, vector<8x256xf32> -> vector<8x256xf32>
    %373 = arith.addf %365, %372 : vector<8x256xf32>
    %c0_250 = arith.constant 0 : index
    %c0_251 = arith.constant 0 : index
    %374 = vector.load %arg8[%c0_250, %c0_251] : memref<8x1xf32, #tpu.memory_space<vmem>>, vector<8x1xf32>
    %375 = vector.broadcast %374 : vector<8x1xf32> to vector<8x256xf32>
    %376 = arith.addf %373, %375 : vector<8x256xf32>
    %cst_252 = arith.constant 2.000000e-01 : f32
    %377 = vector.broadcast %cst_252 : f32 to vector<8x256xf32>
    %378 = arith.mulf %377, %376 : vector<8x256xf32>
    %379 = arith.maximumf %376, %378 : vector<8x256xf32>
    %380 = arith.truncf %379 : vector<8x256xf32> to vector<8x256xbf16>
    %cst_253 = arith.constant 0.000000e+00 : bf16
    %381 = vector.broadcast %cst_253 : bf16 to vector<8x51xbf16>
    %382 = tpu.concatenate %381, %380, %381 in 1 : vector<8x51xbf16>, vector<8x256xbf16>, vector<8x51xbf16> -> vector<8x358xbf16>
    %cst_254 = arith.constant 0.000000e+00 : f32
    %383 = vector.broadcast %cst_254 : f32 to vector<3x256xf32>
    %384 = vector.extract_strided_slice %382 {offsets = [0, 0], sizes = [8, 256], strides = [1, 1]} : vector<8x358xbf16> to vector<8x256xbf16>
    %c0_255 = arith.constant 0 : index
    %c0_256 = arith.constant 0 : index
    %385 = vector.load %arg13[%c0_255, %c0_256] : memref<49x256xbf16, #tpu.memory_space<vmem>>, vector<1x256xbf16>
    %386 = vector.broadcast %385 : vector<1x256xbf16> to vector<8x256xbf16>
    %387 = arith.mulf %384, %386 : vector<8x256xbf16>
    %c0_257 = arith.constant 0 : index
    %c0_258 = arith.constant 0 : index
    %c0_259 = arith.constant 0 : index
    %388 = vector.load %arg11[%c0_257, %c0_258, %c0_259] : memref<49x3x8xbf16, #tpu.memory_space<vmem>>, vector<1x3x8xbf16>
    %389 = vector.shape_cast %388 : vector<1x3x8xbf16> to vector<3x8xbf16>
    %cst_260 = arith.constant dense<0.000000e+00> : vector<3x256xf32>
    %390 = tpu.matmul %389, %387, %cst_260 {dimension_numbers = #tpu.dot_dimension_numbers<[1], [0], [0], [1], [0, 0, 1, 1], [], []>} : vector<3x8xbf16>, vector<8x256xbf16>, vector<3x256xf32> -> vector<3x256xf32>
    %391 = arith.addf %383, %390 : vector<3x256xf32>
    %392 = vector.extract_strided_slice %382 {offsets = [0, 1], sizes = [8, 256], strides = [1, 1]} : vector<8x358xbf16> to vector<8x256xbf16>
    %c1_261 = arith.constant 1 : index
    %c0_262 = arith.constant 0 : index
    %393 = vector.load %arg13[%c1_261, %c0_262] : memref<49x256xbf16, #tpu.memory_space<vmem>>, vector<1x256xbf16>
    %394 = vector.broadcast %393 : vector<1x256xbf16> to vector<8x256xbf16>
    %395 = arith.mulf %392, %394 : vector<8x256xbf16>
    %c1_263 = arith.constant 1 : index
    %c0_264 = arith.constant 0 : index
    %c0_265 = arith.constant 0 : index
    %396 = vector.load %arg11[%c1_263, %c0_264, %c0_265] : memref<49x3x8xbf16, #tpu.memory_space<vmem>>, vector<1x3x8xbf16>
    %397 = vector.shape_cast %396 : vector<1x3x8xbf16> to vector<3x8xbf16>
    %cst_266 = arith.constant dense<0.000000e+00> : vector<3x256xf32>
    %398 = tpu.matmul %397, %395, %cst_266 {dimension_numbers = #tpu.dot_dimension_numbers<[1], [0], [0], [1], [0, 0, 1, 1], [], []>} : vector<3x8xbf16>, vector<8x256xbf16>, vector<3x256xf32> -> vector<3x256xf32>
    %399 = arith.addf %391, %398 : vector<3x256xf32>
    %400 = vector.extract_strided_slice %382 {offsets = [0, 2], sizes = [8, 256], strides = [1, 1]} : vector<8x358xbf16> to vector<8x256xbf16>
    %c2_267 = arith.constant 2 : index
    %c0_268 = arith.constant 0 : index
    %401 = vector.load %arg13[%c2_267, %c0_268] : memref<49x256xbf16, #tpu.memory_space<vmem>>, vector<1x256xbf16>
    %402 = vector.broadcast %401 : vector<1x256xbf16> to vector<8x256xbf16>
    %403 = arith.mulf %400, %402 : vector<8x256xbf16>
    %c2_269 = arith.constant 2 : index
    %c0_270 = arith.constant 0 : index
    %c0_271 = arith.constant 0 : index
    %404 = vector.load %arg11[%c2_269, %c0_270, %c0_271] : memref<49x3x8xbf16, #tpu.memory_space<vmem>>, vector<1x3x8xbf16>
    %405 = vector.shape_cast %404 : vector<1x3x8xbf16> to vector<3x8xbf16>
    %cst_272 = arith.constant dense<0.000000e+00> : vector<3x256xf32>
    %406 = tpu.matmul %405, %403, %cst_272 {dimension_numbers = #tpu.dot_dimension_numbers<[1], [0], [0], [1], [0, 0, 1, 1], [], []>} : vector<3x8xbf16>, vector<8x256xbf16>, vector<3x256xf32> -> vector<3x256xf32>
    %407 = arith.addf %399, %406 : vector<3x256xf32>
    %408 = vector.extract_strided_slice %382 {offsets = [0, 3], sizes = [8, 256], strides = [1, 1]} : vector<8x358xbf16> to vector<8x256xbf16>
    %c3_273 = arith.constant 3 : index
    %c0_274 = arith.constant 0 : index
    %409 = vector.load %arg13[%c3_273, %c0_274] : memref<49x256xbf16, #tpu.memory_space<vmem>>, vector<1x256xbf16>
    %410 = vector.broadcast %409 : vector<1x256xbf16> to vector<8x256xbf16>
    %411 = arith.mulf %408, %410 : vector<8x256xbf16>
    %c3_275 = arith.constant 3 : index
    %c0_276 = arith.constant 0 : index
    %c0_277 = arith.constant 0 : index
    %412 = vector.load %arg11[%c3_275, %c0_276, %c0_277] : memref<49x3x8xbf16, #tpu.memory_space<vmem>>, vector<1x3x8xbf16>
    %413 = vector.shape_cast %412 : vector<1x3x8xbf16> to vector<3x8xbf16>
    %cst_278 = arith.constant dense<0.000000e+00> : vector<3x256xf32>
    %414 = tpu.matmul %413, %411, %cst_278 {dimension_numbers = #tpu.dot_dimension_numbers<[1], [0], [0], [1], [0, 0, 1, 1], [], []>} : vector<3x8xbf16>, vector<8x256xbf16>, vector<3x256xf32> -> vector<3x256xf32>
    %415 = arith.addf %407, %414 : vector<3x256xf32>
    %416 = vector.extract_strided_slice %382 {offsets = [0, 4], sizes = [8, 256], strides = [1, 1]} : vector<8x358xbf16> to vector<8x256xbf16>
    %c4_279 = arith.constant 4 : index
    %c0_280 = arith.constant 0 : index
    %417 = vector.load %arg13[%c4_279, %c0_280] : memref<49x256xbf16, #tpu.memory_space<vmem>>, vector<1x256xbf16>
    %418 = vector.broadcast %417 : vector<1x256xbf16> to vector<8x256xbf16>
    %419 = arith.mulf %416, %418 : vector<8x256xbf16>
    %c4_281 = arith.constant 4 : index
    %c0_282 = arith.constant 0 : index
    %c0_283 = arith.constant 0 : index
    %420 = vector.load %arg11[%c4_281, %c0_282, %c0_283] : memref<49x3x8xbf16, #tpu.memory_space<vmem>>, vector<1x3x8xbf16>
    %421 = vector.shape_cast %420 : vector<1x3x8xbf16> to vector<3x8xbf16>
    %cst_284 = arith.constant dense<0.000000e+00> : vector<3x256xf32>
    %422 = tpu.matmul %421, %419, %cst_284 {dimension_numbers = #tpu.dot_dimension_numbers<[1], [0], [0], [1], [0, 0, 1, 1], [], []>} : vector<3x8xbf16>, vector<8x256xbf16>, vector<3x256xf32> -> vector<3x256xf32>
    %423 = arith.addf %415, %422 : vector<3x256xf32>
    %424 = vector.extract_strided_slice %382 {offsets = [0, 5], sizes = [8, 256], strides = [1, 1]} : vector<8x358xbf16> to vector<8x256xbf16>
    %c5_285 = arith.constant 5 : index
    %c0_286 = arith.constant 0 : index
    %425 = vector.load %arg13[%c5_285, %c0_286] : memref<49x256xbf16, #tpu.memory_space<vmem>>, vector<1x256xbf16>
    %426 = vector.broadcast %425 : vector<1x256xbf16> to vector<8x256xbf16>
    %427 = arith.mulf %424, %426 : vector<8x256xbf16>
    %c5_287 = arith.constant 5 : index
    %c0_288 = arith.constant 0 : index
    %c0_289 = arith.constant 0 : index
    %428 = vector.load %arg11[%c5_287, %c0_288, %c0_289] : memref<49x3x8xbf16, #tpu.memory_space<vmem>>, vector<1x3x8xbf16>
    %429 = vector.shape_cast %428 : vector<1x3x8xbf16> to vector<3x8xbf16>
    %cst_290 = arith.constant dense<0.000000e+00> : vector<3x256xf32>
    %430 = tpu.matmul %429, %427, %cst_290 {dimension_numbers = #tpu.dot_dimension_numbers<[1], [0], [0], [1], [0, 0, 1, 1], [], []>} : vector<3x8xbf16>, vector<8x256xbf16>, vector<3x256xf32> -> vector<3x256xf32>
    %431 = arith.addf %423, %430 : vector<3x256xf32>
    %432 = vector.extract_strided_slice %382 {offsets = [0, 6], sizes = [8, 256], strides = [1, 1]} : vector<8x358xbf16> to vector<8x256xbf16>
    %c6_291 = arith.constant 6 : index
    %c0_292 = arith.constant 0 : index
    %433 = vector.load %arg13[%c6_291, %c0_292] : memref<49x256xbf16, #tpu.memory_space<vmem>>, vector<1x256xbf16>
    %434 = vector.broadcast %433 : vector<1x256xbf16> to vector<8x256xbf16>
    %435 = arith.mulf %432, %434 : vector<8x256xbf16>
    %c6_293 = arith.constant 6 : index
    %c0_294 = arith.constant 0 : index
    %c0_295 = arith.constant 0 : index
    %436 = vector.load %arg11[%c6_293, %c0_294, %c0_295] : memref<49x3x8xbf16, #tpu.memory_space<vmem>>, vector<1x3x8xbf16>
    %437 = vector.shape_cast %436 : vector<1x3x8xbf16> to vector<3x8xbf16>
    %cst_296 = arith.constant dense<0.000000e+00> : vector<3x256xf32>
    %438 = tpu.matmul %437, %435, %cst_296 {dimension_numbers = #tpu.dot_dimension_numbers<[1], [0], [0], [1], [0, 0, 1, 1], [], []>} : vector<3x8xbf16>, vector<8x256xbf16>, vector<3x256xf32> -> vector<3x256xf32>
    %439 = arith.addf %431, %438 : vector<3x256xf32>
    %440 = vector.extract_strided_slice %382 {offsets = [0, 16], sizes = [8, 256], strides = [1, 1]} : vector<8x358xbf16> to vector<8x256xbf16>
    %c7_297 = arith.constant 7 : index
    %c0_298 = arith.constant 0 : index
    %441 = vector.load %arg13[%c7_297, %c0_298] : memref<49x256xbf16, #tpu.memory_space<vmem>>, vector<1x256xbf16>
    %442 = vector.broadcast %441 : vector<1x256xbf16> to vector<8x256xbf16>
    %443 = arith.mulf %440, %442 : vector<8x256xbf16>
    %c7_299 = arith.constant 7 : index
    %c0_300 = arith.constant 0 : index
    %c0_301 = arith.constant 0 : index
    %444 = vector.load %arg11[%c7_299, %c0_300, %c0_301] : memref<49x3x8xbf16, #tpu.memory_space<vmem>>, vector<1x3x8xbf16>
    %445 = vector.shape_cast %444 : vector<1x3x8xbf16> to vector<3x8xbf16>
    %cst_302 = arith.constant dense<0.000000e+00> : vector<3x256xf32>
    %446 = tpu.matmul %445, %443, %cst_302 {dimension_numbers = #tpu.dot_dimension_numbers<[1], [0], [0], [1], [0, 0, 1, 1], [], []>} : vector<3x8xbf16>, vector<8x256xbf16>, vector<3x256xf32> -> vector<3x256xf32>
    %447 = arith.addf %439, %446 : vector<3x256xf32>
    %448 = vector.extract_strided_slice %382 {offsets = [0, 17], sizes = [8, 256], strides = [1, 1]} : vector<8x358xbf16> to vector<8x256xbf16>
    %c8_303 = arith.constant 8 : index
    %c0_304 = arith.constant 0 : index
    %449 = vector.load %arg13[%c8_303, %c0_304] : memref<49x256xbf16, #tpu.memory_space<vmem>>, vector<1x256xbf16>
    %450 = vector.broadcast %449 : vector<1x256xbf16> to vector<8x256xbf16>
    %451 = arith.mulf %448, %450 : vector<8x256xbf16>
    %c8_305 = arith.constant 8 : index
    %c0_306 = arith.constant 0 : index
    %c0_307 = arith.constant 0 : index
    %452 = vector.load %arg11[%c8_305, %c0_306, %c0_307] : memref<49x3x8xbf16, #tpu.memory_space<vmem>>, vector<1x3x8xbf16>
    %453 = vector.shape_cast %452 : vector<1x3x8xbf16> to vector<3x8xbf16>
    %cst_308 = arith.constant dense<0.000000e+00> : vector<3x256xf32>
    %454 = tpu.matmul %453, %451, %cst_308 {dimension_numbers = #tpu.dot_dimension_numbers<[1], [0], [0], [1], [0, 0, 1, 1], [], []>} : vector<3x8xbf16>, vector<8x256xbf16>, vector<3x256xf32> -> vector<3x256xf32>
    %455 = arith.addf %447, %454 : vector<3x256xf32>
    %456 = vector.extract_strided_slice %382 {offsets = [0, 18], sizes = [8, 256], strides = [1, 1]} : vector<8x358xbf16> to vector<8x256xbf16>
    %c9_309 = arith.constant 9 : index
    %c0_310 = arith.constant 0 : index
    %457 = vector.load %arg13[%c9_309, %c0_310] : memref<49x256xbf16, #tpu.memory_space<vmem>>, vector<1x256xbf16>
    %458 = vector.broadcast %457 : vector<1x256xbf16> to vector<8x256xbf16>
    %459 = arith.mulf %456, %458 : vector<8x256xbf16>
    %c9_311 = arith.constant 9 : index
    %c0_312 = arith.constant 0 : index
    %c0_313 = arith.constant 0 : index
    %460 = vector.load %arg11[%c9_311, %c0_312, %c0_313] : memref<49x3x8xbf16, #tpu.memory_space<vmem>>, vector<1x3x8xbf16>
    %461 = vector.shape_cast %460 : vector<1x3x8xbf16> to vector<3x8xbf16>
    %cst_314 = arith.constant dense<0.000000e+00> : vector<3x256xf32>
    %462 = tpu.matmul %461, %459, %cst_314 {dimension_numbers = #tpu.dot_dimension_numbers<[1], [0], [0], [1], [0, 0, 1, 1], [], []>} : vector<3x8xbf16>, vector<8x256xbf16>, vector<3x256xf32> -> vector<3x256xf32>
    %463 = arith.addf %455, %462 : vector<3x256xf32>
    %464 = vector.extract_strided_slice %382 {offsets = [0, 19], sizes = [8, 256], strides = [1, 1]} : vector<8x358xbf16> to vector<8x256xbf16>
    %c10_315 = arith.constant 10 : index
    %c0_316 = arith.constant 0 : index
    %465 = vector.load %arg13[%c10_315, %c0_316] : memref<49x256xbf16, #tpu.memory_space<vmem>>, vector<1x256xbf16>
    %466 = vector.broadcast %465 : vector<1x256xbf16> to vector<8x256xbf16>
    %467 = arith.mulf %464, %466 : vector<8x256xbf16>
    %c10_317 = arith.constant 10 : index
    %c0_318 = arith.constant 0 : index
    %c0_319 = arith.constant 0 : index
    %468 = vector.load %arg11[%c10_317, %c0_318, %c0_319] : memref<49x3x8xbf16, #tpu.memory_space<vmem>>, vector<1x3x8xbf16>
    %469 = vector.shape_cast %468 : vector<1x3x8xbf16> to vector<3x8xbf16>
    %cst_320 = arith.constant dense<0.000000e+00> : vector<3x256xf32>
    %470 = tpu.matmul %469, %467, %cst_320 {dimension_numbers = #tpu.dot_dimension_numbers<[1], [0], [0], [1], [0, 0, 1, 1], [], []>} : vector<3x8xbf16>, vector<8x256xbf16>, vector<3x256xf32> -> vector<3x256xf32>
    %471 = arith.addf %463, %470 : vector<3x256xf32>
    %472 = vector.extract_strided_slice %382 {offsets = [0, 20], sizes = [8, 256], strides = [1, 1]} : vector<8x358xbf16> to vector<8x256xbf16>
    %c11_321 = arith.constant 11 : index
    %c0_322 = arith.constant 0 : index
    %473 = vector.load %arg13[%c11_321, %c0_322] : memref<49x256xbf16, #tpu.memory_space<vmem>>, vector<1x256xbf16>
    %474 = vector.broadcast %473 : vector<1x256xbf16> to vector<8x256xbf16>
    %475 = arith.mulf %472, %474 : vector<8x256xbf16>
    %c11_323 = arith.constant 11 : index
    %c0_324 = arith.constant 0 : index
    %c0_325 = arith.constant 0 : index
    %476 = vector.load %arg11[%c11_323, %c0_324, %c0_325] : memref<49x3x8xbf16, #tpu.memory_space<vmem>>, vector<1x3x8xbf16>
    %477 = vector.shape_cast %476 : vector<1x3x8xbf16> to vector<3x8xbf16>
    %cst_326 = arith.constant dense<0.000000e+00> : vector<3x256xf32>
    %478 = tpu.matmul %477, %475, %cst_326 {dimension_numbers = #tpu.dot_dimension_numbers<[1], [0], [0], [1], [0, 0, 1, 1], [], []>} : vector<3x8xbf16>, vector<8x256xbf16>, vector<3x256xf32> -> vector<3x256xf32>
    %479 = arith.addf %471, %478 : vector<3x256xf32>
    %480 = vector.extract_strided_slice %382 {offsets = [0, 21], sizes = [8, 256], strides = [1, 1]} : vector<8x358xbf16> to vector<8x256xbf16>
    %c12_327 = arith.constant 12 : index
    %c0_328 = arith.constant 0 : index
    %481 = vector.load %arg13[%c12_327, %c0_328] : memref<49x256xbf16, #tpu.memory_space<vmem>>, vector<1x256xbf16>
    %482 = vector.broadcast %481 : vector<1x256xbf16> to vector<8x256xbf16>
    %483 = arith.mulf %480, %482 : vector<8x256xbf16>
    %c12_329 = arith.constant 12 : index
    %c0_330 = arith.constant 0 : index
    %c0_331 = arith.constant 0 : index
    %484 = vector.load %arg11[%c12_329, %c0_330, %c0_331] : memref<49x3x8xbf16, #tpu.memory_space<vmem>>, vector<1x3x8xbf16>
    %485 = vector.shape_cast %484 : vector<1x3x8xbf16> to vector<3x8xbf16>
    %cst_332 = arith.constant dense<0.000000e+00> : vector<3x256xf32>
    %486 = tpu.matmul %485, %483, %cst_332 {dimension_numbers = #tpu.dot_dimension_numbers<[1], [0], [0], [1], [0, 0, 1, 1], [], []>} : vector<3x8xbf16>, vector<8x256xbf16>, vector<3x256xf32> -> vector<3x256xf32>
    %487 = arith.addf %479, %486 : vector<3x256xf32>
    %488 = vector.extract_strided_slice %382 {offsets = [0, 22], sizes = [8, 256], strides = [1, 1]} : vector<8x358xbf16> to vector<8x256xbf16>
    %c13_333 = arith.constant 13 : index
    %c0_334 = arith.constant 0 : index
    %489 = vector.load %arg13[%c13_333, %c0_334] : memref<49x256xbf16, #tpu.memory_space<vmem>>, vector<1x256xbf16>
    %490 = vector.broadcast %489 : vector<1x256xbf16> to vector<8x256xbf16>
    %491 = arith.mulf %488, %490 : vector<8x256xbf16>
    %c13_335 = arith.constant 13 : index
    %c0_336 = arith.constant 0 : index
    %c0_337 = arith.constant 0 : index
    %492 = vector.load %arg11[%c13_335, %c0_336, %c0_337] : memref<49x3x8xbf16, #tpu.memory_space<vmem>>, vector<1x3x8xbf16>
    %493 = vector.shape_cast %492 : vector<1x3x8xbf16> to vector<3x8xbf16>
    %cst_338 = arith.constant dense<0.000000e+00> : vector<3x256xf32>
    %494 = tpu.matmul %493, %491, %cst_338 {dimension_numbers = #tpu.dot_dimension_numbers<[1], [0], [0], [1], [0, 0, 1, 1], [], []>} : vector<3x8xbf16>, vector<8x256xbf16>, vector<3x256xf32> -> vector<3x256xf32>
    %495 = arith.addf %487, %494 : vector<3x256xf32>
    %496 = vector.extract_strided_slice %382 {offsets = [0, 32], sizes = [8, 256], strides = [1, 1]} : vector<8x358xbf16> to vector<8x256xbf16>
    %c14_339 = arith.constant 14 : index
    %c0_340 = arith.constant 0 : index
    %497 = vector.load %arg13[%c14_339, %c0_340] : memref<49x256xbf16, #tpu.memory_space<vmem>>, vector<1x256xbf16>
    %498 = vector.broadcast %497 : vector<1x256xbf16> to vector<8x256xbf16>
    %499 = arith.mulf %496, %498 : vector<8x256xbf16>
    %c14_341 = arith.constant 14 : index
    %c0_342 = arith.constant 0 : index
    %c0_343 = arith.constant 0 : index
    %500 = vector.load %arg11[%c14_341, %c0_342, %c0_343] : memref<49x3x8xbf16, #tpu.memory_space<vmem>>, vector<1x3x8xbf16>
    %501 = vector.shape_cast %500 : vector<1x3x8xbf16> to vector<3x8xbf16>
    %cst_344 = arith.constant dense<0.000000e+00> : vector<3x256xf32>
    %502 = tpu.matmul %501, %499, %cst_344 {dimension_numbers = #tpu.dot_dimension_numbers<[1], [0], [0], [1], [0, 0, 1, 1], [], []>} : vector<3x8xbf16>, vector<8x256xbf16>, vector<3x256xf32> -> vector<3x256xf32>
    %503 = arith.addf %495, %502 : vector<3x256xf32>
    %504 = vector.extract_strided_slice %382 {offsets = [0, 33], sizes = [8, 256], strides = [1, 1]} : vector<8x358xbf16> to vector<8x256xbf16>
    %c15_345 = arith.constant 15 : index
    %c0_346 = arith.constant 0 : index
    %505 = vector.load %arg13[%c15_345, %c0_346] : memref<49x256xbf16, #tpu.memory_space<vmem>>, vector<1x256xbf16>
    %506 = vector.broadcast %505 : vector<1x256xbf16> to vector<8x256xbf16>
    %507 = arith.mulf %504, %506 : vector<8x256xbf16>
    %c15_347 = arith.constant 15 : index
    %c0_348 = arith.constant 0 : index
    %c0_349 = arith.constant 0 : index
    %508 = vector.load %arg11[%c15_347, %c0_348, %c0_349] : memref<49x3x8xbf16, #tpu.memory_space<vmem>>, vector<1x3x8xbf16>
    %509 = vector.shape_cast %508 : vector<1x3x8xbf16> to vector<3x8xbf16>
    %cst_350 = arith.constant dense<0.000000e+00> : vector<3x256xf32>
    %510 = tpu.matmul %509, %507, %cst_350 {dimension_numbers = #tpu.dot_dimension_numbers<[1], [0], [0], [1], [0, 0, 1, 1], [], []>} : vector<3x8xbf16>, vector<8x256xbf16>, vector<3x256xf32> -> vector<3x256xf32>
    %511 = arith.addf %503, %510 : vector<3x256xf32>
    %512 = vector.extract_strided_slice %382 {offsets = [0, 34], sizes = [8, 256], strides = [1, 1]} : vector<8x358xbf16> to vector<8x256xbf16>
    %c16_351 = arith.constant 16 : index
    %c0_352 = arith.constant 0 : index
    %513 = vector.load %arg13[%c16_351, %c0_352] : memref<49x256xbf16, #tpu.memory_space<vmem>>, vector<1x256xbf16>
    %514 = vector.broadcast %513 : vector<1x256xbf16> to vector<8x256xbf16>
    %515 = arith.mulf %512, %514 : vector<8x256xbf16>
    %c16_353 = arith.constant 16 : index
    %c0_354 = arith.constant 0 : index
    %c0_355 = arith.constant 0 : index
    %516 = vector.load %arg11[%c16_353, %c0_354, %c0_355] : memref<49x3x8xbf16, #tpu.memory_space<vmem>>, vector<1x3x8xbf16>
    %517 = vector.shape_cast %516 : vector<1x3x8xbf16> to vector<3x8xbf16>
    %cst_356 = arith.constant dense<0.000000e+00> : vector<3x256xf32>
    %518 = tpu.matmul %517, %515, %cst_356 {dimension_numbers = #tpu.dot_dimension_numbers<[1], [0], [0], [1], [0, 0, 1, 1], [], []>} : vector<3x8xbf16>, vector<8x256xbf16>, vector<3x256xf32> -> vector<3x256xf32>
    %519 = arith.addf %511, %518 : vector<3x256xf32>
    %520 = vector.extract_strided_slice %382 {offsets = [0, 35], sizes = [8, 256], strides = [1, 1]} : vector<8x358xbf16> to vector<8x256xbf16>
    %c17_357 = arith.constant 17 : index
    %c0_358 = arith.constant 0 : index
    %521 = vector.load %arg13[%c17_357, %c0_358] : memref<49x256xbf16, #tpu.memory_space<vmem>>, vector<1x256xbf16>
    %522 = vector.broadcast %521 : vector<1x256xbf16> to vector<8x256xbf16>
    %523 = arith.mulf %520, %522 : vector<8x256xbf16>
    %c17_359 = arith.constant 17 : index
    %c0_360 = arith.constant 0 : index
    %c0_361 = arith.constant 0 : index
    %524 = vector.load %arg11[%c17_359, %c0_360, %c0_361] : memref<49x3x8xbf16, #tpu.memory_space<vmem>>, vector<1x3x8xbf16>
    %525 = vector.shape_cast %524 : vector<1x3x8xbf16> to vector<3x8xbf16>
    %cst_362 = arith.constant dense<0.000000e+00> : vector<3x256xf32>
    %526 = tpu.matmul %525, %523, %cst_362 {dimension_numbers = #tpu.dot_dimension_numbers<[1], [0], [0], [1], [0, 0, 1, 1], [], []>} : vector<3x8xbf16>, vector<8x256xbf16>, vector<3x256xf32> -> vector<3x256xf32>
    %527 = arith.addf %519, %526 : vector<3x256xf32>
    %528 = vector.extract_strided_slice %382 {offsets = [0, 36], sizes = [8, 256], strides = [1, 1]} : vector<8x358xbf16> to vector<8x256xbf16>
    %c18_363 = arith.constant 18 : index
    %c0_364 = arith.constant 0 : index
    %529 = vector.load %arg13[%c18_363, %c0_364] : memref<49x256xbf16, #tpu.memory_space<vmem>>, vector<1x256xbf16>
    %530 = vector.broadcast %529 : vector<1x256xbf16> to vector<8x256xbf16>
    %531 = arith.mulf %528, %530 : vector<8x256xbf16>
    %c18_365 = arith.constant 18 : index
    %c0_366 = arith.constant 0 : index
    %c0_367 = arith.constant 0 : index
    %532 = vector.load %arg11[%c18_365, %c0_366, %c0_367] : memref<49x3x8xbf16, #tpu.memory_space<vmem>>, vector<1x3x8xbf16>
    %533 = vector.shape_cast %532 : vector<1x3x8xbf16> to vector<3x8xbf16>
    %cst_368 = arith.constant dense<0.000000e+00> : vector<3x256xf32>
    %534 = tpu.matmul %533, %531, %cst_368 {dimension_numbers = #tpu.dot_dimension_numbers<[1], [0], [0], [1], [0, 0, 1, 1], [], []>} : vector<3x8xbf16>, vector<8x256xbf16>, vector<3x256xf32> -> vector<3x256xf32>
    %535 = arith.addf %527, %534 : vector<3x256xf32>
    %536 = vector.extract_strided_slice %382 {offsets = [0, 37], sizes = [8, 256], strides = [1, 1]} : vector<8x358xbf16> to vector<8x256xbf16>
    %c19_369 = arith.constant 19 : index
    %c0_370 = arith.constant 0 : index
    %537 = vector.load %arg13[%c19_369, %c0_370] : memref<49x256xbf16, #tpu.memory_space<vmem>>, vector<1x256xbf16>
    %538 = vector.broadcast %537 : vector<1x256xbf16> to vector<8x256xbf16>
    %539 = arith.mulf %536, %538 : vector<8x256xbf16>
    %c19_371 = arith.constant 19 : index
    %c0_372 = arith.constant 0 : index
    %c0_373 = arith.constant 0 : index
    %540 = vector.load %arg11[%c19_371, %c0_372, %c0_373] : memref<49x3x8xbf16, #tpu.memory_space<vmem>>, vector<1x3x8xbf16>
    %541 = vector.shape_cast %540 : vector<1x3x8xbf16> to vector<3x8xbf16>
    %cst_374 = arith.constant dense<0.000000e+00> : vector<3x256xf32>
    %542 = tpu.matmul %541, %539, %cst_374 {dimension_numbers = #tpu.dot_dimension_numbers<[1], [0], [0], [1], [0, 0, 1, 1], [], []>} : vector<3x8xbf16>, vector<8x256xbf16>, vector<3x256xf32> -> vector<3x256xf32>
    %543 = arith.addf %535, %542 : vector<3x256xf32>
    %544 = vector.extract_strided_slice %382 {offsets = [0, 38], sizes = [8, 256], strides = [1, 1]} : vector<8x358xbf16> to vector<8x256xbf16>
    %c20_375 = arith.constant 20 : index
    %c0_376 = arith.constant 0 : index
    %545 = vector.load %arg13[%c20_375, %c0_376] : memref<49x256xbf16, #tpu.memory_space<vmem>>, vector<1x256xbf16>
    %546 = vector.broadcast %545 : vector<1x256xbf16> to vector<8x256xbf16>
    %547 = arith.mulf %544, %546 : vector<8x256xbf16>
    %c20_377 = arith.constant 20 : index
    %c0_378 = arith.constant 0 : index
    %c0_379 = arith.constant 0 : index
    %548 = vector.load %arg11[%c20_377, %c0_378, %c0_379] : memref<49x3x8xbf16, #tpu.memory_space<vmem>>, vector<1x3x8xbf16>
    %549 = vector.shape_cast %548 : vector<1x3x8xbf16> to vector<3x8xbf16>
    %cst_380 = arith.constant dense<0.000000e+00> : vector<3x256xf32>
    %550 = tpu.matmul %549, %547, %cst_380 {dimension_numbers = #tpu.dot_dimension_numbers<[1], [0], [0], [1], [0, 0, 1, 1], [], []>} : vector<3x8xbf16>, vector<8x256xbf16>, vector<3x256xf32> -> vector<3x256xf32>
    %551 = arith.addf %543, %550 : vector<3x256xf32>
    %552 = vector.extract_strided_slice %382 {offsets = [0, 48], sizes = [8, 256], strides = [1, 1]} : vector<8x358xbf16> to vector<8x256xbf16>
    %c21_381 = arith.constant 21 : index
    %c0_382 = arith.constant 0 : index
    %553 = vector.load %arg13[%c21_381, %c0_382] : memref<49x256xbf16, #tpu.memory_space<vmem>>, vector<1x256xbf16>
    %554 = vector.broadcast %553 : vector<1x256xbf16> to vector<8x256xbf16>
    %555 = arith.mulf %552, %554 : vector<8x256xbf16>
    %c21_383 = arith.constant 21 : index
    %c0_384 = arith.constant 0 : index
    %c0_385 = arith.constant 0 : index
    %556 = vector.load %arg11[%c21_383, %c0_384, %c0_385] : memref<49x3x8xbf16, #tpu.memory_space<vmem>>, vector<1x3x8xbf16>
    %557 = vector.shape_cast %556 : vector<1x3x8xbf16> to vector<3x8xbf16>
    %cst_386 = arith.constant dense<0.000000e+00> : vector<3x256xf32>
    %558 = tpu.matmul %557, %555, %cst_386 {dimension_numbers = #tpu.dot_dimension_numbers<[1], [0], [0], [1], [0, 0, 1, 1], [], []>} : vector<3x8xbf16>, vector<8x256xbf16>, vector<3x256xf32> -> vector<3x256xf32>
    %559 = arith.addf %551, %558 : vector<3x256xf32>
    %560 = vector.extract_strided_slice %382 {offsets = [0, 49], sizes = [8, 256], strides = [1, 1]} : vector<8x358xbf16> to vector<8x256xbf16>
    %c22_387 = arith.constant 22 : index
    %c0_388 = arith.constant 0 : index
    %561 = vector.load %arg13[%c22_387, %c0_388] : memref<49x256xbf16, #tpu.memory_space<vmem>>, vector<1x256xbf16>
    %562 = vector.broadcast %561 : vector<1x256xbf16> to vector<8x256xbf16>
    %563 = arith.mulf %560, %562 : vector<8x256xbf16>
    %c22_389 = arith.constant 22 : index
    %c0_390 = arith.constant 0 : index
    %c0_391 = arith.constant 0 : index
    %564 = vector.load %arg11[%c22_389, %c0_390, %c0_391] : memref<49x3x8xbf16, #tpu.memory_space<vmem>>, vector<1x3x8xbf16>
    %565 = vector.shape_cast %564 : vector<1x3x8xbf16> to vector<3x8xbf16>
    %cst_392 = arith.constant dense<0.000000e+00> : vector<3x256xf32>
    %566 = tpu.matmul %565, %563, %cst_392 {dimension_numbers = #tpu.dot_dimension_numbers<[1], [0], [0], [1], [0, 0, 1, 1], [], []>} : vector<3x8xbf16>, vector<8x256xbf16>, vector<3x256xf32> -> vector<3x256xf32>
    %567 = arith.addf %559, %566 : vector<3x256xf32>
    %568 = vector.extract_strided_slice %382 {offsets = [0, 50], sizes = [8, 256], strides = [1, 1]} : vector<8x358xbf16> to vector<8x256xbf16>
    %c23_393 = arith.constant 23 : index
    %c0_394 = arith.constant 0 : index
    %569 = vector.load %arg13[%c23_393, %c0_394] : memref<49x256xbf16, #tpu.memory_space<vmem>>, vector<1x256xbf16>
    %570 = vector.broadcast %569 : vector<1x256xbf16> to vector<8x256xbf16>
    %571 = arith.mulf %568, %570 : vector<8x256xbf16>
    %c23_395 = arith.constant 23 : index
    %c0_396 = arith.constant 0 : index
    %c0_397 = arith.constant 0 : index
    %572 = vector.load %arg11[%c23_395, %c0_396, %c0_397] : memref<49x3x8xbf16, #tpu.memory_space<vmem>>, vector<1x3x8xbf16>
    %573 = vector.shape_cast %572 : vector<1x3x8xbf16> to vector<3x8xbf16>
    %cst_398 = arith.constant dense<0.000000e+00> : vector<3x256xf32>
    %574 = tpu.matmul %573, %571, %cst_398 {dimension_numbers = #tpu.dot_dimension_numbers<[1], [0], [0], [1], [0, 0, 1, 1], [], []>} : vector<3x8xbf16>, vector<8x256xbf16>, vector<3x256xf32> -> vector<3x256xf32>
    %575 = arith.addf %567, %574 : vector<3x256xf32>
    %576 = vector.extract_strided_slice %382 {offsets = [0, 51], sizes = [8, 256], strides = [1, 1]} : vector<8x358xbf16> to vector<8x256xbf16>
    %c24_399 = arith.constant 24 : index
    %c0_400 = arith.constant 0 : index
    %577 = vector.load %arg13[%c24_399, %c0_400] : memref<49x256xbf16, #tpu.memory_space<vmem>>, vector<1x256xbf16>
    %578 = vector.broadcast %577 : vector<1x256xbf16> to vector<8x256xbf16>
    %579 = arith.mulf %576, %578 : vector<8x256xbf16>
    %c24_401 = arith.constant 24 : index
    %c0_402 = arith.constant 0 : index
    %c0_403 = arith.constant 0 : index
    %580 = vector.load %arg11[%c24_401, %c0_402, %c0_403] : memref<49x3x8xbf16, #tpu.memory_space<vmem>>, vector<1x3x8xbf16>
    %581 = vector.shape_cast %580 : vector<1x3x8xbf16> to vector<3x8xbf16>
    %cst_404 = arith.constant dense<0.000000e+00> : vector<3x256xf32>
    %582 = tpu.matmul %581, %579, %cst_404 {dimension_numbers = #tpu.dot_dimension_numbers<[1], [0], [0], [1], [0, 0, 1, 1], [], []>} : vector<3x8xbf16>, vector<8x256xbf16>, vector<3x256xf32> -> vector<3x256xf32>
    %583 = arith.addf %575, %582 : vector<3x256xf32>
    %584 = vector.extract_strided_slice %382 {offsets = [0, 52], sizes = [8, 256], strides = [1, 1]} : vector<8x358xbf16> to vector<8x256xbf16>
    %c25 = arith.constant 25 : index
    %c0_405 = arith.constant 0 : index
    %585 = vector.load %arg13[%c25, %c0_405] : memref<49x256xbf16, #tpu.memory_space<vmem>>, vector<1x256xbf16>
    %586 = vector.broadcast %585 : vector<1x256xbf16> to vector<8x256xbf16>
    %587 = arith.mulf %584, %586 : vector<8x256xbf16>
    %c25_406 = arith.constant 25 : index
    %c0_407 = arith.constant 0 : index
    %c0_408 = arith.constant 0 : index
    %588 = vector.load %arg11[%c25_406, %c0_407, %c0_408] : memref<49x3x8xbf16, #tpu.memory_space<vmem>>, vector<1x3x8xbf16>
    %589 = vector.shape_cast %588 : vector<1x3x8xbf16> to vector<3x8xbf16>
    %cst_409 = arith.constant dense<0.000000e+00> : vector<3x256xf32>
    %590 = tpu.matmul %589, %587, %cst_409 {dimension_numbers = #tpu.dot_dimension_numbers<[1], [0], [0], [1], [0, 0, 1, 1], [], []>} : vector<3x8xbf16>, vector<8x256xbf16>, vector<3x256xf32> -> vector<3x256xf32>
    %591 = arith.addf %583, %590 : vector<3x256xf32>
    %592 = vector.extract_strided_slice %382 {offsets = [0, 53], sizes = [8, 256], strides = [1, 1]} : vector<8x358xbf16> to vector<8x256xbf16>
    %c26 = arith.constant 26 : index
    %c0_410 = arith.constant 0 : index
    %593 = vector.load %arg13[%c26, %c0_410] : memref<49x256xbf16, #tpu.memory_space<vmem>>, vector<1x256xbf16>
    %594 = vector.broadcast %593 : vector<1x256xbf16> to vector<8x256xbf16>
    %595 = arith.mulf %592, %594 : vector<8x256xbf16>
    %c26_411 = arith.constant 26 : index
    %c0_412 = arith.constant 0 : index
    %c0_413 = arith.constant 0 : index
    %596 = vector.load %arg11[%c26_411, %c0_412, %c0_413] : memref<49x3x8xbf16, #tpu.memory_space<vmem>>, vector<1x3x8xbf16>
    %597 = vector.shape_cast %596 : vector<1x3x8xbf16> to vector<3x8xbf16>
    %cst_414 = arith.constant dense<0.000000e+00> : vector<3x256xf32>
    %598 = tpu.matmul %597, %595, %cst_414 {dimension_numbers = #tpu.dot_dimension_numbers<[1], [0], [0], [1], [0, 0, 1, 1], [], []>} : vector<3x8xbf16>, vector<8x256xbf16>, vector<3x256xf32> -> vector<3x256xf32>
    %599 = arith.addf %591, %598 : vector<3x256xf32>
    %600 = vector.extract_strided_slice %382 {offsets = [0, 54], sizes = [8, 256], strides = [1, 1]} : vector<8x358xbf16> to vector<8x256xbf16>
    %c27 = arith.constant 27 : index
    %c0_415 = arith.constant 0 : index
    %601 = vector.load %arg13[%c27, %c0_415] : memref<49x256xbf16, #tpu.memory_space<vmem>>, vector<1x256xbf16>
    %602 = vector.broadcast %601 : vector<1x256xbf16> to vector<8x256xbf16>
    %603 = arith.mulf %600, %602 : vector<8x256xbf16>
    %c27_416 = arith.constant 27 : index
    %c0_417 = arith.constant 0 : index
    %c0_418 = arith.constant 0 : index
    %604 = vector.load %arg11[%c27_416, %c0_417, %c0_418] : memref<49x3x8xbf16, #tpu.memory_space<vmem>>, vector<1x3x8xbf16>
    %605 = vector.shape_cast %604 : vector<1x3x8xbf16> to vector<3x8xbf16>
    %cst_419 = arith.constant dense<0.000000e+00> : vector<3x256xf32>
    %606 = tpu.matmul %605, %603, %cst_419 {dimension_numbers = #tpu.dot_dimension_numbers<[1], [0], [0], [1], [0, 0, 1, 1], [], []>} : vector<3x8xbf16>, vector<8x256xbf16>, vector<3x256xf32> -> vector<3x256xf32>
    %607 = arith.addf %599, %606 : vector<3x256xf32>
    %608 = vector.extract_strided_slice %382 {offsets = [0, 64], sizes = [8, 256], strides = [1, 1]} : vector<8x358xbf16> to vector<8x256xbf16>
    %c28 = arith.constant 28 : index
    %c0_420 = arith.constant 0 : index
    %609 = vector.load %arg13[%c28, %c0_420] : memref<49x256xbf16, #tpu.memory_space<vmem>>, vector<1x256xbf16>
    %610 = vector.broadcast %609 : vector<1x256xbf16> to vector<8x256xbf16>
    %611 = arith.mulf %608, %610 : vector<8x256xbf16>
    %c28_421 = arith.constant 28 : index
    %c0_422 = arith.constant 0 : index
    %c0_423 = arith.constant 0 : index
    %612 = vector.load %arg11[%c28_421, %c0_422, %c0_423] : memref<49x3x8xbf16, #tpu.memory_space<vmem>>, vector<1x3x8xbf16>
    %613 = vector.shape_cast %612 : vector<1x3x8xbf16> to vector<3x8xbf16>
    %cst_424 = arith.constant dense<0.000000e+00> : vector<3x256xf32>
    %614 = tpu.matmul %613, %611, %cst_424 {dimension_numbers = #tpu.dot_dimension_numbers<[1], [0], [0], [1], [0, 0, 1, 1], [], []>} : vector<3x8xbf16>, vector<8x256xbf16>, vector<3x256xf32> -> vector<3x256xf32>
    %615 = arith.addf %607, %614 : vector<3x256xf32>
    %616 = vector.extract_strided_slice %382 {offsets = [0, 65], sizes = [8, 256], strides = [1, 1]} : vector<8x358xbf16> to vector<8x256xbf16>
    %c29 = arith.constant 29 : index
    %c0_425 = arith.constant 0 : index
    %617 = vector.load %arg13[%c29, %c0_425] : memref<49x256xbf16, #tpu.memory_space<vmem>>, vector<1x256xbf16>
    %618 = vector.broadcast %617 : vector<1x256xbf16> to vector<8x256xbf16>
    %619 = arith.mulf %616, %618 : vector<8x256xbf16>
    %c29_426 = arith.constant 29 : index
    %c0_427 = arith.constant 0 : index
    %c0_428 = arith.constant 0 : index
    %620 = vector.load %arg11[%c29_426, %c0_427, %c0_428] : memref<49x3x8xbf16, #tpu.memory_space<vmem>>, vector<1x3x8xbf16>
    %621 = vector.shape_cast %620 : vector<1x3x8xbf16> to vector<3x8xbf16>
    %cst_429 = arith.constant dense<0.000000e+00> : vector<3x256xf32>
    %622 = tpu.matmul %621, %619, %cst_429 {dimension_numbers = #tpu.dot_dimension_numbers<[1], [0], [0], [1], [0, 0, 1, 1], [], []>} : vector<3x8xbf16>, vector<8x256xbf16>, vector<3x256xf32> -> vector<3x256xf32>
    %623 = arith.addf %615, %622 : vector<3x256xf32>
    %624 = vector.extract_strided_slice %382 {offsets = [0, 66], sizes = [8, 256], strides = [1, 1]} : vector<8x358xbf16> to vector<8x256xbf16>
    %c30 = arith.constant 30 : index
    %c0_430 = arith.constant 0 : index
    %625 = vector.load %arg13[%c30, %c0_430] : memref<49x256xbf16, #tpu.memory_space<vmem>>, vector<1x256xbf16>
    %626 = vector.broadcast %625 : vector<1x256xbf16> to vector<8x256xbf16>
    %627 = arith.mulf %624, %626 : vector<8x256xbf16>
    %c30_431 = arith.constant 30 : index
    %c0_432 = arith.constant 0 : index
    %c0_433 = arith.constant 0 : index
    %628 = vector.load %arg11[%c30_431, %c0_432, %c0_433] : memref<49x3x8xbf16, #tpu.memory_space<vmem>>, vector<1x3x8xbf16>
    %629 = vector.shape_cast %628 : vector<1x3x8xbf16> to vector<3x8xbf16>
    %cst_434 = arith.constant dense<0.000000e+00> : vector<3x256xf32>
    %630 = tpu.matmul %629, %627, %cst_434 {dimension_numbers = #tpu.dot_dimension_numbers<[1], [0], [0], [1], [0, 0, 1, 1], [], []>} : vector<3x8xbf16>, vector<8x256xbf16>, vector<3x256xf32> -> vector<3x256xf32>
    %631 = arith.addf %623, %630 : vector<3x256xf32>
    %632 = vector.extract_strided_slice %382 {offsets = [0, 67], sizes = [8, 256], strides = [1, 1]} : vector<8x358xbf16> to vector<8x256xbf16>
    %c31 = arith.constant 31 : index
    %c0_435 = arith.constant 0 : index
    %633 = vector.load %arg13[%c31, %c0_435] : memref<49x256xbf16, #tpu.memory_space<vmem>>, vector<1x256xbf16>
    %634 = vector.broadcast %633 : vector<1x256xbf16> to vector<8x256xbf16>
    %635 = arith.mulf %632, %634 : vector<8x256xbf16>
    %c31_436 = arith.constant 31 : index
    %c0_437 = arith.constant 0 : index
    %c0_438 = arith.constant 0 : index
    %636 = vector.load %arg11[%c31_436, %c0_437, %c0_438] : memref<49x3x8xbf16, #tpu.memory_space<vmem>>, vector<1x3x8xbf16>
    %637 = vector.shape_cast %636 : vector<1x3x8xbf16> to vector<3x8xbf16>
    %cst_439 = arith.constant dense<0.000000e+00> : vector<3x256xf32>
    %638 = tpu.matmul %637, %635, %cst_439 {dimension_numbers = #tpu.dot_dimension_numbers<[1], [0], [0], [1], [0, 0, 1, 1], [], []>} : vector<3x8xbf16>, vector<8x256xbf16>, vector<3x256xf32> -> vector<3x256xf32>
    %639 = arith.addf %631, %638 : vector<3x256xf32>
    %640 = vector.extract_strided_slice %382 {offsets = [0, 68], sizes = [8, 256], strides = [1, 1]} : vector<8x358xbf16> to vector<8x256xbf16>
    %c32 = arith.constant 32 : index
    %c0_440 = arith.constant 0 : index
    %641 = vector.load %arg13[%c32, %c0_440] : memref<49x256xbf16, #tpu.memory_space<vmem>>, vector<1x256xbf16>
    %642 = vector.broadcast %641 : vector<1x256xbf16> to vector<8x256xbf16>
    %643 = arith.mulf %640, %642 : vector<8x256xbf16>
    %c32_441 = arith.constant 32 : index
    %c0_442 = arith.constant 0 : index
    %c0_443 = arith.constant 0 : index
    %644 = vector.load %arg11[%c32_441, %c0_442, %c0_443] : memref<49x3x8xbf16, #tpu.memory_space<vmem>>, vector<1x3x8xbf16>
    %645 = vector.shape_cast %644 : vector<1x3x8xbf16> to vector<3x8xbf16>
    %cst_444 = arith.constant dense<0.000000e+00> : vector<3x256xf32>
    %646 = tpu.matmul %645, %643, %cst_444 {dimension_numbers = #tpu.dot_dimension_numbers<[1], [0], [0], [1], [0, 0, 1, 1], [], []>} : vector<3x8xbf16>, vector<8x256xbf16>, vector<3x256xf32> -> vector<3x256xf32>
    %647 = arith.addf %639, %646 : vector<3x256xf32>
    %648 = vector.extract_strided_slice %382 {offsets = [0, 69], sizes = [8, 256], strides = [1, 1]} : vector<8x358xbf16> to vector<8x256xbf16>
    %c33 = arith.constant 33 : index
    %c0_445 = arith.constant 0 : index
    %649 = vector.load %arg13[%c33, %c0_445] : memref<49x256xbf16, #tpu.memory_space<vmem>>, vector<1x256xbf16>
    %650 = vector.broadcast %649 : vector<1x256xbf16> to vector<8x256xbf16>
    %651 = arith.mulf %648, %650 : vector<8x256xbf16>
    %c33_446 = arith.constant 33 : index
    %c0_447 = arith.constant 0 : index
    %c0_448 = arith.constant 0 : index
    %652 = vector.load %arg11[%c33_446, %c0_447, %c0_448] : memref<49x3x8xbf16, #tpu.memory_space<vmem>>, vector<1x3x8xbf16>
    %653 = vector.shape_cast %652 : vector<1x3x8xbf16> to vector<3x8xbf16>
    %cst_449 = arith.constant dense<0.000000e+00> : vector<3x256xf32>
    %654 = tpu.matmul %653, %651, %cst_449 {dimension_numbers = #tpu.dot_dimension_numbers<[1], [0], [0], [1], [0, 0, 1, 1], [], []>} : vector<3x8xbf16>, vector<8x256xbf16>, vector<3x256xf32> -> vector<3x256xf32>
    %655 = arith.addf %647, %654 : vector<3x256xf32>
    %656 = vector.extract_strided_slice %382 {offsets = [0, 70], sizes = [8, 256], strides = [1, 1]} : vector<8x358xbf16> to vector<8x256xbf16>
    %c34 = arith.constant 34 : index
    %c0_450 = arith.constant 0 : index
    %657 = vector.load %arg13[%c34, %c0_450] : memref<49x256xbf16, #tpu.memory_space<vmem>>, vector<1x256xbf16>
    %658 = vector.broadcast %657 : vector<1x256xbf16> to vector<8x256xbf16>
    %659 = arith.mulf %656, %658 : vector<8x256xbf16>
    %c34_451 = arith.constant 34 : index
    %c0_452 = arith.constant 0 : index
    %c0_453 = arith.constant 0 : index
    %660 = vector.load %arg11[%c34_451, %c0_452, %c0_453] : memref<49x3x8xbf16, #tpu.memory_space<vmem>>, vector<1x3x8xbf16>
    %661 = vector.shape_cast %660 : vector<1x3x8xbf16> to vector<3x8xbf16>
    %cst_454 = arith.constant dense<0.000000e+00> : vector<3x256xf32>
    %662 = tpu.matmul %661, %659, %cst_454 {dimension_numbers = #tpu.dot_dimension_numbers<[1], [0], [0], [1], [0, 0, 1, 1], [], []>} : vector<3x8xbf16>, vector<8x256xbf16>, vector<3x256xf32> -> vector<3x256xf32>
    %663 = arith.addf %655, %662 : vector<3x256xf32>
    %664 = vector.extract_strided_slice %382 {offsets = [0, 80], sizes = [8, 256], strides = [1, 1]} : vector<8x358xbf16> to vector<8x256xbf16>
    %c35 = arith.constant 35 : index
    %c0_455 = arith.constant 0 : index
    %665 = vector.load %arg13[%c35, %c0_455] : memref<49x256xbf16, #tpu.memory_space<vmem>>, vector<1x256xbf16>
    %666 = vector.broadcast %665 : vector<1x256xbf16> to vector<8x256xbf16>
    %667 = arith.mulf %664, %666 : vector<8x256xbf16>
    %c35_456 = arith.constant 35 : index
    %c0_457 = arith.constant 0 : index
    %c0_458 = arith.constant 0 : index
    %668 = vector.load %arg11[%c35_456, %c0_457, %c0_458] : memref<49x3x8xbf16, #tpu.memory_space<vmem>>, vector<1x3x8xbf16>
    %669 = vector.shape_cast %668 : vector<1x3x8xbf16> to vector<3x8xbf16>
    %cst_459 = arith.constant dense<0.000000e+00> : vector<3x256xf32>
    %670 = tpu.matmul %669, %667, %cst_459 {dimension_numbers = #tpu.dot_dimension_numbers<[1], [0], [0], [1], [0, 0, 1, 1], [], []>} : vector<3x8xbf16>, vector<8x256xbf16>, vector<3x256xf32> -> vector<3x256xf32>
    %671 = arith.addf %663, %670 : vector<3x256xf32>
    %672 = vector.extract_strided_slice %382 {offsets = [0, 81], sizes = [8, 256], strides = [1, 1]} : vector<8x358xbf16> to vector<8x256xbf16>
    %c36 = arith.constant 36 : index
    %c0_460 = arith.constant 0 : index
    %673 = vector.load %arg13[%c36, %c0_460] : memref<49x256xbf16, #tpu.memory_space<vmem>>, vector<1x256xbf16>
    %674 = vector.broadcast %673 : vector<1x256xbf16> to vector<8x256xbf16>
    %675 = arith.mulf %672, %674 : vector<8x256xbf16>
    %c36_461 = arith.constant 36 : index
    %c0_462 = arith.constant 0 : index
    %c0_463 = arith.constant 0 : index
    %676 = vector.load %arg11[%c36_461, %c0_462, %c0_463] : memref<49x3x8xbf16, #tpu.memory_space<vmem>>, vector<1x3x8xbf16>
    %677 = vector.shape_cast %676 : vector<1x3x8xbf16> to vector<3x8xbf16>
    %cst_464 = arith.constant dense<0.000000e+00> : vector<3x256xf32>
    %678 = tpu.matmul %677, %675, %cst_464 {dimension_numbers = #tpu.dot_dimension_numbers<[1], [0], [0], [1], [0, 0, 1, 1], [], []>} : vector<3x8xbf16>, vector<8x256xbf16>, vector<3x256xf32> -> vector<3x256xf32>
    %679 = arith.addf %671, %678 : vector<3x256xf32>
    %680 = vector.extract_strided_slice %382 {offsets = [0, 82], sizes = [8, 256], strides = [1, 1]} : vector<8x358xbf16> to vector<8x256xbf16>
    %c37 = arith.constant 37 : index
    %c0_465 = arith.constant 0 : index
    %681 = vector.load %arg13[%c37, %c0_465] : memref<49x256xbf16, #tpu.memory_space<vmem>>, vector<1x256xbf16>
    %682 = vector.broadcast %681 : vector<1x256xbf16> to vector<8x256xbf16>
    %683 = arith.mulf %680, %682 : vector<8x256xbf16>
    %c37_466 = arith.constant 37 : index
    %c0_467 = arith.constant 0 : index
    %c0_468 = arith.constant 0 : index
    %684 = vector.load %arg11[%c37_466, %c0_467, %c0_468] : memref<49x3x8xbf16, #tpu.memory_space<vmem>>, vector<1x3x8xbf16>
    %685 = vector.shape_cast %684 : vector<1x3x8xbf16> to vector<3x8xbf16>
    %cst_469 = arith.constant dense<0.000000e+00> : vector<3x256xf32>
    %686 = tpu.matmul %685, %683, %cst_469 {dimension_numbers = #tpu.dot_dimension_numbers<[1], [0], [0], [1], [0, 0, 1, 1], [], []>} : vector<3x8xbf16>, vector<8x256xbf16>, vector<3x256xf32> -> vector<3x256xf32>
    %687 = arith.addf %679, %686 : vector<3x256xf32>
    %688 = vector.extract_strided_slice %382 {offsets = [0, 83], sizes = [8, 256], strides = [1, 1]} : vector<8x358xbf16> to vector<8x256xbf16>
    %c38 = arith.constant 38 : index
    %c0_470 = arith.constant 0 : index
    %689 = vector.load %arg13[%c38, %c0_470] : memref<49x256xbf16, #tpu.memory_space<vmem>>, vector<1x256xbf16>
    %690 = vector.broadcast %689 : vector<1x256xbf16> to vector<8x256xbf16>
    %691 = arith.mulf %688, %690 : vector<8x256xbf16>
    %c38_471 = arith.constant 38 : index
    %c0_472 = arith.constant 0 : index
    %c0_473 = arith.constant 0 : index
    %692 = vector.load %arg11[%c38_471, %c0_472, %c0_473] : memref<49x3x8xbf16, #tpu.memory_space<vmem>>, vector<1x3x8xbf16>
    %693 = vector.shape_cast %692 : vector<1x3x8xbf16> to vector<3x8xbf16>
    %cst_474 = arith.constant dense<0.000000e+00> : vector<3x256xf32>
    %694 = tpu.matmul %693, %691, %cst_474 {dimension_numbers = #tpu.dot_dimension_numbers<[1], [0], [0], [1], [0, 0, 1, 1], [], []>} : vector<3x8xbf16>, vector<8x256xbf16>, vector<3x256xf32> -> vector<3x256xf32>
    %695 = arith.addf %687, %694 : vector<3x256xf32>
    %696 = vector.extract_strided_slice %382 {offsets = [0, 84], sizes = [8, 256], strides = [1, 1]} : vector<8x358xbf16> to vector<8x256xbf16>
    %c39 = arith.constant 39 : index
    %c0_475 = arith.constant 0 : index
    %697 = vector.load %arg13[%c39, %c0_475] : memref<49x256xbf16, #tpu.memory_space<vmem>>, vector<1x256xbf16>
    %698 = vector.broadcast %697 : vector<1x256xbf16> to vector<8x256xbf16>
    %699 = arith.mulf %696, %698 : vector<8x256xbf16>
    %c39_476 = arith.constant 39 : index
    %c0_477 = arith.constant 0 : index
    %c0_478 = arith.constant 0 : index
    %700 = vector.load %arg11[%c39_476, %c0_477, %c0_478] : memref<49x3x8xbf16, #tpu.memory_space<vmem>>, vector<1x3x8xbf16>
    %701 = vector.shape_cast %700 : vector<1x3x8xbf16> to vector<3x8xbf16>
    %cst_479 = arith.constant dense<0.000000e+00> : vector<3x256xf32>
    %702 = tpu.matmul %701, %699, %cst_479 {dimension_numbers = #tpu.dot_dimension_numbers<[1], [0], [0], [1], [0, 0, 1, 1], [], []>} : vector<3x8xbf16>, vector<8x256xbf16>, vector<3x256xf32> -> vector<3x256xf32>
    %703 = arith.addf %695, %702 : vector<3x256xf32>
    %704 = vector.extract_strided_slice %382 {offsets = [0, 85], sizes = [8, 256], strides = [1, 1]} : vector<8x358xbf16> to vector<8x256xbf16>
    %c40 = arith.constant 40 : index
    %c0_480 = arith.constant 0 : index
    %705 = vector.load %arg13[%c40, %c0_480] : memref<49x256xbf16, #tpu.memory_space<vmem>>, vector<1x256xbf16>
    %706 = vector.broadcast %705 : vector<1x256xbf16> to vector<8x256xbf16>
    %707 = arith.mulf %704, %706 : vector<8x256xbf16>
    %c40_481 = arith.constant 40 : index
    %c0_482 = arith.constant 0 : index
    %c0_483 = arith.constant 0 : index
    %708 = vector.load %arg11[%c40_481, %c0_482, %c0_483] : memref<49x3x8xbf16, #tpu.memory_space<vmem>>, vector<1x3x8xbf16>
    %709 = vector.shape_cast %708 : vector<1x3x8xbf16> to vector<3x8xbf16>
    %cst_484 = arith.constant dense<0.000000e+00> : vector<3x256xf32>
    %710 = tpu.matmul %709, %707, %cst_484 {dimension_numbers = #tpu.dot_dimension_numbers<[1], [0], [0], [1], [0, 0, 1, 1], [], []>} : vector<3x8xbf16>, vector<8x256xbf16>, vector<3x256xf32> -> vector<3x256xf32>
    %711 = arith.addf %703, %710 : vector<3x256xf32>
    %712 = vector.extract_strided_slice %382 {offsets = [0, 86], sizes = [8, 256], strides = [1, 1]} : vector<8x358xbf16> to vector<8x256xbf16>
    %c41 = arith.constant 41 : index
    %c0_485 = arith.constant 0 : index
    %713 = vector.load %arg13[%c41, %c0_485] : memref<49x256xbf16, #tpu.memory_space<vmem>>, vector<1x256xbf16>
    %714 = vector.broadcast %713 : vector<1x256xbf16> to vector<8x256xbf16>
    %715 = arith.mulf %712, %714 : vector<8x256xbf16>
    %c41_486 = arith.constant 41 : index
    %c0_487 = arith.constant 0 : index
    %c0_488 = arith.constant 0 : index
    %716 = vector.load %arg11[%c41_486, %c0_487, %c0_488] : memref<49x3x8xbf16, #tpu.memory_space<vmem>>, vector<1x3x8xbf16>
    %717 = vector.shape_cast %716 : vector<1x3x8xbf16> to vector<3x8xbf16>
    %cst_489 = arith.constant dense<0.000000e+00> : vector<3x256xf32>
    %718 = tpu.matmul %717, %715, %cst_489 {dimension_numbers = #tpu.dot_dimension_numbers<[1], [0], [0], [1], [0, 0, 1, 1], [], []>} : vector<3x8xbf16>, vector<8x256xbf16>, vector<3x256xf32> -> vector<3x256xf32>
    %719 = arith.addf %711, %718 : vector<3x256xf32>
    %720 = vector.extract_strided_slice %382 {offsets = [0, 96], sizes = [8, 256], strides = [1, 1]} : vector<8x358xbf16> to vector<8x256xbf16>
    %c42 = arith.constant 42 : index
    %c0_490 = arith.constant 0 : index
    %721 = vector.load %arg13[%c42, %c0_490] : memref<49x256xbf16, #tpu.memory_space<vmem>>, vector<1x256xbf16>
    %722 = vector.broadcast %721 : vector<1x256xbf16> to vector<8x256xbf16>
    %723 = arith.mulf %720, %722 : vector<8x256xbf16>
    %c42_491 = arith.constant 42 : index
    %c0_492 = arith.constant 0 : index
    %c0_493 = arith.constant 0 : index
    %724 = vector.load %arg11[%c42_491, %c0_492, %c0_493] : memref<49x3x8xbf16, #tpu.memory_space<vmem>>, vector<1x3x8xbf16>
    %725 = vector.shape_cast %724 : vector<1x3x8xbf16> to vector<3x8xbf16>
    %cst_494 = arith.constant dense<0.000000e+00> : vector<3x256xf32>
    %726 = tpu.matmul %725, %723, %cst_494 {dimension_numbers = #tpu.dot_dimension_numbers<[1], [0], [0], [1], [0, 0, 1, 1], [], []>} : vector<3x8xbf16>, vector<8x256xbf16>, vector<3x256xf32> -> vector<3x256xf32>
    %727 = arith.addf %719, %726 : vector<3x256xf32>
    %728 = vector.extract_strided_slice %382 {offsets = [0, 97], sizes = [8, 256], strides = [1, 1]} : vector<8x358xbf16> to vector<8x256xbf16>
    %c43 = arith.constant 43 : index
    %c0_495 = arith.constant 0 : index
    %729 = vector.load %arg13[%c43, %c0_495] : memref<49x256xbf16, #tpu.memory_space<vmem>>, vector<1x256xbf16>
    %730 = vector.broadcast %729 : vector<1x256xbf16> to vector<8x256xbf16>
    %731 = arith.mulf %728, %730 : vector<8x256xbf16>
    %c43_496 = arith.constant 43 : index
    %c0_497 = arith.constant 0 : index
    %c0_498 = arith.constant 0 : index
    %732 = vector.load %arg11[%c43_496, %c0_497, %c0_498] : memref<49x3x8xbf16, #tpu.memory_space<vmem>>, vector<1x3x8xbf16>
    %733 = vector.shape_cast %732 : vector<1x3x8xbf16> to vector<3x8xbf16>
    %cst_499 = arith.constant dense<0.000000e+00> : vector<3x256xf32>
    %734 = tpu.matmul %733, %731, %cst_499 {dimension_numbers = #tpu.dot_dimension_numbers<[1], [0], [0], [1], [0, 0, 1, 1], [], []>} : vector<3x8xbf16>, vector<8x256xbf16>, vector<3x256xf32> -> vector<3x256xf32>
    %735 = arith.addf %727, %734 : vector<3x256xf32>
    %736 = vector.extract_strided_slice %382 {offsets = [0, 98], sizes = [8, 256], strides = [1, 1]} : vector<8x358xbf16> to vector<8x256xbf16>
    %c44 = arith.constant 44 : index
    %c0_500 = arith.constant 0 : index
    %737 = vector.load %arg13[%c44, %c0_500] : memref<49x256xbf16, #tpu.memory_space<vmem>>, vector<1x256xbf16>
    %738 = vector.broadcast %737 : vector<1x256xbf16> to vector<8x256xbf16>
    %739 = arith.mulf %736, %738 : vector<8x256xbf16>
    %c44_501 = arith.constant 44 : index
    %c0_502 = arith.constant 0 : index
    %c0_503 = arith.constant 0 : index
    %740 = vector.load %arg11[%c44_501, %c0_502, %c0_503] : memref<49x3x8xbf16, #tpu.memory_space<vmem>>, vector<1x3x8xbf16>
    %741 = vector.shape_cast %740 : vector<1x3x8xbf16> to vector<3x8xbf16>
    %cst_504 = arith.constant dense<0.000000e+00> : vector<3x256xf32>
    %742 = tpu.matmul %741, %739, %cst_504 {dimension_numbers = #tpu.dot_dimension_numbers<[1], [0], [0], [1], [0, 0, 1, 1], [], []>} : vector<3x8xbf16>, vector<8x256xbf16>, vector<3x256xf32> -> vector<3x256xf32>
    %743 = arith.addf %735, %742 : vector<3x256xf32>
    %744 = vector.extract_strided_slice %382 {offsets = [0, 99], sizes = [8, 256], strides = [1, 1]} : vector<8x358xbf16> to vector<8x256xbf16>
    %c45 = arith.constant 45 : index
    %c0_505 = arith.constant 0 : index
    %745 = vector.load %arg13[%c45, %c0_505] : memref<49x256xbf16, #tpu.memory_space<vmem>>, vector<1x256xbf16>
    %746 = vector.broadcast %745 : vector<1x256xbf16> to vector<8x256xbf16>
    %747 = arith.mulf %744, %746 : vector<8x256xbf16>
    %c45_506 = arith.constant 45 : index
    %c0_507 = arith.constant 0 : index
    %c0_508 = arith.constant 0 : index
    %748 = vector.load %arg11[%c45_506, %c0_507, %c0_508] : memref<49x3x8xbf16, #tpu.memory_space<vmem>>, vector<1x3x8xbf16>
    %749 = vector.shape_cast %748 : vector<1x3x8xbf16> to vector<3x8xbf16>
    %cst_509 = arith.constant dense<0.000000e+00> : vector<3x256xf32>
    %750 = tpu.matmul %749, %747, %cst_509 {dimension_numbers = #tpu.dot_dimension_numbers<[1], [0], [0], [1], [0, 0, 1, 1], [], []>} : vector<3x8xbf16>, vector<8x256xbf16>, vector<3x256xf32> -> vector<3x256xf32>
    %751 = arith.addf %743, %750 : vector<3x256xf32>
    %752 = vector.extract_strided_slice %382 {offsets = [0, 100], sizes = [8, 256], strides = [1, 1]} : vector<8x358xbf16> to vector<8x256xbf16>
    %c46 = arith.constant 46 : index
    %c0_510 = arith.constant 0 : index
    %753 = vector.load %arg13[%c46, %c0_510] : memref<49x256xbf16, #tpu.memory_space<vmem>>, vector<1x256xbf16>
    %754 = vector.broadcast %753 : vector<1x256xbf16> to vector<8x256xbf16>
    %755 = arith.mulf %752, %754 : vector<8x256xbf16>
    %c46_511 = arith.constant 46 : index
    %c0_512 = arith.constant 0 : index
    %c0_513 = arith.constant 0 : index
    %756 = vector.load %arg11[%c46_511, %c0_512, %c0_513] : memref<49x3x8xbf16, #tpu.memory_space<vmem>>, vector<1x3x8xbf16>
    %757 = vector.shape_cast %756 : vector<1x3x8xbf16> to vector<3x8xbf16>
    %cst_514 = arith.constant dense<0.000000e+00> : vector<3x256xf32>
    %758 = tpu.matmul %757, %755, %cst_514 {dimension_numbers = #tpu.dot_dimension_numbers<[1], [0], [0], [1], [0, 0, 1, 1], [], []>} : vector<3x8xbf16>, vector<8x256xbf16>, vector<3x256xf32> -> vector<3x256xf32>
    %759 = arith.addf %751, %758 : vector<3x256xf32>
    %760 = vector.extract_strided_slice %382 {offsets = [0, 101], sizes = [8, 256], strides = [1, 1]} : vector<8x358xbf16> to vector<8x256xbf16>
    %c47 = arith.constant 47 : index
    %c0_515 = arith.constant 0 : index
    %761 = vector.load %arg13[%c47, %c0_515] : memref<49x256xbf16, #tpu.memory_space<vmem>>, vector<1x256xbf16>
    %762 = vector.broadcast %761 : vector<1x256xbf16> to vector<8x256xbf16>
    %763 = arith.mulf %760, %762 : vector<8x256xbf16>
    %c47_516 = arith.constant 47 : index
    %c0_517 = arith.constant 0 : index
    %c0_518 = arith.constant 0 : index
    %764 = vector.load %arg11[%c47_516, %c0_517, %c0_518] : memref<49x3x8xbf16, #tpu.memory_space<vmem>>, vector<1x3x8xbf16>
    %765 = vector.shape_cast %764 : vector<1x3x8xbf16> to vector<3x8xbf16>
    %cst_519 = arith.constant dense<0.000000e+00> : vector<3x256xf32>
    %766 = tpu.matmul %765, %763, %cst_519 {dimension_numbers = #tpu.dot_dimension_numbers<[1], [0], [0], [1], [0, 0, 1, 1], [], []>} : vector<3x8xbf16>, vector<8x256xbf16>, vector<3x256xf32> -> vector<3x256xf32>
    %767 = arith.addf %759, %766 : vector<3x256xf32>
    %768 = vector.extract_strided_slice %382 {offsets = [0, 102], sizes = [8, 256], strides = [1, 1]} : vector<8x358xbf16> to vector<8x256xbf16>
    %c48 = arith.constant 48 : index
    %c0_520 = arith.constant 0 : index
    %769 = vector.load %arg13[%c48, %c0_520] : memref<49x256xbf16, #tpu.memory_space<vmem>>, vector<1x256xbf16>
    %770 = vector.broadcast %769 : vector<1x256xbf16> to vector<8x256xbf16>
    %771 = arith.mulf %768, %770 : vector<8x256xbf16>
    %c48_521 = arith.constant 48 : index
    %c0_522 = arith.constant 0 : index
    %c0_523 = arith.constant 0 : index
    %772 = vector.load %arg11[%c48_521, %c0_522, %c0_523] : memref<49x3x8xbf16, #tpu.memory_space<vmem>>, vector<1x3x8xbf16>
    %773 = vector.shape_cast %772 : vector<1x3x8xbf16> to vector<3x8xbf16>
    %cst_524 = arith.constant dense<0.000000e+00> : vector<3x256xf32>
    %774 = tpu.matmul %773, %771, %cst_524 {dimension_numbers = #tpu.dot_dimension_numbers<[1], [0], [0], [1], [0, 0, 1, 1], [], []>} : vector<3x8xbf16>, vector<8x256xbf16>, vector<3x256xf32> -> vector<3x256xf32>
    %775 = arith.addf %767, %774 : vector<3x256xf32>
    %c0_525 = arith.constant 0 : index
    %c0_526 = arith.constant 0 : index
    %776 = vector.load %arg12[%c0_525, %c0_526] : memref<3x1xf32, #tpu.memory_space<vmem>>, vector<3x1xf32>
    %777 = vector.broadcast %776 : vector<3x1xf32> to vector<3x256xf32>
    %778 = arith.addf %775, %777 : vector<3x256xf32>
    %cst_527 = arith.constant 2.000000e-01 : f32
    %779 = vector.broadcast %cst_527 : f32 to vector<3x256xf32>
    %780 = arith.mulf %779, %778 : vector<3x256xf32>
    %781 = arith.maximumf %778, %780 : vector<3x256xf32>
    %c0_528 = arith.constant 0 : index
    %c0_529 = arith.constant 0 : index
    %c0_530 = arith.constant 0 : index
    %782 = vector.load %arg14[%c0_528, %c0_529, %c0_530] : memref<1x3x256xf32, #tpu.memory_space<vmem>>, vector<1x3x256xf32>
    %783 = vector.shape_cast %782 : vector<1x3x256xf32> to vector<3x256xf32>
    %784 = vector.shape_cast %781 : vector<3x256xf32> to vector<1x3x256xf32>
    tpu.vector_store %arg14[%c0_528, %c0_529, %c0_530], %784 {strides = array<i32>} : memref<1x3x256xf32, #tpu.memory_space<vmem>>, vector<1x3x256xf32>,
    return
  }
  func.func @transform_0(%arg0: i32) -> (i32, i32, i32) {
    %c0_i32 = arith.constant 0 : i32
    %c0_i32_0 = arith.constant 0 : i32
    %c0_i32_1 = arith.constant 0 : i32
    return %arg0, %c0_i32, %c0_i32_0 : i32, i32, i32
  }
  func.func @transform_1(%arg0: i32) -> (i32, i32, i32) {
    %c0_i32 = arith.constant 0 : i32
    %c0_i32_0 = arith.constant 0 : i32
    %c0_i32_1 = arith.constant 0 : i32
    %c0_i32_2 = arith.constant 0 : i32
    return %c0_i32, %c0_i32_0, %c0_i32_1 : i32, i32, i32
  }
  func.func @transform_2(%arg0: i32) -> (i32, i32) {
    %c0_i32 = arith.constant 0 : i32
    %c0_i32_0 = arith.constant 0 : i32
    %c0_i32_1 = arith.constant 0 : i32
    return %c0_i32, %c0_i32_0 : i32, i32
  }
  func.func @transform_3(%arg0: i32) -> (i32, i32, i32) {
    %c0_i32 = arith.constant 0 : i32
    %c0_i32_0 = arith.constant 0 : i32
    %c0_i32_1 = arith.constant 0 : i32
    %c0_i32_2 = arith.constant 0 : i32
    return %c0_i32, %c0_i32_0, %c0_i32_1 : i32, i32, i32
  }
  func.func @transform_4(%arg0: i32) -> (i32, i32) {
    %c0_i32 = arith.constant 0 : i32
    %c0_i32_0 = arith.constant 0 : i32
    %c0_i32_1 = arith.constant 0 : i32
    return %c0_i32, %c0_i32_0 : i32, i32
  }
  func.func @transform_5(%arg0: i32) -> (i32, i32) {
    %c0_i32 = arith.constant 0 : i32
    %c0_i32_0 = arith.constant 0 : i32
    %c0_i32_1 = arith.constant 0 : i32
    return %c0_i32, %c0_i32_0 : i32, i32
  }
  func.func @transform_6(%arg0: i32) -> (i32, i32, i32) {
    %c0_i32 = arith.constant 0 : i32
    %c0_i32_0 = arith.constant 0 : i32
    %c0_i32_1 = arith.constant 0 : i32
    %c0_i32_2 = arith.constant 0 : i32
    return %c0_i32, %c0_i32_0, %c0_i32_1 : i32, i32, i32
  }
  func.func @transform_7(%arg0: i32) -> (i32, i32) {
    %c0_i32 = arith.constant 0 : i32
    %c0_i32_0 = arith.constant 0 : i32
    %c0_i32_1 = arith.constant 0 : i32
    return %c0_i32, %c0_i32_0 : i32, i32
  }
  func.func @transform_8(%arg0: i32) -> (i32, i32) {
    %c0_i32 = arith.constant 0 : i32
    %c0_i32_0 = arith.constant 0 : i32
    %c0_i32_1 = arith.constant 0 : i32
    return %c0_i32, %c0_i32_0 : i32, i32
  }
  func.func @transform_9(%arg0: i32) -> (i32, i32) {
    %c0_i32 = arith.constant 0 : i32
    %c0_i32_0 = arith.constant 0 : i32
    %c0_i32_1 = arith.constant 0 : i32
    return %c0_i32, %c0_i32_0 : i32, i32
  }
  func.func @transform_10(%arg0: i32) -> (i32, i32, i32) {
    %c0_i32 = arith.constant 0 : i32
    %c0_i32_0 = arith.constant 0 : i32
    %c0_i32_1 = arith.constant 0 : i32
    %c0_i32_2 = arith.constant 0 : i32
    return %c0_i32, %c0_i32_0, %c0_i32_1 : i32, i32, i32
  }
  func.func @transform_11(%arg0: i32) -> (i32, i32) {
    %c0_i32 = arith.constant 0 : i32
    %c0_i32_0 = arith.constant 0 : i32
    %c0_i32_1 = arith.constant 0 : i32
    return %c0_i32, %c0_i32_0 : i32, i32
  }
  func.func @transform_12(%arg0: i32) -> (i32, i32) {
    %c0_i32 = arith.constant 0 : i32
    %c0_i32_0 = arith.constant 0 : i32
    %c0_i32_1 = arith.constant 0 : i32
    return %c0_i32, %c0_i32_0 : i32, i32
  }
  func.func @transform_13(%arg0: i32) -> (i32, i32, i32) {
    %c0_i32 = arith.constant 0 : i32
    %c0_i32_0 = arith.constant 0 : i32
    %c0_i32_1 = arith.constant 0 : i32
    return %arg0, %c0_i32, %c0_i32_0 : i32, i32, i32
  }
}

</mosaic_0001>

<llo_original>
// kernel: decoder_forward.1
$region0: #{decoder_forward.1}
  #allocation0 [shape = 'u32[]', space=smem, size = 0x4, offset = 0x4, fixed_abs, tag = 'smem constant byte address 0x4 - core index']
  #allocation1 [shape = 'u32[72,128]{1,0:T(1,128)}', space=vmem, size = 0x9000, scoped, tag = 'internal scratch']
  %s0 = inlined_call_operand.vmem [shape: f32[2,16,64], index: 0, kind: input, shape index: {}]
  %s1 = inlined_call_operand.vmem [shape: bf16[9,16,16], index: 1, kind: input, shape index: {}]
  %s2 = inlined_call_operand.vmem [shape: f32[16,1], index: 2, kind: input, shape index: {}]
  %s3 = inlined_call_operand.vmem [shape: bf16[9,16,16], index: 3, kind: input, shape index: {}]
  %s4 = inlined_call_operand.vmem [shape: f32[16,1], index: 4, kind: input, shape index: {}]
  %s5 = inlined_call_operand.vmem [shape: bf16[9,64], index: 5, kind: input, shape index: {}]
  %s6 = inlined_call_operand.vmem [shape: bf16[25,8,16], index: 6, kind: input, shape index: {}]
  %s7 = inlined_call_operand.vmem [shape: f32[8,1], index: 7, kind: input, shape index: {}]
  %s8 = inlined_call_operand.vmem [shape: bf16[25,256], index: 8, kind: input, shape index: {}]
  %s9 = inlined_call_operand.vmem [shape: bf16[64,256], index: 9, kind: input, shape index: {}]
  %s10 = inlined_call_operand.vmem [shape: bf16[49,3,8], index: 10, kind: input, shape index: {}]
  %s11 = inlined_call_operand.vmem [shape: f32[3,1], index: 11, kind: input, shape index: {}]
  %s12 = inlined_call_operand.vmem [shape: bf16[49,256], index: 12, kind: input, shape index: {}]
  %s13 = inlined_call_operand.vmem [shape: f32[2,3,256], index: 13, kind: output, shape index: {}]
  %s14 = sld [smem:[#allocation0]]
  $region85: #{decoder_forward.1} parent=0
    _
  %s16 = ssub.s32 1, %s14
  %s17 = scalar_select 0, %s16, %s14
  loop: start=0, step=1, limit=4
  $region2: #{decoder_forward.1} parent=0 // loop_pre_header
    _
  $region3: #{decoder_forward.1} parent=0 // loop_header
    %s19 = sphi 0, %s23
    %p20 = scmp.ge.s32.totalorder %s19, 4
    %s29 = sphi 0, %s31
    %s32 = sphi 0, %s29
    %s33 = sphi 0, %s32
    %s49 = sphi 0, %s33
    %s53 = sphi 0, %s53
    %s55 = sphi 0, %s53
    %s56 = sphi 0, %s55
    %s70 = sphi 0, %s56
    %s74 = sphi 0, %s74
    %s76 = sphi 0, %s74
    %s77 = sphi 0, %s76
    %s91 = sphi 0, %s77
    %s95 = sphi 0, %s95
    %s97 = sphi 0, %s95
    %s98 = sphi 0, %s97
    %s112 = sphi 0, %s98
    %s116 = sphi 0, %s116
    %s118 = sphi 0, %s116
    %s119 = sphi 0, %s118
    %s133 = sphi 0, %s119
    %s137 = sphi 0, %s137
    %s139 = sphi 0, %s137
    %s140 = sphi 0, %s139
    %s154 = sphi 0, %s140
    %s158 = sphi 0, %s158
    %s160 = sphi 0, %s158
    %s161 = sphi 0, %s160
    %s175 = sphi 0, %s161
    %s179 = sphi 0, %s179
    %s181 = sphi 0, %s179
    %s182 = sphi 0, %s181
    %s196 = sphi 0, %s182
    %s200 = sphi 0, %s200
    %s202 = sphi 0, %s200
    %s203 = sphi 0, %s202
    %s217 = sphi 0, %s203
    %s221 = sphi 0, %s221
    %s223 = sphi 0, %s221
    %s224 = sphi 0, %s223
    %s238 = sphi 0, %s224
    %s242 = sphi 0, %s242
    %s244 = sphi 0, %s242
    %s245 = sphi 0, %s244
    %s259 = sphi 0, %s245
    %s263 = sphi 0, %s263
    %s265 = sphi 0, %s263
    %s266 = sphi 0, %s265
    %s280 = sphi 0, %s266
    %s284 = sphi 0, %s284
    %s286 = sphi 0, %s284
    %s287 = sphi 0, %s286
    %s301 = sphi 0, %s287
    %s307 = sphi 0, %s309
    %s310 = sphi 0, %s307
    %s311 = sphi 0, %s310
    %s327 = sphi 0, %s311
  $region4: #{decoder_forward.1} parent=0 // loop_header_branch
    %22 = sbr.rel (%p20) target = $region8
  $region5: #{decoder_forward.1} parent=0 // loop_body
    %s24 = ssub.s32 %s19, 1
    %s25 = ssub.s32 %s19, 2
    %s26 = sadd.s32 %s19, 1
    %s27 = ssub.s32 %s19, %s26
    %p28 = scmp.eq.s32.totalorder %s27, 0
    %s30 = sadd.s32 %s29, 1
    %s31 = scalar_select %p28, %s29, %s30
    %p34 = pneg %p28
    %p35 = scmp.eq.s32.totalorder %s19, 1
    %p36 = por %p34, %p35
    %p37 = scmp.ne.s32.totalorder %s29, %s32
    %p38 = scmp.eq.s32.totalorder %s19, 0
    %p39 = por %p37, %p38
    %p40 = scmp.ne.s32.totalorder %s29, %s32
    %p41 = scmp.eq.s32.totalorder %s24, 1
    %p42 = por %p40, %p41
    %p43 = scmp.ne.s32.totalorder %s32, %s33
    %p44 = scmp.eq.s32.totalorder %s24, 0
    %p45 = por %p43, %p44
    %p46 = scmp.ne.s32.totalorder %s32, %s33
    %p47 = scmp.eq.s32.totalorder %s25, 1
    %p48 = por %p46, %p47
    %p50 = scmp.ne.s32.totalorder %s33, %s49
    %p51 = scmp.eq.s32.totalorder %s25, 0
    %p52 = por %p50, %p51
    %s54 = sadd.s32 %s53, 1
    %p57 = scmp.eq.s32.totalorder %s19, 1
    %p58 = scmp.ne.s32.totalorder %s53, %s55
    %p59 = scmp.eq.s32.totalorder %s19, 0
    %p60 = por %p58, %p59
    %p61 = scmp.ne.s32.totalorder %s53, %s55
    %p62 = scmp.eq.s32.totalorder %s24, 1
    %p63 = por %p61, %p62
    %p64 = scmp.ne.s32.totalorder %s55, %s56
    %p65 = scmp.eq.s32.totalorder %s24, 0
    %p66 = por %p64, %p65
    %p67 = scmp.ne.s32.totalorder %s55, %s56
    %p68 = scmp.eq.s32.totalorder %s25, 1
    %p69 = por %p67, %p68
    %p71 = scmp.ne.s32.totalorder %s56, %s70
    %p72 = scmp.eq.s32.totalorder %s25, 0
    %p73 = por %p71, %p72
    %s75 = sadd.s32 %s74, 1
    %p78 = scmp.eq.s32.totalorder %s19, 1
    %p79 = scmp.ne.s32.totalorder %s74, %s76
    %p80 = scmp.eq.s32.totalorder %s19, 0
    %p81 = por %p79, %p80
    %p82 = scmp.ne.s32.totalorder %s74, %s76
    %p83 = scmp.eq.s32.totalorder %s24, 1
    %p84 = por %p82, %p83
    %p85 = scmp.ne.s32.totalorder %s76, %s77
    %p86 = scmp.eq.s32.totalorder %s24, 0
    %p87 = por %p85, %p86
    %p88 = scmp.ne.s32.totalorder %s76, %s77
    %p89 = scmp.eq.s32.totalorder %s25, 1
    %p90 = por %p88, %p89
    %p92 = scmp.ne.s32.totalorder %s77, %s91
    %p93 = scmp.eq.s32.totalorder %s25, 0
    %p94 = por %p92, %p93
    %s96 = sadd.s32 %s95, 1
    %p99 = scmp.eq.s32.totalorder %s19, 1
    %p100 = scmp.ne.s32.totalorder %s95, %s97
    %p101 = scmp.eq.s32.totalorder %s19, 0
    %p102 = por %p100, %p101
    %p103 = scmp.ne.s32.totalorder %s95, %s97
    %p104 = scmp.eq.s32.totalorder %s24, 1
    %p105 = por %p103, %p104
    %p106 = scmp.ne.s32.totalorder %s97, %s98
    %p107 = scmp.eq.s32.totalorder %s24, 0
    %p108 = por %p106, %p107
    %p109 = scmp.ne.s32.totalorder %s97, %s98
    %p110 = scmp.eq.s32.totalorder %s25, 1
    %p111 = por %p109, %p110
    %p113 = scmp.ne.s32.totalorder %s98, %s112
    %p114 = scmp.eq.s32.totalorder %s25, 0
    %p115 = por %p113, %p114
    %s117 = sadd.s32 %s116, 1
    %p120 = scmp.eq.s32.totalorder %s19, 1
    %p121 = scmp.ne.s32.totalorder %s116, %s118
    %p122 = scmp.eq.s32.totalorder %s19, 0
    %p123 = por %p121, %p122
    %p124 = scmp.ne.s32.totalorder %s116, %s118
    %p125 = scmp.eq.s32.totalorder %s24, 1
    %p126 = por %p124, %p125
    %p127 = scmp.ne.s32.totalorder %s118, %s119
    %p128 = scmp.eq.s32.totalorder %s24, 0
    %p129 = por %p127, %p128
    %p130 = scmp.ne.s32.totalorder %s118, %s119
    %p131 = scmp.eq.s32.totalorder %s25, 1
    %p132 = por %p130, %p131
    %p134 = scmp.ne.s32.totalorder %s119, %s133
    %p135 = scmp.eq.s32.totalorder %s25, 0
    %p136 = por %p134, %p135
    %s138 = sadd.s32 %s137, 1
    %p141 = scmp.eq.s32.totalorder %s19, 1
    %p142 = scmp.ne.s32.totalorder %s137, %s139
    %p143 = scmp.eq.s32.totalorder %s19, 0
    %p144 = por %p142, %p143
    %p145 = scmp.ne.s32.totalorder %s137, %s139
    %p146 = scmp.eq.s32.totalorder %s24, 1
    %p147 = por %p145, %p146
    %p148 = scmp.ne.s32.totalorder %s139, %s140
    %p149 = scmp.eq.s32.totalorder %s24, 0
    %p150 = por %p148, %p149
    %p151 = scmp.ne.s32.totalorder %s139, %s140
    %p152 = scmp.eq.s32.totalorder %s25, 1
    %p153 = por %p151, %p152
    %p155 = scmp.ne.s32.totalorder %s140, %s154
    %p156 = scmp.eq.s32.totalorder %s25, 0
    %p157 = por %p155, %p156
    %s159 = sadd.s32 %s158, 1
    %p162 = scmp.eq.s32.totalorder %s19, 1
    %p163 = scmp.ne.s32.totalorder %s158, %s160
    %p164 = scmp.eq.s32.totalorder %s19, 0
    %p165 = por %p163, %p164
    %p166 = scmp.ne.s32.totalorder %s158, %s160
    %p167 = scmp.eq.s32.totalorder %s24, 1
    %p168 = por %p166, %p167
    %p169 = scmp.ne.s32.totalorder %s160, %s161
    %p170 = scmp.eq.s32.totalorder %s24, 0
    %p171 = por %p169, %p170
    %p172 = scmp.ne.s32.totalorder %s160, %s161
    %p173 = scmp.eq.s32.totalorder %s25, 1
    %p174 = por %p172, %p173
    %p176 = scmp.ne.s32.totalorder %s161, %s175
    %p177 = scmp.eq.s32.totalorder %s25, 0
    %p178 = por %p176, %p177
    %s180 = sadd.s32 %s179, 1
    %p183 = scmp.eq.s32.totalorder %s19, 1
    %p184 = scmp.ne.s32.totalorder %s179, %s181
    %p185 = scmp.eq.s32.totalorder %s19, 0
    %p186 = por %p184, %p185
    %p187 = scmp.ne.s32.totalorder %s179, %s181
    %p188 = scmp.eq.s32.totalorder %s24, 1
    %p189 = por %p187, %p188
    %p190 = scmp.ne.s32.totalorder %s181, %s182
    %p191 = scmp.eq.s32.totalorder %s24, 0
    %p192 = por %p190, %p191
    %p193 = scmp.ne.s32.totalorder %s181, %s182
    %p194 = scmp.eq.s32.totalorder %s25, 1
    %p195 = por %p193, %p194
    %p197 = scmp.ne.s32.totalorder %s182, %s196
    %p198 = scmp.eq.s32.totalorder %s25, 0
    %p199 = por %p197, %p198
    %s201 = sadd.s32 %s200, 1
    %p204 = scmp.eq.s32.totalorder %s19, 1
    %p205 = scmp.ne.s32.totalorder %s200, %s202
    %p206 = scmp.eq.s32.totalorder %s19, 0
    %p207 = por %p205, %p206
    %p208 = scmp.ne.s32.totalorder %s200, %s202
    %p209 = scmp.eq.s32.totalorder %s24, 1
    %p210 = por %p208, %p209
    %p211 = scmp.ne.s32.totalorder %s202, %s203
    %p212 = scmp.eq.s32.totalorder %s24, 0
    %p213 = por %p211, %p212
    %p214 = scmp.ne.s32.totalorder %s202, %s203
    %p215 = scmp.eq.s32.totalorder %s25, 1
    %p216 = por %p214, %p215
    %p218 = scmp.ne.s32.totalorder %s203, %s217
    %p219 = scmp.eq.s32.totalorder %s25, 0
    %p220 = por %p218, %p219
    %s222 = sadd.s32 %s221, 1
    %p225 = scmp.eq.s32.totalorder %s19, 1
    %p226 = scmp.ne.s32.totalorder %s221, %s223
    %p227 = scmp.eq.s32.totalorder %s19, 0
    %p228 = por %p226, %p227
    %p229 = scmp.ne.s32.totalorder %s221, %s223
    %p230 = scmp.eq.s32.totalorder %s24, 1
    %p231 = por %p229, %p230
    %p232 = scmp.ne.s32.totalorder %s223, %s224
    %p233 = scmp.eq.s32.totalorder %s24, 0
    %p234 = por %p232, %p233
    %p235 = scmp.ne.s32.totalorder %s223, %s224
    %p236 = scmp.eq.s32.totalorder %s25, 1
    %p237 = por %p235, %p236
    %p239 = scmp.ne.s32.totalorder %s224, %s238
    %p240 = scmp.eq.s32.totalorder %s25, 0
    %p241 = por %p239, %p240
    %s243 = sadd.s32 %s242, 1
    %p246 = scmp.eq.s32.totalorder %s19, 1
    %p247 = scmp.ne.s32.totalorder %s242, %s244
    %p248 = scmp.eq.s32.totalorder %s19, 0
    %p249 = por %p247, %p248
    %p250 = scmp.ne.s32.totalorder %s242, %s244
    %p251 = scmp.eq.s32.totalorder %s24, 1
    %p252 = por %p250, %p251
    %p253 = scmp.ne.s32.totalorder %s244, %s245
    %p254 = scmp.eq.s32.totalorder %s24, 0
    %p255 = por %p253, %p254
    %p256 = scmp.ne.s32.totalorder %s244, %s245
    %p257 = scmp.eq.s32.totalorder %s25, 1
    %p258 = por %p256, %p257
    %p260 = scmp.ne.s32.totalorder %s245, %s259
    %p261 = scmp.eq.s32.totalorder %s25, 0
    %p262 = por %p260, %p261
    %s264 = sadd.s32 %s263, 1
    %p267 = scmp.eq.s32.totalorder %s19, 1
    %p268 = scmp.ne.s32.totalorder %s263, %s265
    %p269 = scmp.eq.s32.totalorder %s19, 0
    %p270 = por %p268, %p269
    %p271 = scmp.ne.s32.totalorder %s263, %s265
    %p272 = scmp.eq.s32.totalorder %s24, 1
    %p273 = por %p271, %p272
    %p274 = scmp.ne.s32.totalorder %s265, %s266
    %p275 = scmp.eq.s32.totalorder %s24, 0
    %p276 = por %p274, %p275
    %p277 = scmp.ne.s32.totalorder %s265, %s266
    %p278 = scmp.eq.s32.totalorder %s25, 1
    %p279 = por %p277, %p278
    %p281 = scmp.ne.s32.totalorder %s266, %s280
    %p282 = scmp.eq.s32.totalorder %s25, 0
    %p283 = por %p281, %p282
    %s285 = sadd.s32 %s284, 1
    %p288 = scmp.eq.s32.totalorder %s19, 1
    %p289 = scmp.ne.s32.totalorder %s284, %s286
    %p290 = scmp.eq.s32.totalorder %s19, 0
    %p291 = por %p289, %p290
    %p292 = scmp.ne.s32.totalorder %s284, %s286
    %p293 = scmp.eq.s32.totalorder %s24, 1
    %p294 = por %p292, %p293
    %p295 = scmp.ne.s32.totalorder %s286, %s287
    %p296 = scmp.eq.s32.totalorder %s24, 0
    %p297 = por %p295, %p296
    %p298 = scmp.ne.s32.totalorder %s286, %s287
    %p299 = scmp.eq.s32.totalorder %s25, 1
    %p300 = por %p298, %p299
    %p302 = scmp.ne.s32.totalorder %s287, %s301
    %p303 = scmp.eq.s32.totalorder %s25, 0
    %p304 = por %p302, %p303
    %s305 = ssub.s32 %s19, %s26
    %p306 = scmp.eq.s32.totalorder %s305, 0
    %s308 = sadd.s32 %s307, 1
    %s309 = scalar_select %p306, %s307, %s308
    %p312 = pneg %p306
    %p313 = scmp.eq.s32.totalorder %s19, 1
    %p314 = por %p312, %p313
    %p315 = scmp.ne.s32.totalorder %s307, %s310
    %p316 = scmp.eq.s32.totalorder %s19, 0
    %p317 = por %p315, %p316
    %p318 = scmp.ne.s32.totalorder %s307, %s310
    %p319 = scmp.eq.s32.totalorder %s24, 1
    %p320 = por %p318, %p319
    %p321 = scmp.ne.s32.totalorder %s310, %s311
    %p322 = scmp.eq.s32.totalorder %s24, 0
    %p323 = por %p321, %p322
    %p324 = scmp.ne.s32.totalorder %s310, %s311
    %p325 = scmp.eq.s32.totalorder %s25, 1
    %p326 = por %p324, %p325
    %p328 = scmp.ne.s32.totalorder %s311, %s327
    %p329 = scmp.eq.s32.totalorder %s25, 0
    %p330 = por %p328, %p329
    %p331 = scmp.le.s32.totalorder 1, %s19
    %p332 = scmp.lt.s32.totalorder %s19, 3
    %p333 = pnand %p331, %p332
    %p334 = pneg %p333
    // Predicated region
    $region9: #{decoder_forward.1} parent=5 // pred_check
      _
    $region10: #{decoder_forward.1} parent=5 // pred_check_branch
      %336 = sbr.rel (%p333) target = $region12
    $region11: #{decoder_forward.1} parent=5 // pred_region
      %s337 = ssub.s32 %s19, 1
      // Predicated region
      $region13: #{decoder_forward.1} parent=11 // pred_check
        %p338 = pneg %p66
      $region14: #{decoder_forward.1} parent=11 // pred_check_branch
        %340 = sbr.rel (%p338) target = $region16
      $region15: #{decoder_forward.1} parent=11 // pred_region
        _
      $region16: #{decoder_forward.1} parent=11 // pred_fallthru
        _
      // Predicated region
      $region17: #{decoder_forward.1} parent=11 // pred_check
        %p341 = pneg %p87
      $region18: #{decoder_forward.1} parent=11 // pred_check_branch
        %343 = sbr.rel (%p341) target = $region20
      $region19: #{decoder_forward.1} parent=11 // pred_region
        _
      $region20: #{decoder_forward.1} parent=11 // pred_fallthru
        _
      // Predicated region
      $region21: #{decoder_forward.1} parent=11 // pred_check
        %p344 = pneg %p108
      $region22: #{decoder_forward.1} parent=11 // pred_check_branch
        %346 = sbr.rel (%p344) target = $region24
      $region23: #{decoder_forward.1} parent=11 // pred_region
        _
      $region24: #{decoder_forward.1} parent=11 // pred_fallthru
        _
      // Predicated region
      $region25: #{decoder_forward.1} parent=11 // pred_check
        %p347 = pneg %p129
      $region26: #{decoder_forward.1} parent=11 // pred_check_branch
        %349 = sbr.rel (%p347) target = $region28
      $region27: #{decoder_forward.1} parent=11 // pred_region
        _
      $region28: #{decoder_forward.1} parent=11 // pred_fallthru
        _
      // Predicated region
      $region29: #{decoder_forward.1} parent=11 // pred_check
        %p350 = pneg %p150
      $region30: #{decoder_forward.1} parent=11 // pred_check_branch
        %352 = sbr.rel (%p350) target = $region32
      $region31: #{decoder_forward.1} parent=11 // pred_region
        _
      $region32: #{decoder_forward.1} parent=11 // pred_fallthru
        _
      // Predicated region
      $region33: #{decoder_forward.1} parent=11 // pred_check
        %p353 = pneg %p171
      $region34: #{decoder_forward.1} parent=11 // pred_check_branch
        %355 = sbr.rel (%p353) target = $region36
      $region35: #{decoder_forward.1} parent=11 // pred_region
        _
      $region36: #{decoder_forward.1} parent=11 // pred_fallthru
        _
      // Predicated region
      $region37: #{decoder_forward.1} parent=11 // pred_check
        %p356 = pneg %p192
      $region38: #{decoder_forward.1} parent=11 // pred_check_branch
        %358 = sbr.rel (%p356) target = $region40
      $region39: #{decoder_forward.1} parent=11 // pred_region
        _
      $region40: #{decoder_forward.1} parent=11 // pred_fallthru
        _
      // Predicated region
      $region41: #{decoder_forward.1} parent=11 // pred_check
        %p359 = pneg %p213
      $region42: #{decoder_forward.1} parent=11 // pred_check_branch
        %361 = sbr.rel (%p359) target = $region44
      $region43: #{decoder_forward.1} parent=11 // pred_region
        _
      $region44: #{decoder_forward.1} parent=11 // pred_fallthru
        _
      // Predicated region
      $region45: #{decoder_forward.1} parent=11 // pred_check
        %p362 = pneg %p234
      $region46: #{decoder_forward.1} parent=11 // pred_check_branch
        %364 = sbr.rel (%p362) target = $region48
      $region47: #{decoder_forward.1} parent=11 // pred_region
        _
      $region48: #{decoder_forward.1} parent=11 // pred_fallthru
        _
      // Predicated region
      $region49: #{decoder_forward.1} parent=11 // pred_check
        %p365 = pneg %p255
      $region50: #{decoder_forward.1} parent=11 // pred_check_branch
        %367 = sbr.rel (%p365) target = $region52
      $region51: #{decoder_forward.1} parent=11 // pred_region
        _
      $region52: #{decoder_forward.1} parent=11 // pred_fallthru
        _
      // Predicated region
      $region53: #{decoder_forward.1} parent=11 // pred_check
        %p368 = pneg %p276
      $region54: #{decoder_forward.1} parent=11 // pred_check_branch
        %370 = sbr.rel (%p368) target = $region56
      $region55: #{decoder_forward.1} parent=11 // pred_region
        _
      $region56: #{decoder_forward.1} parent=11 // pred_fallthru
        _
      // Predicated region
      $region57: #{decoder_forward.1} parent=11 // pred_check
        %p371 = pneg %p297
      $region58: #{decoder_forward.1} parent=11 // pred_check_branch
        %373 = sbr.rel (%p371) target = $region60
      $region59: #{decoder_forward.1} parent=11 // pred_region
        _
      $region60: #{decoder_forward.1} parent=11 // pred_fallthru
        _
    $region12: #{decoder_forward.1} parent=5 // pred_fallthru
      _
    %p374 = scmp.lt.s32.totalorder %s19, 2
    // Predicated region
    $region61: #{decoder_forward.1} parent=5 // pred_check
      %p375 = pneg %p374
    $region62: #{decoder_forward.1} parent=5 // pred_check_branch
      %377 = sbr.rel (%p375) target = $region64
    $region63: #{decoder_forward.1} parent=5 // pred_region
      // Predicated region
      $region65: #{decoder_forward.1} parent=63 // pred_check
        %p378 = pneg %p39
      $region66: #{decoder_forward.1} parent=63 // pred_check_branch
        %380 = sbr.rel (%p378) target = $region68
      $region67: #{decoder_forward.1} parent=63 // pred_region
        %p381 = scmp.lt.s32.totalorder %s19, 1
        %s382 = scalar_select %p381, %s19, 1
        %s383 = smul.addr %s382, 2
        %s384 = smul.addr %s383, 8
        %s385 = scalar_lea.vmem %s0, %s384
      $region68: #{decoder_forward.1} parent=63 // pred_fallthru
        _
    $region64: #{decoder_forward.1} parent=5 // pred_fallthru
      _
    %p386 = scmp.le.s32.totalorder 1, %s19
    %p387 = scmp.lt.s32.totalorder %s19, 3
    %p388 = pnand %p386, %p387
    %p389 = pneg %p388
    // Predicated region
    $region69: #{decoder_forward.1} parent=5 // pred_check
      _
    $region70: #{decoder_forward.1} parent=5 // pred_check_branch
      %391 = sbr.rel (%p388) target = $region72
    $region71: #{decoder_forward.1} parent=5 // pred_region
      %s392 = ssub.s32 %s19, 1
      %p393 = scmp.lt.s32.totalorder %s24, 1
      %s394 = scalar_select %p393, %s24, 1
      %s395 = smul.addr %s394, 2
      %s396 = smul.addr %s395, 8
      %s397 = scalar_lea.vmem %s0, %s396
      %p398 = pneg %p45
      %p399 = pneg %p42
      %p400 = pneg %p66
      %p401 = pneg %p63
      %p402 = pneg %p87
      %p403 = pneg %p84
      %p404 = pneg %p108
      %p405 = pneg %p105
      %p406 = pneg %p129
      %p407 = pneg %p126
      %p408 = pneg %p150
      %p409 = pneg %p147
      %p410 = pneg %p171
      %p411 = pneg %p168
      %p412 = pneg %p192
      %p413 = pneg %p189
      %p414 = pneg %p213
      %p415 = pneg %p210
      %p416 = pneg %p234
      %p417 = pneg %p231
      %p418 = pneg %p255
      %p419 = pneg %p252
      %p420 = pneg %p276
      %p421 = pneg %p273
      %p422 = pneg %p297
      %p423 = pneg %p294
      %p424 = pneg %p323
      %p425 = pneg %p320
      %p426 = scmp.lt.s32.totalorder %s24, 1
      %s427 = scalar_select %p426, %s24, 1
      %s428 = smul.addr %s427, 2
      %s429 = smul.addr %s428, 4
      %s430 = scalar_lea.vmem %s13, %s429
      %p431 = scmp.lt.s32.totalorder %s24, 1
      %s432 = scalar_select %p431, %s24, 1
      %s433 = smul.addr %s432, 2
      %s434 = smul.addr %s433, 8
      %s435 = scalar_lea.vmem %s0, %s434
      %p436 = scmp.lt.s32.totalorder %s24, 1
      %s437 = scalar_select %p436, %s24, 1
      %s438 = smul.addr %s437, 2
      %s439 = smul.addr %s438, 4
      %s440 = scalar_lea.vmem %s13, %s439
      %v442 = vld [vmem:[%s435] sm:$0xff]
      %v443 = vld [vmem:[%s435 + $0x8] sm:$0xff]
      %v444 = vpack.c.bf16 %v442, %v442
      %v445 = vpack.c.bf16 %v443, %v443
      %v448 = vunpack.c.l.b16 %v444
      %v449 = vunpack.c.l.b16 %v445
      %v450 = vpack.c.b16 %v449, %v448
      %451 = vrot.lane.b32.xlu0 %v450, 9
      %v452 = vpop.permute.xlu0 %451
      %vm453 = vcmask 72704
      %v456 = vsel %vm453, 0, %v452
      %vm457 = vcmask 596992
      %v458 = vsel %vm457, %v456, 0
      %v460 = vld [vmem:[%s5] sm:$0x1]
      %v462 = vpack.i.b16 %v460, %v460
      %v464 = vperm.slane %v462, 0
      %v465 = vunpack.c.l.bf16 %v458
      %v466 = vunpack.c.h.bf16 %v458
      %v467 = vunpack.c.l.bf16 %v464
      %v468 = vmul.f32 %v465, %v467
      %v469 = vmul.f32 %v466, %v467
      %v470 = vpack.c.bf16 %v469, %v468
      %v471 = vld [vmem:[%s1] sm:$0xf]
      %v472 = vld [vmem:[%s1 + $0x4] sm:$0xf]
      %v473 = vshrl.u32 %v460, 16
      %v474 = vpack.i.b16 %v473, %v473
      %v476 = vperm.slane %v474, 0
      %v477 = vunpack.c.l.bf16 %v476
      %479 = vrot.lane.b32.xlu0 %v477, 1
      %v480 = vpop.permute.xlu0 %479
      %v482 = vmul.f32 %v465, %v480
      %v483 = vmul.f32 %v466, %v480
      %v484 = vpack.c.bf16 %v483, %v482
      %s485 = scalar_lea.vmem %s1, 8
      %v486 = vld [vmem:[%s485] sm:$0xf]
      %v487 = vld [vmem:[%s485 + $0x4] sm:$0xf]
      %v490 = vunpack.c.l.b16 %v486
      %v491 = vunpack.c.l.b16 %v487
      %v492 = vpack.c.b16 %v491, %v490
      %494 = vrot.lane.b32.xlu0 %v484, 127
      %v495 = vpop.permute.xlu0 %494
      %vm497 = vcmask 130048
      %v499 = vsel %vm497, %v492, 0
      %501 = vmatpush.bf16.msra.mxu0 0
      %502 = vmatpush.bf16.msra.mxu0 0
      %503 = vmatpush.bf16.msra.mxu0 0
      %504 = vmatpush.bf16.msra.mxu0 0
      %505 = vmatpush.bf16.msra.mxu0 0
      %506 = vmatpush.bf16.msra.mxu0 0
      %507 = vmatpush.bf16.msra.mxu0 0
      %508 = vmatpush.bf16.msra.mxu0 %v495
      %509 = vmatmul.bf16.gmra.mxu0 %v499
      %v510 = vpop.f32.mrf.mxu0
      %v511 = vadd.f32 0.0, %v510
      %v512 = vpop.f32.mrf.mxu0
      %v513 = vadd.f32 0.0, %v512
      %514 = vdwg.mxu0
      %v517 = vunpack.c.l.b16 %v471
      %v518 = vunpack.c.l.b16 %v472
      %v519 = vpack.c.b16 %v518, %v517
      %v521 = vsel %vm497, %v519, 0
      %523 = vmatpush.bf16.msra.mxu0 0
      %524 = vmatpush.bf16.msra.mxu0 0
      %525 = vmatpush.bf16.msra.mxu0 0
      %526 = vmatpush.bf16.msra.mxu0 0
      %527 = vmatpush.bf16.msra.mxu0 0
      %528 = vmatpush.bf16.msra.mxu0 0
      %529 = vmatpush.bf16.msra.mxu0 0
      %530 = vmatpush.bf16.msra.mxu0 %v470
      %531 = vmatmul.bf16.gmra.mxu0 %v521
      %v532 = vpop.f32.mrf.mxu0
      %v533 = vadd.f32 %v511, %v532
      %v534 = vpop.f32.mrf.mxu0
      %v535 = vadd.f32 %v513, %v534
      %536 = vdwg.mxu0
      %v537 = vld [vmem:[%s5] sm:$0x2]
      %v539 = vpack.i.b16 %v537, %v537
      %v541 = vperm.slane %v539, 1
      %v542 = vunpack.c.l.bf16 %v541
      %544 = vrot.lane.b32.xlu0 %v542, 2
      %v545 = vpop.permute.xlu0 %544
      %v547 = vmul.f32 %v465, %v545
      %v548 = vmul.f32 %v466, %v545
      %v549 = vpack.c.bf16 %v548, %v547
      %s550 = scalar_lea.vmem %s1, 16
      %v551 = vld [vmem:[%s550] sm:$0xf]
      %v552 = vld [vmem:[%s550 + $0x4] sm:$0xf]
      %v555 = vunpack.c.l.b16 %v551
      %v556 = vunpack.c.l.b16 %v552
      %v557 = vpack.c.b16 %v556, %v555
      %559 = vrot.lane.b32.xlu0 %v549, 126
      %v560 = vpop.permute.xlu0 %559
      %v563 = vsel %vm497, %v557, 0
      %565 = vmatpush.bf16.msra.mxu0 0
      %566 = vmatpush.bf16.msra.mxu0 0
      %567 = vmatpush.bf16.msra.mxu0 0
      %568 = vmatpush.bf16.msra.mxu0 0
      %569 = vmatpush.bf16.msra.mxu0 0
      %570 = vmatpush.bf16.msra.mxu0 0
      %571 = vmatpush.bf16.msra.mxu0 0
      %572 = vmatpush.bf16.msra.mxu0 %v560
      %573 = vmatmul.bf16.gmra.mxu0 %v563
      %v574 = vpop.f32.mrf.mxu0
      %v575 = vadd.f32 0.0, %v574
      %v576 = vpop.f32.mrf.mxu0
      %v577 = vadd.f32 0.0, %v576
      %578 = vdwg.mxu0
      %v579 = vadd.f32 %v533, %v575
      %v580 = vadd.f32 %v535, %v577
      %v581 = vshrl.u32 %v537, 16
      %v582 = vpack.i.b16 %v581, %v581
      %v584 = vperm.slane %v582, 1
      %v585 = vunpack.c.l.bf16 %v584
      %587 = vrot.lane.b32.xlu0 %v585, 8
      %v588 = vpop.permute.xlu0 %587
      %v590 = vmul.f32 %v465, %v588
      %v591 = vmul.f32 %v466, %v588
      %v592 = vpack.c.bf16 %v591, %v590
      %s593 = scalar_lea.vmem %s1, 24
      %v594 = vld [vmem:[%s593] sm:$0xf]
      %v595 = vld [vmem:[%s593 + $0x4] sm:$0xf]
      %v598 = vunpack.c.l.b16 %v594
      %v599 = vunpack.c.l.b16 %v595
      %v600 = vpack.c.b16 %v599, %v598
      %602 = vrot.lane.b32.xlu0 %v592, 120
      %v603 = vpop.permute.xlu0 %602
      %v606 = vsel %vm497, %v600, 0
      %608 = vmatpush.bf16.msra.mxu0 0
      %609 = vmatpush.bf16.msra.mxu0 0
      %610 = vmatpush.bf16.msra.mxu0 0
      %611 = vmatpush.bf16.msra.mxu0 0
      %612 = vmatpush.bf16.msra.mxu0 0
      %613 = vmatpush.bf16.msra.mxu0 0
      %614 = vmatpush.bf16.msra.mxu0 0
      %615 = vmatpush.bf16.msra.mxu0 %v603
      %616 = vmatmul.bf16.gmra.mxu0 %v606
      %v617 = vpop.f32.mrf.mxu0
      %v618 = vadd.f32 0.0, %v617
      %v619 = vpop.f32.mrf.mxu0
      %v620 = vadd.f32 0.0, %v619
      %621 = vdwg.mxu0
      %v622 = vadd.f32 %v579, %v618
      %v623 = vadd.f32 %v580, %v620
      %v624 = vld [vmem:[%s5] sm:$0x4]
      %v626 = vpack.i.b16 %v624, %v624
      %v628 = vperm.slane %v626, 2
      %v629 = vunpack.c.l.bf16 %v628
      %631 = vrot.lane.b32.xlu0 %v629, 9
      %v632 = vpop.permute.xlu0 %631
      %v634 = vmul.f32 %v465, %v632
      %v635 = vmul.f32 %v466, %v632
      %v636 = vpack.c.bf16 %v635, %v634
      %s637 = scalar_lea.vmem %s1, 32
      %v638 = vld [vmem:[%s637] sm:$0xf]
      %v639 = vld [vmem:[%s637 + $0x4] sm:$0xf]
      %v642 = vunpack.c.l.b16 %v638
      %v643 = vunpack.c.l.b16 %v639
      %v644 = vpack.c.b16 %v643, %v642
      %646 = vrot.lane.b32.xlu0 %v636, 119
      %v647 = vpop.permute.xlu0 %646
      %v650 = vsel %vm497, %v644, 0
      %652 = vmatpush.bf16.msra.mxu0 0
      %653 = vmatpush.bf16.msra.mxu0 0
      %654 = vmatpush.bf16.msra.mxu0 0
      %655 = vmatpush.bf16.msra.mxu0 0
      %656 = vmatpush.bf16.msra.mxu0 0
      %657 = vmatpush.bf16.msra.mxu0 0
      %658 = vmatpush.bf16.msra.mxu0 0
      %659 = vmatpush.bf16.msra.mxu0 %v647
      %660 = vmatmul.bf16.gmra.mxu0 %v650
      %v661 = vpop.f32.mrf.mxu0
      %v662 = vadd.f32 0.0, %v661
      %v663 = vpop.f32.mrf.mxu0
      %v664 = vadd.f32 0.0, %v663
      %665 = vdwg.mxu0
      %v666 = vadd.f32 %v622, %v662
      %v667 = vadd.f32 %v623, %v664
      %v668 = vshrl.u32 %v624, 16
      %v669 = vpack.i.b16 %v668, %v668
      %v671 = vperm.slane %v669, 2
      %v672 = vunpack.c.l.bf16 %v671
      %674 = vrot.lane.b32.xlu0 %v672, 10
      %v675 = vpop.permute.xlu0 %674
      %v677 = vmul.f32 %v465, %v675
      %v678 = vmul.f32 %v466, %v675
      %v679 = vpack.c.bf16 %v678, %v677
      %s680 = scalar_lea.vmem %s1, 40
      %v681 = vld [vmem:[%s680] sm:$0xf]
      %v682 = vld [vmem:[%s680 + $0x4] sm:$0xf]
      %v685 = vunpack.c.l.b16 %v681
      %v686 = vunpack.c.l.b16 %v682
      %v687 = vpack.c.b16 %v686, %v685
      %689 = vrot.lane.b32.xlu0 %v679, 118
      %v690 = vpop.permute.xlu0 %689
      %v693 = vsel %vm497, %v687, 0
      %695 = vmatpush.bf16.msra.mxu0 0
      %696 = vmatpush.bf16.msra.mxu0 0
      %697 = vmatpush.bf16.msra.mxu0 0
      %698 = vmatpush.bf16.msra.mxu0 0
      %699 = vmatpush.bf16.msra.mxu0 0
      %700 = vmatpush.bf16.msra.mxu0 0
      %701 = vmatpush.bf16.msra.mxu0 0
      %702 = vmatpush.bf16.msra.mxu0 %v690
      %703 = vmatmul.bf16.gmra.mxu0 %v693
      %v704 = vpop.f32.mrf.mxu0
      %v705 = vadd.f32 0.0, %v704
      %v706 = vpop.f32.mrf.mxu0
      %v707 = vadd.f32 0.0, %v706
      %708 = vdwg.mxu0
      %v709 = vadd.f32 %v666, %v705
      %v710 = vadd.f32 %v667, %v707
      %v711 = vld [vmem:[%s5] sm:$0x8]
      %v713 = vpack.i.b16 %v711, %v711
      %v715 = vperm.slane %v713, 3
      %v716 = vunpack.c.l.bf16 %v715
      %718 = vrot.lane.b32.xlu0 %v716, 16
      %v719 = vpop.permute.xlu0 %718
      %v721 = vmul.f32 %v465, %v719
      %v722 = vmul.f32 %v466, %v719
      %v723 = vpack.c.bf16 %v722, %v721
      %s724 = scalar_lea.vmem %s1, 48
      %v725 = vld [vmem:[%s724] sm:$0xf]
      %v726 = vld [vmem:[%s724 + $0x4] sm:$0xf]
      %v729 = vunpack.c.l.b16 %v725
      %v730 = vunpack.c.l.b16 %v726
      %v731 = vpack.c.b16 %v730, %v729
      %733 = vrot.lane.b32.xlu0 %v723, 112
      %v734 = vpop.permute.xlu0 %733
      %v737 = vsel %vm497, %v731, 0
      %739 = vmatpush.bf16.msra.mxu0 0
      %740 = vmatpush.bf16.msra.mxu0 0
      %741 = vmatpush.bf16.msra.mxu0 0
      %742 = vmatpush.bf16.msra.mxu0 0
      %743 = vmatpush.bf16.msra.mxu0 0
      %744 = vmatpush.bf16.msra.mxu0 0
      %745 = vmatpush.bf16.msra.mxu0 0
      %746 = vmatpush.bf16.msra.mxu0 %v734
      %747 = vmatmul.bf16.gmra.mxu0 %v737
      %v748 = vpop.f32.mrf.mxu0
      %v749 = vadd.f32 0.0, %v748
      %v750 = vpop.f32.mrf.mxu0
      %v751 = vadd.f32 0.0, %v750
      %752 = vdwg.mxu0
      %v753 = vadd.f32 %v709, %v749
      %v754 = vadd.f32 %v710, %v751
      %v755 = vshrl.u32 %v711, 16
      %v756 = vpack.i.b16 %v755, %v755
      %v758 = vperm.slane %v756, 3
      %v759 = vunpack.c.l.bf16 %v758
      %761 = vrot.lane.b32.xlu0 %v759, 17
      %v762 = vpop.permute.xlu0 %761
      %v764 = vmul.f32 %v465, %v762
      %v765 = vmul.f32 %v466, %v762
      %v766 = vpack.c.bf16 %v765, %v764
      %s767 = scalar_lea.vmem %s1, 56
      %v768 = vld [vmem:[%s767] sm:$0xf]
      %v769 = vld [vmem:[%s767 + $0x4] sm:$0xf]
      %v772 = vunpack.c.l.b16 %v768
      %v773 = vunpack.c.l.b16 %v769
      %v774 = vpack.c.b16 %v773, %v772
      %776 = vrot.lane.b32.xlu0 %v766, 111
      %v777 = vpop.permute.xlu0 %776
      %v780 = vsel %vm497, %v774, 0
      %782 = vmatpush.bf16.msra.mxu0 0
      %783 = vmatpush.bf16.msra.mxu0 0
      %784 = vmatpush.bf16.msra.mxu0 0
      %785 = vmatpush.bf16.msra.mxu0 0
      %786 = vmatpush.bf16.msra.mxu0 0
      %787 = vmatpush.bf16.msra.mxu0 0
      %788 = vmatpush.bf16.msra.mxu0 0
      %789 = vmatpush.bf16.msra.mxu0 %v777
      %790 = vmatmul.bf16.gmra.mxu0 %v780
      %v791 = vpop.f32.mrf.mxu0
      %v792 = vadd.f32 0.0, %v791
      %v793 = vpop.f32.mrf.mxu0
      %v794 = vadd.f32 0.0, %v793
      %795 = vdwg.mxu0
      %v796 = vadd.f32 %v753, %v792
      %v797 = vadd.f32 %v754, %v794
      %v798 = vld [vmem:[%s5 + $0x4] sm:$0x1]
      %v800 = vpack.i.b16 %v798, %v798
      %v802 = vperm.slane %v800, 0
      %v803 = vunpack.c.l.bf16 %v802
      %805 = vrot.lane.b32.xlu0 %v803, 18
      %v806 = vpop.permute.xlu0 %805
      %v808 = vmul.f32 %v465, %v806
      %v809 = vmul.f32 %v466, %v806
      %v810 = vpack.c.bf16 %v809, %v808
      %s811 = scalar_lea.vmem %s1, 64
      %v812 = vld [vmem:[%s811] sm:$0xf]
      %v813 = vld [vmem:[%s811 + $0x4] sm:$0xf]
      %v816 = vunpack.c.l.b16 %v812
      %v817 = vunpack.c.l.b16 %v813
      %v818 = vpack.c.b16 %v817, %v816
      %820 = vrot.lane.b32.xlu0 %v810, 110
      %v821 = vpop.permute.xlu0 %820
      %v824 = vsel %vm497, %v818, 0
      %826 = vmatpush.bf16.msra.mxu0 0
      %827 = vmatpush.bf16.msra.mxu0 0
      %828 = vmatpush.bf16.msra.mxu0 0
      %829 = vmatpush.bf16.msra.mxu0 0
      %830 = vmatpush.bf16.msra.mxu0 0
      %831 = vmatpush.bf16.msra.mxu0 0
      %832 = vmatpush.bf16.msra.mxu0 0
      %833 = vmatpush.bf16.msra.mxu0 %v821
      %834 = vmatmul.bf16.gmra.mxu0 %v824
      %v835 = vpop.f32.mrf.mxu0
      %v836 = vadd.f32 0.0, %v835
      %v837 = vpop.f32.mrf.mxu0
      %v838 = vadd.f32 0.0, %v837
      %839 = vdwg.mxu0
      %v840 = vadd.f32 %v796, %v836
      %v841 = vadd.f32 %v797, %v838
      %v842 = vld [vmem:[%s2] sm:$0xff]
      %v843 = vld [vmem:[%s2 + $0x8] sm:$0xff]
      %845 = vset.pattern.permute.xlu0 0
      %846 = vperm.xlu0 %845, %v842
      %v847 = vpop.permute.xlu0 %846
      %850 = vset.pattern.permute.xlu0 0
      %851 = vperm.xlu0 %850, %v843
      %v852 = vpop.permute.xlu0 %851
      %v854 = vadd.f32 %v840, %v847
      %v855 = vadd.f32 %v841, %v852
      %v856 = vmul.f32 %v854, 0.2
      %v857 = vmul.f32 %v855, 0.2
      %v858 = vmax.f32 %v854, %v856
      %v859 = vmax.f32 %v855, %v857
      %v860 = vpack.c.bf16 %v858, %v858
      %v861 = vpack.c.bf16 %v859, %v859
      %v864 = vunpack.c.l.b16 %v860
      %v865 = vunpack.c.l.b16 %v861
      %v866 = vpack.c.b16 %v865, %v864
      %867 = vrot.lane.b32.xlu0 %v866, 9
      %v868 = vpop.permute.xlu0 %867
      %v870 = vsel %vm453, 0, %v868
      %v871 = vsel %vm457, %v870, 0
      %v873 = vunpack.c.l.bf16 %v871
      %v874 = vunpack.c.h.bf16 %v871
      %v875 = vmul.f32 %v873, %v467
      %v876 = vmul.f32 %v874, %v467
      %v877 = vpack.c.bf16 %v876, %v875
      %v878 = vld [vmem:[%s3] sm:$0xf]
      %v879 = vld [vmem:[%s3 + $0x4] sm:$0xf]
      %v880 = vmul.f32 %v873, %v480
      %v881 = vmul.f32 %v874, %v480
      %v882 = vpack.c.bf16 %v881, %v880
      %s883 = scalar_lea.vmem %s3, 8
      %v884 = vld [vmem:[%s883] sm:$0xf]
      %v885 = vld [vmem:[%s883 + $0x4] sm:$0xf]
      %v888 = vunpack.c.l.b16 %v884
      %v889 = vunpack.c.l.b16 %v885
      %v890 = vpack.c.b16 %v889, %v888
      %892 = vrot.lane.b32.xlu0 %v882, 127
      %v893 = vpop.permute.xlu0 %892
      %v896 = vsel %vm497, %v890, 0
      %898 = vmatpush.bf16.msra.mxu0 0
      %899 = vmatpush.bf16.msra.mxu0 0
      %900 = vmatpush.bf16.msra.mxu0 0
      %901 = vmatpush.bf16.msra.mxu0 0
      %902 = vmatpush.bf16.msra.mxu0 0
      %903 = vmatpush.bf16.msra.mxu0 0
      %904 = vmatpush.bf16.msra.mxu0 0
      %905 = vmatpush.bf16.msra.mxu0 %v893
      %906 = vmatmul.bf16.gmra.mxu0 %v896
      %v907 = vpop.f32.mrf.mxu0
      %v908 = vadd.f32 0.0, %v907
      %v909 = vpop.f32.mrf.mxu0
      %v910 = vadd.f32 0.0, %v909
      %911 = vdwg.mxu0
      %v914 = vunpack.c.l.b16 %v878
      %v915 = vunpack.c.l.b16 %v879
      %v916 = vpack.c.b16 %v915, %v914
      %v918 = vsel %vm497, %v916, 0
      %920 = vmatpush.bf16.msra.mxu0 0
      %921 = vmatpush.bf16.msra.mxu0 0
      %922 = vmatpush.bf16.msra.mxu0 0
      %923 = vmatpush.bf16.msra.mxu0 0
      %924 = vmatpush.bf16.msra.mxu0 0
      %925 = vmatpush.bf16.msra.mxu0 0
      %926 = vmatpush.bf16.msra.mxu0 0
      %927 = vmatpush.bf16.msra.mxu0 %v877
      %928 = vmatmul.bf16.gmra.mxu0 %v918
      %v929 = vpop.f32.mrf.mxu0
      %v930 = vadd.f32 %v908, %v929
      %v931 = vpop.f32.mrf.mxu0
      %v932 = vadd.f32 %v910, %v931
      %933 = vdwg.mxu0
      %v934 = vmul.f32 %v873, %v545
      %v935 = vmul.f32 %v874, %v545
      %v936 = vpack.c.bf16 %v935, %v934
      %s937 = scalar_lea.vmem %s3, 16
      %v938 = vld [vmem:[%s937] sm:$0xf]
      %v939 = vld [vmem:[%s937 + $0x4] sm:$0xf]
      %v942 = vunpack.c.l.b16 %v938
      %v943 = vunpack.c.l.b16 %v939
      %v944 = vpack.c.b16 %v943, %v942
      %946 = vrot.lane.b32.xlu0 %v936, 126
      %v947 = vpop.permute.xlu0 %946
      %v950 = vsel %vm497, %v944, 0
      %952 = vmatpush.bf16.msra.mxu0 0
      %953 = vmatpush.bf16.msra.mxu0 0
      %954 = vmatpush.bf16.msra.mxu0 0
      %955 = vmatpush.bf16.msra.mxu0 0
      %956 = vmatpush.bf16.msra.mxu0 0
      %957 = vmatpush.bf16.msra.mxu0 0
      %958 = vmatpush.bf16.msra.mxu0 0
      %959 = vmatpush.bf16.msra.mxu0 %v947
      %960 = vmatmul.bf16.gmra.mxu0 %v950
      %v961 = vpop.f32.mrf.mxu0
      %v962 = vadd.f32 0.0, %v961
      %v963 = vpop.f32.mrf.mxu0
      %v964 = vadd.f32 0.0, %v963
      %965 = vdwg.mxu0
      %v966 = vadd.f32 %v930, %v962
      %v967 = vadd.f32 %v932, %v964
      %v968 = vmul.f32 %v873, %v588
      %v969 = vmul.f32 %v874, %v588
      %v970 = vpack.c.bf16 %v969, %v968
      %s971 = scalar_lea.vmem %s3, 24
      %v972 = vld [vmem:[%s971] sm:$0xf]
      %v973 = vld [vmem:[%s971 + $0x4] sm:$0xf]
      %v976 = vunpack.c.l.b16 %v972
      %v977 = vunpack.c.l.b16 %v973
      %v978 = vpack.c.b16 %v977, %v976
      %980 = vrot.lane.b32.xlu0 %v970, 120
      %v981 = vpop.permute.xlu0 %980
      %v984 = vsel %vm497, %v978, 0
      %986 = vmatpush.bf16.msra.mxu0 0
      %987 = vmatpush.bf16.msra.mxu0 0
      %988 = vmatpush.bf16.msra.mxu0 0
      %989 = vmatpush.bf16.msra.mxu0 0
      %990 = vmatpush.bf16.msra.mxu0 0
      %991 = vmatpush.bf16.msra.mxu0 0
      %992 = vmatpush.bf16.msra.mxu0 0
      %993 = vmatpush.bf16.msra.mxu0 %v981
      %994 = vmatmul.bf16.gmra.mxu0 %v984
      %v995 = vpop.f32.mrf.mxu0
      %v996 = vadd.f32 0.0, %v995
      %v997 = vpop.f32.mrf.mxu0
      %v998 = vadd.f32 0.0, %v997
      %999 = vdwg.mxu0
      %v1000 = vadd.f32 %v966, %v996
      %v1001 = vadd.f32 %v967, %v998
      %v1002 = vmul.f32 %v873, %v632
      %v1003 = vmul.f32 %v874, %v632
      %v1004 = vpack.c.bf16 %v1003, %v1002
      %s1005 = scalar_lea.vmem %s3, 32
      %v1006 = vld [vmem:[%s1005] sm:$0xf]
      %v1007 = vld [vmem:[%s1005 + $0x4] sm:$0xf]
      %v1010 = vunpack.c.l.b16 %v1006
      %v1011 = vunpack.c.l.b16 %v1007
      %v1012 = vpack.c.b16 %v1011, %v1010
      %1014 = vrot.lane.b32.xlu0 %v1004, 119
      %v1015 = vpop.permute.xlu0 %1014
      %v1018 = vsel %vm497, %v1012, 0
      %1020 = vmatpush.bf16.msra.mxu0 0
      %1021 = vmatpush.bf16.msra.mxu0 0
      %1022 = vmatpush.bf16.msra.mxu0 0
      %1023 = vmatpush.bf16.msra.mxu0 0
      %1024 = vmatpush.bf16.msra.mxu0 0
      %1025 = vmatpush.bf16.msra.mxu0 0
      %1026 = vmatpush.bf16.msra.mxu0 0
      %1027 = vmatpush.bf16.msra.mxu0 %v1015
      %1028 = vmatmul.bf16.gmra.mxu0 %v1018
      %v1029 = vpop.f32.mrf.mxu0
      %v1030 = vadd.f32 0.0, %v1029
      %v1031 = vpop.f32.mrf.mxu0
      %v1032 = vadd.f32 0.0, %v1031
      %1033 = vdwg.mxu0
      %v1034 = vadd.f32 %v1000, %v1030
      %v1035 = vadd.f32 %v1001, %v1032
      %v1036 = vmul.f32 %v873, %v675
      %v1037 = vmul.f32 %v874, %v675
      %v1038 = vpack.c.bf16 %v1037, %v1036
      %s1039 = scalar_lea.vmem %s3, 40
      %v1040 = vld [vmem:[%s1039] sm:$0xf]
      %v1041 = vld [vmem:[%s1039 + $0x4] sm:$0xf]
      %v1044 = vunpack.c.l.b16 %v1040
      %v1045 = vunpack.c.l.b16 %v1041
      %v1046 = vpack.c.b16 %v1045, %v1044
      %1048 = vrot.lane.b32.xlu0 %v1038, 118
      %v1049 = vpop.permute.xlu0 %1048
      %v1052 = vsel %vm497, %v1046, 0
      %1054 = vmatpush.bf16.msra.mxu0 0
      %1055 = vmatpush.bf16.msra.mxu0 0
      %1056 = vmatpush.bf16.msra.mxu0 0
      %1057 = vmatpush.bf16.msra.mxu0 0
      %1058 = vmatpush.bf16.msra.mxu0 0
      %1059 = vmatpush.bf16.msra.mxu0 0
      %1060 = vmatpush.bf16.msra.mxu0 0
      %1061 = vmatpush.bf16.msra.mxu0 %v1049
      %1062 = vmatmul.bf16.gmra.mxu0 %v1052
      %v1063 = vpop.f32.mrf.mxu0
      %v1064 = vadd.f32 0.0, %v1063
      %v1065 = vpop.f32.mrf.mxu0
      %v1066 = vadd.f32 0.0, %v1065
      %1067 = vdwg.mxu0
      %v1068 = vadd.f32 %v1034, %v1064
      %v1069 = vadd.f32 %v1035, %v1066
      %v1070 = vmul.f32 %v873, %v719
      %v1071 = vmul.f32 %v874, %v719
      %v1072 = vpack.c.bf16 %v1071, %v1070
      %s1073 = scalar_lea.vmem %s3, 48
      %v1074 = vld [vmem:[%s1073] sm:$0xf]
      %v1075 = vld [vmem:[%s1073 + $0x4] sm:$0xf]
      %v1078 = vunpack.c.l.b16 %v1074
      %v1079 = vunpack.c.l.b16 %v1075
      %v1080 = vpack.c.b16 %v1079, %v1078
      %1082 = vrot.lane.b32.xlu0 %v1072, 112
      %v1083 = vpop.permute.xlu0 %1082
      %v1086 = vsel %vm497, %v1080, 0
      %1088 = vmatpush.bf16.msra.mxu0 0
      %1089 = vmatpush.bf16.msra.mxu0 0
      %1090 = vmatpush.bf16.msra.mxu0 0
      %1091 = vmatpush.bf16.msra.mxu0 0
      %1092 = vmatpush.bf16.msra.mxu0 0
      %1093 = vmatpush.bf16.msra.mxu0 0
      %1094 = vmatpush.bf16.msra.mxu0 0
      %1095 = vmatpush.bf16.msra.mxu0 %v1083
      %1096 = vmatmul.bf16.gmra.mxu0 %v1086
      %v1097 = vpop.f32.mrf.mxu0
      %v1098 = vadd.f32 0.0, %v1097
      %v1099 = vpop.f32.mrf.mxu0
      %v1100 = vadd.f32 0.0, %v1099
      %1101 = vdwg.mxu0
      %v1102 = vadd.f32 %v1068, %v1098
      %v1103 = vadd.f32 %v1069, %v1100
      %v1104 = vmul.f32 %v873, %v762
      %v1105 = vmul.f32 %v874, %v762
      %v1106 = vpack.c.bf16 %v1105, %v1104
      %s1107 = scalar_lea.vmem %s3, 56
      %v1108 = vld [vmem:[%s1107] sm:$0xf]
      %v1109 = vld [vmem:[%s1107 + $0x4] sm:$0xf]
      %v1112 = vunpack.c.l.b16 %v1108
      %v1113 = vunpack.c.l.b16 %v1109
      %v1114 = vpack.c.b16 %v1113, %v1112
      %1116 = vrot.lane.b32.xlu0 %v1106, 111
      %v1117 = vpop.permute.xlu0 %1116
      %v1120 = vsel %vm497, %v1114, 0
      %1122 = vmatpush.bf16.msra.mxu0 0
      %1123 = vmatpush.bf16.msra.mxu0 0
      %1124 = vmatpush.bf16.msra.mxu0 0
      %1125 = vmatpush.bf16.msra.mxu0 0
      %1126 = vmatpush.bf16.msra.mxu0 0
      %1127 = vmatpush.bf16.msra.mxu0 0
      %1128 = vmatpush.bf16.msra.mxu0 0
      %1129 = vmatpush.bf16.msra.mxu0 %v1117
      %1130 = vmatmul.bf16.gmra.mxu0 %v1120
      %v1131 = vpop.f32.mrf.mxu0
      %v1132 = vadd.f32 0.0, %v1131
      %v1133 = vpop.f32.mrf.mxu0
      %v1134 = vadd.f32 0.0, %v1133
      %1135 = vdwg.mxu0
      %v1136 = vadd.f32 %v1102, %v1132
      %v1137 = vadd.f32 %v1103, %v1134
      %v1138 = vmul.f32 %v873, %v806
      %v1139 = vmul.f32 %v874, %v806
      %v1140 = vpack.c.bf16 %v1139, %v1138
      %s1141 = scalar_lea.vmem %s3, 64
      %v1142 = vld [vmem:[%s1141] sm:$0xf]
      %v1143 = vld [vmem:[%s1141 + $0x4] sm:$0xf]
      %v1146 = vunpack.c.l.b16 %v1142
      %v1147 = vunpack.c.l.b16 %v1143
      %v1148 = vpack.c.b16 %v1147, %v1146
      %1150 = vrot.lane.b32.xlu0 %v1140, 110
      %v1151 = vpop.permute.xlu0 %1150
      %v1154 = vsel %vm497, %v1148, 0
      %1156 = vmatpush.bf16.msra.mxu0 0
      %1157 = vmatpush.bf16.msra.mxu0 0
      %1158 = vmatpush.bf16.msra.mxu0 0
      %1159 = vmatpush.bf16.msra.mxu0 0
      %1160 = vmatpush.bf16.msra.mxu0 0
      %1161 = vmatpush.bf16.msra.mxu0 0
      %1162 = vmatpush.bf16.msra.mxu0 0
      %1163 = vmatpush.bf16.msra.mxu0 %v1151
      %1164 = vmatmul.bf16.gmra.mxu0 %v1154
      %v1165 = vpop.f32.mrf.mxu0
      %v1166 = vadd.f32 0.0, %v1165
      %v1167 = vpop.f32.mrf.mxu0
      %v1168 = vadd.f32 0.0, %v1167
      %1169 = vdwg.mxu0
      %v1170 = vadd.f32 %v1136, %v1166
      %v1171 = vadd.f32 %v1137, %v1168
      %v1172 = vld [vmem:[%s4] sm:$0xff]
      %v1173 = vld [vmem:[%s4 + $0x8] sm:$0xff]
      %1175 = vset.pattern.permute.xlu0 0
      %1176 = vperm.xlu0 %1175, %v1172
      %v1177 = vpop.permute.xlu0 %1176
      %1180 = vset.pattern.permute.xlu0 0
      %1181 = vperm.xlu0 %1180, %v1173
      %v1182 = vpop.permute.xlu0 %1181
      %v1184 = vadd.f32 %v1170, %v1177
      %v1185 = vadd.f32 %v1171, %v1182
      %v1186 = vmul.f32 %v1184, 0.2
      %v1187 = vmul.f32 %v1185, 0.2
      %v1188 = vmax.f32 %v1184, %v1186
      %v1189 = vmax.f32 %v1185, %v1187
      %v1190 = vadd.f32 %v442, %v1188
      %v1191 = vadd.f32 %v443, %v1189
      %v1192 = vpack.c.bf16 %v1191, %v1190
      %v1193 = vld [vmem:[%s9] sm:$0xff]
      %v1194 = vld [vmem:[%s9 + $0x8] sm:$0xff]
      %v1195 = vld [vmem:[%s9 + $0x10] sm:$0xff]
      %v1196 = vld [vmem:[%s9 + $0x18] sm:$0xff]
      %v1197 = vld [vmem:[%s9 + $0x20] sm:$0xff]
      %v1198 = vld [vmem:[%s9 + $0x28] sm:$0xff]
      %v1199 = vld [vmem:[%s9 + $0x30] sm:$0xff]
      %v1200 = vld [vmem:[%s9 + $0x38] sm:$0xff]
      %v1209 = vunpack.c.l.b16 %v1193
      %v1210 = vunpack.c.h.b16 %v1193
      %v1211 = vunpack.c.l.b16 %v1194
      %v1212 = vunpack.c.h.b16 %v1194
      %v1213 = vunpack.c.l.b16 %v1195
      %v1214 = vunpack.c.h.b16 %v1195
      %v1215 = vunpack.c.l.b16 %v1196
      %v1216 = vunpack.c.h.b16 %v1196
      %v1217 = vunpack.c.l.b16 %v1197
      %v1218 = vunpack.c.h.b16 %v1197
      %v1219 = vunpack.c.l.b16 %v1198
      %v1220 = vunpack.c.h.b16 %v1198
      %v1221 = vunpack.c.l.b16 %v1199
      %v1222 = vunpack.c.h.b16 %v1199
      %v1223 = vunpack.c.l.b16 %v1200
      %v1224 = vunpack.c.h.b16 %v1200
      %v1225 = vpack.c.b16 %v1211, %v1209
      %v1226 = vpack.c.b16 %v1212, %v1210
      %v1227 = vpack.c.b16 %v1215, %v1213
      %v1228 = vpack.c.b16 %v1216, %v1214
      %v1229 = vpack.c.b16 %v1219, %v1217
      %v1230 = vpack.c.b16 %v1220, %v1218
      %v1231 = vpack.c.b16 %v1223, %v1221
      %v1232 = vpack.c.b16 %v1224, %v1222
      %vm1241 = vcmask 523264
      %v1243 = vsel %vm1241, %v1192, 0
      %1245 = vmatpush.bf16.msra.mxu0 0
      %1246 = vmatpush.bf16.msra.mxu0 0
      %1247 = vmatpush.bf16.msra.mxu0 0
      %1248 = vmatpush.bf16.msra.mxu0 0
      %1249 = vmatpush.bf16.msra.mxu0 %v1231
      %1250 = vmatpush.bf16.msra.mxu0 %v1229
      %1251 = vmatpush.bf16.msra.mxu0 %v1227
      %1252 = vmatpush.bf16.msra.mxu0 %v1225
      %1253 = vmatmul.bf16.gmra.mxu0 %v1243
      %v1254 = vpop.f32.mrf.mxu0
      %v1255 = vadd.f32 0.0, %v1254
      %v1256 = vpop.f32.mrf.mxu0
      %v1257 = vadd.f32 0.0, %v1256
      %1258 = vdwg.mxu0
      %1259 = vmatpush.bf16.msra.mxu0 0
      %1260 = vmatpush.bf16.msra.mxu0 0
      %1261 = vmatpush.bf16.msra.mxu0 0
      %1262 = vmatpush.bf16.msra.mxu0 0
      %1263 = vmatpush.bf16.msra.mxu0 %v1232
      %1264 = vmatpush.bf16.msra.mxu0 %v1230
      %1265 = vmatpush.bf16.msra.mxu0 %v1228
      %1266 = vmatpush.bf16.msra.mxu0 %v1226
      %1267 = vmatmul.bf16.gmra.mxu0 %v1243
      %v1268 = vpop.f32.mrf.mxu0
      %v1269 = vadd.f32 0.0, %v1268
      %v1270 = vpop.f32.mrf.mxu0
      %v1271 = vadd.f32 0.0, %v1270
      %1272 = vdwg.mxu0
      %v1273 = vpack.c.bf16 %v1269, %v1255
      %v1274 = vpack.c.bf16 %v1271, %v1257
      %v1277 = vunpack.c.l.b16 %v1273
      %v1278 = vunpack.c.h.b16 %v1273
      %v1279 = vunpack.c.l.b16 %v1274
      %v1280 = vunpack.c.h.b16 %v1274
      %v1281 = vpack.c.b16 %v1279, %v1277
      %v1282 = vpack.c.b16 %v1280, %v1278
      %1283 = vrot.lane.b32.xlu0 %v1281, 34
      %v1284 = vpop.permute.xlu0 %1283
      %1285 = vrot.lane.b32.xlu0 %v1282, 34
      %v1286 = vpop.permute.xlu0 %1285
      %vm1287 = vcmask 277504
      %v1288 = vsel %vm1287, %v1284, %v1286
      %vm1290 = vcmask 277504
      %v1292 = vsel %vm1290, 0, %v1284
      %v1295 = vsel %vm1290, %v1286, 0
      %v1297 = vld [vmem:[%s8] sm:$0x11]
      %v1299 = vunpack.c.l.b16 %v1297
      %v1300 = vunpack.c.h.b16 %v1297
      %v1301 = vpack.c.b16 %v1299, %v1299
      %v1302 = vpack.c.b16 %v1300, %v1300
      %v1304 = vpack.i.b16 %v1301, %v1301
      %v1306 = vperm.slane %v1304, 0
      %v1308 = vpack.i.b16 %v1302, %v1302
      %v1310 = vperm.slane %v1308, 0
      %v1311 = vunpack.c.l.bf16 %v1292
      %v1312 = vunpack.c.l.bf16 %v1288
      %v1313 = vunpack.c.h.bf16 %v1292
      %v1314 = vunpack.c.h.bf16 %v1288
      %v1315 = vunpack.c.l.bf16 %v1306
      %v1316 = vunpack.c.l.bf16 %v1310
      %v1317 = vmul.f32 %v1311, %v1315
      %v1318 = vmul.f32 %v1312, %v1316
      %v1319 = vmul.f32 %v1313, %v1315
      %v1320 = vmul.f32 %v1314, %v1316
      %v1321 = vpack.c.bf16 %v1319, %v1317
      %v1322 = vpack.c.bf16 %v1320, %v1318
      %v1323 = vld [vmem:[%s6] sm:$0xf]
      %v1324 = vshrl.u32 %v1301, 16
      %v1325 = vpack.i.b16 %v1324, %v1324
      %v1327 = vperm.slane %v1325, 0
      %v1328 = vshrl.u32 %v1302, 16
      %v1329 = vpack.i.b16 %v1328, %v1328
      %v1331 = vperm.slane %v1329, 0
      %v1332 = vunpack.c.l.bf16 %v1295
      %v1333 = vunpack.c.h.bf16 %v1295
      %v1334 = vunpack.c.l.bf16 %v1327
      %v1335 = vunpack.c.l.bf16 %v1331
      %1338 = vrot.lane.b32.xlu0 %v1334, 1
      %v1339 = vpop.permute.xlu0 %1338
      %1340 = vrot.lane.b32.xlu0 %v1335, 1
      %v1341 = vpop.permute.xlu0 %1340
      %vm1342 = vcmask 7168
      %v1343 = vsel %vm1342, %v1339, %v1341
      %v1347 = vmul.f32 %v1311, %v1339
      %v1348 = vmul.f32 %v1312, %v1343
      %v1349 = vmul.f32 %v1332, %v1341
      %v1350 = vmul.f32 %v1313, %v1339
      %v1351 = vmul.f32 %v1314, %v1343
      %v1352 = vmul.f32 %v1333, %v1341
      %v1353 = vpack.c.bf16 %v1350, %v1347
      %v1354 = vpack.c.bf16 %v1351, %v1348
      %v1355 = vpack.c.bf16 %v1352, %v1349
      %s1356 = scalar_lea.vmem %s6, 4
      %v1357 = vld [vmem:[%s1356] sm:$0xf]
      %1361 = vrot.lane.b32.xlu0 %v1353, 127
      %v1362 = vpop.permute.xlu0 %1361
      %1363 = vrot.lane.b32.xlu0 %v1354, 127
      %v1364 = vpop.permute.xlu0 %1363
      %1365 = vrot.lane.b32.xlu0 %v1355, 127
      %v1366 = vpop.permute.xlu0 %1365
      %vm1367 = vcmask 1039360
      %v1368 = vsel %vm1367, %v1362, %v1364
      %v1369 = vsel %vm1367, %v1364, %v1366
      %v1373 = vsel %vm497, %v1357, 0
      %1375 = vmatpush.bf16.msra.mxu0 0
      %1376 = vmatpush.bf16.msra.mxu0 0
      %1377 = vmatpush.bf16.msra.mxu0 0
      %1378 = vmatpush.bf16.msra.mxu0 0
      %1379 = vmatpush.bf16.msra.mxu0 0
      %1380 = vmatpush.bf16.msra.mxu0 0
      %1381 = vmatpush.bf16.msra.mxu0 0
      %1382 = vmatpush.bf16.msra.mxu0 %v1368
      %1383 = vmatmul.bf16.gmra.mxu0 %v1373
      %v1384 = vpop.f32.mrf.mxu0
      %v1385 = vadd.f32 0.0, %v1384
      %v1386 = vpop.f32.mrf.mxu0
      %1387 = vdwg.mxu0
      %1388 = vmatpush.bf16.msra.mxu0 0
      %1389 = vmatpush.bf16.msra.mxu0 0
      %1390 = vmatpush.bf16.msra.mxu0 0
      %1391 = vmatpush.bf16.msra.mxu0 0
      %1392 = vmatpush.bf16.msra.mxu0 0
      %1393 = vmatpush.bf16.msra.mxu0 0
      %1394 = vmatpush.bf16.msra.mxu0 0
      %1395 = vmatpush.bf16.msra.mxu0 %v1369
      %1396 = vmatmul.bf16.gmra.mxu0 %v1373
      %v1397 = vpop.f32.mrf.mxu0
      %v1398 = vadd.f32 0.0, %v1397
      %v1399 = vpop.f32.mrf.mxu0
      %1400 = vdwg.mxu0
      %v1402 = vsel %vm497, %v1323, 0
      %1404 = vmatpush.bf16.msra.mxu0 0
      %1405 = vmatpush.bf16.msra.mxu0 0
      %1406 = vmatpush.bf16.msra.mxu0 0
      %1407 = vmatpush.bf16.msra.mxu0 0
      %1408 = vmatpush.bf16.msra.mxu0 0
      %1409 = vmatpush.bf16.msra.mxu0 0
      %1410 = vmatpush.bf16.msra.mxu0 0
      %1411 = vmatpush.bf16.msra.mxu0 %v1321
      %1412 = vmatmul.bf16.gmra.mxu0 %v1402
      %v1413 = vpop.f32.mrf.mxu0
      %v1414 = vadd.f32 %v1385, %v1413
      %v1415 = vpop.f32.mrf.mxu0
      %1416 = vdwg.mxu0
      %1417 = vmatpush.bf16.msra.mxu0 0
      %1418 = vmatpush.bf16.msra.mxu0 0
      %1419 = vmatpush.bf16.msra.mxu0 0
      %1420 = vmatpush.bf16.msra.mxu0 0
      %1421 = vmatpush.bf16.msra.mxu0 0
      %1422 = vmatpush.bf16.msra.mxu0 0
      %1423 = vmatpush.bf16.msra.mxu0 0
      %1424 = vmatpush.bf16.msra.mxu0 %v1322
      %1425 = vmatmul.bf16.gmra.mxu0 %v1402
      %v1426 = vpop.f32.mrf.mxu0
      %v1427 = vadd.f32 %v1398, %v1426
      %v1428 = vpop.f32.mrf.mxu0
      %1429 = vdwg.mxu0
      %v1430 = vld [vmem:[%s8] sm:$0x22]
      %v1432 = vunpack.c.l.b16 %v1430
      %v1433 = vunpack.c.h.b16 %v1430
      %v1434 = vpack.c.b16 %v1432, %v1432
      %v1435 = vpack.c.b16 %v1433, %v1433
      %v1437 = vpack.i.b16 %v1434, %v1434
      %v1439 = vperm.slane %v1437, 1
      %v1441 = vpack.i.b16 %v1435, %v1435
      %v1443 = vperm.slane %v1441, 1
      %v1444 = vunpack.c.l.bf16 %v1439
      %v1445 = vunpack.c.l.bf16 %v1443
      %1448 = vrot.lane.b32.xlu0 %v1444, 2
      %v1449 = vpop.permute.xlu0 %1448
      %1450 = vrot.lane.b32.xlu0 %v1445, 2
      %v1451 = vpop.permute.xlu0 %1450
      %vm1452 = vcmask 15360
      %v1453 = vsel %vm1452, %v1449, %v1451
      %v1457 = vmul.f32 %v1311, %v1449
      %v1458 = vmul.f32 %v1312, %v1453
      %v1459 = vmul.f32 %v1332, %v1451
      %v1460 = vmul.f32 %v1313, %v1449
      %v1461 = vmul.f32 %v1314, %v1453
      %v1462 = vmul.f32 %v1333, %v1451
      %v1463 = vpack.c.bf16 %v1460, %v1457
      %v1464 = vpack.c.bf16 %v1461, %v1458
      %v1465 = vpack.c.bf16 %v1462, %v1459
      %s1466 = scalar_lea.vmem %s6, 8
      %v1467 = vld [vmem:[%s1466] sm:$0xf]
      %1471 = vrot.lane.b32.xlu0 %v1463, 126
      %v1472 = vpop.permute.xlu0 %1471
      %1473 = vrot.lane.b32.xlu0 %v1464, 126
      %v1474 = vpop.permute.xlu0 %1473
      %1475 = vrot.lane.b32.xlu0 %v1465, 126
      %v1476 = vpop.permute.xlu0 %1475
      %vm1477 = vcmask 1031168
      %v1478 = vsel %vm1477, %v1472, %v1474
      %v1479 = vsel %vm1477, %v1474, %v1476
      %v1483 = vsel %vm497, %v1467, 0
      %1485 = vmatpush.bf16.msra.mxu0 0
      %1486 = vmatpush.bf16.msra.mxu0 0
      %1487 = vmatpush.bf16.msra.mxu0 0
      %1488 = vmatpush.bf16.msra.mxu0 0
      %1489 = vmatpush.bf16.msra.mxu0 0
      %1490 = vmatpush.bf16.msra.mxu0 0
      %1491 = vmatpush.bf16.msra.mxu0 0
      %1492 = vmatpush.bf16.msra.mxu0 %v1478
      %1493 = vmatmul.bf16.gmra.mxu0 %v1483
      %v1494 = vpop.f32.mrf.mxu0
      %v1495 = vadd.f32 0.0, %v1494
      %v1496 = vpop.f32.mrf.mxu0
      %1497 = vdwg.mxu0
      %1498 = vmatpush.bf16.msra.mxu0 0
      %1499 = vmatpush.bf16.msra.mxu0 0
      %1500 = vmatpush.bf16.msra.mxu0 0
      %1501 = vmatpush.bf16.msra.mxu0 0
      %1502 = vmatpush.bf16.msra.mxu0 0
      %1503 = vmatpush.bf16.msra.mxu0 0
      %1504 = vmatpush.bf16.msra.mxu0 0
      %1505 = vmatpush.bf16.msra.mxu0 %v1479
      %1506 = vmatmul.bf16.gmra.mxu0 %v1483
      %v1507 = vpop.f32.mrf.mxu0
      %v1508 = vadd.f32 0.0, %v1507
      %v1509 = vpop.f32.mrf.mxu0
      %1510 = vdwg.mxu0
      %v1511 = vadd.f32 %v1414, %v1495
      %v1512 = vadd.f32 %v1427, %v1508
      %v1513 = vshrl.u32 %v1434, 16
      %v1514 = vpack.i.b16 %v1513, %v1513
      %v1516 = vperm.slane %v1514, 1
      %v1517 = vshrl.u32 %v1435, 16
      %v1518 = vpack.i.b16 %v1517, %v1517
      %v1520 = vperm.slane %v1518, 1
      %v1521 = vunpack.c.l.bf16 %v1516
      %v1522 = vunpack.c.l.bf16 %v1520
      %1525 = vrot.lane.b32.xlu0 %v1521, 3
      %v1526 = vpop.permute.xlu0 %1525
      %1527 = vrot.lane.b32.xlu0 %v1522, 3
      %v1528 = vpop.permute.xlu0 %1527
      %vm1529 = vcmask 23552
      %v1530 = vsel %vm1529, %v1526, %v1528
      %v1534 = vmul.f32 %v1311, %v1526
      %v1535 = vmul.f32 %v1312, %v1530
      %v1536 = vmul.f32 %v1332, %v1528
      %v1537 = vmul.f32 %v1313, %v1526
      %v1538 = vmul.f32 %v1314, %v1530
      %v1539 = vmul.f32 %v1333, %v1528
      %v1540 = vpack.c.bf16 %v1537, %v1534
      %v1541 = vpack.c.bf16 %v1538, %v1535
      %v1542 = vpack.c.bf16 %v1539, %v1536
      %s1543 = scalar_lea.vmem %s6, 12
      %v1544 = vld [vmem:[%s1543] sm:$0xf]
      %1548 = vrot.lane.b32.xlu0 %v1540, 125
      %v1549 = vpop.permute.xlu0 %1548
      %1550 = vrot.lane.b32.xlu0 %v1541, 125
      %v1551 = vpop.permute.xlu0 %1550
      %1552 = vrot.lane.b32.xlu0 %v1542, 125
      %v1553 = vpop.permute.xlu0 %1552
      %vm1554 = vcmask 1022976
      %v1555 = vsel %vm1554, %v1549, %v1551
      %v1556 = vsel %vm1554, %v1551, %v1553
      %v1560 = vsel %vm497, %v1544, 0
      %1562 = vmatpush.bf16.msra.mxu0 0
      %1563 = vmatpush.bf16.msra.mxu0 0
      %1564 = vmatpush.bf16.msra.mxu0 0
      %1565 = vmatpush.bf16.msra.mxu0 0
      %1566 = vmatpush.bf16.msra.mxu0 0
      %1567 = vmatpush.bf16.msra.mxu0 0
      %1568 = vmatpush.bf16.msra.mxu0 0
      %1569 = vmatpush.bf16.msra.mxu0 %v1555
      %1570 = vmatmul.bf16.gmra.mxu0 %v1560
      %v1571 = vpop.f32.mrf.mxu0
      %v1572 = vadd.f32 0.0, %v1571
      %v1573 = vpop.f32.mrf.mxu0
      %1574 = vdwg.mxu0
      %1575 = vmatpush.bf16.msra.mxu0 0
      %1576 = vmatpush.bf16.msra.mxu0 0
      %1577 = vmatpush.bf16.msra.mxu0 0
      %1578 = vmatpush.bf16.msra.mxu0 0
      %1579 = vmatpush.bf16.msra.mxu0 0
      %1580 = vmatpush.bf16.msra.mxu0 0
      %1581 = vmatpush.bf16.msra.mxu0 0
      %1582 = vmatpush.bf16.msra.mxu0 %v1556
      %1583 = vmatmul.bf16.gmra.mxu0 %v1560
      %v1584 = vpop.f32.mrf.mxu0
      %v1585 = vadd.f32 0.0, %v1584
      %v1586 = vpop.f32.mrf.mxu0
      %1587 = vdwg.mxu0
      %v1588 = vadd.f32 %v1511, %v1572
      %v1589 = vadd.f32 %v1512, %v1585
      %v1590 = vld [vmem:[%s8] sm:$0x44]
      %v1592 = vunpack.c.l.b16 %v1590
      %v1593 = vunpack.c.h.b16 %v1590
      %v1594 = vpack.c.b16 %v1592, %v1592
      %v1595 = vpack.c.b16 %v1593, %v1593
      %v1597 = vpack.i.b16 %v1594, %v1594
      %v1599 = vperm.slane %v1597, 2
      %v1601 = vpack.i.b16 %v1595, %v1595
      %v1603 = vperm.slane %v1601, 2
      %v1604 = vunpack.c.l.bf16 %v1599
      %v1605 = vunpack.c.l.bf16 %v1603
      %1608 = vrot.lane.b32.xlu0 %v1604, 4
      %v1609 = vpop.permute.xlu0 %1608
      %1610 = vrot.lane.b32.xlu0 %v1605, 4
      %v1611 = vpop.permute.xlu0 %1610
      %vm1612 = vcmask 31744
      %v1613 = vsel %vm1612, %v1609, %v1611
      %v1617 = vmul.f32 %v1311, %v1609
      %v1618 = vmul.f32 %v1312, %v1613
      %v1619 = vmul.f32 %v1332, %v1611
      %v1620 = vmul.f32 %v1313, %v1609
      %v1621 = vmul.f32 %v1314, %v1613
      %v1622 = vmul.f32 %v1333, %v1611
      %v1623 = vpack.c.bf16 %v1620, %v1617
      %v1624 = vpack.c.bf16 %v1621, %v1618
      %v1625 = vpack.c.bf16 %v1622, %v1619
      %s1626 = scalar_lea.vmem %s6, 16
      %v1627 = vld [vmem:[%s1626] sm:$0xf]
      %1631 = vrot.lane.b32.xlu0 %v1623, 124
      %v1632 = vpop.permute.xlu0 %1631
      %1633 = vrot.lane.b32.xlu0 %v1624, 124
      %v1634 = vpop.permute.xlu0 %1633
      %1635 = vrot.lane.b32.xlu0 %v1625, 124
      %v1636 = vpop.permute.xlu0 %1635
      %vm1637 = vcmask 1014784
      %v1638 = vsel %vm1637, %v1632, %v1634
      %v1639 = vsel %vm1637, %v1634, %v1636
      %v1643 = vsel %vm497, %v1627, 0
      %1645 = vmatpush.bf16.msra.mxu0 0
      %1646 = vmatpush.bf16.msra.mxu0 0
      %1647 = vmatpush.bf16.msra.mxu0 0
      %1648 = vmatpush.bf16.msra.mxu0 0
      %1649 = vmatpush.bf16.msra.mxu0 0
      %1650 = vmatpush.bf16.msra.mxu0 0
      %1651 = vmatpush.bf16.msra.mxu0 0
      %1652 = vmatpush.bf16.msra.mxu0 %v1638
      %1653 = vmatmul.bf16.gmra.mxu0 %v1643
      %v1654 = vpop.f32.mrf.mxu0
      %v1655 = vadd.f32 0.0, %v1654
      %v1656 = vpop.f32.mrf.mxu0
      %1657 = vdwg.mxu0
      %1658 = vmatpush.bf16.msra.mxu0 0
      %1659 = vmatpush.bf16.msra.mxu0 0
      %1660 = vmatpush.bf16.msra.mxu0 0
      %1661 = vmatpush.bf16.msra.mxu0 0
      %1662 = vmatpush.bf16.msra.mxu0 0
      %1663 = vmatpush.bf16.msra.mxu0 0
      %1664 = vmatpush.bf16.msra.mxu0 0
      %1665 = vmatpush.bf16.msra.mxu0 %v1639
      %1666 = vmatmul.bf16.gmra.mxu0 %v1643
      %v1667 = vpop.f32.mrf.mxu0
      %v1668 = vadd.f32 0.0, %v1667
      %v1669 = vpop.f32.mrf.mxu0
      %1670 = vdwg.mxu0
      %v1671 = vadd.f32 %v1588, %v1655
      %v1672 = vadd.f32 %v1589, %v1668
      %v1673 = vshrl.u32 %v1594, 16
      %v1674 = vpack.i.b16 %v1673, %v1673
      %v1676 = vperm.slane %v1674, 2
      %v1677 = vshrl.u32 %v1595, 16
      %v1678 = vpack.i.b16 %v1677, %v1677
      %v1680 = vperm.slane %v1678, 2
      %v1681 = vunpack.c.l.bf16 %v1676
      %v1682 = vunpack.c.l.bf16 %v1680
      %1685 = vrot.lane.b32.xlu0 %v1681, 16
      %v1686 = vpop.permute.xlu0 %1685
      %1687 = vrot.lane.b32.xlu0 %v1682, 16
      %v1688 = vpop.permute.xlu0 %1687
      %v1689 = vsel %vm497, %v1686, %v1688
      %v1693 = vmul.f32 %v1311, %v1686
      %v1694 = vmul.f32 %v1312, %v1689
      %v1695 = vmul.f32 %v1332, %v1688
      %v1696 = vmul.f32 %v1313, %v1686
      %v1697 = vmul.f32 %v1314, %v1689
      %v1698 = vmul.f32 %v1333, %v1688
      %v1699 = vpack.c.bf16 %v1696, %v1693
      %v1700 = vpack.c.bf16 %v1697, %v1694
      %v1701 = vpack.c.bf16 %v1698, %v1695
      %s1702 = scalar_lea.vmem %s6, 20
      %v1703 = vld [vmem:[%s1702] sm:$0xf]
      %1707 = vrot.lane.b32.xlu0 %v1699, 112
      %v1708 = vpop.permute.xlu0 %1707
      %1709 = vrot.lane.b32.xlu0 %v1700, 112
      %v1710 = vpop.permute.xlu0 %1709
      %1711 = vrot.lane.b32.xlu0 %v1701, 112
      %v1712 = vpop.permute.xlu0 %1711
      %vm1713 = vcmask 916480
      %v1714 = vsel %vm1713, %v1708, %v1710
      %v1715 = vsel %vm1713, %v1710, %v1712
      %v1719 = vsel %vm497, %v1703, 0
      %1721 = vmatpush.bf16.msra.mxu0 0
      %1722 = vmatpush.bf16.msra.mxu0 0
      %1723 = vmatpush.bf16.msra.mxu0 0
      %1724 = vmatpush.bf16.msra.mxu0 0
      %1725 = vmatpush.bf16.msra.mxu0 0
      %1726 = vmatpush.bf16.msra.mxu0 0
      %1727 = vmatpush.bf16.msra.mxu0 0
      %1728 = vmatpush.bf16.msra.mxu0 %v1714
      %1729 = vmatmul.bf16.gmra.mxu0 %v1719
      %v1730 = vpop.f32.mrf.mxu0
      %v1731 = vadd.f32 0.0, %v1730
      %v1732 = vpop.f32.mrf.mxu0
      %1733 = vdwg.mxu0
      %1734 = vmatpush.bf16.msra.mxu0 0
      %1735 = vmatpush.bf16.msra.mxu0 0
      %1736 = vmatpush.bf16.msra.mxu0 0
      %1737 = vmatpush.bf16.msra.mxu0 0
      %1738 = vmatpush.bf16.msra.mxu0 0
      %1739 = vmatpush.bf16.msra.mxu0 0
      %1740 = vmatpush.bf16.msra.mxu0 0
      %1741 = vmatpush.bf16.msra.mxu0 %v1715
      %1742 = vmatmul.bf16.gmra.mxu0 %v1719
      %v1743 = vpop.f32.mrf.mxu0
      %v1744 = vadd.f32 0.0, %v1743
      %v1745 = vpop.f32.mrf.mxu0
      %1746 = vdwg.mxu0
      %v1747 = vadd.f32 %v1671, %v1731
      %v1748 = vadd.f32 %v1672, %v1744
      %v1749 = vld [vmem:[%s8] sm:$0x88]
      %v1751 = vunpack.c.l.b16 %v1749
      %v1752 = vunpack.c.h.b16 %v1749
      %v1753 = vpack.c.b16 %v1751, %v1751
      %v1754 = vpack.c.b16 %v1752, %v1752
      %v1756 = vpack.i.b16 %v1753, %v1753
      %v1758 = vperm.slane %v1756, 3
      %v1760 = vpack.i.b16 %v1754, %v1754
      %v1762 = vperm.slane %v1760, 3
      %v1763 = vunpack.c.l.bf16 %v1758
      %v1764 = vunpack.c.l.bf16 %v1762
      %1767 = vrot.lane.b32.xlu0 %v1763, 17
      %v1768 = vpop.permute.xlu0 %1767
      %1769 = vrot.lane.b32.xlu0 %v1764, 17
      %v1770 = vpop.permute.xlu0 %1769
      %vm1771 = vcmask 138240
      %v1772 = vsel %vm1771, %v1768, %v1770
      %v1776 = vmul.f32 %v1311, %v1768
      %v1777 = vmul.f32 %v1312, %v1772
      %v1778 = vmul.f32 %v1332, %v1770
      %v1779 = vmul.f32 %v1313, %v1768
      %v1780 = vmul.f32 %v1314, %v1772
      %v1781 = vmul.f32 %v1333, %v1770
      %v1782 = vpack.c.bf16 %v1779, %v1776
      %v1783 = vpack.c.bf16 %v1780, %v1777
      %v1784 = vpack.c.bf16 %v1781, %v1778
      %s1785 = scalar_lea.vmem %s6, 24
      %v1786 = vld [vmem:[%s1785] sm:$0xf]
      %1790 = vrot.lane.b32.xlu0 %v1782, 111
      %v1791 = vpop.permute.xlu0 %1790
      %1792 = vrot.lane.b32.xlu0 %v1783, 111
      %v1793 = vpop.permute.xlu0 %1792
      %1794 = vrot.lane.b32.xlu0 %v1784, 111
      %v1795 = vpop.permute.xlu0 %1794
      %vm1796 = vcmask 908288
      %v1797 = vsel %vm1796, %v1791, %v1793
      %v1798 = vsel %vm1796, %v1793, %v1795
      %v1802 = vsel %vm497, %v1786, 0
      %1804 = vmatpush.bf16.msra.mxu0 0
      %1805 = vmatpush.bf16.msra.mxu0 0
      %1806 = vmatpush.bf16.msra.mxu0 0
      %1807 = vmatpush.bf16.msra.mxu0 0
      %1808 = vmatpush.bf16.msra.mxu0 0
      %1809 = vmatpush.bf16.msra.mxu0 0
      %1810 = vmatpush.bf16.msra.mxu0 0
      %1811 = vmatpush.bf16.msra.mxu0 %v1797
      %1812 = vmatmul.bf16.gmra.mxu0 %v1802
      %v1813 = vpop.f32.mrf.mxu0
      %v1814 = vadd.f32 0.0, %v1813
      %v1815 = vpop.f32.mrf.mxu0
      %1816 = vdwg.mxu0
      %1817 = vmatpush.bf16.msra.mxu0 0
      %1818 = vmatpush.bf16.msra.mxu0 0
      %1819 = vmatpush.bf16.msra.mxu0 0
      %1820 = vmatpush.bf16.msra.mxu0 0
      %1821 = vmatpush.bf16.msra.mxu0 0
      %1822 = vmatpush.bf16.msra.mxu0 0
      %1823 = vmatpush.bf16.msra.mxu0 0
      %1824 = vmatpush.bf16.msra.mxu0 %v1798
      %1825 = vmatmul.bf16.gmra.mxu0 %v1802
      %v1826 = vpop.f32.mrf.mxu0
      %v1827 = vadd.f32 0.0, %v1826
      %v1828 = vpop.f32.mrf.mxu0
      %1829 = vdwg.mxu0
      %v1830 = vadd.f32 %v1747, %v1814
      %v1831 = vadd.f32 %v1748, %v1827
      %v1832 = vshrl.u32 %v1753, 16
      %v1833 = vpack.i.b16 %v1832, %v1832
      %v1835 = vperm.slane %v1833, 3
      %v1836 = vshrl.u32 %v1754, 16
      %v1837 = vpack.i.b16 %v1836, %v1836
      %v1839 = vperm.slane %v1837, 3
      %v1840 = vunpack.c.l.bf16 %v1835
      %v1841 = vunpack.c.l.bf16 %v1839
      %1844 = vrot.lane.b32.xlu0 %v1840, 18
      %v1845 = vpop.permute.xlu0 %1844
      %1846 = vrot.lane.b32.xlu0 %v1841, 18
      %v1847 = vpop.permute.xlu0 %1846
      %vm1848 = vcmask 146432
      %v1849 = vsel %vm1848, %v1845, %v1847
      %v1853 = vmul.f32 %v1311, %v1845
      %v1854 = vmul.f32 %v1312, %v1849
      %v1855 = vmul.f32 %v1332, %v1847
      %v1856 = vmul.f32 %v1313, %v1845
      %v1857 = vmul.f32 %v1314, %v1849
      %v1858 = vmul.f32 %v1333, %v1847
      %v1859 = vpack.c.bf16 %v1856, %v1853
      %v1860 = vpack.c.bf16 %v1857, %v1854
      %v1861 = vpack.c.bf16 %v1858, %v1855
      %s1862 = scalar_lea.vmem %s6, 28
      %v1863 = vld [vmem:[%s1862] sm:$0xf]
      %1867 = vrot.lane.b32.xlu0 %v1859, 110
      %v1868 = vpop.permute.xlu0 %1867
      %1869 = vrot.lane.b32.xlu0 %v1860, 110
      %v1870 = vpop.permute.xlu0 %1869
      %1871 = vrot.lane.b32.xlu0 %v1861, 110
      %v1872 = vpop.permute.xlu0 %1871
      %vm1873 = vcmask 900096
      %v1874 = vsel %vm1873, %v1868, %v1870
      %v1875 = vsel %vm1873, %v1870, %v1872
      %v1879 = vsel %vm497, %v1863, 0
      %1881 = vmatpush.bf16.msra.mxu0 0
      %1882 = vmatpush.bf16.msra.mxu0 0
      %1883 = vmatpush.bf16.msra.mxu0 0
      %1884 = vmatpush.bf16.msra.mxu0 0
      %1885 = vmatpush.bf16.msra.mxu0 0
      %1886 = vmatpush.bf16.msra.mxu0 0
      %1887 = vmatpush.bf16.msra.mxu0 0
      %1888 = vmatpush.bf16.msra.mxu0 %v1874
      %1889 = vmatmul.bf16.gmra.mxu0 %v1879
      %v1890 = vpop.f32.mrf.mxu0
      %v1891 = vadd.f32 0.0, %v1890
      %v1892 = vpop.f32.mrf.mxu0
      %1893 = vdwg.mxu0
      %1894 = vmatpush.bf16.msra.mxu0 0
      %1895 = vmatpush.bf16.msra.mxu0 0
      %1896 = vmatpush.bf16.msra.mxu0 0
      %1897 = vmatpush.bf16.msra.mxu0 0
      %1898 = vmatpush.bf16.msra.mxu0 0
      %1899 = vmatpush.bf16.msra.mxu0 0
      %1900 = vmatpush.bf16.msra.mxu0 0
      %1901 = vmatpush.bf16.msra.mxu0 %v1875
      %1902 = vmatmul.bf16.gmra.mxu0 %v1879
      %v1903 = vpop.f32.mrf.mxu0
      %v1904 = vadd.f32 0.0, %v1903
      %v1905 = vpop.f32.mrf.mxu0
      %1906 = vdwg.mxu0
      %v1907 = vadd.f32 %v1830, %v1891
      %v1908 = vadd.f32 %v1831, %v1904
      %v1909 = vld [vmem:[%s8 + $0x8] sm:$0x11]
      %v1911 = vunpack.c.l.b16 %v1909
      %v1912 = vunpack.c.h.b16 %v1909
      %v1913 = vpack.c.b16 %v1911, %v1911
      %v1914 = vpack.c.b16 %v1912, %v1912
      %v1916 = vpack.i.b16 %v1913, %v1913
      %v1918 = vperm.slane %v1916, 0
      %v1920 = vpack.i.b16 %v1914, %v1914
      %v1922 = vperm.slane %v1920, 0
      %v1923 = vunpack.c.l.bf16 %v1918
      %v1924 = vunpack.c.l.bf16 %v1922
      %1927 = vrot.lane.b32.xlu0 %v1923, 19
      %v1928 = vpop.permute.xlu0 %1927
      %1929 = vrot.lane.b32.xlu0 %v1924, 19
      %v1930 = vpop.permute.xlu0 %1929
      %vm1931 = vcmask 154624
      %v1932 = vsel %vm1931, %v1928, %v1930
      %v1936 = vmul.f32 %v1311, %v1928
      %v1937 = vmul.f32 %v1312, %v1932
      %v1938 = vmul.f32 %v1332, %v1930
      %v1939 = vmul.f32 %v1313, %v1928
      %v1940 = vmul.f32 %v1314, %v1932
      %v1941 = vmul.f32 %v1333, %v1930
      %v1942 = vpack.c.bf16 %v1939, %v1936
      %v1943 = vpack.c.bf16 %v1940, %v1937
      %v1944 = vpack.c.bf16 %v1941, %v1938
      %s1945 = scalar_lea.vmem %s6, 32
      %v1946 = vld [vmem:[%s1945] sm:$0xf]
      %1950 = vrot.lane.b32.xlu0 %v1942, 109
      %v1951 = vpop.permute.xlu0 %1950
      %1952 = vrot.lane.b32.xlu0 %v1943, 109
      %v1953 = vpop.permute.xlu0 %1952
      %1954 = vrot.lane.b32.xlu0 %v1944, 109
      %v1955 = vpop.permute.xlu0 %1954
      %vm1956 = vcmask 891904
      %v1957 = vsel %vm1956, %v1951, %v1953
      %v1958 = vsel %vm1956, %v1953, %v1955
      %v1962 = vsel %vm497, %v1946, 0
      %1964 = vmatpush.bf16.msra.mxu0 0
      %1965 = vmatpush.bf16.msra.mxu0 0
      %1966 = vmatpush.bf16.msra.mxu0 0
      %1967 = vmatpush.bf16.msra.mxu0 0
      %1968 = vmatpush.bf16.msra.mxu0 0
      %1969 = vmatpush.bf16.msra.mxu0 0
      %1970 = vmatpush.bf16.msra.mxu0 0
      %1971 = vmatpush.bf16.msra.mxu0 %v1957
      %1972 = vmatmul.bf16.gmra.mxu0 %v1962
      %v1973 = vpop.f32.mrf.mxu0
      %v1974 = vadd.f32 0.0, %v1973
      %v1975 = vpop.f32.mrf.mxu0
      %1976 = vdwg.mxu0
      %1977 = vmatpush.bf16.msra.mxu0 0
      %1978 = vmatpush.bf16.msra.mxu0 0
      %1979 = vmatpush.bf16.msra.mxu0 0
      %1980 = vmatpush.bf16.msra.mxu0 0
      %1981 = vmatpush.bf16.msra.mxu0 0
      %1982 = vmatpush.bf16.msra.mxu0 0
      %1983 = vmatpush.bf16.msra.mxu0 0
      %1984 = vmatpush.bf16.msra.mxu0 %v1958
      %1985 = vmatmul.bf16.gmra.mxu0 %v1962
      %v1986 = vpop.f32.mrf.mxu0
      %v1987 = vadd.f32 0.0, %v1986
      %v1988 = vpop.f32.mrf.mxu0
      %1989 = vdwg.mxu0
      %v1990 = vadd.f32 %v1907, %v1974
      %v1991 = vadd.f32 %v1908, %v1987
      %v1992 = vshrl.u32 %v1913, 16
      %v1993 = vpack.i.b16 %v1992, %v1992
      %v1995 = vperm.slane %v1993, 0
      %v1996 = vshrl.u32 %v1914, 16
      %v1997 = vpack.i.b16 %v1996, %v1996
      %v1999 = vperm.slane %v1997, 0
      %v2000 = vunpack.c.l.bf16 %v1995
      %v2001 = vunpack.c.l.bf16 %v1999
      %2004 = vrot.lane.b32.xlu0 %v2000, 20
      %v2005 = vpop.permute.xlu0 %2004
      %2006 = vrot.lane.b32.xlu0 %v2001, 20
      %v2007 = vpop.permute.xlu0 %2006
      %vm2008 = vcmask 162816
      %v2009 = vsel %vm2008, %v2005, %v2007
      %v2013 = vmul.f32 %v1311, %v2005
      %v2014 = vmul.f32 %v1312, %v2009
      %v2015 = vmul.f32 %v1332, %v2007
      %v2016 = vmul.f32 %v1313, %v2005
      %v2017 = vmul.f32 %v1314, %v2009
      %v2018 = vmul.f32 %v1333, %v2007
      %v2019 = vpack.c.bf16 %v2016, %v2013
      %v2020 = vpack.c.bf16 %v2017, %v2014
      %v2021 = vpack.c.bf16 %v2018, %v2015
      %s2022 = scalar_lea.vmem %s6, 36
      %v2023 = vld [vmem:[%s2022] sm:$0xf]
      %2027 = vrot.lane.b32.xlu0 %v2019, 108
      %v2028 = vpop.permute.xlu0 %2027
      %2029 = vrot.lane.b32.xlu0 %v2020, 108
      %v2030 = vpop.permute.xlu0 %2029
      %2031 = vrot.lane.b32.xlu0 %v2021, 108
      %v2032 = vpop.permute.xlu0 %2031
      %vm2033 = vcmask 883712
      %v2034 = vsel %vm2033, %v2028, %v2030
      %v2035 = vsel %vm2033, %v2030, %v2032
      %v2039 = vsel %vm497, %v2023, 0
      %2041 = vmatpush.bf16.msra.mxu0 0
      %2042 = vmatpush.bf16.msra.mxu0 0
      %2043 = vmatpush.bf16.msra.mxu0 0
      %2044 = vmatpush.bf16.msra.mxu0 0
      %2045 = vmatpush.bf16.msra.mxu0 0
      %2046 = vmatpush.bf16.msra.mxu0 0
      %2047 = vmatpush.bf16.msra.mxu0 0
      %2048 = vmatpush.bf16.msra.mxu0 %v2034
      %2049 = vmatmul.bf16.gmra.mxu0 %v2039
      %v2050 = vpop.f32.mrf.mxu0
      %v2051 = vadd.f32 0.0, %v2050
      %v2052 = vpop.f32.mrf.mxu0
      %2053 = vdwg.mxu0
      %2054 = vmatpush.bf16.msra.mxu0 0
      %2055 = vmatpush.bf16.msra.mxu0 0
      %2056 = vmatpush.bf16.msra.mxu0 0
      %2057 = vmatpush.bf16.msra.mxu0 0
      %2058 = vmatpush.bf16.msra.mxu0 0
      %2059 = vmatpush.bf16.msra.mxu0 0
      %2060 = vmatpush.bf16.msra.mxu0 0
      %2061 = vmatpush.bf16.msra.mxu0 %v2035
      %2062 = vmatmul.bf16.gmra.mxu0 %v2039
      %v2063 = vpop.f32.mrf.mxu0
      %v2064 = vadd.f32 0.0, %v2063
      %v2065 = vpop.f32.mrf.mxu0
      %2066 = vdwg.mxu0
      %v2067 = vadd.f32 %v1990, %v2051
      %v2068 = vadd.f32 %v1991, %v2064
      %v2069 = vld [vmem:[%s8 + $0x8] sm:$0x22]
      %v2071 = vunpack.c.l.b16 %v2069
      %v2072 = vunpack.c.h.b16 %v2069
      %v2073 = vpack.c.b16 %v2071, %v2071
      %v2074 = vpack.c.b16 %v2072, %v2072
      %v2076 = vpack.i.b16 %v2073, %v2073
      %v2078 = vperm.slane %v2076, 1
      %v2080 = vpack.i.b16 %v2074, %v2074
      %v2082 = vperm.slane %v2080, 1
      %v2083 = vunpack.c.l.bf16 %v2078
      %v2084 = vunpack.c.l.bf16 %v2082
      %2087 = vrot.lane.b32.xlu0 %v2083, 32
      %v2088 = vpop.permute.xlu0 %2087
      %2089 = vrot.lane.b32.xlu0 %v2084, 32
      %v2090 = vpop.permute.xlu0 %2089
      %vm2091 = vcmask 261120
      %v2092 = vsel %vm2091, %v2088, %v2090
      %v2096 = vmul.f32 %v1311, %v2088
      %v2097 = vmul.f32 %v1312, %v2092
      %v2098 = vmul.f32 %v1332, %v2090
      %v2099 = vmul.f32 %v1313, %v2088
      %v2100 = vmul.f32 %v1314, %v2092
      %v2101 = vmul.f32 %v1333, %v2090
      %v2102 = vpack.c.bf16 %v2099, %v2096
      %v2103 = vpack.c.bf16 %v2100, %v2097
      %v2104 = vpack.c.bf16 %v2101, %v2098
      %s2105 = scalar_lea.vmem %s6, 40
      %v2106 = vld [vmem:[%s2105] sm:$0xf]
      %2110 = vrot.lane.b32.xlu0 %v2102, 96
      %v2111 = vpop.permute.xlu0 %2110
      %2112 = vrot.lane.b32.xlu0 %v2103, 96
      %v2113 = vpop.permute.xlu0 %2112
      %2114 = vrot.lane.b32.xlu0 %v2104, 96
      %v2115 = vpop.permute.xlu0 %2114
      %vm2116 = vcmask 785408
      %v2117 = vsel %vm2116, %v2111, %v2113
      %v2118 = vsel %vm2116, %v2113, %v2115
      %v2122 = vsel %vm497, %v2106, 0
      %2124 = vmatpush.bf16.msra.mxu0 0
      %2125 = vmatpush.bf16.msra.mxu0 0
      %2126 = vmatpush.bf16.msra.mxu0 0
      %2127 = vmatpush.bf16.msra.mxu0 0
      %2128 = vmatpush.bf16.msra.mxu0 0
      %2129 = vmatpush.bf16.msra.mxu0 0
      %2130 = vmatpush.bf16.msra.mxu0 0
      %2131 = vmatpush.bf16.msra.mxu0 %v2117
      %2132 = vmatmul.bf16.gmra.mxu0 %v2122
      %v2133 = vpop.f32.mrf.mxu0
      %v2134 = vadd.f32 0.0, %v2133
      %v2135 = vpop.f32.mrf.mxu0
      %2136 = vdwg.mxu0
      %2137 = vmatpush.bf16.msra.mxu0 0
      %2138 = vmatpush.bf16.msra.mxu0 0
      %2139 = vmatpush.bf16.msra.mxu0 0
      %2140 = vmatpush.bf16.msra.mxu0 0
      %2141 = vmatpush.bf16.msra.mxu0 0
      %2142 = vmatpush.bf16.msra.mxu0 0
      %2143 = vmatpush.bf16.msra.mxu0 0
      %2144 = vmatpush.bf16.msra.mxu0 %v2118
      %2145 = vmatmul.bf16.gmra.mxu0 %v2122
      %v2146 = vpop.f32.mrf.mxu0
      %v2147 = vadd.f32 0.0, %v2146
      %v2148 = vpop.f32.mrf.mxu0
      %2149 = vdwg.mxu0
      %v2150 = vadd.f32 %v2067, %v2134
      %v2151 = vadd.f32 %v2068, %v2147
      %v2152 = vshrl.u32 %v2073, 16
      %v2153 = vpack.i.b16 %v2152, %v2152
      %v2155 = vperm.slane %v2153, 1
      %v2156 = vshrl.u32 %v2074, 16
      %v2157 = vpack.i.b16 %v2156, %v2156
      %v2159 = vperm.slane %v2157, 1
      %v2160 = vunpack.c.l.bf16 %v2155
      %v2161 = vunpack.c.l.bf16 %v2159
      %2164 = vrot.lane.b32.xlu0 %v2160, 33
      %v2165 = vpop.permute.xlu0 %2164
      %2166 = vrot.lane.b32.xlu0 %v2161, 33
      %v2167 = vpop.permute.xlu0 %2166
      %vm2168 = vcmask 269312
      %v2169 = vsel %vm2168, %v2165, %v2167
      %v2173 = vmul.f32 %v1311, %v2165
      %v2174 = vmul.f32 %v1312, %v2169
      %v2175 = vmul.f32 %v1332, %v2167
      %v2176 = vmul.f32 %v1313, %v2165
      %v2177 = vmul.f32 %v1314, %v2169
      %v2178 = vmul.f32 %v1333, %v2167
      %v2179 = vpack.c.bf16 %v2176, %v2173
      %v2180 = vpack.c.bf16 %v2177, %v2174
      %v2181 = vpack.c.bf16 %v2178, %v2175
      %s2182 = scalar_lea.vmem %s6, 44
      %v2183 = vld [vmem:[%s2182] sm:$0xf]
      %2187 = vrot.lane.b32.xlu0 %v2179, 95
      %v2188 = vpop.permute.xlu0 %2187
      %2189 = vrot.lane.b32.xlu0 %v2180, 95
      %v2190 = vpop.permute.xlu0 %2189
      %2191 = vrot.lane.b32.xlu0 %v2181, 95
      %v2192 = vpop.permute.xlu0 %2191
      %vm2193 = vcmask 777216
      %v2194 = vsel %vm2193, %v2188, %v2190
      %v2195 = vsel %vm2193, %v2190, %v2192
      %v2199 = vsel %vm497, %v2183, 0
      %2201 = vmatpush.bf16.msra.mxu0 0
      %2202 = vmatpush.bf16.msra.mxu0 0
      %2203 = vmatpush.bf16.msra.mxu0 0
      %2204 = vmatpush.bf16.msra.mxu0 0
      %2205 = vmatpush.bf16.msra.mxu0 0
      %2206 = vmatpush.bf16.msra.mxu0 0
      %2207 = vmatpush.bf16.msra.mxu0 0
      %2208 = vmatpush.bf16.msra.mxu0 %v2194
      %2209 = vmatmul.bf16.gmra.mxu0 %v2199
      %v2210 = vpop.f32.mrf.mxu0
      %v2211 = vadd.f32 0.0, %v2210
      %v2212 = vpop.f32.mrf.mxu0
      %2213 = vdwg.mxu0
      %2214 = vmatpush.bf16.msra.mxu0 0
      %2215 = vmatpush.bf16.msra.mxu0 0
      %2216 = vmatpush.bf16.msra.mxu0 0
      %2217 = vmatpush.bf16.msra.mxu0 0
      %2218 = vmatpush.bf16.msra.mxu0 0
      %2219 = vmatpush.bf16.msra.mxu0 0
      %2220 = vmatpush.bf16.msra.mxu0 0
      %2221 = vmatpush.bf16.msra.mxu0 %v2195
      %2222 = vmatmul.bf16.gmra.mxu0 %v2199
      %v2223 = vpop.f32.mrf.mxu0
      %v2224 = vadd.f32 0.0, %v2223
      %v2225 = vpop.f32.mrf.mxu0
      %2226 = vdwg.mxu0
      %v2227 = vadd.f32 %v2150, %v2211
      %v2228 = vadd.f32 %v2151, %v2224
      %v2229 = vld [vmem:[%s8 + $0x8] sm:$0x44]
      %v2231 = vunpack.c.l.b16 %v2229
      %v2232 = vunpack.c.h.b16 %v2229
      %v2233 = vpack.c.b16 %v2231, %v2231
      %v2234 = vpack.c.b16 %v2232, %v2232
      %v2236 = vpack.i.b16 %v2233, %v2233
      %v2238 = vperm.slane %v2236, 2
      %v2240 = vpack.i.b16 %v2234, %v2234
      %v2242 = vperm.slane %v2240, 2
      %v2243 = vunpack.c.l.bf16 %v2238
      %v2244 = vunpack.c.l.bf16 %v2242
      %2247 = vrot.lane.b32.xlu0 %v2243, 34
      %v2248 = vpop.permute.xlu0 %2247
      %2249 = vrot.lane.b32.xlu0 %v2244, 34
      %v2250 = vpop.permute.xlu0 %2249
      %v2251 = vsel %vm1290, %v2248, %v2250
      %v2255 = vmul.f32 %v1311, %v2248
      %v2256 = vmul.f32 %v1312, %v2251
      %v2257 = vmul.f32 %v1332, %v2250
      %v2258 = vmul.f32 %v1313, %v2248
      %v2259 = vmul.f32 %v1314, %v2251
      %v2260 = vmul.f32 %v1333, %v2250
      %v2261 = vpack.c.bf16 %v2258, %v2255
      %v2262 = vpack.c.bf16 %v2259, %v2256
      %v2263 = vpack.c.bf16 %v2260, %v2257
      %s2264 = scalar_lea.vmem %s6, 48
      %v2265 = vld [vmem:[%s2264] sm:$0xf]
      %2269 = vrot.lane.b32.xlu0 %v2261, 94
      %v2270 = vpop.permute.xlu0 %2269
      %2271 = vrot.lane.b32.xlu0 %v2262, 94
      %v2272 = vpop.permute.xlu0 %2271
      %2273 = vrot.lane.b32.xlu0 %v2263, 94
      %v2274 = vpop.permute.xlu0 %2273
      %vm2275 = vcmask 769024
      %v2276 = vsel %vm2275, %v2270, %v2272
      %v2277 = vsel %vm2275, %v2272, %v2274
      %v2281 = vsel %vm497, %v2265, 0
      %2283 = vmatpush.bf16.msra.mxu0 0
      %2284 = vmatpush.bf16.msra.mxu0 0
      %2285 = vmatpush.bf16.msra.mxu0 0
      %2286 = vmatpush.bf16.msra.mxu0 0
      %2287 = vmatpush.bf16.msra.mxu0 0
      %2288 = vmatpush.bf16.msra.mxu0 0
      %2289 = vmatpush.bf16.msra.mxu0 0
      %2290 = vmatpush.bf16.msra.mxu0 %v2276
      %2291 = vmatmul.bf16.gmra.mxu0 %v2281
      %v2292 = vpop.f32.mrf.mxu0
      %v2293 = vadd.f32 0.0, %v2292
      %v2294 = vpop.f32.mrf.mxu0
      %2295 = vdwg.mxu0
      %2296 = vmatpush.bf16.msra.mxu0 0
      %2297 = vmatpush.bf16.msra.mxu0 0
      %2298 = vmatpush.bf16.msra.mxu0 0
      %2299 = vmatpush.bf16.msra.mxu0 0
      %2300 = vmatpush.bf16.msra.mxu0 0
      %2301 = vmatpush.bf16.msra.mxu0 0
      %2302 = vmatpush.bf16.msra.mxu0 0
      %2303 = vmatpush.bf16.msra.mxu0 %v2277
      %2304 = vmatmul.bf16.gmra.mxu0 %v2281
      %v2305 = vpop.f32.mrf.mxu0
      %v2306 = vadd.f32 0.0, %v2305
      %v2307 = vpop.f32.mrf.mxu0
      %2308 = vdwg.mxu0
      %v2309 = vadd.f32 %v2227, %v2293
      %v2310 = vadd.f32 %v2228, %v2306
      %v2311 = vshrl.u32 %v2233, 16
      %v2312 = vpack.i.b16 %v2311, %v2311
      %v2314 = vperm.slane %v2312, 2
      %v2315 = vshrl.u32 %v2234, 16
      %v2316 = vpack.i.b16 %v2315, %v2315
      %v2318 = vperm.slane %v2316, 2
      %v2319 = vunpack.c.l.bf16 %v2314
      %v2320 = vunpack.c.l.bf16 %v2318
      %2323 = vrot.lane.b32.xlu0 %v2319, 35
      %v2324 = vpop.permute.xlu0 %2323
      %2325 = vrot.lane.b32.xlu0 %v2320, 35
      %v2326 = vpop.permute.xlu0 %2325
      %vm2327 = vcmask 285696
      %v2328 = vsel %vm2327, %v2324, %v2326
      %v2332 = vmul.f32 %v1311, %v2324
      %v2333 = vmul.f32 %v1312, %v2328
      %v2334 = vmul.f32 %v1332, %v2326
      %v2335 = vmul.f32 %v1313, %v2324
      %v2336 = vmul.f32 %v1314, %v2328
      %v2337 = vmul.f32 %v1333, %v2326
      %v2338 = vpack.c.bf16 %v2335, %v2332
      %v2339 = vpack.c.bf16 %v2336, %v2333
      %v2340 = vpack.c.bf16 %v2337, %v2334
      %s2341 = scalar_lea.vmem %s6, 52
      %v2342 = vld [vmem:[%s2341] sm:$0xf]
      %2346 = vrot.lane.b32.xlu0 %v2338, 93
      %v2347 = vpop.permute.xlu0 %2346
      %2348 = vrot.lane.b32.xlu0 %v2339, 93
      %v2349 = vpop.permute.xlu0 %2348
      %2350 = vrot.lane.b32.xlu0 %v2340, 93
      %v2351 = vpop.permute.xlu0 %2350
      %vm2352 = vcmask 760832
      %v2353 = vsel %vm2352, %v2347, %v2349
      %v2354 = vsel %vm2352, %v2349, %v2351
      %v2358 = vsel %vm497, %v2342, 0
      %2360 = vmatpush.bf16.msra.mxu0 0
      %2361 = vmatpush.bf16.msra.mxu0 0
      %2362 = vmatpush.bf16.msra.mxu0 0
      %2363 = vmatpush.bf16.msra.mxu0 0
      %2364 = vmatpush.bf16.msra.mxu0 0
      %2365 = vmatpush.bf16.msra.mxu0 0
      %2366 = vmatpush.bf16.msra.mxu0 0
      %2367 = vmatpush.bf16.msra.mxu0 %v2353
      %2368 = vmatmul.bf16.gmra.mxu0 %v2358
      %v2369 = vpop.f32.mrf.mxu0
      %v2370 = vadd.f32 0.0, %v2369
      %v2371 = vpop.f32.mrf.mxu0
      %2372 = vdwg.mxu0
      %2373 = vmatpush.bf16.msra.mxu0 0
      %2374 = vmatpush.bf16.msra.mxu0 0
      %2375 = vmatpush.bf16.msra.mxu0 0
      %2376 = vmatpush.bf16.msra.mxu0 0
      %2377 = vmatpush.bf16.msra.mxu0 0
      %2378 = vmatpush.bf16.msra.mxu0 0
      %2379 = vmatpush.bf16.msra.mxu0 0
      %2380 = vmatpush.bf16.msra.mxu0 %v2354
      %2381 = vmatmul.bf16.gmra.mxu0 %v2358
      %v2382 = vpop.f32.mrf.mxu0
      %v2383 = vadd.f32 0.0, %v2382
      %v2384 = vpop.f32.mrf.mxu0
      %2385 = vdwg.mxu0
      %v2386 = vadd.f32 %v2309, %v2370
      %v2387 = vadd.f32 %v2310, %v2383
      %v2388 = vld [vmem:[%s8 + $0x8] sm:$0x88]
      %v2390 = vunpack.c.l.b16 %v2388
      %v2391 = vunpack.c.h.b16 %v2388
      %v2392 = vpack.c.b16 %v2390, %v2390
      %v2393 = vpack.c.b16 %v2391, %v2391
      %v2395 = vpack.i.b16 %v2392, %v2392
      %v2397 = vperm.slane %v2395, 3
      %v2399 = vpack.i.b16 %v2393, %v2393
      %v2401 = vperm.slane %v2399, 3
      %v2402 = vunpack.c.l.bf16 %v2397
      %v2403 = vunpack.c.l.bf16 %v2401
      %2406 = vrot.lane.b32.xlu0 %v2402, 36
      %v2407 = vpop.permute.xlu0 %2406
      %2408 = vrot.lane.b32.xlu0 %v2403, 36
      %v2409 = vpop.permute.xlu0 %2408
      %vm2410 = vcmask 293888
      %v2411 = vsel %vm2410, %v2407, %v2409
      %v2415 = vmul.f32 %v1311, %v2407
      %v2416 = vmul.f32 %v1312, %v2411
      %v2417 = vmul.f32 %v1332, %v2409
      %v2418 = vmul.f32 %v1313, %v2407
      %v2419 = vmul.f32 %v1314, %v2411
      %v2420 = vmul.f32 %v1333, %v2409
      %v2421 = vpack.c.bf16 %v2418, %v2415
      %v2422 = vpack.c.bf16 %v2419, %v2416
      %v2423 = vpack.c.bf16 %v2420, %v2417
      %s2424 = scalar_lea.vmem %s6, 56
      %v2425 = vld [vmem:[%s2424] sm:$0xf]
      %2429 = vrot.lane.b32.xlu0 %v2421, 92
      %v2430 = vpop.permute.xlu0 %2429
      %2431 = vrot.lane.b32.xlu0 %v2422, 92
      %v2432 = vpop.permute.xlu0 %2431
      %2433 = vrot.lane.b32.xlu0 %v2423, 92
      %v2434 = vpop.permute.xlu0 %2433
      %vm2435 = vcmask 752640
      %v2436 = vsel %vm2435, %v2430, %v2432
      %v2437 = vsel %vm2435, %v2432, %v2434
      %v2441 = vsel %vm497, %v2425, 0
      %2443 = vmatpush.bf16.msra.mxu0 0
      %2444 = vmatpush.bf16.msra.mxu0 0
      %2445 = vmatpush.bf16.msra.mxu0 0
      %2446 = vmatpush.bf16.msra.mxu0 0
      %2447 = vmatpush.bf16.msra.mxu0 0
      %2448 = vmatpush.bf16.msra.mxu0 0
      %2449 = vmatpush.bf16.msra.mxu0 0
      %2450 = vmatpush.bf16.msra.mxu0 %v2436
      %2451 = vmatmul.bf16.gmra.mxu0 %v2441
      %v2452 = vpop.f32.mrf.mxu0
      %v2453 = vadd.f32 0.0, %v2452
      %v2454 = vpop.f32.mrf.mxu0
      %2455 = vdwg.mxu0
      %2456 = vmatpush.bf16.msra.mxu0 0
      %2457 = vmatpush.bf16.msra.mxu0 0
      %2458 = vmatpush.bf16.msra.mxu0 0
      %2459 = vmatpush.bf16.msra.mxu0 0
      %2460 = vmatpush.bf16.msra.mxu0 0
      %2461 = vmatpush.bf16.msra.mxu0 0
      %2462 = vmatpush.bf16.msra.mxu0 0
      %2463 = vmatpush.bf16.msra.mxu0 %v2437
      %2464 = vmatmul.bf16.gmra.mxu0 %v2441
      %v2465 = vpop.f32.mrf.mxu0
      %v2466 = vadd.f32 0.0, %v2465
      %v2467 = vpop.f32.mrf.mxu0
      %2468 = vdwg.mxu0
      %v2469 = vadd.f32 %v2386, %v2453
      %v2470 = vadd.f32 %v2387, %v2466
      %v2471 = vshrl.u32 %v2392, 16
      %v2472 = vpack.i.b16 %v2471, %v2471
      %v2474 = vperm.slane %v2472, 3
      %v2475 = vshrl.u32 %v2393, 16
      %v2476 = vpack.i.b16 %v2475, %v2475
      %v2478 = vperm.slane %v2476, 3
      %v2479 = vunpack.c.l.bf16 %v2474
      %v2480 = vunpack.c.l.bf16 %v2478
      %2483 = vrot.lane.b32.xlu0 %v2479, 48
      %v2484 = vpop.permute.xlu0 %2483
      %2485 = vrot.lane.b32.xlu0 %v2480, 48
      %v2486 = vpop.permute.xlu0 %2485
      %vm2487 = vcmask 392192
      %v2488 = vsel %vm2487, %v2484, %v2486
      %v2492 = vmul.f32 %v1311, %v2484
      %v2493 = vmul.f32 %v1312, %v2488
      %v2494 = vmul.f32 %v1332, %v2486
      %v2495 = vmul.f32 %v1313, %v2484
      %v2496 = vmul.f32 %v1314, %v2488
      %v2497 = vmul.f32 %v1333, %v2486
      %v2498 = vpack.c.bf16 %v2495, %v2492
      %v2499 = vpack.c.bf16 %v2496, %v2493
      %v2500 = vpack.c.bf16 %v2497, %v2494
      %s2501 = scalar_lea.vmem %s6, 60
      %v2502 = vld [vmem:[%s2501] sm:$0xf]
      %2506 = vrot.lane.b32.xlu0 %v2498, 80
      %v2507 = vpop.permute.xlu0 %2506
      %2508 = vrot.lane.b32.xlu0 %v2499, 80
      %v2509 = vpop.permute.xlu0 %2508
      %2510 = vrot.lane.b32.xlu0 %v2500, 80
      %v2511 = vpop.permute.xlu0 %2510
      %vm2512 = vcmask 654336
      %v2513 = vsel %vm2512, %v2507, %v2509
      %v2514 = vsel %vm2512, %v2509, %v2511
      %v2518 = vsel %vm497, %v2502, 0
      %2520 = vmatpush.bf16.msra.mxu0 0
      %2521 = vmatpush.bf16.msra.mxu0 0
      %2522 = vmatpush.bf16.msra.mxu0 0
      %2523 = vmatpush.bf16.msra.mxu0 0
      %2524 = vmatpush.bf16.msra.mxu0 0
      %2525 = vmatpush.bf16.msra.mxu0 0
      %2526 = vmatpush.bf16.msra.mxu0 0
      %2527 = vmatpush.bf16.msra.mxu0 %v2513
      %2528 = vmatmul.bf16.gmra.mxu0 %v2518
      %v2529 = vpop.f32.mrf.mxu0
      %v2530 = vadd.f32 0.0, %v2529
      %v2531 = vpop.f32.mrf.mxu0
      %2532 = vdwg.mxu0
      %2533 = vmatpush.bf16.msra.mxu0 0
      %2534 = vmatpush.bf16.msra.mxu0 0
      %2535 = vmatpush.bf16.msra.mxu0 0
      %2536 = vmatpush.bf16.msra.mxu0 0
      %2537 = vmatpush.bf16.msra.mxu0 0
      %2538 = vmatpush.bf16.msra.mxu0 0
      %2539 = vmatpush.bf16.msra.mxu0 0
      %2540 = vmatpush.bf16.msra.mxu0 %v2514
      %2541 = vmatmul.bf16.gmra.mxu0 %v2518
      %v2542 = vpop.f32.mrf.mxu0
      %v2543 = vadd.f32 0.0, %v2542
      %v2544 = vpop.f32.mrf.mxu0
      %2545 = vdwg.mxu0
      %v2546 = vadd.f32 %v2469, %v2530
      %v2547 = vadd.f32 %v2470, %v2543
      %v2548 = vld [vmem:[%s8 + $0x10] sm:$0x11]
      %v2550 = vunpack.c.l.b16 %v2548
      %v2551 = vunpack.c.h.b16 %v2548
      %v2552 = vpack.c.b16 %v2550, %v2550
      %v2553 = vpack.c.b16 %v2551, %v2551
      %v2555 = vpack.i.b16 %v2552, %v2552
      %v2557 = vperm.slane %v2555, 0
      %v2559 = vpack.i.b16 %v2553, %v2553
      %v2561 = vperm.slane %v2559, 0
      %v2562 = vunpack.c.l.bf16 %v2557
      %v2563 = vunpack.c.l.bf16 %v2561
      %2566 = vrot.lane.b32.xlu0 %v2562, 49
      %v2567 = vpop.permute.xlu0 %2566
      %2568 = vrot.lane.b32.xlu0 %v2563, 49
      %v2569 = vpop.permute.xlu0 %2568
      %vm2570 = vcmask 400384
      %v2571 = vsel %vm2570, %v2567, %v2569
      %v2575 = vmul.f32 %v1311, %v2567
      %v2576 = vmul.f32 %v1312, %v2571
      %v2577 = vmul.f32 %v1332, %v2569
      %v2578 = vmul.f32 %v1313, %v2567
      %v2579 = vmul.f32 %v1314, %v2571
      %v2580 = vmul.f32 %v1333, %v2569
      %v2581 = vpack.c.bf16 %v2578, %v2575
      %v2582 = vpack.c.bf16 %v2579, %v2576
      %v2583 = vpack.c.bf16 %v2580, %v2577
      %s2584 = scalar_lea.vmem %s6, 64
      %v2585 = vld [vmem:[%s2584] sm:$0xf]
      %2589 = vrot.lane.b32.xlu0 %v2581, 79
      %v2590 = vpop.permute.xlu0 %2589
      %2591 = vrot.lane.b32.xlu0 %v2582, 79
      %v2592 = vpop.permute.xlu0 %2591
      %2593 = vrot.lane.b32.xlu0 %v2583, 79
      %v2594 = vpop.permute.xlu0 %2593
      %vm2595 = vcmask 646144
      %v2596 = vsel %vm2595, %v2590, %v2592
      %v2597 = vsel %vm2595, %v2592, %v2594
      %v2601 = vsel %vm497, %v2585, 0
      %2603 = vmatpush.bf16.msra.mxu0 0
      %2604 = vmatpush.bf16.msra.mxu0 0
      %2605 = vmatpush.bf16.msra.mxu0 0
      %2606 = vmatpush.bf16.msra.mxu0 0
      %2607 = vmatpush.bf16.msra.mxu0 0
      %2608 = vmatpush.bf16.msra.mxu0 0
      %2609 = vmatpush.bf16.msra.mxu0 0
      %2610 = vmatpush.bf16.msra.mxu0 %v2596
      %2611 = vmatmul.bf16.gmra.mxu0 %v2601
      %v2612 = vpop.f32.mrf.mxu0
      %v2613 = vadd.f32 0.0, %v2612
      %v2614 = vpop.f32.mrf.mxu0
      %2615 = vdwg.mxu0
      %2616 = vmatpush.bf16.msra.mxu0 0
      %2617 = vmatpush.bf16.msra.mxu0 0
      %2618 = vmatpush.bf16.msra.mxu0 0
      %2619 = vmatpush.bf16.msra.mxu0 0
      %2620 = vmatpush.bf16.msra.mxu0 0
      %2621 = vmatpush.bf16.msra.mxu0 0
      %2622 = vmatpush.bf16.msra.mxu0 0
      %2623 = vmatpush.bf16.msra.mxu0 %v2597
      %2624 = vmatmul.bf16.gmra.mxu0 %v2601
      %v2625 = vpop.f32.mrf.mxu0
      %v2626 = vadd.f32 0.0, %v2625
      %v2627 = vpop.f32.mrf.mxu0
      %2628 = vdwg.mxu0
      %v2629 = vadd.f32 %v2546, %v2613
      %v2630 = vadd.f32 %v2547, %v2626
      %v2631 = vshrl.u32 %v2552, 16
      %v2632 = vpack.i.b16 %v2631, %v2631
      %v2634 = vperm.slane %v2632, 0
      %v2635 = vshrl.u32 %v2553, 16
      %v2636 = vpack.i.b16 %v2635, %v2635
      %v2638 = vperm.slane %v2636, 0
      %v2639 = vunpack.c.l.bf16 %v2634
      %v2640 = vunpack.c.l.bf16 %v2638
      %2643 = vrot.lane.b32.xlu0 %v2639, 50
      %v2644 = vpop.permute.xlu0 %2643
      %2645 = vrot.lane.b32.xlu0 %v2640, 50
      %v2646 = vpop.permute.xlu0 %2645
      %vm2647 = vcmask 408576
      %v2648 = vsel %vm2647, %v2644, %v2646
      %v2652 = vmul.f32 %v1311, %v2644
      %v2653 = vmul.f32 %v1312, %v2648
      %v2654 = vmul.f32 %v1332, %v2646
      %v2655 = vmul.f32 %v1313, %v2644
      %v2656 = vmul.f32 %v1314, %v2648
      %v2657 = vmul.f32 %v1333, %v2646
      %v2658 = vpack.c.bf16 %v2655, %v2652
      %v2659 = vpack.c.bf16 %v2656, %v2653
      %v2660 = vpack.c.bf16 %v2657, %v2654
      %s2661 = scalar_lea.vmem %s6, 68
      %v2662 = vld [vmem:[%s2661] sm:$0xf]
      %2666 = vrot.lane.b32.xlu0 %v2658, 78
      %v2667 = vpop.permute.xlu0 %2666
      %2668 = vrot.lane.b32.xlu0 %v2659, 78
      %v2669 = vpop.permute.xlu0 %2668
      %2670 = vrot.lane.b32.xlu0 %v2660, 78
      %v2671 = vpop.permute.xlu0 %2670
      %vm2672 = vcmask 637952
      %v2673 = vsel %vm2672, %v2667, %v2669
      %v2674 = vsel %vm2672, %v2669, %v2671
      %v2678 = vsel %vm497, %v2662, 0
      %2680 = vmatpush.bf16.msra.mxu0 0
      %2681 = vmatpush.bf16.msra.mxu0 0
      %2682 = vmatpush.bf16.msra.mxu0 0
      %2683 = vmatpush.bf16.msra.mxu0 0
      %2684 = vmatpush.bf16.msra.mxu0 0
      %2685 = vmatpush.bf16.msra.mxu0 0
      %2686 = vmatpush.bf16.msra.mxu0 0
      %2687 = vmatpush.bf16.msra.mxu0 %v2673
      %2688 = vmatmul.bf16.gmra.mxu0 %v2678
      %v2689 = vpop.f32.mrf.mxu0
      %v2690 = vadd.f32 0.0, %v2689
      %v2691 = vpop.f32.mrf.mxu0
      %2692 = vdwg.mxu0
      %2693 = vmatpush.bf16.msra.mxu0 0
      %2694 = vmatpush.bf16.msra.mxu0 0
      %2695 = vmatpush.bf16.msra.mxu0 0
      %2696 = vmatpush.bf16.msra.mxu0 0
      %2697 = vmatpush.bf16.msra.mxu0 0
      %2698 = vmatpush.bf16.msra.mxu0 0
      %2699 = vmatpush.bf16.msra.mxu0 0
      %2700 = vmatpush.bf16.msra.mxu0 %v2674
      %2701 = vmatmul.bf16.gmra.mxu0 %v2678
      %v2702 = vpop.f32.mrf.mxu0
      %v2703 = vadd.f32 0.0, %v2702
      %v2704 = vpop.f32.mrf.mxu0
      %2705 = vdwg.mxu0
      %v2706 = vadd.f32 %v2629, %v2690
      %v2707 = vadd.f32 %v2630, %v2703
      %v2708 = vld [vmem:[%s8 + $0x10] sm:$0x22]
      %v2710 = vunpack.c.l.b16 %v2708
      %v2711 = vunpack.c.h.b16 %v2708
      %v2712 = vpack.c.b16 %v2710, %v2710
      %v2713 = vpack.c.b16 %v2711, %v2711
      %v2715 = vpack.i.b16 %v2712, %v2712
      %v2717 = vperm.slane %v2715, 1
      %v2719 = vpack.i.b16 %v2713, %v2713
      %v2721 = vperm.slane %v2719, 1
      %v2722 = vunpack.c.l.bf16 %v2717
      %v2723 = vunpack.c.l.bf16 %v2721
      %2726 = vrot.lane.b32.xlu0 %v2722, 51
      %v2727 = vpop.permute.xlu0 %2726
      %2728 = vrot.lane.b32.xlu0 %v2723, 51
      %v2729 = vpop.permute.xlu0 %2728
      %vm2730 = vcmask 416768
      %v2731 = vsel %vm2730, %v2727, %v2729
      %v2735 = vmul.f32 %v1311, %v2727
      %v2736 = vmul.f32 %v1312, %v2731
      %v2737 = vmul.f32 %v1332, %v2729
      %v2738 = vmul.f32 %v1313, %v2727
      %v2739 = vmul.f32 %v1314, %v2731
      %v2740 = vmul.f32 %v1333, %v2729
      %v2741 = vpack.c.bf16 %v2738, %v2735
      %v2742 = vpack.c.bf16 %v2739, %v2736
      %v2743 = vpack.c.bf16 %v2740, %v2737
      %s2744 = scalar_lea.vmem %s6, 72
      %v2745 = vld [vmem:[%s2744] sm:$0xf]
      %2749 = vrot.lane.b32.xlu0 %v2741, 77
      %v2750 = vpop.permute.xlu0 %2749
      %2751 = vrot.lane.b32.xlu0 %v2742, 77
      %v2752 = vpop.permute.xlu0 %2751
      %2753 = vrot.lane.b32.xlu0 %v2743, 77
      %v2754 = vpop.permute.xlu0 %2753
      %vm2755 = vcmask 629760
      %v2756 = vsel %vm2755, %v2750, %v2752
      %v2757 = vsel %vm2755, %v2752, %v2754
      %v2761 = vsel %vm497, %v2745, 0
      %2763 = vmatpush.bf16.msra.mxu0 0
      %2764 = vmatpush.bf16.msra.mxu0 0
      %2765 = vmatpush.bf16.msra.mxu0 0
      %2766 = vmatpush.bf16.msra.mxu0 0
      %2767 = vmatpush.bf16.msra.mxu0 0
      %2768 = vmatpush.bf16.msra.mxu0 0
      %2769 = vmatpush.bf16.msra.mxu0 0
      %2770 = vmatpush.bf16.msra.mxu0 %v2756
      %2771 = vmatmul.bf16.gmra.mxu0 %v2761
      %v2772 = vpop.f32.mrf.mxu0
      %v2773 = vadd.f32 0.0, %v2772
      %v2774 = vpop.f32.mrf.mxu0
      %2775 = vdwg.mxu0
      %2776 = vmatpush.bf16.msra.mxu0 0
      %2777 = vmatpush.bf16.msra.mxu0 0
      %2778 = vmatpush.bf16.msra.mxu0 0
      %2779 = vmatpush.bf16.msra.mxu0 0
      %2780 = vmatpush.bf16.msra.mxu0 0
      %2781 = vmatpush.bf16.msra.mxu0 0
      %2782 = vmatpush.bf16.msra.mxu0 0
      %2783 = vmatpush.bf16.msra.mxu0 %v2757
      %2784 = vmatmul.bf16.gmra.mxu0 %v2761
      %v2785 = vpop.f32.mrf.mxu0
      %v2786 = vadd.f32 0.0, %v2785
      %v2787 = vpop.f32.mrf.mxu0
      %2788 = vdwg.mxu0
      %v2789 = vadd.f32 %v2706, %v2773
      %v2790 = vadd.f32 %v2707, %v2786
      %v2791 = vshrl.u32 %v2712, 16
      %v2792 = vpack.i.b16 %v2791, %v2791
      %v2794 = vperm.slane %v2792, 1
      %v2795 = vshrl.u32 %v2713, 16
      %v2796 = vpack.i.b16 %v2795, %v2795
      %v2798 = vperm.slane %v2796, 1
      %v2799 = vunpack.c.l.bf16 %v2794
      %v2800 = vunpack.c.l.bf16 %v2798
      %2803 = vrot.lane.b32.xlu0 %v2799, 52
      %v2804 = vpop.permute.xlu0 %2803
      %2805 = vrot.lane.b32.xlu0 %v2800, 52
      %v2806 = vpop.permute.xlu0 %2805
      %vm2807 = vcmask 424960
      %v2808 = vsel %vm2807, %v2804, %v2806
      %v2812 = vmul.f32 %v1311, %v2804
      %v2813 = vmul.f32 %v1312, %v2808
      %v2814 = vmul.f32 %v1332, %v2806
      %v2815 = vmul.f32 %v1313, %v2804
      %v2816 = vmul.f32 %v1314, %v2808
      %v2817 = vmul.f32 %v1333, %v2806
      %v2818 = vpack.c.bf16 %v2815, %v2812
      %v2819 = vpack.c.bf16 %v2816, %v2813
      %v2820 = vpack.c.bf16 %v2817, %v2814
      %s2821 = scalar_lea.vmem %s6, 76
      %v2822 = vld [vmem:[%s2821] sm:$0xf]
      %2826 = vrot.lane.b32.xlu0 %v2818, 76
      %v2827 = vpop.permute.xlu0 %2826
      %2828 = vrot.lane.b32.xlu0 %v2819, 76
      %v2829 = vpop.permute.xlu0 %2828
      %2830 = vrot.lane.b32.xlu0 %v2820, 76
      %v2831 = vpop.permute.xlu0 %2830
      %vm2832 = vcmask 621568
      %v2833 = vsel %vm2832, %v2827, %v2829
      %v2834 = vsel %vm2832, %v2829, %v2831
      %v2838 = vsel %vm497, %v2822, 0
      %2840 = vmatpush.bf16.msra.mxu0 0
      %2841 = vmatpush.bf16.msra.mxu0 0
      %2842 = vmatpush.bf16.msra.mxu0 0
      %2843 = vmatpush.bf16.msra.mxu0 0
      %2844 = vmatpush.bf16.msra.mxu0 0
      %2845 = vmatpush.bf16.msra.mxu0 0
      %2846 = vmatpush.bf16.msra.mxu0 0
      %2847 = vmatpush.bf16.msra.mxu0 %v2833
      %2848 = vmatmul.bf16.gmra.mxu0 %v2838
      %v2849 = vpop.f32.mrf.mxu0
      %v2850 = vadd.f32 0.0, %v2849
      %v2851 = vpop.f32.mrf.mxu0
      %2852 = vdwg.mxu0
      %2853 = vmatpush.bf16.msra.mxu0 0
      %2854 = vmatpush.bf16.msra.mxu0 0
      %2855 = vmatpush.bf16.msra.mxu0 0
      %2856 = vmatpush.bf16.msra.mxu0 0
      %2857 = vmatpush.bf16.msra.mxu0 0
      %2858 = vmatpush.bf16.msra.mxu0 0
      %2859 = vmatpush.bf16.msra.mxu0 0
      %2860 = vmatpush.bf16.msra.mxu0 %v2834
      %2861 = vmatmul.bf16.gmra.mxu0 %v2838
      %v2862 = vpop.f32.mrf.mxu0
      %v2863 = vadd.f32 0.0, %v2862
      %v2864 = vpop.f32.mrf.mxu0
      %2865 = vdwg.mxu0
      %v2866 = vadd.f32 %v2789, %v2850
      %v2867 = vadd.f32 %v2790, %v2863
      %v2868 = vld [vmem:[%s8 + $0x10] sm:$0x44]
      %v2870 = vunpack.c.l.b16 %v2868
      %v2871 = vunpack.c.h.b16 %v2868
      %v2872 = vpack.c.b16 %v2870, %v2870
      %v2873 = vpack.c.b16 %v2871, %v2871
      %v2875 = vpack.i.b16 %v2872, %v2872
      %v2877 = vperm.slane %v2875, 2
      %v2879 = vpack.i.b16 %v2873, %v2873
      %v2881 = vperm.slane %v2879, 2
      %v2882 = vunpack.c.l.bf16 %v2877
      %v2883 = vunpack.c.l.bf16 %v2881
      %2886 = vrot.lane.b32.xlu0 %v2882, 64
      %v2887 = vpop.permute.xlu0 %2886
      %2888 = vrot.lane.b32.xlu0 %v2883, 64
      %v2889 = vpop.permute.xlu0 %2888
      %v2890 = vsel %vm1241, %v2887, %v2889
      %v2894 = vmul.f32 %v1311, %v2887
      %v2895 = vmul.f32 %v1312, %v2890
      %v2896 = vmul.f32 %v1332, %v2889
      %v2897 = vmul.f32 %v1313, %v2887
      %v2898 = vmul.f32 %v1314, %v2890
      %v2899 = vmul.f32 %v1333, %v2889
      %v2900 = vpack.c.bf16 %v2897, %v2894
      %v2901 = vpack.c.bf16 %v2898, %v2895
      %v2902 = vpack.c.bf16 %v2899, %v2896
      %s2903 = scalar_lea.vmem %s6, 80
      %v2904 = vld [vmem:[%s2903] sm:$0xf]
      %2908 = vrot.lane.b32.xlu0 %v2900, 64
      %v2909 = vpop.permute.xlu0 %2908
      %2910 = vrot.lane.b32.xlu0 %v2901, 64
      %v2911 = vpop.permute.xlu0 %2910
      %2912 = vrot.lane.b32.xlu0 %v2902, 64
      %v2913 = vpop.permute.xlu0 %2912
      %vm2914 = vcmask 523264
      %v2915 = vsel %vm2914, %v2909, %v2911
      %v2916 = vsel %vm2914, %v2911, %v2913
      %v2920 = vsel %vm497, %v2904, 0
      %2922 = vmatpush.bf16.msra.mxu0 0
      %2923 = vmatpush.bf16.msra.mxu0 0
      %2924 = vmatpush.bf16.msra.mxu0 0
      %2925 = vmatpush.bf16.msra.mxu0 0
      %2926 = vmatpush.bf16.msra.mxu0 0
      %2927 = vmatpush.bf16.msra.mxu0 0
      %2928 = vmatpush.bf16.msra.mxu0 0
      %2929 = vmatpush.bf16.msra.mxu0 %v2915
      %2930 = vmatmul.bf16.gmra.mxu0 %v2920
      %v2931 = vpop.f32.mrf.mxu0
      %v2932 = vadd.f32 0.0, %v2931
      %v2933 = vpop.f32.mrf.mxu0
      %2934 = vdwg.mxu0
      %2935 = vmatpush.bf16.msra.mxu0 0
      %2936 = vmatpush.bf16.msra.mxu0 0
      %2937 = vmatpush.bf16.msra.mxu0 0
      %2938 = vmatpush.bf16.msra.mxu0 0
      %2939 = vmatpush.bf16.msra.mxu0 0
      %2940 = vmatpush.bf16.msra.mxu0 0
      %2941 = vmatpush.bf16.msra.mxu0 0
      %2942 = vmatpush.bf16.msra.mxu0 %v2916
      %2943 = vmatmul.bf16.gmra.mxu0 %v2920
      %v2944 = vpop.f32.mrf.mxu0
      %v2945 = vadd.f32 0.0, %v2944
      %v2946 = vpop.f32.mrf.mxu0
      %2947 = vdwg.mxu0
      %v2948 = vadd.f32 %v2866, %v2932
      %v2949 = vadd.f32 %v2867, %v2945
      %v2950 = vshrl.u32 %v2872, 16
      %v2951 = vpack.i.b16 %v2950, %v2950
      %v2953 = vperm.slane %v2951, 2
      %v2954 = vshrl.u32 %v2873, 16
      %v2955 = vpack.i.b16 %v2954, %v2954
      %v2957 = vperm.slane %v2955, 2
      %v2958 = vunpack.c.l.bf16 %v2953
      %v2959 = vunpack.c.l.bf16 %v2957
      %2962 = vrot.lane.b32.xlu0 %v2958, 65
      %v2963 = vpop.permute.xlu0 %2962
      %2964 = vrot.lane.b32.xlu0 %v2959, 65
      %v2965 = vpop.permute.xlu0 %2964
      %vm2966 = vcmask 531456
      %v2967 = vsel %vm2966, %v2963, %v2965
      %v2971 = vmul.f32 %v1311, %v2963
      %v2972 = vmul.f32 %v1312, %v2967
      %v2973 = vmul.f32 %v1332, %v2965
      %v2974 = vmul.f32 %v1313, %v2963
      %v2975 = vmul.f32 %v1314, %v2967
      %v2976 = vmul.f32 %v1333, %v2965
      %v2977 = vpack.c.bf16 %v2974, %v2971
      %v2978 = vpack.c.bf16 %v2975, %v2972
      %v2979 = vpack.c.bf16 %v2976, %v2973
      %s2980 = scalar_lea.vmem %s6, 84
      %v2981 = vld [vmem:[%s2980] sm:$0xf]
      %2985 = vrot.lane.b32.xlu0 %v2977, 63
      %v2986 = vpop.permute.xlu0 %2985
      %2987 = vrot.lane.b32.xlu0 %v2978, 63
      %v2988 = vpop.permute.xlu0 %2987
      %2989 = vrot.lane.b32.xlu0 %v2979, 63
      %v2990 = vpop.permute.xlu0 %2989
      %vm2991 = vcmask 515072
      %v2992 = vsel %vm2991, %v2986, %v2988
      %v2993 = vsel %vm2991, %v2988, %v2990
      %v2997 = vsel %vm497, %v2981, 0
      %2999 = vmatpush.bf16.msra.mxu0 0
      %3000 = vmatpush.bf16.msra.mxu0 0
      %3001 = vmatpush.bf16.msra.mxu0 0
      %3002 = vmatpush.bf16.msra.mxu0 0
      %3003 = vmatpush.bf16.msra.mxu0 0
      %3004 = vmatpush.bf16.msra.mxu0 0
      %3005 = vmatpush.bf16.msra.mxu0 0
      %3006 = vmatpush.bf16.msra.mxu0 %v2992
      %3007 = vmatmul.bf16.gmra.mxu0 %v2997
      %v3008 = vpop.f32.mrf.mxu0
      %v3009 = vadd.f32 0.0, %v3008
      %v3010 = vpop.f32.mrf.mxu0
      %3011 = vdwg.mxu0
      %3012 = vmatpush.bf16.msra.mxu0 0
      %3013 = vmatpush.bf16.msra.mxu0 0
      %3014 = vmatpush.bf16.msra.mxu0 0
      %3015 = vmatpush.bf16.msra.mxu0 0
      %3016 = vmatpush.bf16.msra.mxu0 0
      %3017 = vmatpush.bf16.msra.mxu0 0
      %3018 = vmatpush.bf16.msra.mxu0 0
      %3019 = vmatpush.bf16.msra.mxu0 %v2993
      %3020 = vmatmul.bf16.gmra.mxu0 %v2997
      %v3021 = vpop.f32.mrf.mxu0
      %v3022 = vadd.f32 0.0, %v3021
      %v3023 = vpop.f32.mrf.mxu0
      %3024 = vdwg.mxu0
      %v3025 = vadd.f32 %v2948, %v3009
      %v3026 = vadd.f32 %v2949, %v3022
      %v3027 = vld [vmem:[%s8 + $0x10] sm:$0x88]
      %v3029 = vunpack.c.l.b16 %v3027
      %v3030 = vunpack.c.h.b16 %v3027
      %v3031 = vpack.c.b16 %v3029, %v3029
      %v3032 = vpack.c.b16 %v3030, %v3030
      %v3034 = vpack.i.b16 %v3031, %v3031
      %v3036 = vperm.slane %v3034, 3
      %v3038 = vpack.i.b16 %v3032, %v3032
      %v3040 = vperm.slane %v3038, 3
      %v3041 = vunpack.c.l.bf16 %v3036
      %v3042 = vunpack.c.l.bf16 %v3040
      %3045 = vrot.lane.b32.xlu0 %v3041, 66
      %v3046 = vpop.permute.xlu0 %3045
      %3047 = vrot.lane.b32.xlu0 %v3042, 66
      %v3048 = vpop.permute.xlu0 %3047
      %vm3049 = vcmask 539648
      %v3050 = vsel %vm3049, %v3046, %v3048
      %v3054 = vmul.f32 %v1311, %v3046
      %v3055 = vmul.f32 %v1312, %v3050
      %v3056 = vmul.f32 %v1332, %v3048
      %v3057 = vmul.f32 %v1313, %v3046
      %v3058 = vmul.f32 %v1314, %v3050
      %v3059 = vmul.f32 %v1333, %v3048
      %v3060 = vpack.c.bf16 %v3057, %v3054
      %v3061 = vpack.c.bf16 %v3058, %v3055
      %v3062 = vpack.c.bf16 %v3059, %v3056
      %s3063 = scalar_lea.vmem %s6, 88
      %v3064 = vld [vmem:[%s3063] sm:$0xf]
      %3068 = vrot.lane.b32.xlu0 %v3060, 62
      %v3069 = vpop.permute.xlu0 %3068
      %3070 = vrot.lane.b32.xlu0 %v3061, 62
      %v3071 = vpop.permute.xlu0 %3070
      %3072 = vrot.lane.b32.xlu0 %v3062, 62
      %v3073 = vpop.permute.xlu0 %3072
      %vm3074 = vcmask 506880
      %v3075 = vsel %vm3074, %v3069, %v3071
      %v3076 = vsel %vm3074, %v3071, %v3073
      %v3080 = vsel %vm497, %v3064, 0
      %3082 = vmatpush.bf16.msra.mxu0 0
      %3083 = vmatpush.bf16.msra.mxu0 0
      %3084 = vmatpush.bf16.msra.mxu0 0
      %3085 = vmatpush.bf16.msra.mxu0 0
      %3086 = vmatpush.bf16.msra.mxu0 0
      %3087 = vmatpush.bf16.msra.mxu0 0
      %3088 = vmatpush.bf16.msra.mxu0 0
      %3089 = vmatpush.bf16.msra.mxu0 %v3075
      %3090 = vmatmul.bf16.gmra.mxu0 %v3080
      %v3091 = vpop.f32.mrf.mxu0
      %v3092 = vadd.f32 0.0, %v3091
      %v3093 = vpop.f32.mrf.mxu0
      %3094 = vdwg.mxu0
      %3095 = vmatpush.bf16.msra.mxu0 0
      %3096 = vmatpush.bf16.msra.mxu0 0
      %3097 = vmatpush.bf16.msra.mxu0 0
      %3098 = vmatpush.bf16.msra.mxu0 0
      %3099 = vmatpush.bf16.msra.mxu0 0
      %3100 = vmatpush.bf16.msra.mxu0 0
      %3101 = vmatpush.bf16.msra.mxu0 0
      %3102 = vmatpush.bf16.msra.mxu0 %v3076
      %3103 = vmatmul.bf16.gmra.mxu0 %v3080
      %v3104 = vpop.f32.mrf.mxu0
      %v3105 = vadd.f32 0.0, %v3104
      %v3106 = vpop.f32.mrf.mxu0
      %3107 = vdwg.mxu0
      %v3108 = vadd.f32 %v3025, %v3092
      %v3109 = vadd.f32 %v3026, %v3105
      %v3110 = vshrl.u32 %v3031, 16
      %v3111 = vpack.i.b16 %v3110, %v3110
      %v3113 = vperm.slane %v3111, 3
      %v3114 = vshrl.u32 %v3032, 16
      %v3115 = vpack.i.b16 %v3114, %v3114
      %v3117 = vperm.slane %v3115, 3
      %v3118 = vunpack.c.l.bf16 %v3113
      %v3119 = vunpack.c.l.bf16 %v3117
      %3122 = vrot.lane.b32.xlu0 %v3118, 67
      %v3123 = vpop.permute.xlu0 %3122
      %3124 = vrot.lane.b32.xlu0 %v3119, 67
      %v3125 = vpop.permute.xlu0 %3124
      %vm3126 = vcmask 547840
      %v3127 = vsel %vm3126, %v3123, %v3125
      %v3131 = vmul.f32 %v1311, %v3123
      %v3132 = vmul.f32 %v1312, %v3127
      %v3133 = vmul.f32 %v1332, %v3125
      %v3134 = vmul.f32 %v1313, %v3123
      %v3135 = vmul.f32 %v1314, %v3127
      %v3136 = vmul.f32 %v1333, %v3125
      %v3137 = vpack.c.bf16 %v3134, %v3131
      %v3138 = vpack.c.bf16 %v3135, %v3132
      %v3139 = vpack.c.bf16 %v3136, %v3133
      %s3140 = scalar_lea.vmem %s6, 92
      %v3141 = vld [vmem:[%s3140] sm:$0xf]
      %3145 = vrot.lane.b32.xlu0 %v3137, 61
      %v3146 = vpop.permute.xlu0 %3145
      %3147 = vrot.lane.b32.xlu0 %v3138, 61
      %v3148 = vpop.permute.xlu0 %3147
      %3149 = vrot.lane.b32.xlu0 %v3139, 61
      %v3150 = vpop.permute.xlu0 %3149
      %vm3151 = vcmask 498688
      %v3152 = vsel %vm3151, %v3146, %v3148
      %v3153 = vsel %vm3151, %v3148, %v3150
      %v3157 = vsel %vm497, %v3141, 0
      %3159 = vmatpush.bf16.msra.mxu0 0
      %3160 = vmatpush.bf16.msra.mxu0 0
      %3161 = vmatpush.bf16.msra.mxu0 0
      %3162 = vmatpush.bf16.msra.mxu0 0
      %3163 = vmatpush.bf16.msra.mxu0 0
      %3164 = vmatpush.bf16.msra.mxu0 0
      %3165 = vmatpush.bf16.msra.mxu0 0
      %3166 = vmatpush.bf16.msra.mxu0 %v3152
      %3167 = vmatmul.bf16.gmra.mxu0 %v3157
      %v3168 = vpop.f32.mrf.mxu0
      %v3169 = vadd.f32 0.0, %v3168
      %v3170 = vpop.f32.mrf.mxu0
      %3171 = vdwg.mxu0
      %3172 = vmatpush.bf16.msra.mxu0 0
      %3173 = vmatpush.bf16.msra.mxu0 0
      %3174 = vmatpush.bf16.msra.mxu0 0
      %3175 = vmatpush.bf16.msra.mxu0 0
      %3176 = vmatpush.bf16.msra.mxu0 0
      %3177 = vmatpush.bf16.msra.mxu0 0
      %3178 = vmatpush.bf16.msra.mxu0 0
      %3179 = vmatpush.bf16.msra.mxu0 %v3153
      %3180 = vmatmul.bf16.gmra.mxu0 %v3157
      %v3181 = vpop.f32.mrf.mxu0
      %v3182 = vadd.f32 0.0, %v3181
      %v3183 = vpop.f32.mrf.mxu0
      %3184 = vdwg.mxu0
      %v3185 = vadd.f32 %v3108, %v3169
      %v3186 = vadd.f32 %v3109, %v3182
      %v3187 = vld [vmem:[%s8 + $0x18] sm:$0x11]
      %v3189 = vunpack.c.l.b16 %v3187
      %v3190 = vunpack.c.h.b16 %v3187
      %v3191 = vpack.c.b16 %v3189, %v3189
      %v3192 = vpack.c.b16 %v3190, %v3190
      %v3194 = vpack.i.b16 %v3191, %v3191
      %v3196 = vperm.slane %v3194, 0
      %v3198 = vpack.i.b16 %v3192, %v3192
      %v3200 = vperm.slane %v3198, 0
      %v3201 = vunpack.c.l.bf16 %v3196
      %v3202 = vunpack.c.l.bf16 %v3200
      %3205 = vrot.lane.b32.xlu0 %v3201, 68
      %v3206 = vpop.permute.xlu0 %3205
      %3207 = vrot.lane.b32.xlu0 %v3202, 68
      %v3208 = vpop.permute.xlu0 %3207
      %vm3209 = vcmask 556032
      %v3210 = vsel %vm3209, %v3206, %v3208
      %v3214 = vmul.f32 %v1311, %v3206
      %v3215 = vmul.f32 %v1312, %v3210
      %v3216 = vmul.f32 %v1332, %v3208
      %v3217 = vmul.f32 %v1313, %v3206
      %v3218 = vmul.f32 %v1314, %v3210
      %v3219 = vmul.f32 %v1333, %v3208
      %v3220 = vpack.c.bf16 %v3217, %v3214
      %v3221 = vpack.c.bf16 %v3218, %v3215
      %v3222 = vpack.c.bf16 %v3219, %v3216
      %s3223 = scalar_lea.vmem %s6, 96
      %v3224 = vld [vmem:[%s3223] sm:$0xf]
      %3228 = vrot.lane.b32.xlu0 %v3220, 60
      %v3229 = vpop.permute.xlu0 %3228
      %3230 = vrot.lane.b32.xlu0 %v3221, 60
      %v3231 = vpop.permute.xlu0 %3230
      %3232 = vrot.lane.b32.xlu0 %v3222, 60
      %v3233 = vpop.permute.xlu0 %3232
      %vm3234 = vcmask 490496
      %v3235 = vsel %vm3234, %v3229, %v3231
      %v3236 = vsel %vm3234, %v3231, %v3233
      %v3240 = vsel %vm497, %v3224, 0
      %3242 = vmatpush.bf16.msra.mxu0 0
      %3243 = vmatpush.bf16.msra.mxu0 0
      %3244 = vmatpush.bf16.msra.mxu0 0
      %3245 = vmatpush.bf16.msra.mxu0 0
      %3246 = vmatpush.bf16.msra.mxu0 0
      %3247 = vmatpush.bf16.msra.mxu0 0
      %3248 = vmatpush.bf16.msra.mxu0 0
      %3249 = vmatpush.bf16.msra.mxu0 %v3235
      %3250 = vmatmul.bf16.gmra.mxu0 %v3240
      %v3251 = vpop.f32.mrf.mxu0
      %v3252 = vadd.f32 0.0, %v3251
      %v3253 = vpop.f32.mrf.mxu0
      %3254 = vdwg.mxu0
      %3255 = vmatpush.bf16.msra.mxu0 0
      %3256 = vmatpush.bf16.msra.mxu0 0
      %3257 = vmatpush.bf16.msra.mxu0 0
      %3258 = vmatpush.bf16.msra.mxu0 0
      %3259 = vmatpush.bf16.msra.mxu0 0
      %3260 = vmatpush.bf16.msra.mxu0 0
      %3261 = vmatpush.bf16.msra.mxu0 0
      %3262 = vmatpush.bf16.msra.mxu0 %v3236
      %3263 = vmatmul.bf16.gmra.mxu0 %v3240
      %v3264 = vpop.f32.mrf.mxu0
      %v3265 = vadd.f32 0.0, %v3264
      %v3266 = vpop.f32.mrf.mxu0
      %3267 = vdwg.mxu0
      %v3268 = vadd.f32 %v3185, %v3252
      %v3269 = vadd.f32 %v3186, %v3265
      %v3270 = vld [vmem:[%s7] sm:$0xff]
      %3272 = vset.pattern.permute.xlu0 0
      %3273 = vperm.xlu0 %3272, %v3270
      %v3274 = vpop.permute.xlu0 %3273
      %v3276 = vadd.f32 %v3268, %v3274
      %v3277 = vadd.f32 %v3269, %v3274
      %v3278 = vmul.f32 %v3276, 0.2
      %v3279 = vmul.f32 %v3277, 0.2
      %v3280 = vmax.f32 %v3276, %v3278
      %v3281 = vmax.f32 %v3277, %v3279
      %v3282 = vpack.c.bf16 %v3281, %v3280
      %v3284 = vunpack.c.l.b16 %v3282
      %v3285 = vunpack.c.h.b16 %v3282
      %v3286 = vpack.c.b16 %v3284, %v3284
      %v3287 = vpack.c.b16 %v3285, %v3285
      %3288 = vrot.lane.b32.xlu0 %v3286, 51
      %v3289 = vpop.permute.xlu0 %3288
      %3290 = vrot.lane.b32.xlu0 %v3287, 51
      %v3291 = vpop.permute.xlu0 %3290
      %vm3292 = vcmask 416768
      %v3293 = vsel %vm3292, %v3289, %v3291
      %v3296 = vsel %vm2730, 0, %v3289
      %v3299 = vsel %vm2730, %v3291, 0
      %v3301 = vld [vmem:[%s12] sm:$0x11]
      %v3303 = vunpack.c.l.b16 %v3301
      %v3304 = vunpack.c.h.b16 %v3301
      %v3305 = vpack.c.b16 %v3303, %v3303
      %v3306 = vpack.c.b16 %v3304, %v3304
      %v3308 = vpack.i.b16 %v3305, %v3305
      %v3310 = vperm.slane %v3308, 0
      %v3312 = vpack.i.b16 %v3306, %v3306
      %v3314 = vperm.slane %v3312, 0
      %v3315 = vunpack.c.l.bf16 %v3296
      %v3316 = vunpack.c.l.bf16 %v3293
      %v3317 = vunpack.c.l.bf16 %v3310
      %v3318 = vunpack.c.l.bf16 %v3314
      %v3319 = vmul.f32 %v3315, %v3317
      %v3320 = vmul.f32 %v3316, %v3318
      %v3321 = vpack.c.bf16 %v3319, %v3319
      %v3322 = vpack.c.bf16 %v3320, %v3320
      %v3323 = vld [vmem:[%s10] sm:$0x3]
      %v3324 = vshrl.u32 %v3305, 16
      %v3325 = vpack.i.b16 %v3324, %v3324
      %v3327 = vperm.slane %v3325, 0
      %v3328 = vshrl.u32 %v3306, 16
      %v3329 = vpack.i.b16 %v3328, %v3328
      %v3331 = vperm.slane %v3329, 0
      %v3332 = vunpack.c.l.bf16 %v3299
      %v3333 = vunpack.c.l.bf16 %v3327
      %v3334 = vunpack.c.l.bf16 %v3331
      %3337 = vrot.lane.b32.xlu0 %v3333, 1
      %v3338 = vpop.permute.xlu0 %3337
      %3339 = vrot.lane.b32.xlu0 %v3334, 1
      %v3340 = vpop.permute.xlu0 %3339
      %v3341 = vsel %vm1342, %v3338, %v3340
      %v3345 = vmul.f32 %v3315, %v3338
      %v3346 = vmul.f32 %v3316, %v3341
      %v3347 = vmul.f32 %v3332, %v3340
      %v3348 = vpack.c.bf16 %v3345, %v3345
      %v3349 = vpack.c.bf16 %v3346, %v3346
      %v3350 = vpack.c.bf16 %v3347, %v3347
      %s3351 = scalar_lea.vmem %s10, 2
      %v3352 = vld [vmem:[%s3351] sm:$0x3]
      %3356 = vrot.lane.b32.xlu0 %v3348, 127
      %v3357 = vpop.permute.xlu0 %3356
      %3358 = vrot.lane.b32.xlu0 %v3349, 127
      %v3359 = vpop.permute.xlu0 %3358
      %3360 = vrot.lane.b32.xlu0 %v3350, 127
      %v3361 = vpop.permute.xlu0 %3360
      %v3362 = vsel %vm1367, %v3357, %v3359
      %v3363 = vsel %vm1367, %v3359, %v3361
      %vm3364 = vcmask 64512
      %v3366 = vsel %vm3364, %v3352, 0
      %vm3368 = vcmask 1043456
      %v3370 = vsel %vm3368, %v3362, 0
      %v3373 = vsel %vm3368, %v3363, 0
      %3375 = vmatpush.bf16.msra.mxu0 0
      %3376 = vmatpush.bf16.msra.mxu0 0
      %3377 = vmatpush.bf16.msra.mxu0 0
      %3378 = vmatpush.bf16.msra.mxu0 0
      %3379 = vmatpush.bf16.msra.mxu0 0
      %3380 = vmatpush.bf16.msra.mxu0 0
      %3381 = vmatpush.bf16.msra.mxu0 0
      %3382 = vmatpush.bf16.msra.mxu0 %v3370
      %3383 = vmatmul.bf16.gmra.mxu0 %v3366
      %v3384 = vpop.f32.mrf.mxu0
      %v3385 = vadd.f32 0.0, %v3384
      %v3386 = vpop.f32.mrf.mxu0
      %3387 = vdwg.mxu0
      %3388 = vmatpush.bf16.msra.mxu0 0
      %3389 = vmatpush.bf16.msra.mxu0 0
      %3390 = vmatpush.bf16.msra.mxu0 0
      %3391 = vmatpush.bf16.msra.mxu0 0
      %3392 = vmatpush.bf16.msra.mxu0 0
      %3393 = vmatpush.bf16.msra.mxu0 0
      %3394 = vmatpush.bf16.msra.mxu0 0
      %3395 = vmatpush.bf16.msra.mxu0 %v3373
      %3396 = vmatmul.bf16.gmra.mxu0 %v3366
      %v3397 = vpop.f32.mrf.mxu0
      %v3398 = vadd.f32 0.0, %v3397
      %v3399 = vpop.f32.mrf.mxu0
      %3400 = vdwg.mxu0
      %v3402 = vsel %vm3364, %v3323, 0
      %v3405 = vsel %vm3368, %v3321, 0
      %v3408 = vsel %vm3368, %v3322, 0
      %3410 = vmatpush.bf16.msra.mxu0 0
      %3411 = vmatpush.bf16.msra.mxu0 0
      %3412 = vmatpush.bf16.msra.mxu0 0
      %3413 = vmatpush.bf16.msra.mxu0 0
      %3414 = vmatpush.bf16.msra.mxu0 0
      %3415 = vmatpush.bf16.msra.mxu0 0
      %3416 = vmatpush.bf16.msra.mxu0 0
      %3417 = vmatpush.bf16.msra.mxu0 %v3405
      %3418 = vmatmul.bf16.gmra.mxu0 %v3402
      %v3419 = vpop.f32.mrf.mxu0
      %v3420 = vadd.f32 %v3385, %v3419
      %v3421 = vpop.f32.mrf.mxu0
      %3422 = vdwg.mxu0
      %3423 = vmatpush.bf16.msra.mxu0 0
      %3424 = vmatpush.bf16.msra.mxu0 0
      %3425 = vmatpush.bf16.msra.mxu0 0
      %3426 = vmatpush.bf16.msra.mxu0 0
      %3427 = vmatpush.bf16.msra.mxu0 0
      %3428 = vmatpush.bf16.msra.mxu0 0
      %3429 = vmatpush.bf16.msra.mxu0 0
      %3430 = vmatpush.bf16.msra.mxu0 %v3408
      %3431 = vmatmul.bf16.gmra.mxu0 %v3402
      %v3432 = vpop.f32.mrf.mxu0
      %v3433 = vadd.f32 %v3398, %v3432
      %v3434 = vpop.f32.mrf.mxu0
      %3435 = vdwg.mxu0
      %v3436 = vld [vmem:[%s12] sm:$0x22]
      %v3438 = vunpack.c.l.b16 %v3436
      %v3439 = vunpack.c.h.b16 %v3436
      %v3440 = vpack.c.b16 %v3438, %v3438
      %v3441 = vpack.c.b16 %v3439, %v3439
      %v3443 = vpack.i.b16 %v3440, %v3440
      %v3445 = vperm.slane %v3443, 1
      %v3447 = vpack.i.b16 %v3441, %v3441
      %v3449 = vperm.slane %v3447, 1
      %v3450 = vunpack.c.l.bf16 %v3445
      %v3451 = vunpack.c.l.bf16 %v3449
      %3454 = vrot.lane.b32.xlu0 %v3450, 2
      %v3455 = vpop.permute.xlu0 %3454
      %3456 = vrot.lane.b32.xlu0 %v3451, 2
      %v3457 = vpop.permute.xlu0 %3456
      %v3458 = vsel %vm1452, %v3455, %v3457
      %v3462 = vmul.f32 %v3315, %v3455
      %v3463 = vmul.f32 %v3316, %v3458
      %v3464 = vmul.f32 %v3332, %v3457
      %v3465 = vpack.c.bf16 %v3462, %v3462
      %v3466 = vpack.c.bf16 %v3463, %v3463
      %v3467 = vpack.c.bf16 %v3464, %v3464
      %s3468 = scalar_lea.vmem %s10, 4
      %v3469 = vld [vmem:[%s3468] sm:$0x3]
      %3473 = vrot.lane.b32.xlu0 %v3465, 126
      %v3474 = vpop.permute.xlu0 %3473
      %3475 = vrot.lane.b32.xlu0 %v3466, 126
      %v3476 = vpop.permute.xlu0 %3475
      %3477 = vrot.lane.b32.xlu0 %v3467, 126
      %v3478 = vpop.permute.xlu0 %3477
      %v3479 = vsel %vm1477, %v3474, %v3476
      %v3480 = vsel %vm1477, %v3476, %v3478
      %v3482 = vsel %vm3364, %v3469, 0
      %v3485 = vsel %vm3368, %v3479, 0
      %v3488 = vsel %vm3368, %v3480, 0
      %3490 = vmatpush.bf16.msra.mxu0 0
      %3491 = vmatpush.bf16.msra.mxu0 0
      %3492 = vmatpush.bf16.msra.mxu0 0
      %3493 = vmatpush.bf16.msra.mxu0 0
      %3494 = vmatpush.bf16.msra.mxu0 0
      %3495 = vmatpush.bf16.msra.mxu0 0
      %3496 = vmatpush.bf16.msra.mxu0 0
      %3497 = vmatpush.bf16.msra.mxu0 %v3485
      %3498 = vmatmul.bf16.gmra.mxu0 %v3482
      %v3499 = vpop.f32.mrf.mxu0
      %v3500 = vadd.f32 0.0, %v3499
      %v3501 = vpop.f32.mrf.mxu0
      %3502 = vdwg.mxu0
      %3503 = vmatpush.bf16.msra.mxu0 0
      %3504 = vmatpush.bf16.msra.mxu0 0
      %3505 = vmatpush.bf16.msra.mxu0 0
      %3506 = vmatpush.bf16.msra.mxu0 0
      %3507 = vmatpush.bf16.msra.mxu0 0
      %3508 = vmatpush.bf16.msra.mxu0 0
      %3509 = vmatpush.bf16.msra.mxu0 0
      %3510 = vmatpush.bf16.msra.mxu0 %v3488
      %3511 = vmatmul.bf16.gmra.mxu0 %v3482
      %v3512 = vpop.f32.mrf.mxu0
      %v3513 = vadd.f32 0.0, %v3512
      %v3514 = vpop.f32.mrf.mxu0
      %3515 = vdwg.mxu0
      %v3516 = vadd.f32 %v3420, %v3500
      %v3517 = vadd.f32 %v3433, %v3513
      %v3518 = vshrl.u32 %v3440, 16
      %v3519 = vpack.i.b16 %v3518, %v3518
      %v3521 = vperm.slane %v3519, 1
      %v3522 = vshrl.u32 %v3441, 16
      %v3523 = vpack.i.b16 %v3522, %v3522
      %v3525 = vperm.slane %v3523, 1
      %v3526 = vunpack.c.l.bf16 %v3521
      %v3527 = vunpack.c.l.bf16 %v3525
      %3530 = vrot.lane.b32.xlu0 %v3526, 3
      %v3531 = vpop.permute.xlu0 %3530
      %3532 = vrot.lane.b32.xlu0 %v3527, 3
      %v3533 = vpop.permute.xlu0 %3532
      %v3534 = vsel %vm1529, %v3531, %v3533
      %v3538 = vmul.f32 %v3315, %v3531
      %v3539 = vmul.f32 %v3316, %v3534
      %v3540 = vmul.f32 %v3332, %v3533
      %v3541 = vpack.c.bf16 %v3538, %v3538
      %v3542 = vpack.c.bf16 %v3539, %v3539
      %v3543 = vpack.c.bf16 %v3540, %v3540
      %s3544 = scalar_lea.vmem %s10, 6
      %v3545 = vld [vmem:[%s3544] sm:$0x3]
      %3549 = vrot.lane.b32.xlu0 %v3541, 125
      %v3550 = vpop.permute.xlu0 %3549
      %3551 = vrot.lane.b32.xlu0 %v3542, 125
      %v3552 = vpop.permute.xlu0 %3551
      %3553 = vrot.lane.b32.xlu0 %v3543, 125
      %v3554 = vpop.permute.xlu0 %3553
      %v3555 = vsel %vm1554, %v3550, %v3552
      %v3556 = vsel %vm1554, %v3552, %v3554
      %v3558 = vsel %vm3364, %v3545, 0
      %v3561 = vsel %vm3368, %v3555, 0
      %v3564 = vsel %vm3368, %v3556, 0
      %3566 = vmatpush.bf16.msra.mxu0 0
      %3567 = vmatpush.bf16.msra.mxu0 0
      %3568 = vmatpush.bf16.msra.mxu0 0
      %3569 = vmatpush.bf16.msra.mxu0 0
      %3570 = vmatpush.bf16.msra.mxu0 0
      %3571 = vmatpush.bf16.msra.mxu0 0
      %3572 = vmatpush.bf16.msra.mxu0 0
      %3573 = vmatpush.bf16.msra.mxu0 %v3561
      %3574 = vmatmul.bf16.gmra.mxu0 %v3558
      %v3575 = vpop.f32.mrf.mxu0
      %v3576 = vadd.f32 0.0, %v3575
      %v3577 = vpop.f32.mrf.mxu0
      %3578 = vdwg.mxu0
      %3579 = vmatpush.bf16.msra.mxu0 0
      %3580 = vmatpush.bf16.msra.mxu0 0
      %3581 = vmatpush.bf16.msra.mxu0 0
      %3582 = vmatpush.bf16.msra.mxu0 0
      %3583 = vmatpush.bf16.msra.mxu0 0
      %3584 = vmatpush.bf16.msra.mxu0 0
      %3585 = vmatpush.bf16.msra.mxu0 0
      %3586 = vmatpush.bf16.msra.mxu0 %v3564
      %3587 = vmatmul.bf16.gmra.mxu0 %v3558
      %v3588 = vpop.f32.mrf.mxu0
      %v3589 = vadd.f32 0.0, %v3588
      %v3590 = vpop.f32.mrf.mxu0
      %3591 = vdwg.mxu0
      %v3592 = vadd.f32 %v3516, %v3576
      %v3593 = vadd.f32 %v3517, %v3589
      %v3594 = vld [vmem:[%s12] sm:$0x44]
      %v3596 = vunpack.c.l.b16 %v3594
      %v3597 = vunpack.c.h.b16 %v3594
      %v3598 = vpack.c.b16 %v3596, %v3596
      %v3599 = vpack.c.b16 %v3597, %v3597
      %v3601 = vpack.i.b16 %v3598, %v3598
      %v3603 = vperm.slane %v3601, 2
      %v3605 = vpack.i.b16 %v3599, %v3599
      %v3607 = vperm.slane %v3605, 2
      %v3608 = vunpack.c.l.bf16 %v3603
      %v3609 = vunpack.c.l.bf16 %v3607
      %3612 = vrot.lane.b32.xlu0 %v3608, 4
      %v3613 = vpop.permute.xlu0 %3612
      %3614 = vrot.lane.b32.xlu0 %v3609, 4
      %v3615 = vpop.permute.xlu0 %3614
      %v3616 = vsel %vm1612, %v3613, %v3615
      %v3620 = vmul.f32 %v3315, %v3613
      %v3621 = vmul.f32 %v3316, %v3616
      %v3622 = vmul.f32 %v3332, %v3615
      %v3623 = vpack.c.bf16 %v3620, %v3620
      %v3624 = vpack.c.bf16 %v3621, %v3621
      %v3625 = vpack.c.bf16 %v3622, %v3622
      %s3626 = scalar_lea.vmem %s10, 8
      %v3627 = vld [vmem:[%s3626] sm:$0x3]
      %3631 = vrot.lane.b32.xlu0 %v3623, 124
      %v3632 = vpop.permute.xlu0 %3631
      %3633 = vrot.lane.b32.xlu0 %v3624, 124
      %v3634 = vpop.permute.xlu0 %3633
      %3635 = vrot.lane.b32.xlu0 %v3625, 124
      %v3636 = vpop.permute.xlu0 %3635
      %v3637 = vsel %vm1637, %v3632, %v3634
      %v3638 = vsel %vm1637, %v3634, %v3636
      %v3640 = vsel %vm3364, %v3627, 0
      %v3643 = vsel %vm3368, %v3637, 0
      %v3646 = vsel %vm3368, %v3638, 0
      %3648 = vmatpush.bf16.msra.mxu0 0
      %3649 = vmatpush.bf16.msra.mxu0 0
      %3650 = vmatpush.bf16.msra.mxu0 0
      %3651 = vmatpush.bf16.msra.mxu0 0
      %3652 = vmatpush.bf16.msra.mxu0 0
      %3653 = vmatpush.bf16.msra.mxu0 0
      %3654 = vmatpush.bf16.msra.mxu0 0
      %3655 = vmatpush.bf16.msra.mxu0 %v3643
      %3656 = vmatmul.bf16.gmra.mxu0 %v3640
      %v3657 = vpop.f32.mrf.mxu0
      %v3658 = vadd.f32 0.0, %v3657
      %v3659 = vpop.f32.mrf.mxu0
      %3660 = vdwg.mxu0
      %3661 = vmatpush.bf16.msra.mxu0 0
      %3662 = vmatpush.bf16.msra.mxu0 0
      %3663 = vmatpush.bf16.msra.mxu0 0
      %3664 = vmatpush.bf16.msra.mxu0 0
      %3665 = vmatpush.bf16.msra.mxu0 0
      %3666 = vmatpush.bf16.msra.mxu0 0
      %3667 = vmatpush.bf16.msra.mxu0 0
      %3668 = vmatpush.bf16.msra.mxu0 %v3646
      %3669 = vmatmul.bf16.gmra.mxu0 %v3640
      %v3670 = vpop.f32.mrf.mxu0
      %v3671 = vadd.f32 0.0, %v3670
      %v3672 = vpop.f32.mrf.mxu0
      %3673 = vdwg.mxu0
      %v3674 = vadd.f32 %v3592, %v3658
      %v3675 = vadd.f32 %v3593, %v3671
      %v3676 = vshrl.u32 %v3598, 16
      %v3677 = vpack.i.b16 %v3676, %v3676
      %v3679 = vperm.slane %v3677, 2
      %v3680 = vshrl.u32 %v3599, 16
      %v3681 = vpack.i.b16 %v3680, %v3680
      %v3683 = vperm.slane %v3681, 2
      %v3684 = vunpack.c.l.bf16 %v3679
      %v3685 = vunpack.c.l.bf16 %v3683
      %3688 = vrot.lane.b32.xlu0 %v3684, 5
      %v3689 = vpop.permute.xlu0 %3688
      %3690 = vrot.lane.b32.xlu0 %v3685, 5
      %v3691 = vpop.permute.xlu0 %3690
      %vm3692 = vcmask 39936
      %v3693 = vsel %vm3692, %v3689, %v3691
      %v3697 = vmul.f32 %v3315, %v3689
      %v3698 = vmul.f32 %v3316, %v3693
      %v3699 = vmul.f32 %v3332, %v3691
      %v3700 = vpack.c.bf16 %v3697, %v3697
      %v3701 = vpack.c.bf16 %v3698, %v3698
      %v3702 = vpack.c.bf16 %v3699, %v3699
      %s3703 = scalar_lea.vmem %s10, 10
      %v3704 = vld [vmem:[%s3703] sm:$0x3]
      %3708 = vrot.lane.b32.xlu0 %v3700, 123
      %v3709 = vpop.permute.xlu0 %3708
      %3710 = vrot.lane.b32.xlu0 %v3701, 123
      %v3711 = vpop.permute.xlu0 %3710
      %3712 = vrot.lane.b32.xlu0 %v3702, 123
      %v3713 = vpop.permute.xlu0 %3712
      %vm3714 = vcmask 1006592
      %v3715 = vsel %vm3714, %v3709, %v3711
      %v3716 = vsel %vm3714, %v3711, %v3713
      %v3718 = vsel %vm3364, %v3704, 0
      %v3721 = vsel %vm3368, %v3715, 0
      %v3724 = vsel %vm3368, %v3716, 0
      %3726 = vmatpush.bf16.msra.mxu0 0
      %3727 = vmatpush.bf16.msra.mxu0 0
      %3728 = vmatpush.bf16.msra.mxu0 0
      %3729 = vmatpush.bf16.msra.mxu0 0
      %3730 = vmatpush.bf16.msra.mxu0 0
      %3731 = vmatpush.bf16.msra.mxu0 0
      %3732 = vmatpush.bf16.msra.mxu0 0
      %3733 = vmatpush.bf16.msra.mxu0 %v3721
      %3734 = vmatmul.bf16.gmra.mxu0 %v3718
      %v3735 = vpop.f32.mrf.mxu0
      %v3736 = vadd.f32 0.0, %v3735
      %v3737 = vpop.f32.mrf.mxu0
      %3738 = vdwg.mxu0
      %3739 = vmatpush.bf16.msra.mxu0 0
      %3740 = vmatpush.bf16.msra.mxu0 0
      %3741 = vmatpush.bf16.msra.mxu0 0
      %3742 = vmatpush.bf16.msra.mxu0 0
      %3743 = vmatpush.bf16.msra.mxu0 0
      %3744 = vmatpush.bf16.msra.mxu0 0
      %3745 = vmatpush.bf16.msra.mxu0 0
      %3746 = vmatpush.bf16.msra.mxu0 %v3724
      %3747 = vmatmul.bf16.gmra.mxu0 %v3718
      %v3748 = vpop.f32.mrf.mxu0
      %v3749 = vadd.f32 0.0, %v3748
      %v3750 = vpop.f32.mrf.mxu0
      %3751 = vdwg.mxu0
      %v3752 = vadd.f32 %v3674, %v3736
      %v3753 = vadd.f32 %v3675, %v3749
      %v3754 = vld [vmem:[%s12] sm:$0x88]
      %v3756 = vunpack.c.l.b16 %v3754
      %v3757 = vunpack.c.h.b16 %v3754
      %v3758 = vpack.c.b16 %v3756, %v3756
      %v3759 = vpack.c.b16 %v3757, %v3757
      %v3761 = vpack.i.b16 %v3758, %v3758
      %v3763 = vperm.slane %v3761, 3
      %v3765 = vpack.i.b16 %v3759, %v3759
      %v3767 = vperm.slane %v3765, 3
      %v3768 = vunpack.c.l.bf16 %v3763
      %v3769 = vunpack.c.l.bf16 %v3767
      %3772 = vrot.lane.b32.xlu0 %v3768, 6
      %v3773 = vpop.permute.xlu0 %3772
      %3774 = vrot.lane.b32.xlu0 %v3769, 6
      %v3775 = vpop.permute.xlu0 %3774
      %vm3776 = vcmask 48128
      %v3777 = vsel %vm3776, %v3773, %v3775
      %v3781 = vmul.f32 %v3315, %v3773
      %v3782 = vmul.f32 %v3316, %v3777
      %v3783 = vmul.f32 %v3332, %v3775
      %v3784 = vpack.c.bf16 %v3781, %v3781
      %v3785 = vpack.c.bf16 %v3782, %v3782
      %v3786 = vpack.c.bf16 %v3783, %v3783
      %s3787 = scalar_lea.vmem %s10, 12
      %v3788 = vld [vmem:[%s3787] sm:$0x3]
      %3792 = vrot.lane.b32.xlu0 %v3784, 122
      %v3793 = vpop.permute.xlu0 %3792
      %3794 = vrot.lane.b32.xlu0 %v3785, 122
      %v3795 = vpop.permute.xlu0 %3794
      %3796 = vrot.lane.b32.xlu0 %v3786, 122
      %v3797 = vpop.permute.xlu0 %3796
      %vm3798 = vcmask 998400
      %v3799 = vsel %vm3798, %v3793, %v3795
      %v3800 = vsel %vm3798, %v3795, %v3797
      %v3802 = vsel %vm3364, %v3788, 0
      %v3805 = vsel %vm3368, %v3799, 0
      %v3808 = vsel %vm3368, %v3800, 0
      %3810 = vmatpush.bf16.msra.mxu0 0
      %3811 = vmatpush.bf16.msra.mxu0 0
      %3812 = vmatpush.bf16.msra.mxu0 0
      %3813 = vmatpush.bf16.msra.mxu0 0
      %3814 = vmatpush.bf16.msra.mxu0 0
      %3815 = vmatpush.bf16.msra.mxu0 0
      %3816 = vmatpush.bf16.msra.mxu0 0
      %3817 = vmatpush.bf16.msra.mxu0 %v3805
      %3818 = vmatmul.bf16.gmra.mxu0 %v3802
      %v3819 = vpop.f32.mrf.mxu0
      %v3820 = vadd.f32 0.0, %v3819
      %v3821 = vpop.f32.mrf.mxu0
      %3822 = vdwg.mxu0
      %3823 = vmatpush.bf16.msra.mxu0 0
      %3824 = vmatpush.bf16.msra.mxu0 0
      %3825 = vmatpush.bf16.msra.mxu0 0
      %3826 = vmatpush.bf16.msra.mxu0 0
      %3827 = vmatpush.bf16.msra.mxu0 0
      %3828 = vmatpush.bf16.msra.mxu0 0
      %3829 = vmatpush.bf16.msra.mxu0 0
      %3830 = vmatpush.bf16.msra.mxu0 %v3808
      %3831 = vmatmul.bf16.gmra.mxu0 %v3802
      %v3832 = vpop.f32.mrf.mxu0
      %v3833 = vadd.f32 0.0, %v3832
      %v3834 = vpop.f32.mrf.mxu0
      %3835 = vdwg.mxu0
      %v3836 = vadd.f32 %v3752, %v3820
      %v3837 = vadd.f32 %v3753, %v3833
      %v3838 = vshrl.u32 %v3758, 16
      %v3839 = vpack.i.b16 %v3838, %v3838
      %v3841 = vperm.slane %v3839, 3
      %v3842 = vshrl.u32 %v3759, 16
      %v3843 = vpack.i.b16 %v3842, %v3842
      %v3845 = vperm.slane %v3843, 3
      %v3846 = vunpack.c.l.bf16 %v3841
      %v3847 = vunpack.c.l.bf16 %v3845
      %3850 = vrot.lane.b32.xlu0 %v3846, 16
      %v3851 = vpop.permute.xlu0 %3850
      %3852 = vrot.lane.b32.xlu0 %v3847, 16
      %v3853 = vpop.permute.xlu0 %3852
      %v3854 = vsel %vm497, %v3851, %v3853
      %v3858 = vmul.f32 %v3315, %v3851
      %v3859 = vmul.f32 %v3316, %v3854
      %v3860 = vmul.f32 %v3332, %v3853
      %v3861 = vpack.c.bf16 %v3858, %v3858
      %v3862 = vpack.c.bf16 %v3859, %v3859
      %v3863 = vpack.c.bf16 %v3860, %v3860
      %s3864 = scalar_lea.vmem %s10, 14
      %v3865 = vld [vmem:[%s3864] sm:$0x3]
      %3869 = vrot.lane.b32.xlu0 %v3861, 112
      %v3870 = vpop.permute.xlu0 %3869
      %3871 = vrot.lane.b32.xlu0 %v3862, 112
      %v3872 = vpop.permute.xlu0 %3871
      %3873 = vrot.lane.b32.xlu0 %v3863, 112
      %v3874 = vpop.permute.xlu0 %3873
      %v3875 = vsel %vm1713, %v3870, %v3872
      %v3876 = vsel %vm1713, %v3872, %v3874
      %v3878 = vsel %vm3364, %v3865, 0
      %v3881 = vsel %vm3368, %v3875, 0
      %v3884 = vsel %vm3368, %v3876, 0
      %3886 = vmatpush.bf16.msra.mxu0 0
      %3887 = vmatpush.bf16.msra.mxu0 0
      %3888 = vmatpush.bf16.msra.mxu0 0
      %3889 = vmatpush.bf16.msra.mxu0 0
      %3890 = vmatpush.bf16.msra.mxu0 0
      %3891 = vmatpush.bf16.msra.mxu0 0
      %3892 = vmatpush.bf16.msra.mxu0 0
      %3893 = vmatpush.bf16.msra.mxu0 %v3881
      %3894 = vmatmul.bf16.gmra.mxu0 %v3878
      %v3895 = vpop.f32.mrf.mxu0
      %v3896 = vadd.f32 0.0, %v3895
      %v3897 = vpop.f32.mrf.mxu0
      %3898 = vdwg.mxu0
      %3899 = vmatpush.bf16.msra.mxu0 0
      %3900 = vmatpush.bf16.msra.mxu0 0
      %3901 = vmatpush.bf16.msra.mxu0 0
      %3902 = vmatpush.bf16.msra.mxu0 0
      %3903 = vmatpush.bf16.msra.mxu0 0
      %3904 = vmatpush.bf16.msra.mxu0 0
      %3905 = vmatpush.bf16.msra.mxu0 0
      %3906 = vmatpush.bf16.msra.mxu0 %v3884
      %3907 = vmatmul.bf16.gmra.mxu0 %v3878
      %v3908 = vpop.f32.mrf.mxu0
      %v3909 = vadd.f32 0.0, %v3908
      %v3910 = vpop.f32.mrf.mxu0
      %3911 = vdwg.mxu0
      %v3912 = vadd.f32 %v3836, %v3896
      %v3913 = vadd.f32 %v3837, %v3909
      %v3914 = vld [vmem:[%s12 + $0x8] sm:$0x11]
      %v3916 = vunpack.c.l.b16 %v3914
      %v3917 = vunpack.c.h.b16 %v3914
      %v3918 = vpack.c.b16 %v3916, %v3916
      %v3919 = vpack.c.b16 %v3917, %v3917
      %v3921 = vpack.i.b16 %v3918, %v3918
      %v3923 = vperm.slane %v3921, 0
      %v3925 = vpack.i.b16 %v3919, %v3919
      %v3927 = vperm.slane %v3925, 0
      %v3928 = vunpack.c.l.bf16 %v3923
      %v3929 = vunpack.c.l.bf16 %v3927
      %3932 = vrot.lane.b32.xlu0 %v3928, 17
      %v3933 = vpop.permute.xlu0 %3932
      %3934 = vrot.lane.b32.xlu0 %v3929, 17
      %v3935 = vpop.permute.xlu0 %3934
      %v3936 = vsel %vm1771, %v3933, %v3935
      %v3940 = vmul.f32 %v3315, %v3933
      %v3941 = vmul.f32 %v3316, %v3936
      %v3942 = vmul.f32 %v3332, %v3935
      %v3943 = vpack.c.bf16 %v3940, %v3940
      %v3944 = vpack.c.bf16 %v3941, %v3941
      %v3945 = vpack.c.bf16 %v3942, %v3942
      %s3946 = scalar_lea.vmem %s10, 16
      %v3947 = vld [vmem:[%s3946] sm:$0x3]
      %3951 = vrot.lane.b32.xlu0 %v3943, 111
      %v3952 = vpop.permute.xlu0 %3951
      %3953 = vrot.lane.b32.xlu0 %v3944, 111
      %v3954 = vpop.permute.xlu0 %3953
      %3955 = vrot.lane.b32.xlu0 %v3945, 111
      %v3956 = vpop.permute.xlu0 %3955
      %v3957 = vsel %vm1796, %v3952, %v3954
      %v3958 = vsel %vm1796, %v3954, %v3956
      %v3960 = vsel %vm3364, %v3947, 0
      %v3963 = vsel %vm3368, %v3957, 0
      %v3966 = vsel %vm3368, %v3958, 0
      %3968 = vmatpush.bf16.msra.mxu0 0
      %3969 = vmatpush.bf16.msra.mxu0 0
      %3970 = vmatpush.bf16.msra.mxu0 0
      %3971 = vmatpush.bf16.msra.mxu0 0
      %3972 = vmatpush.bf16.msra.mxu0 0
      %3973 = vmatpush.bf16.msra.mxu0 0
      %3974 = vmatpush.bf16.msra.mxu0 0
      %3975 = vmatpush.bf16.msra.mxu0 %v3963
      %3976 = vmatmul.bf16.gmra.mxu0 %v3960
      %v3977 = vpop.f32.mrf.mxu0
      %v3978 = vadd.f32 0.0, %v3977
      %v3979 = vpop.f32.mrf.mxu0
      %3980 = vdwg.mxu0
      %3981 = vmatpush.bf16.msra.mxu0 0
      %3982 = vmatpush.bf16.msra.mxu0 0
      %3983 = vmatpush.bf16.msra.mxu0 0
      %3984 = vmatpush.bf16.msra.mxu0 0
      %3985 = vmatpush.bf16.msra.mxu0 0
      %3986 = vmatpush.bf16.msra.mxu0 0
      %3987 = vmatpush.bf16.msra.mxu0 0
      %3988 = vmatpush.bf16.msra.mxu0 %v3966
      %3989 = vmatmul.bf16.gmra.mxu0 %v3960
      %v3990 = vpop.f32.mrf.mxu0
      %v3991 = vadd.f32 0.0, %v3990
      %v3992 = vpop.f32.mrf.mxu0
      %3993 = vdwg.mxu0
      %v3994 = vadd.f32 %v3912, %v3978
      %v3995 = vadd.f32 %v3913, %v3991
      %v3996 = vshrl.u32 %v3918, 16
      %v3997 = vpack.i.b16 %v3996, %v3996
      %v3999 = vperm.slane %v3997, 0
      %v4000 = vshrl.u32 %v3919, 16
      %v4001 = vpack.i.b16 %v4000, %v4000
      %v4003 = vperm.slane %v4001, 0
      %v4004 = vunpack.c.l.bf16 %v3999
      %v4005 = vunpack.c.l.bf16 %v4003
      %4008 = vrot.lane.b32.xlu0 %v4004, 18
      %v4009 = vpop.permute.xlu0 %4008
      %4010 = vrot.lane.b32.xlu0 %v4005, 18
      %v4011 = vpop.permute.xlu0 %4010
      %v4012 = vsel %vm1848, %v4009, %v4011
      %v4016 = vmul.f32 %v3315, %v4009
      %v4017 = vmul.f32 %v3316, %v4012
      %v4018 = vmul.f32 %v3332, %v4011
      %v4019 = vpack.c.bf16 %v4016, %v4016
      %v4020 = vpack.c.bf16 %v4017, %v4017
      %v4021 = vpack.c.bf16 %v4018, %v4018
      %s4022 = scalar_lea.vmem %s10, 18
      %v4023 = vld [vmem:[%s4022] sm:$0x3]
      %4027 = vrot.lane.b32.xlu0 %v4019, 110
      %v4028 = vpop.permute.xlu0 %4027
      %4029 = vrot.lane.b32.xlu0 %v4020, 110
      %v4030 = vpop.permute.xlu0 %4029
      %4031 = vrot.lane.b32.xlu0 %v4021, 110
      %v4032 = vpop.permute.xlu0 %4031
      %v4033 = vsel %vm1873, %v4028, %v4030
      %v4034 = vsel %vm1873, %v4030, %v4032
      %v4036 = vsel %vm3364, %v4023, 0
      %v4039 = vsel %vm3368, %v4033, 0
      %v4042 = vsel %vm3368, %v4034, 0
      %4044 = vmatpush.bf16.msra.mxu0 0
      %4045 = vmatpush.bf16.msra.mxu0 0
      %4046 = vmatpush.bf16.msra.mxu0 0
      %4047 = vmatpush.bf16.msra.mxu0 0
      %4048 = vmatpush.bf16.msra.mxu0 0
      %4049 = vmatpush.bf16.msra.mxu0 0
      %4050 = vmatpush.bf16.msra.mxu0 0
      %4051 = vmatpush.bf16.msra.mxu0 %v4039
      %4052 = vmatmul.bf16.gmra.mxu0 %v4036
      %v4053 = vpop.f32.mrf.mxu0
      %v4054 = vadd.f32 0.0, %v4053
      %v4055 = vpop.f32.mrf.mxu0
      %4056 = vdwg.mxu0
      %4057 = vmatpush.bf16.msra.mxu0 0
      %4058 = vmatpush.bf16.msra.mxu0 0
      %4059 = vmatpush.bf16.msra.mxu0 0
      %4060 = vmatpush.bf16.msra.mxu0 0
      %4061 = vmatpush.bf16.msra.mxu0 0
      %4062 = vmatpush.bf16.msra.mxu0 0
      %4063 = vmatpush.bf16.msra.mxu0 0
      %4064 = vmatpush.bf16.msra.mxu0 %v4042
      %4065 = vmatmul.bf16.gmra.mxu0 %v4036
      %v4066 = vpop.f32.mrf.mxu0
      %v4067 = vadd.f32 0.0, %v4066
      %v4068 = vpop.f32.mrf.mxu0
      %4069 = vdwg.mxu0
      %v4070 = vadd.f32 %v3994, %v4054
      %v4071 = vadd.f32 %v3995, %v4067
      %v4072 = vld [vmem:[%s12 + $0x8] sm:$0x22]
      %v4074 = vunpack.c.l.b16 %v4072
      %v4075 = vunpack.c.h.b16 %v4072
      %v4076 = vpack.c.b16 %v4074, %v4074
      %v4077 = vpack.c.b16 %v4075, %v4075
      %v4079 = vpack.i.b16 %v4076, %v4076
      %v4081 = vperm.slane %v4079, 1
      %v4083 = vpack.i.b16 %v4077, %v4077
      %v4085 = vperm.slane %v4083, 1
      %v4086 = vunpack.c.l.bf16 %v4081
      %v4087 = vunpack.c.l.bf16 %v4085
      %4090 = vrot.lane.b32.xlu0 %v4086, 19
      %v4091 = vpop.permute.xlu0 %4090
      %4092 = vrot.lane.b32.xlu0 %v4087, 19
      %v4093 = vpop.permute.xlu0 %4092
      %v4094 = vsel %vm1931, %v4091, %v4093
      %v4098 = vmul.f32 %v3315, %v4091
      %v4099 = vmul.f32 %v3316, %v4094
      %v4100 = vmul.f32 %v3332, %v4093
      %v4101 = vpack.c.bf16 %v4098, %v4098
      %v4102 = vpack.c.bf16 %v4099, %v4099
      %v4103 = vpack.c.bf16 %v4100, %v4100
      %s4104 = scalar_lea.vmem %s10, 20
      %v4105 = vld [vmem:[%s4104] sm:$0x3]
      %4109 = vrot.lane.b32.xlu0 %v4101, 109
      %v4110 = vpop.permute.xlu0 %4109
      %4111 = vrot.lane.b32.xlu0 %v4102, 109
      %v4112 = vpop.permute.xlu0 %4111
      %4113 = vrot.lane.b32.xlu0 %v4103, 109
      %v4114 = vpop.permute.xlu0 %4113
      %v4115 = vsel %vm1956, %v4110, %v4112
      %v4116 = vsel %vm1956, %v4112, %v4114
      %v4118 = vsel %vm3364, %v4105, 0
      %v4121 = vsel %vm3368, %v4115, 0
      %v4124 = vsel %vm3368, %v4116, 0
      %4126 = vmatpush.bf16.msra.mxu0 0
      %4127 = vmatpush.bf16.msra.mxu0 0
      %4128 = vmatpush.bf16.msra.mxu0 0
      %4129 = vmatpush.bf16.msra.mxu0 0
      %4130 = vmatpush.bf16.msra.mxu0 0
      %4131 = vmatpush.bf16.msra.mxu0 0
      %4132 = vmatpush.bf16.msra.mxu0 0
      %4133 = vmatpush.bf16.msra.mxu0 %v4121
      %4134 = vmatmul.bf16.gmra.mxu0 %v4118
      %v4135 = vpop.f32.mrf.mxu0
      %v4136 = vadd.f32 0.0, %v4135
      %v4137 = vpop.f32.mrf.mxu0
      %4138 = vdwg.mxu0
      %4139 = vmatpush.bf16.msra.mxu0 0
      %4140 = vmatpush.bf16.msra.mxu0 0
      %4141 = vmatpush.bf16.msra.mxu0 0
      %4142 = vmatpush.bf16.msra.mxu0 0
      %4143 = vmatpush.bf16.msra.mxu0 0
      %4144 = vmatpush.bf16.msra.mxu0 0
      %4145 = vmatpush.bf16.msra.mxu0 0
      %4146 = vmatpush.bf16.msra.mxu0 %v4124
      %4147 = vmatmul.bf16.gmra.mxu0 %v4118
      %v4148 = vpop.f32.mrf.mxu0
      %v4149 = vadd.f32 0.0, %v4148
      %v4150 = vpop.f32.mrf.mxu0
      %4151 = vdwg.mxu0
      %v4152 = vadd.f32 %v4070, %v4136
      %v4153 = vadd.f32 %v4071, %v4149
      %v4154 = vshrl.u32 %v4076, 16
      %v4155 = vpack.i.b16 %v4154, %v4154
      %v4157 = vperm.slane %v4155, 1
      %v4158 = vshrl.u32 %v4077, 16
      %v4159 = vpack.i.b16 %v4158, %v4158
      %v4161 = vperm.slane %v4159, 1
      %v4162 = vunpack.c.l.bf16 %v4157
      %v4163 = vunpack.c.l.bf16 %v4161
      %4166 = vrot.lane.b32.xlu0 %v4162, 20
      %v4167 = vpop.permute.xlu0 %4166
      %4168 = vrot.lane.b32.xlu0 %v4163, 20
      %v4169 = vpop.permute.xlu0 %4168
      %v4170 = vsel %vm2008, %v4167, %v4169
      %v4174 = vmul.f32 %v3315, %v4167
      %v4175 = vmul.f32 %v3316, %v4170
      %v4176 = vmul.f32 %v3332, %v4169
      %v4177 = vpack.c.bf16 %v4174, %v4174
      %v4178 = vpack.c.bf16 %v4175, %v4175
      %v4179 = vpack.c.bf16 %v4176, %v4176
      %s4180 = scalar_lea.vmem %s10, 22
      %v4181 = vld [vmem:[%s4180] sm:$0x3]
      %4185 = vrot.lane.b32.xlu0 %v4177, 108
      %v4186 = vpop.permute.xlu0 %4185
      %4187 = vrot.lane.b32.xlu0 %v4178, 108
      %v4188 = vpop.permute.xlu0 %4187
      %4189 = vrot.lane.b32.xlu0 %v4179, 108
      %v4190 = vpop.permute.xlu0 %4189
      %v4191 = vsel %vm2033, %v4186, %v4188
      %v4192 = vsel %vm2033, %v4188, %v4190
      %v4194 = vsel %vm3364, %v4181, 0
      %v4197 = vsel %vm3368, %v4191, 0
      %v4200 = vsel %vm3368, %v4192, 0
      %4202 = vmatpush.bf16.msra.mxu0 0
      %4203 = vmatpush.bf16.msra.mxu0 0
      %4204 = vmatpush.bf16.msra.mxu0 0
      %4205 = vmatpush.bf16.msra.mxu0 0
      %4206 = vmatpush.bf16.msra.mxu0 0
      %4207 = vmatpush.bf16.msra.mxu0 0
      %4208 = vmatpush.bf16.msra.mxu0 0
      %4209 = vmatpush.bf16.msra.mxu0 %v4197
      %4210 = vmatmul.bf16.gmra.mxu0 %v4194
      %v4211 = vpop.f32.mrf.mxu0
      %v4212 = vadd.f32 0.0, %v4211
      %v4213 = vpop.f32.mrf.mxu0
      %4214 = vdwg.mxu0
      %4215 = vmatpush.bf16.msra.mxu0 0
      %4216 = vmatpush.bf16.msra.mxu0 0
      %4217 = vmatpush.bf16.msra.mxu0 0
      %4218 = vmatpush.bf16.msra.mxu0 0
      %4219 = vmatpush.bf16.msra.mxu0 0
      %4220 = vmatpush.bf16.msra.mxu0 0
      %4221 = vmatpush.bf16.msra.mxu0 0
      %4222 = vmatpush.bf16.msra.mxu0 %v4200
      %4223 = vmatmul.bf16.gmra.mxu0 %v4194
      %v4224 = vpop.f32.mrf.mxu0
      %v4225 = vadd.f32 0.0, %v4224
      %v4226 = vpop.f32.mrf.mxu0
      %4227 = vdwg.mxu0
      %v4228 = vadd.f32 %v4152, %v4212
      %v4229 = vadd.f32 %v4153, %v4225
      %v4230 = vld [vmem:[%s12 + $0x8] sm:$0x44]
      %v4232 = vunpack.c.l.b16 %v4230
      %v4233 = vunpack.c.h.b16 %v4230
      %v4234 = vpack.c.b16 %v4232, %v4232
      %v4235 = vpack.c.b16 %v4233, %v4233
      %v4237 = vpack.i.b16 %v4234, %v4234
      %v4239 = vperm.slane %v4237, 2
      %v4241 = vpack.i.b16 %v4235, %v4235
      %v4243 = vperm.slane %v4241, 2
      %v4244 = vunpack.c.l.bf16 %v4239
      %v4245 = vunpack.c.l.bf16 %v4243
      %4248 = vrot.lane.b32.xlu0 %v4244, 21
      %v4249 = vpop.permute.xlu0 %4248
      %4250 = vrot.lane.b32.xlu0 %v4245, 21
      %v4251 = vpop.permute.xlu0 %4250
      %vm4252 = vcmask 171008
      %v4253 = vsel %vm4252, %v4249, %v4251
      %v4257 = vmul.f32 %v3315, %v4249
      %v4258 = vmul.f32 %v3316, %v4253
      %v4259 = vmul.f32 %v3332, %v4251
      %v4260 = vpack.c.bf16 %v4257, %v4257
      %v4261 = vpack.c.bf16 %v4258, %v4258
      %v4262 = vpack.c.bf16 %v4259, %v4259
      %s4263 = scalar_lea.vmem %s10, 24
      %v4264 = vld [vmem:[%s4263] sm:$0x3]
      %4268 = vrot.lane.b32.xlu0 %v4260, 107
      %v4269 = vpop.permute.xlu0 %4268
      %4270 = vrot.lane.b32.xlu0 %v4261, 107
      %v4271 = vpop.permute.xlu0 %4270
      %4272 = vrot.lane.b32.xlu0 %v4262, 107
      %v4273 = vpop.permute.xlu0 %4272
      %vm4274 = vcmask 875520
      %v4275 = vsel %vm4274, %v4269, %v4271
      %v4276 = vsel %vm4274, %v4271, %v4273
      %v4278 = vsel %vm3364, %v4264, 0
      %v4281 = vsel %vm3368, %v4275, 0
      %v4284 = vsel %vm3368, %v4276, 0
      %4286 = vmatpush.bf16.msra.mxu0 0
      %4287 = vmatpush.bf16.msra.mxu0 0
      %4288 = vmatpush.bf16.msra.mxu0 0
      %4289 = vmatpush.bf16.msra.mxu0 0
      %4290 = vmatpush.bf16.msra.mxu0 0
      %4291 = vmatpush.bf16.msra.mxu0 0
      %4292 = vmatpush.bf16.msra.mxu0 0
      %4293 = vmatpush.bf16.msra.mxu0 %v4281
      %4294 = vmatmul.bf16.gmra.mxu0 %v4278
      %v4295 = vpop.f32.mrf.mxu0
      %v4296 = vadd.f32 0.0, %v4295
      %v4297 = vpop.f32.mrf.mxu0
      %4298 = vdwg.mxu0
      %4299 = vmatpush.bf16.msra.mxu0 0
      %4300 = vmatpush.bf16.msra.mxu0 0
      %4301 = vmatpush.bf16.msra.mxu0 0
      %4302 = vmatpush.bf16.msra.mxu0 0
      %4303 = vmatpush.bf16.msra.mxu0 0
      %4304 = vmatpush.bf16.msra.mxu0 0
      %4305 = vmatpush.bf16.msra.mxu0 0
      %4306 = vmatpush.bf16.msra.mxu0 %v4284
      %4307 = vmatmul.bf16.gmra.mxu0 %v4278
      %v4308 = vpop.f32.mrf.mxu0
      %v4309 = vadd.f32 0.0, %v4308
      %v4310 = vpop.f32.mrf.mxu0
      %4311 = vdwg.mxu0
      %v4312 = vadd.f32 %v4228, %v4296
      %v4313 = vadd.f32 %v4229, %v4309
      %v4314 = vshrl.u32 %v4234, 16
      %v4315 = vpack.i.b16 %v4314, %v4314
      %v4317 = vperm.slane %v4315, 2
      %v4318 = vshrl.u32 %v4235, 16
      %v4319 = vpack.i.b16 %v4318, %v4318
      %v4321 = vperm.slane %v4319, 2
      %v4322 = vunpack.c.l.bf16 %v4317
      %v4323 = vunpack.c.l.bf16 %v4321
      %4326 = vrot.lane.b32.xlu0 %v4322, 22
      %v4327 = vpop.permute.xlu0 %4326
      %4328 = vrot.lane.b32.xlu0 %v4323, 22
      %v4329 = vpop.permute.xlu0 %4328
      %vm4330 = vcmask 179200
      %v4331 = vsel %vm4330, %v4327, %v4329
      %v4335 = vmul.f32 %v3315, %v4327
      %v4336 = vmul.f32 %v3316, %v4331
      %v4337 = vmul.f32 %v3332, %v4329
      %v4338 = vpack.c.bf16 %v4335, %v4335
      %v4339 = vpack.c.bf16 %v4336, %v4336
      %v4340 = vpack.c.bf16 %v4337, %v4337
      %s4341 = scalar_lea.vmem %s10, 26
      %v4342 = vld [vmem:[%s4341] sm:$0x3]
      %4346 = vrot.lane.b32.xlu0 %v4338, 106
      %v4347 = vpop.permute.xlu0 %4346
      %4348 = vrot.lane.b32.xlu0 %v4339, 106
      %v4349 = vpop.permute.xlu0 %4348
      %4350 = vrot.lane.b32.xlu0 %v4340, 106
      %v4351 = vpop.permute.xlu0 %4350
      %vm4352 = vcmask 867328
      %v4353 = vsel %vm4352, %v4347, %v4349
      %v4354 = vsel %vm4352, %v4349, %v4351
      %v4356 = vsel %vm3364, %v4342, 0
      %v4359 = vsel %vm3368, %v4353, 0
      %v4362 = vsel %vm3368, %v4354, 0
      %4364 = vmatpush.bf16.msra.mxu0 0
      %4365 = vmatpush.bf16.msra.mxu0 0
      %4366 = vmatpush.bf16.msra.mxu0 0
      %4367 = vmatpush.bf16.msra.mxu0 0
      %4368 = vmatpush.bf16.msra.mxu0 0
      %4369 = vmatpush.bf16.msra.mxu0 0
      %4370 = vmatpush.bf16.msra.mxu0 0
      %4371 = vmatpush.bf16.msra.mxu0 %v4359
      %4372 = vmatmul.bf16.gmra.mxu0 %v4356
      %v4373 = vpop.f32.mrf.mxu0
      %v4374 = vadd.f32 0.0, %v4373
      %v4375 = vpop.f32.mrf.mxu0
      %4376 = vdwg.mxu0
      %4377 = vmatpush.bf16.msra.mxu0 0
      %4378 = vmatpush.bf16.msra.mxu0 0
      %4379 = vmatpush.bf16.msra.mxu0 0
      %4380 = vmatpush.bf16.msra.mxu0 0
      %4381 = vmatpush.bf16.msra.mxu0 0
      %4382 = vmatpush.bf16.msra.mxu0 0
      %4383 = vmatpush.bf16.msra.mxu0 0
      %4384 = vmatpush.bf16.msra.mxu0 %v4362
      %4385 = vmatmul.bf16.gmra.mxu0 %v4356
      %v4386 = vpop.f32.mrf.mxu0
      %v4387 = vadd.f32 0.0, %v4386
      %v4388 = vpop.f32.mrf.mxu0
      %4389 = vdwg.mxu0
      %v4390 = vadd.f32 %v4312, %v4374
      %v4391 = vadd.f32 %v4313, %v4387
      %v4392 = vld [vmem:[%s12 + $0x8] sm:$0x88]
      %v4394 = vunpack.c.l.b16 %v4392
      %v4395 = vunpack.c.h.b16 %v4392
      %v4396 = vpack.c.b16 %v4394, %v4394
      %v4397 = vpack.c.b16 %v4395, %v4395
      %v4399 = vpack.i.b16 %v4396, %v4396
      %v4401 = vperm.slane %v4399, 3
      %v4403 = vpack.i.b16 %v4397, %v4397
      %v4405 = vperm.slane %v4403, 3
      %v4406 = vunpack.c.l.bf16 %v4401
      %v4407 = vunpack.c.l.bf16 %v4405
      %4410 = vrot.lane.b32.xlu0 %v4406, 32
      %v4411 = vpop.permute.xlu0 %4410
      %4412 = vrot.lane.b32.xlu0 %v4407, 32
      %v4413 = vpop.permute.xlu0 %4412
      %v4414 = vsel %vm2091, %v4411, %v4413
      %v4418 = vmul.f32 %v3315, %v4411
      %v4419 = vmul.f32 %v3316, %v4414
      %v4420 = vmul.f32 %v3332, %v4413
      %v4421 = vpack.c.bf16 %v4418, %v4418
      %v4422 = vpack.c.bf16 %v4419, %v4419
      %v4423 = vpack.c.bf16 %v4420, %v4420
      %s4424 = scalar_lea.vmem %s10, 28
      %v4425 = vld [vmem:[%s4424] sm:$0x3]
      %4429 = vrot.lane.b32.xlu0 %v4421, 96
      %v4430 = vpop.permute.xlu0 %4429
      %4431 = vrot.lane.b32.xlu0 %v4422, 96
      %v4432 = vpop.permute.xlu0 %4431
      %4433 = vrot.lane.b32.xlu0 %v4423, 96
      %v4434 = vpop.permute.xlu0 %4433
      %v4435 = vsel %vm2116, %v4430, %v4432
      %v4436 = vsel %vm2116, %v4432, %v4434
      %v4438 = vsel %vm3364, %v4425, 0
      %v4441 = vsel %vm3368, %v4435, 0
      %v4444 = vsel %vm3368, %v4436, 0
      %4446 = vmatpush.bf16.msra.mxu0 0
      %4447 = vmatpush.bf16.msra.mxu0 0
      %4448 = vmatpush.bf16.msra.mxu0 0
      %4449 = vmatpush.bf16.msra.mxu0 0
      %4450 = vmatpush.bf16.msra.mxu0 0
      %4451 = vmatpush.bf16.msra.mxu0 0
      %4452 = vmatpush.bf16.msra.mxu0 0
      %4453 = vmatpush.bf16.msra.mxu0 %v4441
      %4454 = vmatmul.bf16.gmra.mxu0 %v4438
      %v4455 = vpop.f32.mrf.mxu0
      %v4456 = vadd.f32 0.0, %v4455
      %v4457 = vpop.f32.mrf.mxu0
      %4458 = vdwg.mxu0
      %4459 = vmatpush.bf16.msra.mxu0 0
      %4460 = vmatpush.bf16.msra.mxu0 0
      %4461 = vmatpush.bf16.msra.mxu0 0
      %4462 = vmatpush.bf16.msra.mxu0 0
      %4463 = vmatpush.bf16.msra.mxu0 0
      %4464 = vmatpush.bf16.msra.mxu0 0
      %4465 = vmatpush.bf16.msra.mxu0 0
      %4466 = vmatpush.bf16.msra.mxu0 %v4444
      %4467 = vmatmul.bf16.gmra.mxu0 %v4438
      %v4468 = vpop.f32.mrf.mxu0
      %v4469 = vadd.f32 0.0, %v4468
      %v4470 = vpop.f32.mrf.mxu0
      %4471 = vdwg.mxu0
      %v4472 = vadd.f32 %v4390, %v4456
      %v4473 = vadd.f32 %v4391, %v4469
      %v4474 = vshrl.u32 %v4396, 16
      %v4475 = vpack.i.b16 %v4474, %v4474
      %v4477 = vperm.slane %v4475, 3
      %v4478 = vshrl.u32 %v4397, 16
      %v4479 = vpack.i.b16 %v4478, %v4478
      %v4481 = vperm.slane %v4479, 3
      %v4482 = vunpack.c.l.bf16 %v4477
      %v4483 = vunpack.c.l.bf16 %v4481
      %4486 = vrot.lane.b32.xlu0 %v4482, 33
      %v4487 = vpop.permute.xlu0 %4486
      %4488 = vrot.lane.b32.xlu0 %v4483, 33
      %v4489 = vpop.permute.xlu0 %4488
      %v4490 = vsel %vm2168, %v4487, %v4489
      %v4494 = vmul.f32 %v3315, %v4487
      %v4495 = vmul.f32 %v3316, %v4490
      %v4496 = vmul.f32 %v3332, %v4489
      %v4497 = vpack.c.bf16 %v4494, %v4494
      %v4498 = vpack.c.bf16 %v4495, %v4495
      %v4499 = vpack.c.bf16 %v4496, %v4496
      %s4500 = scalar_lea.vmem %s10, 30
      %v4501 = vld [vmem:[%s4500] sm:$0x3]
      %4505 = vrot.lane.b32.xlu0 %v4497, 95
      %v4506 = vpop.permute.xlu0 %4505
      %4507 = vrot.lane.b32.xlu0 %v4498, 95
      %v4508 = vpop.permute.xlu0 %4507
      %4509 = vrot.lane.b32.xlu0 %v4499, 95
      %v4510 = vpop.permute.xlu0 %4509
      %v4511 = vsel %vm2193, %v4506, %v4508
      %v4512 = vsel %vm2193, %v4508, %v4510
      %v4514 = vsel %vm3364, %v4501, 0
      %v4517 = vsel %vm3368, %v4511, 0
      %v4520 = vsel %vm3368, %v4512, 0
      %4522 = vmatpush.bf16.msra.mxu0 0
      %4523 = vmatpush.bf16.msra.mxu0 0
      %4524 = vmatpush.bf16.msra.mxu0 0
      %4525 = vmatpush.bf16.msra.mxu0 0
      %4526 = vmatpush.bf16.msra.mxu0 0
      %4527 = vmatpush.bf16.msra.mxu0 0
      %4528 = vmatpush.bf16.msra.mxu0 0
      %4529 = vmatpush.bf16.msra.mxu0 %v4517
      %4530 = vmatmul.bf16.gmra.mxu0 %v4514
      %v4531 = vpop.f32.mrf.mxu0
      %v4532 = vadd.f32 0.0, %v4531
      %v4533 = vpop.f32.mrf.mxu0
      %4534 = vdwg.mxu0
      %4535 = vmatpush.bf16.msra.mxu0 0
      %4536 = vmatpush.bf16.msra.mxu0 0
      %4537 = vmatpush.bf16.msra.mxu0 0
      %4538 = vmatpush.bf16.msra.mxu0 0
      %4539 = vmatpush.bf16.msra.mxu0 0
      %4540 = vmatpush.bf16.msra.mxu0 0
      %4541 = vmatpush.bf16.msra.mxu0 0
      %4542 = vmatpush.bf16.msra.mxu0 %v4520
      %4543 = vmatmul.bf16.gmra.mxu0 %v4514
      %v4544 = vpop.f32.mrf.mxu0
      %v4545 = vadd.f32 0.0, %v4544
      %v4546 = vpop.f32.mrf.mxu0
      %4547 = vdwg.mxu0
      %v4548 = vadd.f32 %v4472, %v4532
      %v4549 = vadd.f32 %v4473, %v4545
      %v4550 = vld [vmem:[%s12 + $0x10] sm:$0x11]
      %v4552 = vunpack.c.l.b16 %v4550
      %v4553 = vunpack.c.h.b16 %v4550
      %v4554 = vpack.c.b16 %v4552, %v4552
      %v4555 = vpack.c.b16 %v4553, %v4553
      %v4557 = vpack.i.b16 %v4554, %v4554
      %v4559 = vperm.slane %v4557, 0
      %v4561 = vpack.i.b16 %v4555, %v4555
      %v4563 = vperm.slane %v4561, 0
      %v4564 = vunpack.c.l.bf16 %v4559
      %v4565 = vunpack.c.l.bf16 %v4563
      %4568 = vrot.lane.b32.xlu0 %v4564, 34
      %v4569 = vpop.permute.xlu0 %4568
      %4570 = vrot.lane.b32.xlu0 %v4565, 34
      %v4571 = vpop.permute.xlu0 %4570
      %v4572 = vsel %vm1290, %v4569, %v4571
      %v4576 = vmul.f32 %v3315, %v4569
      %v4577 = vmul.f32 %v3316, %v4572
      %v4578 = vmul.f32 %v3332, %v4571
      %v4579 = vpack.c.bf16 %v4576, %v4576
      %v4580 = vpack.c.bf16 %v4577, %v4577
      %v4581 = vpack.c.bf16 %v4578, %v4578
      %s4582 = scalar_lea.vmem %s10, 32
      %v4583 = vld [vmem:[%s4582] sm:$0x3]
      %4587 = vrot.lane.b32.xlu0 %v4579, 94
      %v4588 = vpop.permute.xlu0 %4587
      %4589 = vrot.lane.b32.xlu0 %v4580, 94
      %v4590 = vpop.permute.xlu0 %4589
      %4591 = vrot.lane.b32.xlu0 %v4581, 94
      %v4592 = vpop.permute.xlu0 %4591
      %v4593 = vsel %vm2275, %v4588, %v4590
      %v4594 = vsel %vm2275, %v4590, %v4592
      %v4596 = vsel %vm3364, %v4583, 0
      %v4599 = vsel %vm3368, %v4593, 0
      %v4602 = vsel %vm3368, %v4594, 0
      %4604 = vmatpush.bf16.msra.mxu0 0
      %4605 = vmatpush.bf16.msra.mxu0 0
      %4606 = vmatpush.bf16.msra.mxu0 0
      %4607 = vmatpush.bf16.msra.mxu0 0
      %4608 = vmatpush.bf16.msra.mxu0 0
      %4609 = vmatpush.bf16.msra.mxu0 0
      %4610 = vmatpush.bf16.msra.mxu0 0
      %4611 = vmatpush.bf16.msra.mxu0 %v4599
      %4612 = vmatmul.bf16.gmra.mxu0 %v4596
      %v4613 = vpop.f32.mrf.mxu0
      %v4614 = vadd.f32 0.0, %v4613
      %v4615 = vpop.f32.mrf.mxu0
      %4616 = vdwg.mxu0
      %4617 = vmatpush.bf16.msra.mxu0 0
      %4618 = vmatpush.bf16.msra.mxu0 0
      %4619 = vmatpush.bf16.msra.mxu0 0
      %4620 = vmatpush.bf16.msra.mxu0 0
      %4621 = vmatpush.bf16.msra.mxu0 0
      %4622 = vmatpush.bf16.msra.mxu0 0
      %4623 = vmatpush.bf16.msra.mxu0 0
      %4624 = vmatpush.bf16.msra.mxu0 %v4602
      %4625 = vmatmul.bf16.gmra.mxu0 %v4596
      %v4626 = vpop.f32.mrf.mxu0
      %v4627 = vadd.f32 0.0, %v4626
      %v4628 = vpop.f32.mrf.mxu0
      %4629 = vdwg.mxu0
      %v4630 = vadd.f32 %v4548, %v4614
      %v4631 = vadd.f32 %v4549, %v4627
      %v4632 = vshrl.u32 %v4554, 16
      %v4633 = vpack.i.b16 %v4632, %v4632
      %v4635 = vperm.slane %v4633, 0
      %v4636 = vshrl.u32 %v4555, 16
      %v4637 = vpack.i.b16 %v4636, %v4636
      %v4639 = vperm.slane %v4637, 0
      %v4640 = vunpack.c.l.bf16 %v4635
      %v4641 = vunpack.c.l.bf16 %v4639
      %4644 = vrot.lane.b32.xlu0 %v4640, 35
      %v4645 = vpop.permute.xlu0 %4644
      %4646 = vrot.lane.b32.xlu0 %v4641, 35
      %v4647 = vpop.permute.xlu0 %4646
      %v4648 = vsel %vm2327, %v4645, %v4647
      %v4652 = vmul.f32 %v3315, %v4645
      %v4653 = vmul.f32 %v3316, %v4648
      %v4654 = vmul.f32 %v3332, %v4647
      %v4655 = vpack.c.bf16 %v4652, %v4652
      %v4656 = vpack.c.bf16 %v4653, %v4653
      %v4657 = vpack.c.bf16 %v4654, %v4654
      %s4658 = scalar_lea.vmem %s10, 34
      %v4659 = vld [vmem:[%s4658] sm:$0x3]
      %4663 = vrot.lane.b32.xlu0 %v4655, 93
      %v4664 = vpop.permute.xlu0 %4663
      %4665 = vrot.lane.b32.xlu0 %v4656, 93
      %v4666 = vpop.permute.xlu0 %4665
      %4667 = vrot.lane.b32.xlu0 %v4657, 93
      %v4668 = vpop.permute.xlu0 %4667
      %v4669 = vsel %vm2352, %v4664, %v4666
      %v4670 = vsel %vm2352, %v4666, %v4668
      %v4672 = vsel %vm3364, %v4659, 0
      %v4675 = vsel %vm3368, %v4669, 0
      %v4678 = vsel %vm3368, %v4670, 0
      %4680 = vmatpush.bf16.msra.mxu0 0
      %4681 = vmatpush.bf16.msra.mxu0 0
      %4682 = vmatpush.bf16.msra.mxu0 0
      %4683 = vmatpush.bf16.msra.mxu0 0
      %4684 = vmatpush.bf16.msra.mxu0 0
      %4685 = vmatpush.bf16.msra.mxu0 0
      %4686 = vmatpush.bf16.msra.mxu0 0
      %4687 = vmatpush.bf16.msra.mxu0 %v4675
      %4688 = vmatmul.bf16.gmra.mxu0 %v4672
      %v4689 = vpop.f32.mrf.mxu0
      %v4690 = vadd.f32 0.0, %v4689
      %v4691 = vpop.f32.mrf.mxu0
      %4692 = vdwg.mxu0
      %4693 = vmatpush.bf16.msra.mxu0 0
      %4694 = vmatpush.bf16.msra.mxu0 0
      %4695 = vmatpush.bf16.msra.mxu0 0
      %4696 = vmatpush.bf16.msra.mxu0 0
      %4697 = vmatpush.bf16.msra.mxu0 0
      %4698 = vmatpush.bf16.msra.mxu0 0
      %4699 = vmatpush.bf16.msra.mxu0 0
      %4700 = vmatpush.bf16.msra.mxu0 %v4678
      %4701 = vmatmul.bf16.gmra.mxu0 %v4672
      %v4702 = vpop.f32.mrf.mxu0
      %v4703 = vadd.f32 0.0, %v4702
      %v4704 = vpop.f32.mrf.mxu0
      %4705 = vdwg.mxu0
      %v4706 = vadd.f32 %v4630, %v4690
      %v4707 = vadd.f32 %v4631, %v4703
      %v4708 = vld [vmem:[%s12 + $0x10] sm:$0x22]
      %v4710 = vunpack.c.l.b16 %v4708
      %v4711 = vunpack.c.h.b16 %v4708
      %v4712 = vpack.c.b16 %v4710, %v4710
      %v4713 = vpack.c.b16 %v4711, %v4711
      %v4715 = vpack.i.b16 %v4712, %v4712
      %v4717 = vperm.slane %v4715, 1
      %v4719 = vpack.i.b16 %v4713, %v4713
      %v4721 = vperm.slane %v4719, 1
      %v4722 = vunpack.c.l.bf16 %v4717
      %v4723 = vunpack.c.l.bf16 %v4721
      %4726 = vrot.lane.b32.xlu0 %v4722, 36
      %v4727 = vpop.permute.xlu0 %4726
      %4728 = vrot.lane.b32.xlu0 %v4723, 36
      %v4729 = vpop.permute.xlu0 %4728
      %v4730 = vsel %vm2410, %v4727, %v4729
      %v4734 = vmul.f32 %v3315, %v4727
      %v4735 = vmul.f32 %v3316, %v4730
      %v4736 = vmul.f32 %v3332, %v4729
      %v4737 = vpack.c.bf16 %v4734, %v4734
      %v4738 = vpack.c.bf16 %v4735, %v4735
      %v4739 = vpack.c.bf16 %v4736, %v4736
      %s4740 = scalar_lea.vmem %s10, 36
      %v4741 = vld [vmem:[%s4740] sm:$0x3]
      %4745 = vrot.lane.b32.xlu0 %v4737, 92
      %v4746 = vpop.permute.xlu0 %4745
      %4747 = vrot.lane.b32.xlu0 %v4738, 92
      %v4748 = vpop.permute.xlu0 %4747
      %4749 = vrot.lane.b32.xlu0 %v4739, 92
      %v4750 = vpop.permute.xlu0 %4749
      %v4751 = vsel %vm2435, %v4746, %v4748
      %v4752 = vsel %vm2435, %v4748, %v4750
      %v4754 = vsel %vm3364, %v4741, 0
      %v4757 = vsel %vm3368, %v4751, 0
      %v4760 = vsel %vm3368, %v4752, 0
      %4762 = vmatpush.bf16.msra.mxu0 0
      %4763 = vmatpush.bf16.msra.mxu0 0
      %4764 = vmatpush.bf16.msra.mxu0 0
      %4765 = vmatpush.bf16.msra.mxu0 0
      %4766 = vmatpush.bf16.msra.mxu0 0
      %4767 = vmatpush.bf16.msra.mxu0 0
      %4768 = vmatpush.bf16.msra.mxu0 0
      %4769 = vmatpush.bf16.msra.mxu0 %v4757
      %4770 = vmatmul.bf16.gmra.mxu0 %v4754
      %v4771 = vpop.f32.mrf.mxu0
      %v4772 = vadd.f32 0.0, %v4771
      %v4773 = vpop.f32.mrf.mxu0
      %4774 = vdwg.mxu0
      %4775 = vmatpush.bf16.msra.mxu0 0
      %4776 = vmatpush.bf16.msra.mxu0 0
      %4777 = vmatpush.bf16.msra.mxu0 0
      %4778 = vmatpush.bf16.msra.mxu0 0
      %4779 = vmatpush.bf16.msra.mxu0 0
      %4780 = vmatpush.bf16.msra.mxu0 0
      %4781 = vmatpush.bf16.msra.mxu0 0
      %4782 = vmatpush.bf16.msra.mxu0 %v4760
      %4783 = vmatmul.bf16.gmra.mxu0 %v4754
      %v4784 = vpop.f32.mrf.mxu0
      %v4785 = vadd.f32 0.0, %v4784
      %v4786 = vpop.f32.mrf.mxu0
      %4787 = vdwg.mxu0
      %v4788 = vadd.f32 %v4706, %v4772
      %v4789 = vadd.f32 %v4707, %v4785
      %v4790 = vshrl.u32 %v4712, 16
      %v4791 = vpack.i.b16 %v4790, %v4790
      %v4793 = vperm.slane %v4791, 1
      %v4794 = vshrl.u32 %v4713, 16
      %v4795 = vpack.i.b16 %v4794, %v4794
      %v4797 = vperm.slane %v4795, 1
      %v4798 = vunpack.c.l.bf16 %v4793
      %v4799 = vunpack.c.l.bf16 %v4797
      %4802 = vrot.lane.b32.xlu0 %v4798, 37
      %v4803 = vpop.permute.xlu0 %4802
      %4804 = vrot.lane.b32.xlu0 %v4799, 37
      %v4805 = vpop.permute.xlu0 %4804
      %vm4806 = vcmask 302080
      %v4807 = vsel %vm4806, %v4803, %v4805
      %v4811 = vmul.f32 %v3315, %v4803
      %v4812 = vmul.f32 %v3316, %v4807
      %v4813 = vmul.f32 %v3332, %v4805
      %v4814 = vpack.c.bf16 %v4811, %v4811
      %v4815 = vpack.c.bf16 %v4812, %v4812
      %v4816 = vpack.c.bf16 %v4813, %v4813
      %s4817 = scalar_lea.vmem %s10, 38
      %v4818 = vld [vmem:[%s4817] sm:$0x3]
      %4822 = vrot.lane.b32.xlu0 %v4814, 91
      %v4823 = vpop.permute.xlu0 %4822
      %4824 = vrot.lane.b32.xlu0 %v4815, 91
      %v4825 = vpop.permute.xlu0 %4824
      %4826 = vrot.lane.b32.xlu0 %v4816, 91
      %v4827 = vpop.permute.xlu0 %4826
      %vm4828 = vcmask 744448
      %v4829 = vsel %vm4828, %v4823, %v4825
      %v4830 = vsel %vm4828, %v4825, %v4827
      %v4832 = vsel %vm3364, %v4818, 0
      %v4835 = vsel %vm3368, %v4829, 0
      %v4838 = vsel %vm3368, %v4830, 0
      %4840 = vmatpush.bf16.msra.mxu0 0
      %4841 = vmatpush.bf16.msra.mxu0 0
      %4842 = vmatpush.bf16.msra.mxu0 0
      %4843 = vmatpush.bf16.msra.mxu0 0
      %4844 = vmatpush.bf16.msra.mxu0 0
      %4845 = vmatpush.bf16.msra.mxu0 0
      %4846 = vmatpush.bf16.msra.mxu0 0
      %4847 = vmatpush.bf16.msra.mxu0 %v4835
      %4848 = vmatmul.bf16.gmra.mxu0 %v4832
      %v4849 = vpop.f32.mrf.mxu0
      %v4850 = vadd.f32 0.0, %v4849
      %v4851 = vpop.f32.mrf.mxu0
      %4852 = vdwg.mxu0
      %4853 = vmatpush.bf16.msra.mxu0 0
      %4854 = vmatpush.bf16.msra.mxu0 0
      %4855 = vmatpush.bf16.msra.mxu0 0
      %4856 = vmatpush.bf16.msra.mxu0 0
      %4857 = vmatpush.bf16.msra.mxu0 0
      %4858 = vmatpush.bf16.msra.mxu0 0
      %4859 = vmatpush.bf16.msra.mxu0 0
      %4860 = vmatpush.bf16.msra.mxu0 %v4838
      %4861 = vmatmul.bf16.gmra.mxu0 %v4832
      %v4862 = vpop.f32.mrf.mxu0
      %v4863 = vadd.f32 0.0, %v4862
      %v4864 = vpop.f32.mrf.mxu0
      %4865 = vdwg.mxu0
      %v4866 = vadd.f32 %v4788, %v4850
      %v4867 = vadd.f32 %v4789, %v4863
      %v4868 = vld [vmem:[%s12 + $0x10] sm:$0x44]
      %v4870 = vunpack.c.l.b16 %v4868
      %v4871 = vunpack.c.h.b16 %v4868
      %v4872 = vpack.c.b16 %v4870, %v4870
      %v4873 = vpack.c.b16 %v4871, %v4871
      %v4875 = vpack.i.b16 %v4872, %v4872
      %v4877 = vperm.slane %v4875, 2
      %v4879 = vpack.i.b16 %v4873, %v4873
      %v4881 = vperm.slane %v4879, 2
      %v4882 = vunpack.c.l.bf16 %v4877
      %v4883 = vunpack.c.l.bf16 %v4881
      %4886 = vrot.lane.b32.xlu0 %v4882, 38
      %v4887 = vpop.permute.xlu0 %4886
      %4888 = vrot.lane.b32.xlu0 %v4883, 38
      %v4889 = vpop.permute.xlu0 %4888
      %vm4890 = vcmask 310272
      %v4891 = vsel %vm4890, %v4887, %v4889
      %v4895 = vmul.f32 %v3315, %v4887
      %v4896 = vmul.f32 %v3316, %v4891
      %v4897 = vmul.f32 %v3332, %v4889
      %v4898 = vpack.c.bf16 %v4895, %v4895
      %v4899 = vpack.c.bf16 %v4896, %v4896
      %v4900 = vpack.c.bf16 %v4897, %v4897
      %s4901 = scalar_lea.vmem %s10, 40
      %v4902 = vld [vmem:[%s4901] sm:$0x3]
      %4906 = vrot.lane.b32.xlu0 %v4898, 90
      %v4907 = vpop.permute.xlu0 %4906
      %4908 = vrot.lane.b32.xlu0 %v4899, 90
      %v4909 = vpop.permute.xlu0 %4908
      %4910 = vrot.lane.b32.xlu0 %v4900, 90
      %v4911 = vpop.permute.xlu0 %4910
      %vm4912 = vcmask 736256
      %v4913 = vsel %vm4912, %v4907, %v4909
      %v4914 = vsel %vm4912, %v4909, %v4911
      %v4916 = vsel %vm3364, %v4902, 0
      %v4919 = vsel %vm3368, %v4913, 0
      %v4922 = vsel %vm3368, %v4914, 0
      %4924 = vmatpush.bf16.msra.mxu0 0
      %4925 = vmatpush.bf16.msra.mxu0 0
      %4926 = vmatpush.bf16.msra.mxu0 0
      %4927 = vmatpush.bf16.msra.mxu0 0
      %4928 = vmatpush.bf16.msra.mxu0 0
      %4929 = vmatpush.bf16.msra.mxu0 0
      %4930 = vmatpush.bf16.msra.mxu0 0
      %4931 = vmatpush.bf16.msra.mxu0 %v4919
      %4932 = vmatmul.bf16.gmra.mxu0 %v4916
      %v4933 = vpop.f32.mrf.mxu0
      %v4934 = vadd.f32 0.0, %v4933
      %v4935 = vpop.f32.mrf.mxu0
      %4936 = vdwg.mxu0
      %4937 = vmatpush.bf16.msra.mxu0 0
      %4938 = vmatpush.bf16.msra.mxu0 0
      %4939 = vmatpush.bf16.msra.mxu0 0
      %4940 = vmatpush.bf16.msra.mxu0 0
      %4941 = vmatpush.bf16.msra.mxu0 0
      %4942 = vmatpush.bf16.msra.mxu0 0
      %4943 = vmatpush.bf16.msra.mxu0 0
      %4944 = vmatpush.bf16.msra.mxu0 %v4922
      %4945 = vmatmul.bf16.gmra.mxu0 %v4916
      %v4946 = vpop.f32.mrf.mxu0
      %v4947 = vadd.f32 0.0, %v4946
      %v4948 = vpop.f32.mrf.mxu0
      %4949 = vdwg.mxu0
      %v4950 = vadd.f32 %v4866, %v4934
      %v4951 = vadd.f32 %v4867, %v4947
      %v4952 = vshrl.u32 %v4872, 16
      %v4953 = vpack.i.b16 %v4952, %v4952
      %v4955 = vperm.slane %v4953, 2
      %v4956 = vshrl.u32 %v4873, 16
      %v4957 = vpack.i.b16 %v4956, %v4956
      %v4959 = vperm.slane %v4957, 2
      %v4960 = vunpack.c.l.bf16 %v4955
      %v4961 = vunpack.c.l.bf16 %v4959
      %4964 = vrot.lane.b32.xlu0 %v4960, 48
      %v4965 = vpop.permute.xlu0 %4964
      %4966 = vrot.lane.b32.xlu0 %v4961, 48
      %v4967 = vpop.permute.xlu0 %4966
      %v4968 = vsel %vm2487, %v4965, %v4967
      %v4972 = vmul.f32 %v3315, %v4965
      %v4973 = vmul.f32 %v3316, %v4968
      %v4974 = vmul.f32 %v3332, %v4967
      %v4975 = vpack.c.bf16 %v4972, %v4972
      %v4976 = vpack.c.bf16 %v4973, %v4973
      %v4977 = vpack.c.bf16 %v4974, %v4974
      %s4978 = scalar_lea.vmem %s10, 42
      %v4979 = vld [vmem:[%s4978] sm:$0x3]
      %4983 = vrot.lane.b32.xlu0 %v4975, 80
      %v4984 = vpop.permute.xlu0 %4983
      %4985 = vrot.lane.b32.xlu0 %v4976, 80
      %v4986 = vpop.permute.xlu0 %4985
      %4987 = vrot.lane.b32.xlu0 %v4977, 80
      %v4988 = vpop.permute.xlu0 %4987
      %v4989 = vsel %vm2512, %v4984, %v4986
      %v4990 = vsel %vm2512, %v4986, %v4988
      %v4992 = vsel %vm3364, %v4979, 0
      %v4995 = vsel %vm3368, %v4989, 0
      %v4998 = vsel %vm3368, %v4990, 0
      %5000 = vmatpush.bf16.msra.mxu0 0
      %5001 = vmatpush.bf16.msra.mxu0 0
      %5002 = vmatpush.bf16.msra.mxu0 0
      %5003 = vmatpush.bf16.msra.mxu0 0
      %5004 = vmatpush.bf16.msra.mxu0 0
      %5005 = vmatpush.bf16.msra.mxu0 0
      %5006 = vmatpush.bf16.msra.mxu0 0
      %5007 = vmatpush.bf16.msra.mxu0 %v4995
      %5008 = vmatmul.bf16.gmra.mxu0 %v4992
      %v5009 = vpop.f32.mrf.mxu0
      %v5010 = vadd.f32 0.0, %v5009
      %v5011 = vpop.f32.mrf.mxu0
      %5012 = vdwg.mxu0
      %5013 = vmatpush.bf16.msra.mxu0 0
      %5014 = vmatpush.bf16.msra.mxu0 0
      %5015 = vmatpush.bf16.msra.mxu0 0
      %5016 = vmatpush.bf16.msra.mxu0 0
      %5017 = vmatpush.bf16.msra.mxu0 0
      %5018 = vmatpush.bf16.msra.mxu0 0
      %5019 = vmatpush.bf16.msra.mxu0 0
      %5020 = vmatpush.bf16.msra.mxu0 %v4998
      %5021 = vmatmul.bf16.gmra.mxu0 %v4992
      %v5022 = vpop.f32.mrf.mxu0
      %v5023 = vadd.f32 0.0, %v5022
      %v5024 = vpop.f32.mrf.mxu0
      %5025 = vdwg.mxu0
      %v5026 = vadd.f32 %v4950, %v5010
      %v5027 = vadd.f32 %v4951, %v5023
      %v5028 = vld [vmem:[%s12 + $0x10] sm:$0x88]
      %v5030 = vunpack.c.l.b16 %v5028
      %v5031 = vunpack.c.h.b16 %v5028
      %v5032 = vpack.c.b16 %v5030, %v5030
      %v5033 = vpack.c.b16 %v5031, %v5031
      %v5035 = vpack.i.b16 %v5032, %v5032
      %v5037 = vperm.slane %v5035, 3
      %v5039 = vpack.i.b16 %v5033, %v5033
      %v5041 = vperm.slane %v5039, 3
      %v5042 = vunpack.c.l.bf16 %v5037
      %v5043 = vunpack.c.l.bf16 %v5041
      %5046 = vrot.lane.b32.xlu0 %v5042, 49
      %v5047 = vpop.permute.xlu0 %5046
      %5048 = vrot.lane.b32.xlu0 %v5043, 49
      %v5049 = vpop.permute.xlu0 %5048
      %v5050 = vsel %vm2570, %v5047, %v5049
      %v5054 = vmul.f32 %v3315, %v5047
      %v5055 = vmul.f32 %v3316, %v5050
      %v5056 = vmul.f32 %v3332, %v5049
      %v5057 = vpack.c.bf16 %v5054, %v5054
      %v5058 = vpack.c.bf16 %v5055, %v5055
      %v5059 = vpack.c.bf16 %v5056, %v5056
      %s5060 = scalar_lea.vmem %s10, 44
      %v5061 = vld [vmem:[%s5060] sm:$0x3]
      %5065 = vrot.lane.b32.xlu0 %v5057, 79
      %v5066 = vpop.permute.xlu0 %5065
      %5067 = vrot.lane.b32.xlu0 %v5058, 79
      %v5068 = vpop.permute.xlu0 %5067
      %5069 = vrot.lane.b32.xlu0 %v5059, 79
      %v5070 = vpop.permute.xlu0 %5069
      %v5071 = vsel %vm2595, %v5066, %v5068
      %v5072 = vsel %vm2595, %v5068, %v5070
      %v5074 = vsel %vm3364, %v5061, 0
      %v5077 = vsel %vm3368, %v5071, 0
      %v5080 = vsel %vm3368, %v5072, 0
      %5082 = vmatpush.bf16.msra.mxu0 0
      %5083 = vmatpush.bf16.msra.mxu0 0
      %5084 = vmatpush.bf16.msra.mxu0 0
      %5085 = vmatpush.bf16.msra.mxu0 0
      %5086 = vmatpush.bf16.msra.mxu0 0
      %5087 = vmatpush.bf16.msra.mxu0 0
      %5088 = vmatpush.bf16.msra.mxu0 0
      %5089 = vmatpush.bf16.msra.mxu0 %v5077
      %5090 = vmatmul.bf16.gmra.mxu0 %v5074
      %v5091 = vpop.f32.mrf.mxu0
      %v5092 = vadd.f32 0.0, %v5091
      %v5093 = vpop.f32.mrf.mxu0
      %5094 = vdwg.mxu0
      %5095 = vmatpush.bf16.msra.mxu0 0
      %5096 = vmatpush.bf16.msra.mxu0 0
      %5097 = vmatpush.bf16.msra.mxu0 0
      %5098 = vmatpush.bf16.msra.mxu0 0
      %5099 = vmatpush.bf16.msra.mxu0 0
      %5100 = vmatpush.bf16.msra.mxu0 0
      %5101 = vmatpush.bf16.msra.mxu0 0
      %5102 = vmatpush.bf16.msra.mxu0 %v5080
      %5103 = vmatmul.bf16.gmra.mxu0 %v5074
      %v5104 = vpop.f32.mrf.mxu0
      %v5105 = vadd.f32 0.0, %v5104
      %v5106 = vpop.f32.mrf.mxu0
      %5107 = vdwg.mxu0
      %v5108 = vadd.f32 %v5026, %v5092
      %v5109 = vadd.f32 %v5027, %v5105
      %v5110 = vshrl.u32 %v5032, 16
      %v5111 = vpack.i.b16 %v5110, %v5110
      %v5113 = vperm.slane %v5111, 3
      %v5114 = vshrl.u32 %v5033, 16
      %v5115 = vpack.i.b16 %v5114, %v5114
      %v5117 = vperm.slane %v5115, 3
      %v5118 = vunpack.c.l.bf16 %v5113
      %v5119 = vunpack.c.l.bf16 %v5117
      %5122 = vrot.lane.b32.xlu0 %v5118, 50
      %v5123 = vpop.permute.xlu0 %5122
      %5124 = vrot.lane.b32.xlu0 %v5119, 50
      %v5125 = vpop.permute.xlu0 %5124
      %v5126 = vsel %vm2647, %v5123, %v5125
      %v5130 = vmul.f32 %v3315, %v5123
      %v5131 = vmul.f32 %v3316, %v5126
      %v5132 = vmul.f32 %v3332, %v5125
      %v5133 = vpack.c.bf16 %v5130, %v5130
      %v5134 = vpack.c.bf16 %v5131, %v5131
      %v5135 = vpack.c.bf16 %v5132, %v5132
      %s5136 = scalar_lea.vmem %s10, 46
      %v5137 = vld [vmem:[%s5136] sm:$0x3]
      %5141 = vrot.lane.b32.xlu0 %v5133, 78
      %v5142 = vpop.permute.xlu0 %5141
      %5143 = vrot.lane.b32.xlu0 %v5134, 78
      %v5144 = vpop.permute.xlu0 %5143
      %5145 = vrot.lane.b32.xlu0 %v5135, 78
      %v5146 = vpop.permute.xlu0 %5145
      %v5147 = vsel %vm2672, %v5142, %v5144
      %v5148 = vsel %vm2672, %v5144, %v5146
      %v5150 = vsel %vm3364, %v5137, 0
      %v5153 = vsel %vm3368, %v5147, 0
      %v5156 = vsel %vm3368, %v5148, 0
      %5158 = vmatpush.bf16.msra.mxu0 0
      %5159 = vmatpush.bf16.msra.mxu0 0
      %5160 = vmatpush.bf16.msra.mxu0 0
      %5161 = vmatpush.bf16.msra.mxu0 0
      %5162 = vmatpush.bf16.msra.mxu0 0
      %5163 = vmatpush.bf16.msra.mxu0 0
      %5164 = vmatpush.bf16.msra.mxu0 0
      %5165 = vmatpush.bf16.msra.mxu0 %v5153
      %5166 = vmatmul.bf16.gmra.mxu0 %v5150
      %v5167 = vpop.f32.mrf.mxu0
      %v5168 = vadd.f32 0.0, %v5167
      %v5169 = vpop.f32.mrf.mxu0
      %5170 = vdwg.mxu0
      %5171 = vmatpush.bf16.msra.mxu0 0
      %5172 = vmatpush.bf16.msra.mxu0 0
      %5173 = vmatpush.bf16.msra.mxu0 0
      %5174 = vmatpush.bf16.msra.mxu0 0
      %5175 = vmatpush.bf16.msra.mxu0 0
      %5176 = vmatpush.bf16.msra.mxu0 0
      %5177 = vmatpush.bf16.msra.mxu0 0
      %5178 = vmatpush.bf16.msra.mxu0 %v5156
      %5179 = vmatmul.bf16.gmra.mxu0 %v5150
      %v5180 = vpop.f32.mrf.mxu0
      %v5181 = vadd.f32 0.0, %v5180
      %v5182 = vpop.f32.mrf.mxu0
      %5183 = vdwg.mxu0
      %v5184 = vadd.f32 %v5108, %v5168
      %v5185 = vadd.f32 %v5109, %v5181
      %v5186 = vld [vmem:[%s12 + $0x18] sm:$0x11]
      %v5188 = vunpack.c.l.b16 %v5186
      %v5189 = vunpack.c.h.b16 %v5186
      %v5190 = vpack.c.b16 %v5188, %v5188
      %v5191 = vpack.c.b16 %v5189, %v5189
      %v5193 = vpack.i.b16 %v5190, %v5190
      %v5195 = vperm.slane %v5193, 0
      %v5197 = vpack.i.b16 %v5191, %v5191
      %v5199 = vperm.slane %v5197, 0
      %v5200 = vunpack.c.l.bf16 %v5195
      %v5201 = vunpack.c.l.bf16 %v5199
      %5204 = vrot.lane.b32.xlu0 %v5200, 51
      %v5205 = vpop.permute.xlu0 %5204
      %5206 = vrot.lane.b32.xlu0 %v5201, 51
      %v5207 = vpop.permute.xlu0 %5206
      %v5208 = vsel %vm2730, %v5205, %v5207
      %v5212 = vmul.f32 %v3315, %v5205
      %v5213 = vmul.f32 %v3316, %v5208
      %v5214 = vmul.f32 %v3332, %v5207
      %v5215 = vpack.c.bf16 %v5212, %v5212
      %v5216 = vpack.c.bf16 %v5213, %v5213
      %v5217 = vpack.c.bf16 %v5214, %v5214
      %s5218 = scalar_lea.vmem %s10, 48
      %v5219 = vld [vmem:[%s5218] sm:$0x3]
      %5223 = vrot.lane.b32.xlu0 %v5215, 77
      %v5224 = vpop.permute.xlu0 %5223
      %5225 = vrot.lane.b32.xlu0 %v5216, 77
      %v5226 = vpop.permute.xlu0 %5225
      %5227 = vrot.lane.b32.xlu0 %v5217, 77
      %v5228 = vpop.permute.xlu0 %5227
      %v5229 = vsel %vm2755, %v5224, %v5226
      %v5230 = vsel %vm2755, %v5226, %v5228
      %v5232 = vsel %vm3364, %v5219, 0
      %v5235 = vsel %vm3368, %v5229, 0
      %v5238 = vsel %vm3368, %v5230, 0
      %5240 = vmatpush.bf16.msra.mxu0 0
      %5241 = vmatpush.bf16.msra.mxu0 0
      %5242 = vmatpush.bf16.msra.mxu0 0
      %5243 = vmatpush.bf16.msra.mxu0 0
      %5244 = vmatpush.bf16.msra.mxu0 0
      %5245 = vmatpush.bf16.msra.mxu0 0
      %5246 = vmatpush.bf16.msra.mxu0 0
      %5247 = vmatpush.bf16.msra.mxu0 %v5235
      %5248 = vmatmul.bf16.gmra.mxu0 %v5232
      %v5249 = vpop.f32.mrf.mxu0
      %v5250 = vadd.f32 0.0, %v5249
      %v5251 = vpop.f32.mrf.mxu0
      %5252 = vdwg.mxu0
      %5253 = vmatpush.bf16.msra.mxu0 0
      %5254 = vmatpush.bf16.msra.mxu0 0
      %5255 = vmatpush.bf16.msra.mxu0 0
      %5256 = vmatpush.bf16.msra.mxu0 0
      %5257 = vmatpush.bf16.msra.mxu0 0
      %5258 = vmatpush.bf16.msra.mxu0 0
      %5259 = vmatpush.bf16.msra.mxu0 0
      %5260 = vmatpush.bf16.msra.mxu0 %v5238
      %5261 = vmatmul.bf16.gmra.mxu0 %v5232
      %v5262 = vpop.f32.mrf.mxu0
      %v5263 = vadd.f32 0.0, %v5262
      %v5264 = vpop.f32.mrf.mxu0
      %5265 = vdwg.mxu0
      %v5266 = vadd.f32 %v5184, %v5250
      %v5267 = vadd.f32 %v5185, %v5263
      %v5268 = vshrl.u32 %v5190, 16
      %v5269 = vpack.i.b16 %v5268, %v5268
      %v5271 = vperm.slane %v5269, 0
      %v5272 = vshrl.u32 %v5191, 16
      %v5273 = vpack.i.b16 %v5272, %v5272
      %v5275 = vperm.slane %v5273, 0
      %v5276 = vunpack.c.l.bf16 %v5271
      %v5277 = vunpack.c.l.bf16 %v5275
      %5280 = vrot.lane.b32.xlu0 %v5276, 52
      %v5281 = vpop.permute.xlu0 %5280
      %5282 = vrot.lane.b32.xlu0 %v5277, 52
      %v5283 = vpop.permute.xlu0 %5282
      %v5284 = vsel %vm2807, %v5281, %v5283
      %v5288 = vmul.f32 %v3315, %v5281
      %v5289 = vmul.f32 %v3316, %v5284
      %v5290 = vmul.f32 %v3332, %v5283
      %v5291 = vpack.c.bf16 %v5288, %v5288
      %v5292 = vpack.c.bf16 %v5289, %v5289
      %v5293 = vpack.c.bf16 %v5290, %v5290
      %s5294 = scalar_lea.vmem %s10, 50
      %v5295 = vld [vmem:[%s5294] sm:$0x3]
      %5299 = vrot.lane.b32.xlu0 %v5291, 76
      %v5300 = vpop.permute.xlu0 %5299
      %5301 = vrot.lane.b32.xlu0 %v5292, 76
      %v5302 = vpop.permute.xlu0 %5301
      %5303 = vrot.lane.b32.xlu0 %v5293, 76
      %v5304 = vpop.permute.xlu0 %5303
      %v5305 = vsel %vm2832, %v5300, %v5302
      %v5306 = vsel %vm2832, %v5302, %v5304
      %v5308 = vsel %vm3364, %v5295, 0
      %v5311 = vsel %vm3368, %v5305, 0
      %v5314 = vsel %vm3368, %v5306, 0
      %5316 = vmatpush.bf16.msra.mxu0 0
      %5317 = vmatpush.bf16.msra.mxu0 0
      %5318 = vmatpush.bf16.msra.mxu0 0
      %5319 = vmatpush.bf16.msra.mxu0 0
      %5320 = vmatpush.bf16.msra.mxu0 0
      %5321 = vmatpush.bf16.msra.mxu0 0
      %5322 = vmatpush.bf16.msra.mxu0 0
      %5323 = vmatpush.bf16.msra.mxu0 %v5311
      %5324 = vmatmul.bf16.gmra.mxu0 %v5308
      %v5325 = vpop.f32.mrf.mxu0
      %v5326 = vadd.f32 0.0, %v5325
      %v5327 = vpop.f32.mrf.mxu0
      %5328 = vdwg.mxu0
      %5329 = vmatpush.bf16.msra.mxu0 0
      %5330 = vmatpush.bf16.msra.mxu0 0
      %5331 = vmatpush.bf16.msra.mxu0 0
      %5332 = vmatpush.bf16.msra.mxu0 0
      %5333 = vmatpush.bf16.msra.mxu0 0
      %5334 = vmatpush.bf16.msra.mxu0 0
      %5335 = vmatpush.bf16.msra.mxu0 0
      %5336 = vmatpush.bf16.msra.mxu0 %v5314
      %5337 = vmatmul.bf16.gmra.mxu0 %v5308
      %v5338 = vpop.f32.mrf.mxu0
      %v5339 = vadd.f32 0.0, %v5338
      %v5340 = vpop.f32.mrf.mxu0
      %5341 = vdwg.mxu0
      %v5342 = vadd.f32 %v5266, %v5326
      %v5343 = vadd.f32 %v5267, %v5339
      %v5344 = vld [vmem:[%s12 + $0x18] sm:$0x22]
      %v5346 = vunpack.c.l.b16 %v5344
      %v5347 = vunpack.c.h.b16 %v5344
      %v5348 = vpack.c.b16 %v5346, %v5346
      %v5349 = vpack.c.b16 %v5347, %v5347
      %v5351 = vpack.i.b16 %v5348, %v5348
      %v5353 = vperm.slane %v5351, 1
      %v5355 = vpack.i.b16 %v5349, %v5349
      %v5357 = vperm.slane %v5355, 1
      %v5358 = vunpack.c.l.bf16 %v5353
      %v5359 = vunpack.c.l.bf16 %v5357
      %5362 = vrot.lane.b32.xlu0 %v5358, 53
      %v5363 = vpop.permute.xlu0 %5362
      %5364 = vrot.lane.b32.xlu0 %v5359, 53
      %v5365 = vpop.permute.xlu0 %5364
      %vm5366 = vcmask 433152
      %v5367 = vsel %vm5366, %v5363, %v5365
      %v5371 = vmul.f32 %v3315, %v5363
      %v5372 = vmul.f32 %v3316, %v5367
      %v5373 = vmul.f32 %v3332, %v5365
      %v5374 = vpack.c.bf16 %v5371, %v5371
      %v5375 = vpack.c.bf16 %v5372, %v5372
      %v5376 = vpack.c.bf16 %v5373, %v5373
      %s5377 = scalar_lea.vmem %s10, 52
      %v5378 = vld [vmem:[%s5377] sm:$0x3]
      %5382 = vrot.lane.b32.xlu0 %v5374, 75
      %v5383 = vpop.permute.xlu0 %5382
      %5384 = vrot.lane.b32.xlu0 %v5375, 75
      %v5385 = vpop.permute.xlu0 %5384
      %5386 = vrot.lane.b32.xlu0 %v5376, 75
      %v5387 = vpop.permute.xlu0 %5386
      %vm5388 = vcmask 613376
      %v5389 = vsel %vm5388, %v5383, %v5385
      %v5390 = vsel %vm5388, %v5385, %v5387
      %v5392 = vsel %vm3364, %v5378, 0
      %v5395 = vsel %vm3368, %v5389, 0
      %v5398 = vsel %vm3368, %v5390, 0
      %5400 = vmatpush.bf16.msra.mxu0 0
      %5401 = vmatpush.bf16.msra.mxu0 0
      %5402 = vmatpush.bf16.msra.mxu0 0
      %5403 = vmatpush.bf16.msra.mxu0 0
      %5404 = vmatpush.bf16.msra.mxu0 0
      %5405 = vmatpush.bf16.msra.mxu0 0
      %5406 = vmatpush.bf16.msra.mxu0 0
      %5407 = vmatpush.bf16.msra.mxu0 %v5395
      %5408 = vmatmul.bf16.gmra.mxu0 %v5392
      %v5409 = vpop.f32.mrf.mxu0
      %v5410 = vadd.f32 0.0, %v5409
      %v5411 = vpop.f32.mrf.mxu0
      %5412 = vdwg.mxu0
      %5413 = vmatpush.bf16.msra.mxu0 0
      %5414 = vmatpush.bf16.msra.mxu0 0
      %5415 = vmatpush.bf16.msra.mxu0 0
      %5416 = vmatpush.bf16.msra.mxu0 0
      %5417 = vmatpush.bf16.msra.mxu0 0
      %5418 = vmatpush.bf16.msra.mxu0 0
      %5419 = vmatpush.bf16.msra.mxu0 0
      %5420 = vmatpush.bf16.msra.mxu0 %v5398
      %5421 = vmatmul.bf16.gmra.mxu0 %v5392
      %v5422 = vpop.f32.mrf.mxu0
      %v5423 = vadd.f32 0.0, %v5422
      %v5424 = vpop.f32.mrf.mxu0
      %5425 = vdwg.mxu0
      %v5426 = vadd.f32 %v5342, %v5410
      %v5427 = vadd.f32 %v5343, %v5423
      %v5428 = vshrl.u32 %v5348, 16
      %v5429 = vpack.i.b16 %v5428, %v5428
      %v5431 = vperm.slane %v5429, 1
      %v5432 = vshrl.u32 %v5349, 16
      %v5433 = vpack.i.b16 %v5432, %v5432
      %v5435 = vperm.slane %v5433, 1
      %v5436 = vunpack.c.l.bf16 %v5431
      %v5437 = vunpack.c.l.bf16 %v5435
      %5440 = vrot.lane.b32.xlu0 %v5436, 54
      %v5441 = vpop.permute.xlu0 %5440
      %5442 = vrot.lane.b32.xlu0 %v5437, 54
      %v5443 = vpop.permute.xlu0 %5442
      %vm5444 = vcmask 441344
      %v5445 = vsel %vm5444, %v5441, %v5443
      %v5449 = vmul.f32 %v3315, %v5441
      %v5450 = vmul.f32 %v3316, %v5445
      %v5451 = vmul.f32 %v3332, %v5443
      %v5452 = vpack.c.bf16 %v5449, %v5449
      %v5453 = vpack.c.bf16 %v5450, %v5450
      %v5454 = vpack.c.bf16 %v5451, %v5451
      %s5455 = scalar_lea.vmem %s10, 54
      %v5456 = vld [vmem:[%s5455] sm:$0x3]
      %5460 = vrot.lane.b32.xlu0 %v5452, 74
      %v5461 = vpop.permute.xlu0 %5460
      %5462 = vrot.lane.b32.xlu0 %v5453, 74
      %v5463 = vpop.permute.xlu0 %5462
      %5464 = vrot.lane.b32.xlu0 %v5454, 74
      %v5465 = vpop.permute.xlu0 %5464
      %vm5466 = vcmask 605184
      %v5467 = vsel %vm5466, %v5461, %v5463
      %v5468 = vsel %vm5466, %v5463, %v5465
      %v5470 = vsel %vm3364, %v5456, 0
      %v5473 = vsel %vm3368, %v5467, 0
      %v5476 = vsel %vm3368, %v5468, 0
      %5478 = vmatpush.bf16.msra.mxu0 0
      %5479 = vmatpush.bf16.msra.mxu0 0
      %5480 = vmatpush.bf16.msra.mxu0 0
      %5481 = vmatpush.bf16.msra.mxu0 0
      %5482 = vmatpush.bf16.msra.mxu0 0
      %5483 = vmatpush.bf16.msra.mxu0 0
      %5484 = vmatpush.bf16.msra.mxu0 0
      %5485 = vmatpush.bf16.msra.mxu0 %v5473
      %5486 = vmatmul.bf16.gmra.mxu0 %v5470
      %v5487 = vpop.f32.mrf.mxu0
      %v5488 = vadd.f32 0.0, %v5487
      %v5489 = vpop.f32.mrf.mxu0
      %5490 = vdwg.mxu0
      %5491 = vmatpush.bf16.msra.mxu0 0
      %5492 = vmatpush.bf16.msra.mxu0 0
      %5493 = vmatpush.bf16.msra.mxu0 0
      %5494 = vmatpush.bf16.msra.mxu0 0
      %5495 = vmatpush.bf16.msra.mxu0 0
      %5496 = vmatpush.bf16.msra.mxu0 0
      %5497 = vmatpush.bf16.msra.mxu0 0
      %5498 = vmatpush.bf16.msra.mxu0 %v5476
      %5499 = vmatmul.bf16.gmra.mxu0 %v5470
      %v5500 = vpop.f32.mrf.mxu0
      %v5501 = vadd.f32 0.0, %v5500
      %v5502 = vpop.f32.mrf.mxu0
      %5503 = vdwg.mxu0
      %v5504 = vadd.f32 %v5426, %v5488
      %v5505 = vadd.f32 %v5427, %v5501
      %v5506 = vld [vmem:[%s12 + $0x18] sm:$0x44]
      %v5508 = vunpack.c.l.b16 %v5506
      %v5509 = vunpack.c.h.b16 %v5506
      %v5510 = vpack.c.b16 %v5508, %v5508
      %v5511 = vpack.c.b16 %v5509, %v5509
      %v5513 = vpack.i.b16 %v5510, %v5510
      %v5515 = vperm.slane %v5513, 2
      %v5517 = vpack.i.b16 %v5511, %v5511
      %v5519 = vperm.slane %v5517, 2
      %v5520 = vunpack.c.l.bf16 %v5515
      %v5521 = vunpack.c.l.bf16 %v5519
      %5524 = vrot.lane.b32.xlu0 %v5520, 64
      %v5525 = vpop.permute.xlu0 %5524
      %5526 = vrot.lane.b32.xlu0 %v5521, 64
      %v5527 = vpop.permute.xlu0 %5526
      %v5528 = vsel %vm1241, %v5525, %v5527
      %v5532 = vmul.f32 %v3315, %v5525
      %v5533 = vmul.f32 %v3316, %v5528
      %v5534 = vmul.f32 %v3332, %v5527
      %v5535 = vpack.c.bf16 %v5532, %v5532
      %v5536 = vpack.c.bf16 %v5533, %v5533
      %v5537 = vpack.c.bf16 %v5534, %v5534
      %s5538 = scalar_lea.vmem %s10, 56
      %v5539 = vld [vmem:[%s5538] sm:$0x3]
      %5543 = vrot.lane.b32.xlu0 %v5535, 64
      %v5544 = vpop.permute.xlu0 %5543
      %5545 = vrot.lane.b32.xlu0 %v5536, 64
      %v5546 = vpop.permute.xlu0 %5545
      %5547 = vrot.lane.b32.xlu0 %v5537, 64
      %v5548 = vpop.permute.xlu0 %5547
      %v5549 = vsel %vm2914, %v5544, %v5546
      %v5550 = vsel %vm2914, %v5546, %v5548
      %v5552 = vsel %vm3364, %v5539, 0
      %v5555 = vsel %vm3368, %v5549, 0
      %v5558 = vsel %vm3368, %v5550, 0
      %5560 = vmatpush.bf16.msra.mxu0 0
      %5561 = vmatpush.bf16.msra.mxu0 0
      %5562 = vmatpush.bf16.msra.mxu0 0
      %5563 = vmatpush.bf16.msra.mxu0 0
      %5564 = vmatpush.bf16.msra.mxu0 0
      %5565 = vmatpush.bf16.msra.mxu0 0
      %5566 = vmatpush.bf16.msra.mxu0 0
      %5567 = vmatpush.bf16.msra.mxu0 %v5555
      %5568 = vmatmul.bf16.gmra.mxu0 %v5552
      %v5569 = vpop.f32.mrf.mxu0
      %v5570 = vadd.f32 0.0, %v5569
      %v5571 = vpop.f32.mrf.mxu0
      %5572 = vdwg.mxu0
      %5573 = vmatpush.bf16.msra.mxu0 0
      %5574 = vmatpush.bf16.msra.mxu0 0
      %5575 = vmatpush.bf16.msra.mxu0 0
      %5576 = vmatpush.bf16.msra.mxu0 0
      %5577 = vmatpush.bf16.msra.mxu0 0
      %5578 = vmatpush.bf16.msra.mxu0 0
      %5579 = vmatpush.bf16.msra.mxu0 0
      %5580 = vmatpush.bf16.msra.mxu0 %v5558
      %5581 = vmatmul.bf16.gmra.mxu0 %v5552
      %v5582 = vpop.f32.mrf.mxu0
      %v5583 = vadd.f32 0.0, %v5582
      %v5584 = vpop.f32.mrf.mxu0
      %5585 = vdwg.mxu0
      %v5586 = vadd.f32 %v5504, %v5570
      %v5587 = vadd.f32 %v5505, %v5583
      %v5588 = vshrl.u32 %v5510, 16
      %v5589 = vpack.i.b16 %v5588, %v5588
      %v5591 = vperm.slane %v5589, 2
      %v5592 = vshrl.u32 %v5511, 16
      %v5593 = vpack.i.b16 %v5592, %v5592
      %v5595 = vperm.slane %v5593, 2
      %v5596 = vunpack.c.l.bf16 %v5591
      %v5597 = vunpack.c.l.bf16 %v5595
      %5600 = vrot.lane.b32.xlu0 %v5596, 65
      %v5601 = vpop.permute.xlu0 %5600
      %5602 = vrot.lane.b32.xlu0 %v5597, 65
      %v5603 = vpop.permute.xlu0 %5602
      %v5604 = vsel %vm2966, %v5601, %v5603
      %v5608 = vmul.f32 %v3315, %v5601
      %v5609 = vmul.f32 %v3316, %v5604
      %v5610 = vmul.f32 %v3332, %v5603
      %v5611 = vpack.c.bf16 %v5608, %v5608
      %v5612 = vpack.c.bf16 %v5609, %v5609
      %v5613 = vpack.c.bf16 %v5610, %v5610
      %s5614 = scalar_lea.vmem %s10, 58
      %v5615 = vld [vmem:[%s5614] sm:$0x3]
      %5619 = vrot.lane.b32.xlu0 %v5611, 63
      %v5620 = vpop.permute.xlu0 %5619
      %5621 = vrot.lane.b32.xlu0 %v5612, 63
      %v5622 = vpop.permute.xlu0 %5621
      %5623 = vrot.lane.b32.xlu0 %v5613, 63
      %v5624 = vpop.permute.xlu0 %5623
      %v5625 = vsel %vm2991, %v5620, %v5622
      %v5626 = vsel %vm2991, %v5622, %v5624
      %v5628 = vsel %vm3364, %v5615, 0
      %v5631 = vsel %vm3368, %v5625, 0
      %v5634 = vsel %vm3368, %v5626, 0
      %5636 = vmatpush.bf16.msra.mxu0 0
      %5637 = vmatpush.bf16.msra.mxu0 0
      %5638 = vmatpush.bf16.msra.mxu0 0
      %5639 = vmatpush.bf16.msra.mxu0 0
      %5640 = vmatpush.bf16.msra.mxu0 0
      %5641 = vmatpush.bf16.msra.mxu0 0
      %5642 = vmatpush.bf16.msra.mxu0 0
      %5643 = vmatpush.bf16.msra.mxu0 %v5631
      %5644 = vmatmul.bf16.gmra.mxu0 %v5628
      %v5645 = vpop.f32.mrf.mxu0
      %v5646 = vadd.f32 0.0, %v5645
      %v5647 = vpop.f32.mrf.mxu0
      %5648 = vdwg.mxu0
      %5649 = vmatpush.bf16.msra.mxu0 0
      %5650 = vmatpush.bf16.msra.mxu0 0
      %5651 = vmatpush.bf16.msra.mxu0 0
      %5652 = vmatpush.bf16.msra.mxu0 0
      %5653 = vmatpush.bf16.msra.mxu0 0
      %5654 = vmatpush.bf16.msra.mxu0 0
      %5655 = vmatpush.bf16.msra.mxu0 0
      %5656 = vmatpush.bf16.msra.mxu0 %v5634
      %5657 = vmatmul.bf16.gmra.mxu0 %v5628
      %v5658 = vpop.f32.mrf.mxu0
      %v5659 = vadd.f32 0.0, %v5658
      %v5660 = vpop.f32.mrf.mxu0
      %5661 = vdwg.mxu0
      %v5662 = vadd.f32 %v5586, %v5646
      %v5663 = vadd.f32 %v5587, %v5659
      %v5664 = vld [vmem:[%s12 + $0x18] sm:$0x88]
      %v5666 = vunpack.c.l.b16 %v5664
      %v5667 = vunpack.c.h.b16 %v5664
      %v5668 = vpack.c.b16 %v5666, %v5666
      %v5669 = vpack.c.b16 %v5667, %v5667
      %v5671 = vpack.i.b16 %v5668, %v5668
      %v5673 = vperm.slane %v5671, 3
      %v5675 = vpack.i.b16 %v5669, %v5669
      %v5677 = vperm.slane %v5675, 3
      %v5678 = vunpack.c.l.bf16 %v5673
      %v5679 = vunpack.c.l.bf16 %v5677
      %5682 = vrot.lane.b32.xlu0 %v5678, 66
      %v5683 = vpop.permute.xlu0 %5682
      %5684 = vrot.lane.b32.xlu0 %v5679, 66
      %v5685 = vpop.permute.xlu0 %5684
      %v5686 = vsel %vm3049, %v5683, %v5685
      %v5690 = vmul.f32 %v3315, %v5683
      %v5691 = vmul.f32 %v3316, %v5686
      %v5692 = vmul.f32 %v3332, %v5685
      %v5693 = vpack.c.bf16 %v5690, %v5690
      %v5694 = vpack.c.bf16 %v5691, %v5691
      %v5695 = vpack.c.bf16 %v5692, %v5692
      %s5696 = scalar_lea.vmem %s10, 60
      %v5697 = vld [vmem:[%s5696] sm:$0x3]
      %5701 = vrot.lane.b32.xlu0 %v5693, 62
      %v5702 = vpop.permute.xlu0 %5701
      %5703 = vrot.lane.b32.xlu0 %v5694, 62
      %v5704 = vpop.permute.xlu0 %5703
      %5705 = vrot.lane.b32.xlu0 %v5695, 62
      %v5706 = vpop.permute.xlu0 %5705
      %v5707 = vsel %vm3074, %v5702, %v5704
      %v5708 = vsel %vm3074, %v5704, %v5706
      %v5710 = vsel %vm3364, %v5697, 0
      %v5713 = vsel %vm3368, %v5707, 0
      %v5716 = vsel %vm3368, %v5708, 0
      %5718 = vmatpush.bf16.msra.mxu0 0
      %5719 = vmatpush.bf16.msra.mxu0 0
      %5720 = vmatpush.bf16.msra.mxu0 0
      %5721 = vmatpush.bf16.msra.mxu0 0
      %5722 = vmatpush.bf16.msra.mxu0 0
      %5723 = vmatpush.bf16.msra.mxu0 0
      %5724 = vmatpush.bf16.msra.mxu0 0
      %5725 = vmatpush.bf16.msra.mxu0 %v5713
      %5726 = vmatmul.bf16.gmra.mxu0 %v5710
      %v5727 = vpop.f32.mrf.mxu0
      %v5728 = vadd.f32 0.0, %v5727
      %v5729 = vpop.f32.mrf.mxu0
      %5730 = vdwg.mxu0
      %5731 = vmatpush.bf16.msra.mxu0 0
      %5732 = vmatpush.bf16.msra.mxu0 0
      %5733 = vmatpush.bf16.msra.mxu0 0
      %5734 = vmatpush.bf16.msra.mxu0 0
      %5735 = vmatpush.bf16.msra.mxu0 0
      %5736 = vmatpush.bf16.msra.mxu0 0
      %5737 = vmatpush.bf16.msra.mxu0 0
      %5738 = vmatpush.bf16.msra.mxu0 %v5716
      %5739 = vmatmul.bf16.gmra.mxu0 %v5710
      %v5740 = vpop.f32.mrf.mxu0
      %v5741 = vadd.f32 0.0, %v5740
      %v5742 = vpop.f32.mrf.mxu0
      %5743 = vdwg.mxu0
      %v5744 = vadd.f32 %v5662, %v5728
      %v5745 = vadd.f32 %v5663, %v5741
      %v5746 = vshrl.u32 %v5668, 16
      %v5747 = vpack.i.b16 %v5746, %v5746
      %v5749 = vperm.slane %v5747, 3
      %v5750 = vshrl.u32 %v5669, 16
      %v5751 = vpack.i.b16 %v5750, %v5750
      %v5753 = vperm.slane %v5751, 3
      %v5754 = vunpack.c.l.bf16 %v5749
      %v5755 = vunpack.c.l.bf16 %v5753
      %5758 = vrot.lane.b32.xlu0 %v5754, 67
      %v5759 = vpop.permute.xlu0 %5758
      %5760 = vrot.lane.b32.xlu0 %v5755, 67
      %v5761 = vpop.permute.xlu0 %5760
      %v5762 = vsel %vm3126, %v5759, %v5761
      %v5766 = vmul.f32 %v3315, %v5759
      %v5767 = vmul.f32 %v3316, %v5762
      %v5768 = vmul.f32 %v3332, %v5761
      %v5769 = vpack.c.bf16 %v5766, %v5766
      %v5770 = vpack.c.bf16 %v5767, %v5767
      %v5771 = vpack.c.bf16 %v5768, %v5768
      %s5772 = scalar_lea.vmem %s10, 62
      %v5773 = vld [vmem:[%s5772] sm:$0x3]
      %5777 = vrot.lane.b32.xlu0 %v5769, 61
      %v5778 = vpop.permute.xlu0 %5777
      %5779 = vrot.lane.b32.xlu0 %v5770, 61
      %v5780 = vpop.permute.xlu0 %5779
      %5781 = vrot.lane.b32.xlu0 %v5771, 61
      %v5782 = vpop.permute.xlu0 %5781
      %v5783 = vsel %vm3151, %v5778, %v5780
      %v5784 = vsel %vm3151, %v5780, %v5782
      %v5786 = vsel %vm3364, %v5773, 0
      %v5789 = vsel %vm3368, %v5783, 0
      %v5792 = vsel %vm3368, %v5784, 0
      %5794 = vmatpush.bf16.msra.mxu0 0
      %5795 = vmatpush.bf16.msra.mxu0 0
      %5796 = vmatpush.bf16.msra.mxu0 0
      %5797 = vmatpush.bf16.msra.mxu0 0
      %5798 = vmatpush.bf16.msra.mxu0 0
      %5799 = vmatpush.bf16.msra.mxu0 0
      %5800 = vmatpush.bf16.msra.mxu0 0
      %5801 = vmatpush.bf16.msra.mxu0 %v5789
      %5802 = vmatmul.bf16.gmra.mxu0 %v5786
      %v5803 = vpop.f32.mrf.mxu0
      %v5804 = vadd.f32 0.0, %v5803
      %v5805 = vpop.f32.mrf.mxu0
      %5806 = vdwg.mxu0
      %5807 = vmatpush.bf16.msra.mxu0 0
      %5808 = vmatpush.bf16.msra.mxu0 0
      %5809 = vmatpush.bf16.msra.mxu0 0
      %5810 = vmatpush.bf16.msra.mxu0 0
      %5811 = vmatpush.bf16.msra.mxu0 0
      %5812 = vmatpush.bf16.msra.mxu0 0
      %5813 = vmatpush.bf16.msra.mxu0 0
      %5814 = vmatpush.bf16.msra.mxu0 %v5792
      %5815 = vmatmul.bf16.gmra.mxu0 %v5786
      %v5816 = vpop.f32.mrf.mxu0
      %v5817 = vadd.f32 0.0, %v5816
      %v5818 = vpop.f32.mrf.mxu0
      %5819 = vdwg.mxu0
      %v5820 = vadd.f32 %v5744, %v5804
      %v5821 = vadd.f32 %v5745, %v5817
      %v5822 = vld [vmem:[%s12 + $0x20] sm:$0x11]
      %v5824 = vunpack.c.l.b16 %v5822
      %v5825 = vunpack.c.h.b16 %v5822
      %v5826 = vpack.c.b16 %v5824, %v5824
      %v5827 = vpack.c.b16 %v5825, %v5825
      %v5829 = vpack.i.b16 %v5826, %v5826
      %v5831 = vperm.slane %v5829, 0
      %v5833 = vpack.i.b16 %v5827, %v5827
      %v5835 = vperm.slane %v5833, 0
      %v5836 = vunpack.c.l.bf16 %v5831
      %v5837 = vunpack.c.l.bf16 %v5835
      %5840 = vrot.lane.b32.xlu0 %v5836, 68
      %v5841 = vpop.permute.xlu0 %5840
      %5842 = vrot.lane.b32.xlu0 %v5837, 68
      %v5843 = vpop.permute.xlu0 %5842
      %v5844 = vsel %vm3209, %v5841, %v5843
      %v5848 = vmul.f32 %v3315, %v5841
      %v5849 = vmul.f32 %v3316, %v5844
      %v5850 = vmul.f32 %v3332, %v5843
      %v5851 = vpack.c.bf16 %v5848, %v5848
      %v5852 = vpack.c.bf16 %v5849, %v5849
      %v5853 = vpack.c.bf16 %v5850, %v5850
      %s5854 = scalar_lea.vmem %s10, 64
      %v5855 = vld [vmem:[%s5854] sm:$0x3]
      %5859 = vrot.lane.b32.xlu0 %v5851, 60
      %v5860 = vpop.permute.xlu0 %5859
      %5861 = vrot.lane.b32.xlu0 %v5852, 60
      %v5862 = vpop.permute.xlu0 %5861
      %5863 = vrot.lane.b32.xlu0 %v5853, 60
      %v5864 = vpop.permute.xlu0 %5863
      %v5865 = vsel %vm3234, %v5860, %v5862
      %v5866 = vsel %vm3234, %v5862, %v5864
      %v5868 = vsel %vm3364, %v5855, 0
      %v5871 = vsel %vm3368, %v5865, 0
      %v5874 = vsel %vm3368, %v5866, 0
      %5876 = vmatpush.bf16.msra.mxu0 0
      %5877 = vmatpush.bf16.msra.mxu0 0
      %5878 = vmatpush.bf16.msra.mxu0 0
      %5879 = vmatpush.bf16.msra.mxu0 0
      %5880 = vmatpush.bf16.msra.mxu0 0
      %5881 = vmatpush.bf16.msra.mxu0 0
      %5882 = vmatpush.bf16.msra.mxu0 0
      %5883 = vmatpush.bf16.msra.mxu0 %v5871
      %5884 = vmatmul.bf16.gmra.mxu0 %v5868
      %v5885 = vpop.f32.mrf.mxu0
      %v5886 = vadd.f32 0.0, %v5885
      %v5887 = vpop.f32.mrf.mxu0
      %5888 = vdwg.mxu0
      %5889 = vmatpush.bf16.msra.mxu0 0
      %5890 = vmatpush.bf16.msra.mxu0 0
      %5891 = vmatpush.bf16.msra.mxu0 0
      %5892 = vmatpush.bf16.msra.mxu0 0
      %5893 = vmatpush.bf16.msra.mxu0 0
      %5894 = vmatpush.bf16.msra.mxu0 0
      %5895 = vmatpush.bf16.msra.mxu0 0
      %5896 = vmatpush.bf16.msra.mxu0 %v5874
      %5897 = vmatmul.bf16.gmra.mxu0 %v5868
      %v5898 = vpop.f32.mrf.mxu0
      %v5899 = vadd.f32 0.0, %v5898
      %v5900 = vpop.f32.mrf.mxu0
      %5901 = vdwg.mxu0
      %v5902 = vadd.f32 %v5820, %v5886
      %v5903 = vadd.f32 %v5821, %v5899
      %v5904 = vshrl.u32 %v5826, 16
      %v5905 = vpack.i.b16 %v5904, %v5904
      %v5907 = vperm.slane %v5905, 0
      %v5908 = vshrl.u32 %v5827, 16
      %v5909 = vpack.i.b16 %v5908, %v5908
      %v5911 = vperm.slane %v5909, 0
      %v5912 = vunpack.c.l.bf16 %v5907
      %v5913 = vunpack.c.l.bf16 %v5911
      %5916 = vrot.lane.b32.xlu0 %v5912, 69
      %v5917 = vpop.permute.xlu0 %5916
      %5918 = vrot.lane.b32.xlu0 %v5913, 69
      %v5919 = vpop.permute.xlu0 %5918
      %vm5920 = vcmask 564224
      %v5921 = vsel %vm5920, %v5917, %v5919
      %v5925 = vmul.f32 %v3315, %v5917
      %v5926 = vmul.f32 %v3316, %v5921
      %v5927 = vmul.f32 %v3332, %v5919
      %v5928 = vpack.c.bf16 %v5925, %v5925
      %v5929 = vpack.c.bf16 %v5926, %v5926
      %v5930 = vpack.c.bf16 %v5927, %v5927
      %s5931 = scalar_lea.vmem %s10, 66
      %v5932 = vld [vmem:[%s5931] sm:$0x3]
      %5936 = vrot.lane.b32.xlu0 %v5928, 59
      %v5937 = vpop.permute.xlu0 %5936
      %5938 = vrot.lane.b32.xlu0 %v5929, 59
      %v5939 = vpop.permute.xlu0 %5938
      %5940 = vrot.lane.b32.xlu0 %v5930, 59
      %v5941 = vpop.permute.xlu0 %5940
      %vm5942 = vcmask 482304
      %v5943 = vsel %vm5942, %v5937, %v5939
      %v5944 = vsel %vm5942, %v5939, %v5941
      %v5946 = vsel %vm3364, %v5932, 0
      %v5949 = vsel %vm3368, %v5943, 0
      %v5952 = vsel %vm3368, %v5944, 0
      %5954 = vmatpush.bf16.msra.mxu0 0
      %5955 = vmatpush.bf16.msra.mxu0 0
      %5956 = vmatpush.bf16.msra.mxu0 0
      %5957 = vmatpush.bf16.msra.mxu0 0
      %5958 = vmatpush.bf16.msra.mxu0 0
      %5959 = vmatpush.bf16.msra.mxu0 0
      %5960 = vmatpush.bf16.msra.mxu0 0
      %5961 = vmatpush.bf16.msra.mxu0 %v5949
      %5962 = vmatmul.bf16.gmra.mxu0 %v5946
      %v5963 = vpop.f32.mrf.mxu0
      %v5964 = vadd.f32 0.0, %v5963
      %v5965 = vpop.f32.mrf.mxu0
      %5966 = vdwg.mxu0
      %5967 = vmatpush.bf16.msra.mxu0 0
      %5968 = vmatpush.bf16.msra.mxu0 0
      %5969 = vmatpush.bf16.msra.mxu0 0
      %5970 = vmatpush.bf16.msra.mxu0 0
      %5971 = vmatpush.bf16.msra.mxu0 0
      %5972 = vmatpush.bf16.msra.mxu0 0
      %5973 = vmatpush.bf16.msra.mxu0 0
      %5974 = vmatpush.bf16.msra.mxu0 %v5952
      %5975 = vmatmul.bf16.gmra.mxu0 %v5946
      %v5976 = vpop.f32.mrf.mxu0
      %v5977 = vadd.f32 0.0, %v5976
      %v5978 = vpop.f32.mrf.mxu0
      %5979 = vdwg.mxu0
      %v5980 = vadd.f32 %v5902, %v5964
      %v5981 = vadd.f32 %v5903, %v5977
      %v5982 = vld [vmem:[%s12 + $0x20] sm:$0x22]
      %v5984 = vunpack.c.l.b16 %v5982
      %v5985 = vunpack.c.h.b16 %v5982
      %v5986 = vpack.c.b16 %v5984, %v5984
      %v5987 = vpack.c.b16 %v5985, %v5985
      %v5989 = vpack.i.b16 %v5986, %v5986
      %v5991 = vperm.slane %v5989, 1
      %v5993 = vpack.i.b16 %v5987, %v5987
      %v5995 = vperm.slane %v5993, 1
      %v5996 = vunpack.c.l.bf16 %v5991
      %v5997 = vunpack.c.l.bf16 %v5995
      %6000 = vrot.lane.b32.xlu0 %v5996, 70
      %v6001 = vpop.permute.xlu0 %6000
      %6002 = vrot.lane.b32.xlu0 %v5997, 70
      %v6003 = vpop.permute.xlu0 %6002
      %vm6004 = vcmask 572416
      %v6005 = vsel %vm6004, %v6001, %v6003
      %v6009 = vmul.f32 %v3315, %v6001
      %v6010 = vmul.f32 %v3316, %v6005
      %v6011 = vmul.f32 %v3332, %v6003
      %v6012 = vpack.c.bf16 %v6009, %v6009
      %v6013 = vpack.c.bf16 %v6010, %v6010
      %v6014 = vpack.c.bf16 %v6011, %v6011
      %s6015 = scalar_lea.vmem %s10, 68
      %v6016 = vld [vmem:[%s6015] sm:$0x3]
      %6020 = vrot.lane.b32.xlu0 %v6012, 58
      %v6021 = vpop.permute.xlu0 %6020
      %6022 = vrot.lane.b32.xlu0 %v6013, 58
      %v6023 = vpop.permute.xlu0 %6022
      %6024 = vrot.lane.b32.xlu0 %v6014, 58
      %v6025 = vpop.permute.xlu0 %6024
      %vm6026 = vcmask 474112
      %v6027 = vsel %vm6026, %v6021, %v6023
      %v6028 = vsel %vm6026, %v6023, %v6025
      %v6030 = vsel %vm3364, %v6016, 0
      %v6033 = vsel %vm3368, %v6027, 0
      %v6036 = vsel %vm3368, %v6028, 0
      %6038 = vmatpush.bf16.msra.mxu0 0
      %6039 = vmatpush.bf16.msra.mxu0 0
      %6040 = vmatpush.bf16.msra.mxu0 0
      %6041 = vmatpush.bf16.msra.mxu0 0
      %6042 = vmatpush.bf16.msra.mxu0 0
      %6043 = vmatpush.bf16.msra.mxu0 0
      %6044 = vmatpush.bf16.msra.mxu0 0
      %6045 = vmatpush.bf16.msra.mxu0 %v6033
      %6046 = vmatmul.bf16.gmra.mxu0 %v6030
      %v6047 = vpop.f32.mrf.mxu0
      %v6048 = vadd.f32 0.0, %v6047
      %v6049 = vpop.f32.mrf.mxu0
      %6050 = vdwg.mxu0
      %6051 = vmatpush.bf16.msra.mxu0 0
      %6052 = vmatpush.bf16.msra.mxu0 0
      %6053 = vmatpush.bf16.msra.mxu0 0
      %6054 = vmatpush.bf16.msra.mxu0 0
      %6055 = vmatpush.bf16.msra.mxu0 0
      %6056 = vmatpush.bf16.msra.mxu0 0
      %6057 = vmatpush.bf16.msra.mxu0 0
      %6058 = vmatpush.bf16.msra.mxu0 %v6036
      %6059 = vmatmul.bf16.gmra.mxu0 %v6030
      %v6060 = vpop.f32.mrf.mxu0
      %v6061 = vadd.f32 0.0, %v6060
      %v6062 = vpop.f32.mrf.mxu0
      %6063 = vdwg.mxu0
      %v6064 = vadd.f32 %v5980, %v6048
      %v6065 = vadd.f32 %v5981, %v6061
      %v6066 = vshrl.u32 %v5986, 16
      %v6067 = vpack.i.b16 %v6066, %v6066
      %v6069 = vperm.slane %v6067, 1
      %v6070 = vshrl.u32 %v5987, 16
      %v6071 = vpack.i.b16 %v6070, %v6070
      %v6073 = vperm.slane %v6071, 1
      %v6074 = vunpack.c.l.bf16 %v6069
      %v6075 = vunpack.c.l.bf16 %v6073
      %6078 = vrot.lane.b32.xlu0 %v6074, 80
      %v6079 = vpop.permute.xlu0 %6078
      %6080 = vrot.lane.b32.xlu0 %v6075, 80
      %v6081 = vpop.permute.xlu0 %6080
      %vm6082 = vcmask 654336
      %v6083 = vsel %vm6082, %v6079, %v6081
      %v6087 = vmul.f32 %v3315, %v6079
      %v6088 = vmul.f32 %v3316, %v6083
      %v6089 = vmul.f32 %v3332, %v6081
      %v6090 = vpack.c.bf16 %v6087, %v6087
      %v6091 = vpack.c.bf16 %v6088, %v6088
      %v6092 = vpack.c.bf16 %v6089, %v6089
      %s6093 = scalar_lea.vmem %s10, 70
      %v6094 = vld [vmem:[%s6093] sm:$0x3]
      %6098 = vrot.lane.b32.xlu0 %v6090, 48
      %v6099 = vpop.permute.xlu0 %6098
      %6100 = vrot.lane.b32.xlu0 %v6091, 48
      %v6101 = vpop.permute.xlu0 %6100
      %6102 = vrot.lane.b32.xlu0 %v6092, 48
      %v6103 = vpop.permute.xlu0 %6102
      %vm6104 = vcmask 392192
      %v6105 = vsel %vm6104, %v6099, %v6101
      %v6106 = vsel %vm6104, %v6101, %v6103
      %v6108 = vsel %vm3364, %v6094, 0
      %v6111 = vsel %vm3368, %v6105, 0
      %v6114 = vsel %vm3368, %v6106, 0
      %6116 = vmatpush.bf16.msra.mxu0 0
      %6117 = vmatpush.bf16.msra.mxu0 0
      %6118 = vmatpush.bf16.msra.mxu0 0
      %6119 = vmatpush.bf16.msra.mxu0 0
      %6120 = vmatpush.bf16.msra.mxu0 0
      %6121 = vmatpush.bf16.msra.mxu0 0
      %6122 = vmatpush.bf16.msra.mxu0 0
      %6123 = vmatpush.bf16.msra.mxu0 %v6111
      %6124 = vmatmul.bf16.gmra.mxu0 %v6108
      %v6125 = vpop.f32.mrf.mxu0
      %v6126 = vadd.f32 0.0, %v6125
      %v6127 = vpop.f32.mrf.mxu0
      %6128 = vdwg.mxu0
      %6129 = vmatpush.bf16.msra.mxu0 0
      %6130 = vmatpush.bf16.msra.mxu0 0
      %6131 = vmatpush.bf16.msra.mxu0 0
      %6132 = vmatpush.bf16.msra.mxu0 0
      %6133 = vmatpush.bf16.msra.mxu0 0
      %6134 = vmatpush.bf16.msra.mxu0 0
      %6135 = vmatpush.bf16.msra.mxu0 0
      %6136 = vmatpush.bf16.msra.mxu0 %v6114
      %6137 = vmatmul.bf16.gmra.mxu0 %v6108
      %v6138 = vpop.f32.mrf.mxu0
      %v6139 = vadd.f32 0.0, %v6138
      %v6140 = vpop.f32.mrf.mxu0
      %6141 = vdwg.mxu0
      %v6142 = vadd.f32 %v6064, %v6126
      %v6143 = vadd.f32 %v6065, %v6139
      %v6144 = vld [vmem:[%s12 + $0x20] sm:$0x44]
      %v6146 = vunpack.c.l.b16 %v6144
      %v6147 = vunpack.c.h.b16 %v6144
      %v6148 = vpack.c.b16 %v6146, %v6146
      %v6149 = vpack.c.b16 %v6147, %v6147
      %v6151 = vpack.i.b16 %v6148, %v6148
      %v6153 = vperm.slane %v6151, 2
      %v6155 = vpack.i.b16 %v6149, %v6149
      %v6157 = vperm.slane %v6155, 2
      %v6158 = vunpack.c.l.bf16 %v6153
      %v6159 = vunpack.c.l.bf16 %v6157
      %6162 = vrot.lane.b32.xlu0 %v6158, 81
      %v6163 = vpop.permute.xlu0 %6162
      %6164 = vrot.lane.b32.xlu0 %v6159, 81
      %v6165 = vpop.permute.xlu0 %6164
      %vm6166 = vcmask 662528
      %v6167 = vsel %vm6166, %v6163, %v6165
      %v6171 = vmul.f32 %v3315, %v6163
      %v6172 = vmul.f32 %v3316, %v6167
      %v6173 = vmul.f32 %v3332, %v6165
      %v6174 = vpack.c.bf16 %v6171, %v6171
      %v6175 = vpack.c.bf16 %v6172, %v6172
      %v6176 = vpack.c.bf16 %v6173, %v6173
      %s6177 = scalar_lea.vmem %s10, 72
      %v6178 = vld [vmem:[%s6177] sm:$0x3]
      %6182 = vrot.lane.b32.xlu0 %v6174, 47
      %v6183 = vpop.permute.xlu0 %6182
      %6184 = vrot.lane.b32.xlu0 %v6175, 47
      %v6185 = vpop.permute.xlu0 %6184
      %6186 = vrot.lane.b32.xlu0 %v6176, 47
      %v6187 = vpop.permute.xlu0 %6186
      %vm6188 = vcmask 384000
      %v6189 = vsel %vm6188, %v6183, %v6185
      %v6190 = vsel %vm6188, %v6185, %v6187
      %v6192 = vsel %vm3364, %v6178, 0
      %v6195 = vsel %vm3368, %v6189, 0
      %v6198 = vsel %vm3368, %v6190, 0
      %6200 = vmatpush.bf16.msra.mxu0 0
      %6201 = vmatpush.bf16.msra.mxu0 0
      %6202 = vmatpush.bf16.msra.mxu0 0
      %6203 = vmatpush.bf16.msra.mxu0 0
      %6204 = vmatpush.bf16.msra.mxu0 0
      %6205 = vmatpush.bf16.msra.mxu0 0
      %6206 = vmatpush.bf16.msra.mxu0 0
      %6207 = vmatpush.bf16.msra.mxu0 %v6195
      %6208 = vmatmul.bf16.gmra.mxu0 %v6192
      %v6209 = vpop.f32.mrf.mxu0
      %v6210 = vadd.f32 0.0, %v6209
      %v6211 = vpop.f32.mrf.mxu0
      %6212 = vdwg.mxu0
      %6213 = vmatpush.bf16.msra.mxu0 0
      %6214 = vmatpush.bf16.msra.mxu0 0
      %6215 = vmatpush.bf16.msra.mxu0 0
      %6216 = vmatpush.bf16.msra.mxu0 0
      %6217 = vmatpush.bf16.msra.mxu0 0
      %6218 = vmatpush.bf16.msra.mxu0 0
      %6219 = vmatpush.bf16.msra.mxu0 0
      %6220 = vmatpush.bf16.msra.mxu0 %v6198
      %6221 = vmatmul.bf16.gmra.mxu0 %v6192
      %v6222 = vpop.f32.mrf.mxu0
      %v6223 = vadd.f32 0.0, %v6222
      %v6224 = vpop.f32.mrf.mxu0
      %6225 = vdwg.mxu0
      %v6226 = vadd.f32 %v6142, %v6210
      %v6227 = vadd.f32 %v6143, %v6223
      %v6228 = vshrl.u32 %v6148, 16
      %v6229 = vpack.i.b16 %v6228, %v6228
      %v6231 = vperm.slane %v6229, 2
      %v6232 = vshrl.u32 %v6149, 16
      %v6233 = vpack.i.b16 %v6232, %v6232
      %v6235 = vperm.slane %v6233, 2
      %v6236 = vunpack.c.l.bf16 %v6231
      %v6237 = vunpack.c.l.bf16 %v6235
      %6240 = vrot.lane.b32.xlu0 %v6236, 82
      %v6241 = vpop.permute.xlu0 %6240
      %6242 = vrot.lane.b32.xlu0 %v6237, 82
      %v6243 = vpop.permute.xlu0 %6242
      %vm6244 = vcmask 670720
      %v6245 = vsel %vm6244, %v6241, %v6243
      %v6249 = vmul.f32 %v3315, %v6241
      %v6250 = vmul.f32 %v3316, %v6245
      %v6251 = vmul.f32 %v3332, %v6243
      %v6252 = vpack.c.bf16 %v6249, %v6249
      %v6253 = vpack.c.bf16 %v6250, %v6250
      %v6254 = vpack.c.bf16 %v6251, %v6251
      %s6255 = scalar_lea.vmem %s10, 74
      %v6256 = vld [vmem:[%s6255] sm:$0x3]
      %6260 = vrot.lane.b32.xlu0 %v6252, 46
      %v6261 = vpop.permute.xlu0 %6260
      %6262 = vrot.lane.b32.xlu0 %v6253, 46
      %v6263 = vpop.permute.xlu0 %6262
      %6264 = vrot.lane.b32.xlu0 %v6254, 46
      %v6265 = vpop.permute.xlu0 %6264
      %vm6266 = vcmask 375808
      %v6267 = vsel %vm6266, %v6261, %v6263
      %v6268 = vsel %vm6266, %v6263, %v6265
      %v6270 = vsel %vm3364, %v6256, 0
      %v6273 = vsel %vm3368, %v6267, 0
      %v6276 = vsel %vm3368, %v6268, 0
      %6278 = vmatpush.bf16.msra.mxu0 0
      %6279 = vmatpush.bf16.msra.mxu0 0
      %6280 = vmatpush.bf16.msra.mxu0 0
      %6281 = vmatpush.bf16.msra.mxu0 0
      %6282 = vmatpush.bf16.msra.mxu0 0
      %6283 = vmatpush.bf16.msra.mxu0 0
      %6284 = vmatpush.bf16.msra.mxu0 0
      %6285 = vmatpush.bf16.msra.mxu0 %v6273
      %6286 = vmatmul.bf16.gmra.mxu0 %v6270
      %v6287 = vpop.f32.mrf.mxu0
      %v6288 = vadd.f32 0.0, %v6287
      %v6289 = vpop.f32.mrf.mxu0
      %6290 = vdwg.mxu0
      %6291 = vmatpush.bf16.msra.mxu0 0
      %6292 = vmatpush.bf16.msra.mxu0 0
      %6293 = vmatpush.bf16.msra.mxu0 0
      %6294 = vmatpush.bf16.msra.mxu0 0
      %6295 = vmatpush.bf16.msra.mxu0 0
      %6296 = vmatpush.bf16.msra.mxu0 0
      %6297 = vmatpush.bf16.msra.mxu0 0
      %6298 = vmatpush.bf16.msra.mxu0 %v6276
      %6299 = vmatmul.bf16.gmra.mxu0 %v6270
      %v6300 = vpop.f32.mrf.mxu0
      %v6301 = vadd.f32 0.0, %v6300
      %v6302 = vpop.f32.mrf.mxu0
      %6303 = vdwg.mxu0
      %v6304 = vadd.f32 %v6226, %v6288
      %v6305 = vadd.f32 %v6227, %v6301
      %v6306 = vld [vmem:[%s12 + $0x20] sm:$0x88]
      %v6308 = vunpack.c.l.b16 %v6306
      %v6309 = vunpack.c.h.b16 %v6306
      %v6310 = vpack.c.b16 %v6308, %v6308
      %v6311 = vpack.c.b16 %v6309, %v6309
      %v6313 = vpack.i.b16 %v6310, %v6310
      %v6315 = vperm.slane %v6313, 3
      %v6317 = vpack.i.b16 %v6311, %v6311
      %v6319 = vperm.slane %v6317, 3
      %v6320 = vunpack.c.l.bf16 %v6315
      %v6321 = vunpack.c.l.bf16 %v6319
      %6324 = vrot.lane.b32.xlu0 %v6320, 83
      %v6325 = vpop.permute.xlu0 %6324
      %6326 = vrot.lane.b32.xlu0 %v6321, 83
      %v6327 = vpop.permute.xlu0 %6326
      %vm6328 = vcmask 678912
      %v6329 = vsel %vm6328, %v6325, %v6327
      %v6333 = vmul.f32 %v3315, %v6325
      %v6334 = vmul.f32 %v3316, %v6329
      %v6335 = vmul.f32 %v3332, %v6327
      %v6336 = vpack.c.bf16 %v6333, %v6333
      %v6337 = vpack.c.bf16 %v6334, %v6334
      %v6338 = vpack.c.bf16 %v6335, %v6335
      %s6339 = scalar_lea.vmem %s10, 76
      %v6340 = vld [vmem:[%s6339] sm:$0x3]
      %6344 = vrot.lane.b32.xlu0 %v6336, 45
      %v6345 = vpop.permute.xlu0 %6344
      %6346 = vrot.lane.b32.xlu0 %v6337, 45
      %v6347 = vpop.permute.xlu0 %6346
      %6348 = vrot.lane.b32.xlu0 %v6338, 45
      %v6349 = vpop.permute.xlu0 %6348
      %vm6350 = vcmask 367616
      %v6351 = vsel %vm6350, %v6345, %v6347
      %v6352 = vsel %vm6350, %v6347, %v6349
      %v6354 = vsel %vm3364, %v6340, 0
      %v6357 = vsel %vm3368, %v6351, 0
      %v6360 = vsel %vm3368, %v6352, 0
      %6362 = vmatpush.bf16.msra.mxu0 0
      %6363 = vmatpush.bf16.msra.mxu0 0
      %6364 = vmatpush.bf16.msra.mxu0 0
      %6365 = vmatpush.bf16.msra.mxu0 0
      %6366 = vmatpush.bf16.msra.mxu0 0
      %6367 = vmatpush.bf16.msra.mxu0 0
      %6368 = vmatpush.bf16.msra.mxu0 0
      %6369 = vmatpush.bf16.msra.mxu0 %v6357
      %6370 = vmatmul.bf16.gmra.mxu0 %v6354
      %v6371 = vpop.f32.mrf.mxu0
      %v6372 = vadd.f32 0.0, %v6371
      %v6373 = vpop.f32.mrf.mxu0
      %6374 = vdwg.mxu0
      %6375 = vmatpush.bf16.msra.mxu0 0
      %6376 = vmatpush.bf16.msra.mxu0 0
      %6377 = vmatpush.bf16.msra.mxu0 0
      %6378 = vmatpush.bf16.msra.mxu0 0
      %6379 = vmatpush.bf16.msra.mxu0 0
      %6380 = vmatpush.bf16.msra.mxu0 0
      %6381 = vmatpush.bf16.msra.mxu0 0
      %6382 = vmatpush.bf16.msra.mxu0 %v6360
      %6383 = vmatmul.bf16.gmra.mxu0 %v6354
      %v6384 = vpop.f32.mrf.mxu0
      %v6385 = vadd.f32 0.0, %v6384
      %v6386 = vpop.f32.mrf.mxu0
      %6387 = vdwg.mxu0
      %v6388 = vadd.f32 %v6304, %v6372
      %v6389 = vadd.f32 %v6305, %v6385
      %v6390 = vshrl.u32 %v6310, 16
      %v6391 = vpack.i.b16 %v6390, %v6390
      %v6393 = vperm.slane %v6391, 3
      %v6394 = vshrl.u32 %v6311, 16
      %v6395 = vpack.i.b16 %v6394, %v6394
      %v6397 = vperm.slane %v6395, 3
      %v6398 = vunpack.c.l.bf16 %v6393
      %v6399 = vunpack.c.l.bf16 %v6397
      %6402 = vrot.lane.b32.xlu0 %v6398, 84
      %v6403 = vpop.permute.xlu0 %6402
      %6404 = vrot.lane.b32.xlu0 %v6399, 84
      %v6405 = vpop.permute.xlu0 %6404
      %vm6406 = vcmask 687104
      %v6407 = vsel %vm6406, %v6403, %v6405
      %v6411 = vmul.f32 %v3315, %v6403
      %v6412 = vmul.f32 %v3316, %v6407
      %v6413 = vmul.f32 %v3332, %v6405
      %v6414 = vpack.c.bf16 %v6411, %v6411
      %v6415 = vpack.c.bf16 %v6412, %v6412
      %v6416 = vpack.c.bf16 %v6413, %v6413
      %s6417 = scalar_lea.vmem %s10, 78
      %v6418 = vld [vmem:[%s6417] sm:$0x3]
      %6422 = vrot.lane.b32.xlu0 %v6414, 44
      %v6423 = vpop.permute.xlu0 %6422
      %6424 = vrot.lane.b32.xlu0 %v6415, 44
      %v6425 = vpop.permute.xlu0 %6424
      %6426 = vrot.lane.b32.xlu0 %v6416, 44
      %v6427 = vpop.permute.xlu0 %6426
      %vm6428 = vcmask 359424
      %v6429 = vsel %vm6428, %v6423, %v6425
      %v6430 = vsel %vm6428, %v6425, %v6427
      %v6432 = vsel %vm3364, %v6418, 0
      %v6435 = vsel %vm3368, %v6429, 0
      %v6438 = vsel %vm3368, %v6430, 0
      %6440 = vmatpush.bf16.msra.mxu0 0
      %6441 = vmatpush.bf16.msra.mxu0 0
      %6442 = vmatpush.bf16.msra.mxu0 0
      %6443 = vmatpush.bf16.msra.mxu0 0
      %6444 = vmatpush.bf16.msra.mxu0 0
      %6445 = vmatpush.bf16.msra.mxu0 0
      %6446 = vmatpush.bf16.msra.mxu0 0
      %6447 = vmatpush.bf16.msra.mxu0 %v6435
      %6448 = vmatmul.bf16.gmra.mxu0 %v6432
      %v6449 = vpop.f32.mrf.mxu0
      %v6450 = vadd.f32 0.0, %v6449
      %v6451 = vpop.f32.mrf.mxu0
      %6452 = vdwg.mxu0
      %6453 = vmatpush.bf16.msra.mxu0 0
      %6454 = vmatpush.bf16.msra.mxu0 0
      %6455 = vmatpush.bf16.msra.mxu0 0
      %6456 = vmatpush.bf16.msra.mxu0 0
      %6457 = vmatpush.bf16.msra.mxu0 0
      %6458 = vmatpush.bf16.msra.mxu0 0
      %6459 = vmatpush.bf16.msra.mxu0 0
      %6460 = vmatpush.bf16.msra.mxu0 %v6438
      %6461 = vmatmul.bf16.gmra.mxu0 %v6432
      %v6462 = vpop.f32.mrf.mxu0
      %v6463 = vadd.f32 0.0, %v6462
      %v6464 = vpop.f32.mrf.mxu0
      %6465 = vdwg.mxu0
      %v6466 = vadd.f32 %v6388, %v6450
      %v6467 = vadd.f32 %v6389, %v6463
      %v6468 = vld [vmem:[%s12 + $0x28] sm:$0x11]
      %v6470 = vunpack.c.l.b16 %v6468
      %v6471 = vunpack.c.h.b16 %v6468
      %v6472 = vpack.c.b16 %v6470, %v6470
      %v6473 = vpack.c.b16 %v6471, %v6471
      %v6475 = vpack.i.b16 %v6472, %v6472
      %v6477 = vperm.slane %v6475, 0
      %v6479 = vpack.i.b16 %v6473, %v6473
      %v6481 = vperm.slane %v6479, 0
      %v6482 = vunpack.c.l.bf16 %v6477
      %v6483 = vunpack.c.l.bf16 %v6481
      %6486 = vrot.lane.b32.xlu0 %v6482, 85
      %v6487 = vpop.permute.xlu0 %6486
      %6488 = vrot.lane.b32.xlu0 %v6483, 85
      %v6489 = vpop.permute.xlu0 %6488
      %vm6490 = vcmask 695296
      %v6491 = vsel %vm6490, %v6487, %v6489
      %v6495 = vmul.f32 %v3315, %v6487
      %v6496 = vmul.f32 %v3316, %v6491
      %v6497 = vmul.f32 %v3332, %v6489
      %v6498 = vpack.c.bf16 %v6495, %v6495
      %v6499 = vpack.c.bf16 %v6496, %v6496
      %v6500 = vpack.c.bf16 %v6497, %v6497
      %s6501 = scalar_lea.vmem %s10, 80
      %v6502 = vld [vmem:[%s6501] sm:$0x3]
      %6506 = vrot.lane.b32.xlu0 %v6498, 43
      %v6507 = vpop.permute.xlu0 %6506
      %6508 = vrot.lane.b32.xlu0 %v6499, 43
      %v6509 = vpop.permute.xlu0 %6508
      %6510 = vrot.lane.b32.xlu0 %v6500, 43
      %v6511 = vpop.permute.xlu0 %6510
      %vm6512 = vcmask 351232
      %v6513 = vsel %vm6512, %v6507, %v6509
      %v6514 = vsel %vm6512, %v6509, %v6511
      %v6516 = vsel %vm3364, %v6502, 0
      %v6519 = vsel %vm3368, %v6513, 0
      %v6522 = vsel %vm3368, %v6514, 0
      %6524 = vmatpush.bf16.msra.mxu0 0
      %6525 = vmatpush.bf16.msra.mxu0 0
      %6526 = vmatpush.bf16.msra.mxu0 0
      %6527 = vmatpush.bf16.msra.mxu0 0
      %6528 = vmatpush.bf16.msra.mxu0 0
      %6529 = vmatpush.bf16.msra.mxu0 0
      %6530 = vmatpush.bf16.msra.mxu0 0
      %6531 = vmatpush.bf16.msra.mxu0 %v6519
      %6532 = vmatmul.bf16.gmra.mxu0 %v6516
      %v6533 = vpop.f32.mrf.mxu0
      %v6534 = vadd.f32 0.0, %v6533
      %v6535 = vpop.f32.mrf.mxu0
      %6536 = vdwg.mxu0
      %6537 = vmatpush.bf16.msra.mxu0 0
      %6538 = vmatpush.bf16.msra.mxu0 0
      %6539 = vmatpush.bf16.msra.mxu0 0
      %6540 = vmatpush.bf16.msra.mxu0 0
      %6541 = vmatpush.bf16.msra.mxu0 0
      %6542 = vmatpush.bf16.msra.mxu0 0
      %6543 = vmatpush.bf16.msra.mxu0 0
      %6544 = vmatpush.bf16.msra.mxu0 %v6522
      %6545 = vmatmul.bf16.gmra.mxu0 %v6516
      %v6546 = vpop.f32.mrf.mxu0
      %v6547 = vadd.f32 0.0, %v6546
      %v6548 = vpop.f32.mrf.mxu0
      %6549 = vdwg.mxu0
      %v6550 = vadd.f32 %v6466, %v6534
      %v6551 = vadd.f32 %v6467, %v6547
      %v6552 = vshrl.u32 %v6472, 16
      %v6553 = vpack.i.b16 %v6552, %v6552
      %v6555 = vperm.slane %v6553, 0
      %v6556 = vshrl.u32 %v6473, 16
      %v6557 = vpack.i.b16 %v6556, %v6556
      %v6559 = vperm.slane %v6557, 0
      %v6560 = vunpack.c.l.bf16 %v6555
      %v6561 = vunpack.c.l.bf16 %v6559
      %6564 = vrot.lane.b32.xlu0 %v6560, 86
      %v6565 = vpop.permute.xlu0 %6564
      %6566 = vrot.lane.b32.xlu0 %v6561, 86
      %v6567 = vpop.permute.xlu0 %6566
      %vm6568 = vcmask 703488
      %v6569 = vsel %vm6568, %v6565, %v6567
      %v6573 = vmul.f32 %v3315, %v6565
      %v6574 = vmul.f32 %v3316, %v6569
      %v6575 = vmul.f32 %v3332, %v6567
      %v6576 = vpack.c.bf16 %v6573, %v6573
      %v6577 = vpack.c.bf16 %v6574, %v6574
      %v6578 = vpack.c.bf16 %v6575, %v6575
      %s6579 = scalar_lea.vmem %s10, 82
      %v6580 = vld [vmem:[%s6579] sm:$0x3]
      %6584 = vrot.lane.b32.xlu0 %v6576, 42
      %v6585 = vpop.permute.xlu0 %6584
      %6586 = vrot.lane.b32.xlu0 %v6577, 42
      %v6587 = vpop.permute.xlu0 %6586
      %6588 = vrot.lane.b32.xlu0 %v6578, 42
      %v6589 = vpop.permute.xlu0 %6588
      %vm6590 = vcmask 343040
      %v6591 = vsel %vm6590, %v6585, %v6587
      %v6592 = vsel %vm6590, %v6587, %v6589
      %v6594 = vsel %vm3364, %v6580, 0
      %v6597 = vsel %vm3368, %v6591, 0
      %v6600 = vsel %vm3368, %v6592, 0
      %6602 = vmatpush.bf16.msra.mxu0 0
      %6603 = vmatpush.bf16.msra.mxu0 0
      %6604 = vmatpush.bf16.msra.mxu0 0
      %6605 = vmatpush.bf16.msra.mxu0 0
      %6606 = vmatpush.bf16.msra.mxu0 0
      %6607 = vmatpush.bf16.msra.mxu0 0
      %6608 = vmatpush.bf16.msra.mxu0 0
      %6609 = vmatpush.bf16.msra.mxu0 %v6597
      %6610 = vmatmul.bf16.gmra.mxu0 %v6594
      %v6611 = vpop.f32.mrf.mxu0
      %v6612 = vadd.f32 0.0, %v6611
      %v6613 = vpop.f32.mrf.mxu0
      %6614 = vdwg.mxu0
      %6615 = vmatpush.bf16.msra.mxu0 0
      %6616 = vmatpush.bf16.msra.mxu0 0
      %6617 = vmatpush.bf16.msra.mxu0 0
      %6618 = vmatpush.bf16.msra.mxu0 0
      %6619 = vmatpush.bf16.msra.mxu0 0
      %6620 = vmatpush.bf16.msra.mxu0 0
      %6621 = vmatpush.bf16.msra.mxu0 0
      %6622 = vmatpush.bf16.msra.mxu0 %v6600
      %6623 = vmatmul.bf16.gmra.mxu0 %v6594
      %v6624 = vpop.f32.mrf.mxu0
      %v6625 = vadd.f32 0.0, %v6624
      %v6626 = vpop.f32.mrf.mxu0
      %6627 = vdwg.mxu0
      %v6628 = vadd.f32 %v6550, %v6612
      %v6629 = vadd.f32 %v6551, %v6625
      %v6630 = vld [vmem:[%s12 + $0x28] sm:$0x22]
      %v6632 = vunpack.c.l.b16 %v6630
      %v6633 = vunpack.c.h.b16 %v6630
      %v6634 = vpack.c.b16 %v6632, %v6632
      %v6635 = vpack.c.b16 %v6633, %v6633
      %v6637 = vpack.i.b16 %v6634, %v6634
      %v6639 = vperm.slane %v6637, 1
      %v6641 = vpack.i.b16 %v6635, %v6635
      %v6643 = vperm.slane %v6641, 1
      %v6644 = vunpack.c.l.bf16 %v6639
      %v6645 = vunpack.c.l.bf16 %v6643
      %6648 = vrot.lane.b32.xlu0 %v6644, 96
      %v6649 = vpop.permute.xlu0 %6648
      %6650 = vrot.lane.b32.xlu0 %v6645, 96
      %v6651 = vpop.permute.xlu0 %6650
      %vm6652 = vcmask 785408
      %v6653 = vsel %vm6652, %v6649, %v6651
      %v6657 = vmul.f32 %v3315, %v6649
      %v6658 = vmul.f32 %v3316, %v6653
      %v6659 = vmul.f32 %v3332, %v6651
      %v6660 = vpack.c.bf16 %v6657, %v6657
      %v6661 = vpack.c.bf16 %v6658, %v6658
      %v6662 = vpack.c.bf16 %v6659, %v6659
      %s6663 = scalar_lea.vmem %s10, 84
      %v6664 = vld [vmem:[%s6663] sm:$0x3]
      %6668 = vrot.lane.b32.xlu0 %v6660, 32
      %v6669 = vpop.permute.xlu0 %6668
      %6670 = vrot.lane.b32.xlu0 %v6661, 32
      %v6671 = vpop.permute.xlu0 %6670
      %6672 = vrot.lane.b32.xlu0 %v6662, 32
      %v6673 = vpop.permute.xlu0 %6672
      %vm6674 = vcmask 261120
      %v6675 = vsel %vm6674, %v6669, %v6671
      %v6676 = vsel %vm6674, %v6671, %v6673
      %v6678 = vsel %vm3364, %v6664, 0
      %v6681 = vsel %vm3368, %v6675, 0
      %v6684 = vsel %vm3368, %v6676, 0
      %6686 = vmatpush.bf16.msra.mxu0 0
      %6687 = vmatpush.bf16.msra.mxu0 0
      %6688 = vmatpush.bf16.msra.mxu0 0
      %6689 = vmatpush.bf16.msra.mxu0 0
      %6690 = vmatpush.bf16.msra.mxu0 0
      %6691 = vmatpush.bf16.msra.mxu0 0
      %6692 = vmatpush.bf16.msra.mxu0 0
      %6693 = vmatpush.bf16.msra.mxu0 %v6681
      %6694 = vmatmul.bf16.gmra.mxu0 %v6678
      %v6695 = vpop.f32.mrf.mxu0
      %v6696 = vadd.f32 0.0, %v6695
      %v6697 = vpop.f32.mrf.mxu0
      %6698 = vdwg.mxu0
      %6699 = vmatpush.bf16.msra.mxu0 0
      %6700 = vmatpush.bf16.msra.mxu0 0
      %6701 = vmatpush.bf16.msra.mxu0 0
      %6702 = vmatpush.bf16.msra.mxu0 0
      %6703 = vmatpush.bf16.msra.mxu0 0
      %6704 = vmatpush.bf16.msra.mxu0 0
      %6705 = vmatpush.bf16.msra.mxu0 0
      %6706 = vmatpush.bf16.msra.mxu0 %v6684
      %6707 = vmatmul.bf16.gmra.mxu0 %v6678
      %v6708 = vpop.f32.mrf.mxu0
      %v6709 = vadd.f32 0.0, %v6708
      %v6710 = vpop.f32.mrf.mxu0
      %6711 = vdwg.mxu0
      %v6712 = vadd.f32 %v6628, %v6696
      %v6713 = vadd.f32 %v6629, %v6709
      %v6714 = vshrl.u32 %v6634, 16
      %v6715 = vpack.i.b16 %v6714, %v6714
      %v6717 = vperm.slane %v6715, 1
      %v6718 = vshrl.u32 %v6635, 16
      %v6719 = vpack.i.b16 %v6718, %v6718
      %v6721 = vperm.slane %v6719, 1
      %v6722 = vunpack.c.l.bf16 %v6717
      %v6723 = vunpack.c.l.bf16 %v6721
      %6726 = vrot.lane.b32.xlu0 %v6722, 97
      %v6727 = vpop.permute.xlu0 %6726
      %6728 = vrot.lane.b32.xlu0 %v6723, 97
      %v6729 = vpop.permute.xlu0 %6728
      %vm6730 = vcmask 793600
      %v6731 = vsel %vm6730, %v6727, %v6729
      %v6735 = vmul.f32 %v3315, %v6727
      %v6736 = vmul.f32 %v3316, %v6731
      %v6737 = vmul.f32 %v3332, %v6729
      %v6738 = vpack.c.bf16 %v6735, %v6735
      %v6739 = vpack.c.bf16 %v6736, %v6736
      %v6740 = vpack.c.bf16 %v6737, %v6737
      %s6741 = scalar_lea.vmem %s10, 86
      %v6742 = vld [vmem:[%s6741] sm:$0x3]
      %6746 = vrot.lane.b32.xlu0 %v6738, 31
      %v6747 = vpop.permute.xlu0 %6746
      %6748 = vrot.lane.b32.xlu0 %v6739, 31
      %v6749 = vpop.permute.xlu0 %6748
      %6750 = vrot.lane.b32.xlu0 %v6740, 31
      %v6751 = vpop.permute.xlu0 %6750
      %vm6752 = vcmask 252928
      %v6753 = vsel %vm6752, %v6747, %v6749
      %v6754 = vsel %vm6752, %v6749, %v6751
      %v6756 = vsel %vm3364, %v6742, 0
      %v6759 = vsel %vm3368, %v6753, 0
      %v6762 = vsel %vm3368, %v6754, 0
      %6764 = vmatpush.bf16.msra.mxu0 0
      %6765 = vmatpush.bf16.msra.mxu0 0
      %6766 = vmatpush.bf16.msra.mxu0 0
      %6767 = vmatpush.bf16.msra.mxu0 0
      %6768 = vmatpush.bf16.msra.mxu0 0
      %6769 = vmatpush.bf16.msra.mxu0 0
      %6770 = vmatpush.bf16.msra.mxu0 0
      %6771 = vmatpush.bf16.msra.mxu0 %v6759
      %6772 = vmatmul.bf16.gmra.mxu0 %v6756
      %v6773 = vpop.f32.mrf.mxu0
      %v6774 = vadd.f32 0.0, %v6773
      %v6775 = vpop.f32.mrf.mxu0
      %6776 = vdwg.mxu0
      %6777 = vmatpush.bf16.msra.mxu0 0
      %6778 = vmatpush.bf16.msra.mxu0 0
      %6779 = vmatpush.bf16.msra.mxu0 0
      %6780 = vmatpush.bf16.msra.mxu0 0
      %6781 = vmatpush.bf16.msra.mxu0 0
      %6782 = vmatpush.bf16.msra.mxu0 0
      %6783 = vmatpush.bf16.msra.mxu0 0
      %6784 = vmatpush.bf16.msra.mxu0 %v6762
      %6785 = vmatmul.bf16.gmra.mxu0 %v6756
      %v6786 = vpop.f32.mrf.mxu0
      %v6787 = vadd.f32 0.0, %v6786
      %v6788 = vpop.f32.mrf.mxu0
      %6789 = vdwg.mxu0
      %v6790 = vadd.f32 %v6712, %v6774
      %v6791 = vadd.f32 %v6713, %v6787
      %v6792 = vld [vmem:[%s12 + $0x28] sm:$0x44]
      %v6794 = vunpack.c.l.b16 %v6792
      %v6795 = vunpack.c.h.b16 %v6792
      %v6796 = vpack.c.b16 %v6794, %v6794
      %v6797 = vpack.c.b16 %v6795, %v6795
      %v6799 = vpack.i.b16 %v6796, %v6796
      %v6801 = vperm.slane %v6799, 2
      %v6803 = vpack.i.b16 %v6797, %v6797
      %v6805 = vperm.slane %v6803, 2
      %v6806 = vunpack.c.l.bf16 %v6801
      %v6807 = vunpack.c.l.bf16 %v6805
      %6810 = vrot.lane.b32.xlu0 %v6806, 98
      %v6811 = vpop.permute.xlu0 %6810
      %6812 = vrot.lane.b32.xlu0 %v6807, 98
      %v6813 = vpop.permute.xlu0 %6812
      %vm6814 = vcmask 801792
      %v6815 = vsel %vm6814, %v6811, %v6813
      %v6819 = vmul.f32 %v3315, %v6811
      %v6820 = vmul.f32 %v3316, %v6815
      %v6821 = vmul.f32 %v3332, %v6813
      %v6822 = vpack.c.bf16 %v6819, %v6819
      %v6823 = vpack.c.bf16 %v6820, %v6820
      %v6824 = vpack.c.bf16 %v6821, %v6821
      %s6825 = scalar_lea.vmem %s10, 88
      %v6826 = vld [vmem:[%s6825] sm:$0x3]
      %6830 = vrot.lane.b32.xlu0 %v6822, 30
      %v6831 = vpop.permute.xlu0 %6830
      %6832 = vrot.lane.b32.xlu0 %v6823, 30
      %v6833 = vpop.permute.xlu0 %6832
      %6834 = vrot.lane.b32.xlu0 %v6824, 30
      %v6835 = vpop.permute.xlu0 %6834
      %vm6836 = vcmask 244736
      %v6837 = vsel %vm6836, %v6831, %v6833
      %v6838 = vsel %vm6836, %v6833, %v6835
      %v6840 = vsel %vm3364, %v6826, 0
      %v6843 = vsel %vm3368, %v6837, 0
      %v6846 = vsel %vm3368, %v6838, 0
      %6848 = vmatpush.bf16.msra.mxu0 0
      %6849 = vmatpush.bf16.msra.mxu0 0
      %6850 = vmatpush.bf16.msra.mxu0 0
      %6851 = vmatpush.bf16.msra.mxu0 0
      %6852 = vmatpush.bf16.msra.mxu0 0
      %6853 = vmatpush.bf16.msra.mxu0 0
      %6854 = vmatpush.bf16.msra.mxu0 0
      %6855 = vmatpush.bf16.msra.mxu0 %v6843
      %6856 = vmatmul.bf16.gmra.mxu0 %v6840
      %v6857 = vpop.f32.mrf.mxu0
      %v6858 = vadd.f32 0.0, %v6857
      %v6859 = vpop.f32.mrf.mxu0
      %6860 = vdwg.mxu0
      %6861 = vmatpush.bf16.msra.mxu0 0
      %6862 = vmatpush.bf16.msra.mxu0 0
      %6863 = vmatpush.bf16.msra.mxu0 0
      %6864 = vmatpush.bf16.msra.mxu0 0
      %6865 = vmatpush.bf16.msra.mxu0 0
      %6866 = vmatpush.bf16.msra.mxu0 0
      %6867 = vmatpush.bf16.msra.mxu0 0
      %6868 = vmatpush.bf16.msra.mxu0 %v6846
      %6869 = vmatmul.bf16.gmra.mxu0 %v6840
      %v6870 = vpop.f32.mrf.mxu0
      %v6871 = vadd.f32 0.0, %v6870
      %v6872 = vpop.f32.mrf.mxu0
      %6873 = vdwg.mxu0
      %v6874 = vadd.f32 %v6790, %v6858
      %v6875 = vadd.f32 %v6791, %v6871
      %v6876 = vshrl.u32 %v6796, 16
      %v6877 = vpack.i.b16 %v6876, %v6876
      %v6879 = vperm.slane %v6877, 2
      %v6880 = vshrl.u32 %v6797, 16
      %v6881 = vpack.i.b16 %v6880, %v6880
      %v6883 = vperm.slane %v6881, 2
      %v6884 = vunpack.c.l.bf16 %v6879
      %v6885 = vunpack.c.l.bf16 %v6883
      %6888 = vrot.lane.b32.xlu0 %v6884, 99
      %v6889 = vpop.permute.xlu0 %6888
      %6890 = vrot.lane.b32.xlu0 %v6885, 99
      %v6891 = vpop.permute.xlu0 %6890
      %vm6892 = vcmask 809984
      %v6893 = vsel %vm6892, %v6889, %v6891
      %v6897 = vmul.f32 %v3315, %v6889
      %v6898 = vmul.f32 %v3316, %v6893
      %v6899 = vmul.f32 %v3332, %v6891
      %v6900 = vpack.c.bf16 %v6897, %v6897
      %v6901 = vpack.c.bf16 %v6898, %v6898
      %v6902 = vpack.c.bf16 %v6899, %v6899
      %s6903 = scalar_lea.vmem %s10, 90
      %v6904 = vld [vmem:[%s6903] sm:$0x3]
      %6908 = vrot.lane.b32.xlu0 %v6900, 29
      %v6909 = vpop.permute.xlu0 %6908
      %6910 = vrot.lane.b32.xlu0 %v6901, 29
      %v6911 = vpop.permute.xlu0 %6910
      %6912 = vrot.lane.b32.xlu0 %v6902, 29
      %v6913 = vpop.permute.xlu0 %6912
      %vm6914 = vcmask 236544
      %v6915 = vsel %vm6914, %v6909, %v6911
      %v6916 = vsel %vm6914, %v6911, %v6913
      %v6918 = vsel %vm3364, %v6904, 0
      %v6921 = vsel %vm3368, %v6915, 0
      %v6924 = vsel %vm3368, %v6916, 0
      %6926 = vmatpush.bf16.msra.mxu0 0
      %6927 = vmatpush.bf16.msra.mxu0 0
      %6928 = vmatpush.bf16.msra.mxu0 0
      %6929 = vmatpush.bf16.msra.mxu0 0
      %6930 = vmatpush.bf16.msra.mxu0 0
      %6931 = vmatpush.bf16.msra.mxu0 0
      %6932 = vmatpush.bf16.msra.mxu0 0
      %6933 = vmatpush.bf16.msra.mxu0 %v6921
      %6934 = vmatmul.bf16.gmra.mxu0 %v6918
      %v6935 = vpop.f32.mrf.mxu0
      %v6936 = vadd.f32 0.0, %v6935
      %v6937 = vpop.f32.mrf.mxu0
      %6938 = vdwg.mxu0
      %6939 = vmatpush.bf16.msra.mxu0 0
      %6940 = vmatpush.bf16.msra.mxu0 0
      %6941 = vmatpush.bf16.msra.mxu0 0
      %6942 = vmatpush.bf16.msra.mxu0 0
      %6943 = vmatpush.bf16.msra.mxu0 0
      %6944 = vmatpush.bf16.msra.mxu0 0
      %6945 = vmatpush.bf16.msra.mxu0 0
      %6946 = vmatpush.bf16.msra.mxu0 %v6924
      %6947 = vmatmul.bf16.gmra.mxu0 %v6918
      %v6948 = vpop.f32.mrf.mxu0
      %v6949 = vadd.f32 0.0, %v6948
      %v6950 = vpop.f32.mrf.mxu0
      %6951 = vdwg.mxu0
      %v6952 = vadd.f32 %v6874, %v6936
      %v6953 = vadd.f32 %v6875, %v6949
      %v6954 = vld [vmem:[%s12 + $0x28] sm:$0x88]
      %v6956 = vunpack.c.l.b16 %v6954
      %v6957 = vunpack.c.h.b16 %v6954
      %v6958 = vpack.c.b16 %v6956, %v6956
      %v6959 = vpack.c.b16 %v6957, %v6957
      %v6961 = vpack.i.b16 %v6958, %v6958
      %v6963 = vperm.slane %v6961, 3
      %v6965 = vpack.i.b16 %v6959, %v6959
      %v6967 = vperm.slane %v6965, 3
      %v6968 = vunpack.c.l.bf16 %v6963
      %v6969 = vunpack.c.l.bf16 %v6967
      %6972 = vrot.lane.b32.xlu0 %v6968, 100
      %v6973 = vpop.permute.xlu0 %6972
      %6974 = vrot.lane.b32.xlu0 %v6969, 100
      %v6975 = vpop.permute.xlu0 %6974
      %vm6976 = vcmask 818176
      %v6977 = vsel %vm6976, %v6973, %v6975
      %v6981 = vmul.f32 %v3315, %v6973
      %v6982 = vmul.f32 %v3316, %v6977
      %v6983 = vmul.f32 %v3332, %v6975
      %v6984 = vpack.c.bf16 %v6981, %v6981
      %v6985 = vpack.c.bf16 %v6982, %v6982
      %v6986 = vpack.c.bf16 %v6983, %v6983
      %s6987 = scalar_lea.vmem %s10, 92
      %v6988 = vld [vmem:[%s6987] sm:$0x3]
      %6992 = vrot.lane.b32.xlu0 %v6984, 28
      %v6993 = vpop.permute.xlu0 %6992
      %6994 = vrot.lane.b32.xlu0 %v6985, 28
      %v6995 = vpop.permute.xlu0 %6994
      %6996 = vrot.lane.b32.xlu0 %v6986, 28
      %v6997 = vpop.permute.xlu0 %6996
      %vm6998 = vcmask 228352
      %v6999 = vsel %vm6998, %v6993, %v6995
      %v7000 = vsel %vm6998, %v6995, %v6997
      %v7002 = vsel %vm3364, %v6988, 0
      %v7005 = vsel %vm3368, %v6999, 0
      %v7008 = vsel %vm3368, %v7000, 0
      %7010 = vmatpush.bf16.msra.mxu0 0
      %7011 = vmatpush.bf16.msra.mxu0 0
      %7012 = vmatpush.bf16.msra.mxu0 0
      %7013 = vmatpush.bf16.msra.mxu0 0
      %7014 = vmatpush.bf16.msra.mxu0 0
      %7015 = vmatpush.bf16.msra.mxu0 0
      %7016 = vmatpush.bf16.msra.mxu0 0
      %7017 = vmatpush.bf16.msra.mxu0 %v7005
      %7018 = vmatmul.bf16.gmra.mxu0 %v7002
      %v7019 = vpop.f32.mrf.mxu0
      %v7020 = vadd.f32 0.0, %v7019
      %v7021 = vpop.f32.mrf.mxu0
      %7022 = vdwg.mxu0
      %7023 = vmatpush.bf16.msra.mxu0 0
      %7024 = vmatpush.bf16.msra.mxu0 0
      %7025 = vmatpush.bf16.msra.mxu0 0
      %7026 = vmatpush.bf16.msra.mxu0 0
      %7027 = vmatpush.bf16.msra.mxu0 0
      %7028 = vmatpush.bf16.msra.mxu0 0
      %7029 = vmatpush.bf16.msra.mxu0 0
      %7030 = vmatpush.bf16.msra.mxu0 %v7008
      %7031 = vmatmul.bf16.gmra.mxu0 %v7002
      %v7032 = vpop.f32.mrf.mxu0
      %v7033 = vadd.f32 0.0, %v7032
      %v7034 = vpop.f32.mrf.mxu0
      %7035 = vdwg.mxu0
      %v7036 = vadd.f32 %v6952, %v7020
      %v7037 = vadd.f32 %v6953, %v7033
      %v7038 = vshrl.u32 %v6958, 16
      %v7039 = vpack.i.b16 %v7038, %v7038
      %v7041 = vperm.slane %v7039, 3
      %v7042 = vshrl.u32 %v6959, 16
      %v7043 = vpack.i.b16 %v7042, %v7042
      %v7045 = vperm.slane %v7043, 3
      %v7046 = vunpack.c.l.bf16 %v7041
      %v7047 = vunpack.c.l.bf16 %v7045
      %7050 = vrot.lane.b32.xlu0 %v7046, 101
      %v7051 = vpop.permute.xlu0 %7050
      %7052 = vrot.lane.b32.xlu0 %v7047, 101
      %v7053 = vpop.permute.xlu0 %7052
      %vm7054 = vcmask 826368
      %v7055 = vsel %vm7054, %v7051, %v7053
      %v7059 = vmul.f32 %v3315, %v7051
      %v7060 = vmul.f32 %v3316, %v7055
      %v7061 = vmul.f32 %v3332, %v7053
      %v7062 = vpack.c.bf16 %v7059, %v7059
      %v7063 = vpack.c.bf16 %v7060, %v7060
      %v7064 = vpack.c.bf16 %v7061, %v7061
      %s7065 = scalar_lea.vmem %s10, 94
      %v7066 = vld [vmem:[%s7065] sm:$0x3]
      %7070 = vrot.lane.b32.xlu0 %v7062, 27
      %v7071 = vpop.permute.xlu0 %7070
      %7072 = vrot.lane.b32.xlu0 %v7063, 27
      %v7073 = vpop.permute.xlu0 %7072
      %7074 = vrot.lane.b32.xlu0 %v7064, 27
      %v7075 = vpop.permute.xlu0 %7074
      %vm7076 = vcmask 220160
      %v7077 = vsel %vm7076, %v7071, %v7073
      %v7078 = vsel %vm7076, %v7073, %v7075
      %v7080 = vsel %vm3364, %v7066, 0
      %v7083 = vsel %vm3368, %v7077, 0
      %v7086 = vsel %vm3368, %v7078, 0
      %7088 = vmatpush.bf16.msra.mxu0 0
      %7089 = vmatpush.bf16.msra.mxu0 0
      %7090 = vmatpush.bf16.msra.mxu0 0
      %7091 = vmatpush.bf16.msra.mxu0 0
      %7092 = vmatpush.bf16.msra.mxu0 0
      %7093 = vmatpush.bf16.msra.mxu0 0
      %7094 = vmatpush.bf16.msra.mxu0 0
      %7095 = vmatpush.bf16.msra.mxu0 %v7083
      %7096 = vmatmul.bf16.gmra.mxu0 %v7080
      %v7097 = vpop.f32.mrf.mxu0
      %v7098 = vadd.f32 0.0, %v7097
      %v7099 = vpop.f32.mrf.mxu0
      %7100 = vdwg.mxu0
      %7101 = vmatpush.bf16.msra.mxu0 0
      %7102 = vmatpush.bf16.msra.mxu0 0
      %7103 = vmatpush.bf16.msra.mxu0 0
      %7104 = vmatpush.bf16.msra.mxu0 0
      %7105 = vmatpush.bf16.msra.mxu0 0
      %7106 = vmatpush.bf16.msra.mxu0 0
      %7107 = vmatpush.bf16.msra.mxu0 0
      %7108 = vmatpush.bf16.msra.mxu0 %v7086
      %7109 = vmatmul.bf16.gmra.mxu0 %v7080
      %v7110 = vpop.f32.mrf.mxu0
      %v7111 = vadd.f32 0.0, %v7110
      %v7112 = vpop.f32.mrf.mxu0
      %7113 = vdwg.mxu0
      %v7114 = vadd.f32 %v7036, %v7098
      %v7115 = vadd.f32 %v7037, %v7111
      %v7116 = vld [vmem:[%s12 + $0x30] sm:$0x11]
      %v7118 = vunpack.c.l.b16 %v7116
      %v7119 = vunpack.c.h.b16 %v7116
      %v7120 = vpack.c.b16 %v7118, %v7118
      %v7121 = vpack.c.b16 %v7119, %v7119
      %v7123 = vpack.i.b16 %v7120, %v7120
      %v7125 = vperm.slane %v7123, 0
      %v7127 = vpack.i.b16 %v7121, %v7121
      %v7129 = vperm.slane %v7127, 0
      %v7130 = vunpack.c.l.bf16 %v7125
      %v7131 = vunpack.c.l.bf16 %v7129
      %7134 = vrot.lane.b32.xlu0 %v7130, 102
      %v7135 = vpop.permute.xlu0 %7134
      %7136 = vrot.lane.b32.xlu0 %v7131, 102
      %v7137 = vpop.permute.xlu0 %7136
      %vm7138 = vcmask 834560
      %v7139 = vsel %vm7138, %v7135, %v7137
      %v7143 = vmul.f32 %v3315, %v7135
      %v7144 = vmul.f32 %v3316, %v7139
      %v7145 = vmul.f32 %v3332, %v7137
      %v7146 = vpack.c.bf16 %v7143, %v7143
      %v7147 = vpack.c.bf16 %v7144, %v7144
      %v7148 = vpack.c.bf16 %v7145, %v7145
      %s7149 = scalar_lea.vmem %s10, 96
      %v7150 = vld [vmem:[%s7149] sm:$0x3]
      %7154 = vrot.lane.b32.xlu0 %v7146, 26
      %v7155 = vpop.permute.xlu0 %7154
      %7156 = vrot.lane.b32.xlu0 %v7147, 26
      %v7157 = vpop.permute.xlu0 %7156
      %7158 = vrot.lane.b32.xlu0 %v7148, 26
      %v7159 = vpop.permute.xlu0 %7158
      %vm7160 = vcmask 211968
      %v7161 = vsel %vm7160, %v7155, %v7157
      %v7162 = vsel %vm7160, %v7157, %v7159
      %v7164 = vsel %vm3364, %v7150, 0
      %v7167 = vsel %vm3368, %v7161, 0
      %v7170 = vsel %vm3368, %v7162, 0
      %7172 = vmatpush.bf16.msra.mxu0 0
      %7173 = vmatpush.bf16.msra.mxu0 0
      %7174 = vmatpush.bf16.msra.mxu0 0
      %7175 = vmatpush.bf16.msra.mxu0 0
      %7176 = vmatpush.bf16.msra.mxu0 0
      %7177 = vmatpush.bf16.msra.mxu0 0
      %7178 = vmatpush.bf16.msra.mxu0 0
      %7179 = vmatpush.bf16.msra.mxu0 %v7167
      %7180 = vmatmul.bf16.gmra.mxu0 %v7164
      %v7181 = vpop.f32.mrf.mxu0
      %v7182 = vadd.f32 0.0, %v7181
      %v7183 = vpop.f32.mrf.mxu0
      %7184 = vdwg.mxu0
      %7185 = vmatpush.bf16.msra.mxu0 0
      %7186 = vmatpush.bf16.msra.mxu0 0
      %7187 = vmatpush.bf16.msra.mxu0 0
      %7188 = vmatpush.bf16.msra.mxu0 0
      %7189 = vmatpush.bf16.msra.mxu0 0
      %7190 = vmatpush.bf16.msra.mxu0 0
      %7191 = vmatpush.bf16.msra.mxu0 0
      %7192 = vmatpush.bf16.msra.mxu0 %v7170
      %7193 = vmatmul.bf16.gmra.mxu0 %v7164
      %v7194 = vpop.f32.mrf.mxu0
      %v7195 = vadd.f32 0.0, %v7194
      %v7196 = vpop.f32.mrf.mxu0
      %7197 = vdwg.mxu0
      %v7198 = vadd.f32 %v7114, %v7182
      %v7199 = vadd.f32 %v7115, %v7195
      %v7200 = vld [vmem:[%s11] sm:$0x7]
      %7202 = vset.pattern.permute.xlu0 0
      %7203 = vperm.xlu0 %7202, %v7200
      %v7204 = vpop.permute.xlu0 %7203
      %v7206 = vadd.f32 %v7198, %v7204
      %v7207 = vadd.f32 %v7199, %v7204
      %v7208 = vmul.f32 %v7206, 0.2
      %v7209 = vmul.f32 %v7207, 0.2
      %v7210 = vmax.f32 %v7206, %v7208
      %v7211 = vmax.f32 %v7207, %v7209
      %v7214 = vrot.slane %v7211, 4
      %v7215 = vsel %vm3368, %v7210, %v7214
      %7217 = vst [vmem:[%s440] sm:$0x77] %v7215
      %p7218 = scmp.lt.s32.totalorder %s24, 1
      %s7219 = scalar_select %p7218, %s24, 1
      %s7220 = smul.addr %s7219, 2
      %s7221 = smul.addr %s7220, 4
      %s7222 = scalar_lea.vmem %s13, %s7221
      // Predicated region
      $region73: #{decoder_forward.1} parent=71 // pred_check
        %p7223 = pneg %p320
      $region74: #{decoder_forward.1} parent=71 // pred_check_branch
        %7225 = sbr.rel (%p7223) target = $region76
      $region75: #{decoder_forward.1} parent=71 // pred_region
        _
      $region76: #{decoder_forward.1} parent=71 // pred_fallthru
        _
    $region72: #{decoder_forward.1} parent=5 // pred_fallthru
      _
    %p7226 = scmp.le.s32.totalorder 2, %s19
    // Predicated region
    $region77: #{decoder_forward.1} parent=5 // pred_check
      %p7227 = pneg %p7226
    $region78: #{decoder_forward.1} parent=5 // pred_check_branch
      %7229 = sbr.rel (%p7227) target = $region80
    $region79: #{decoder_forward.1} parent=5 // pred_region
      %s7230 = ssub.s32 %s19, 2
      // Predicated region
      $region81: #{decoder_forward.1} parent=79 // pred_check
        %p7231 = pneg %p326
      $region82: #{decoder_forward.1} parent=79 // pred_check_branch
        %7233 = sbr.rel (%p7231) target = $region84
      $region83: #{decoder_forward.1} parent=79 // pred_region
        %p7234 = scmp.lt.s32.totalorder %s25, 1
        %s7235 = scalar_select %p7234, %s25, 1
        %s7236 = smul.addr %s7235, 2
        %s7237 = smul.addr %s7236, 4
        %s7238 = scalar_lea.vmem %s13, %s7237
      $region84: #{decoder_forward.1} parent=79 // pred_fallthru
        _
    $region80: #{decoder_forward.1} parent=5 // pred_fallthru
      _
  $region6: #{decoder_forward.1} parent=0 // loop_footer
    %s23 = sadd.s32 1, %s19
  $region7: #{decoder_forward.1} parent=0 // loop_footer_branch
    %18 = sbr.rel target = $region3
  $region8: #{decoder_forward.1} parent=0 // loop_exit
    _

</llo_original>
